<compile_context>
chip_gen: v7x
topology: tpu7x:2x2x1
jax: 0.10.0
libtpu: 0.0.40
codegen_flags: <defaults>
</compile_context>

<pallas_src>
import functools
import math

import jax
import jax.numpy as jnp
from jax.experimental import pallas as pl
from jax.experimental.pallas import tpu as pltpu


def _bert_attention_kernel(layer_ref, q_ref, k_ref, v_ref, mask_ref,
                           wq_ref, bq_ref, wk_ref, bk_ref, wv_ref, bv_ref,
                           wo_ref, bo_ref, g_ref, beta_ref, o_ref,
                           *, num_heads, compute_dtype):
    tb, s, bn = q_ref.shape
    h_dim = v_ref.shape[-1]
    a = wq_ref.shape[-1]                       # all_head_size
    d = a // num_heads                         # attention_head_size
    scale = 1.0 / math.sqrt(d)
    rows = tb * s

    # Flatten (batch_block, seq) rows so the QKV projections fill the MXU.
    q_in = q_ref[...].reshape(rows, bn)
    k_in = k_ref[...].reshape(rows, bn)
    v_in = v_ref[...].reshape(rows, h_dim)

    q = jnp.dot(q_in, wq_ref[...], preferred_element_type=jnp.float32) + bq_ref[...]
    k = jnp.dot(k_in, wk_ref[...], preferred_element_type=jnp.float32) + bk_ref[...]
    v = jnp.dot(v_in, wv_ref[...], preferred_element_type=jnp.float32) + bv_ref[...]

    mask = mask_ref[...].astype(jnp.float32)   # (tb, 1, s) additive key mask

    # Accumulate the output projection per head:  context @ Wo == sum_h ctx_h @ Wo_h.
    # (Avoids lane-dim concatenation of the per-head contexts.)
    proj = bo_ref[...].astype(jnp.float32)     # (1, bn), broadcasts on first add
    for hh in range(num_heads):
        sl = slice(hh * d, (hh + 1) * d)
        qh = q[:, sl].astype(compute_dtype).reshape(tb, s, d)
        kh = k[:, sl].astype(compute_dtype).reshape(tb, s, d)
        vh = v[:, sl].astype(compute_dtype).reshape(tb, s, d)

        sc = jnp.einsum('bqd,bkd->bqk', qh, kh,
                        preferred_element_type=jnp.float32) * scale
        sc = sc + mask                                          # broadcast over queries
        m = jnp.max(sc, axis=-1, keepdims=True)
        e = jnp.exp(sc - m)
        p = e / jnp.sum(e, axis=-1, keepdims=True)              # softmax in f32

        ctx_h = jnp.einsum('bqk,bkd->bqd', p.astype(compute_dtype), vh,
                           preferred_element_type=jnp.float32)
        ctx_h = ctx_h.reshape(rows, d)
        proj = proj + jnp.dot(ctx_h.astype(compute_dtype), wo_ref[hh],
                              preferred_element_type=jnp.float32)

    # Residual + FakeBertLayerNorm (elementwise affine only), all in f32.
    y = proj + layer_ref[...].reshape(rows, bn).astype(jnp.float32)
    out = g_ref[...].astype(jnp.float32) * y + beta_ref[...].astype(jnp.float32)
    o_ref[...] = out.reshape(tb, s, bn).astype(o_ref.dtype)


@functools.partial(jax.jit, static_argnames=("num_heads", "tb", "compute_dtype"))
def bert_attention(layer_input, query_tensor, key_tensor, value_tensor,
                   attention_mask, wq, bq, wk, bk, wv, bv, wo, bo, ln_w, ln_b,
                   *, num_heads, tb=None, compute_dtype=jnp.float32):
    """Fused MobileBERT BertAttention forward.

    layer_input, query_tensor, key_tensor: [B, S, intra_bottleneck]
    value_tensor: [B, S, hidden_size]
    attention_mask: additive mask [B, 1, S] (0 = keep, large negative = masked).
    Returns attention_output: [B, S, intra_bottleneck].
    """
    B, S, BN = query_tensor.shape
    H = value_tensor.shape[-1]
    A = wq.shape[1]
    D = A // num_heads
    out_dtype = layer_input.dtype

    # Pick a batch-block size: ~256 MXU rows per grid step, but keep >= 2 grid
    # steps when possible so both v7x TensorCores stay busy.
    if tb is None:
        tb = max(1, 256 // S)
        tb = min(tb, B)
        if B >= 2:
            tb = min(tb, max(1, B // 2))

    # Pad batch up to a multiple of tb instead of asserting divisibility.
    Bp = -(-B // tb) * tb
    pad = Bp - B
    if pad:
        p3 = ((0, pad), (0, 0), (0, 0))
        layer_input = jnp.pad(layer_input, p3)
        query_tensor = jnp.pad(query_tensor, p3)
        key_tensor = jnp.pad(key_tensor, p3)
        value_tensor = jnp.pad(value_tensor, p3)
        attention_mask = jnp.pad(attention_mask, p3)

    # Cast MXU operands to compute_dtype (e.g. bf16 on v6e/v7x); epilogue stays f32.
    qd = query_tensor.astype(compute_dtype)
    kd = key_tensor.astype(compute_dtype)
    vd = value_tensor.astype(compute_dtype)
    wq_c = wq.astype(compute_dtype)
    wk_c = wk.astype(compute_dtype)
    wv_c = wv.astype(compute_dtype)
    wo_c = wo.reshape(num_heads, D, BN).astype(compute_dtype)   # split per head

    bq2 = bq.reshape(1, A).astype(jnp.float32)
    bk2 = bk.reshape(1, A).astype(jnp.float32)
    bv2 = bv.reshape(1, A).astype(jnp.float32)
    bo2 = bo.reshape(1, BN).astype(jnp.float32)
    g2 = ln_w.reshape(1, BN).astype(jnp.float32)
    beta2 = ln_b.reshape(1, BN).astype(jnp.float32)

    grid = (Bp // tb,)
    row3 = lambda i: (i, 0, 0)
    full2 = lambda i: (0, 0)
    full3 = lambda i: (0, 0, 0)

    kernel = functools.partial(_bert_attention_kernel,
                               num_heads=num_heads, compute_dtype=compute_dtype)

    out = pl.pallas_call(
        kernel,
        out_shape=jax.ShapeDtypeStruct((Bp, S, BN), out_dtype),
        grid_spec=pltpu.PrefetchScalarGridSpec(
            num_scalar_prefetch=0,
            grid=grid,
            in_specs=[
                pl.BlockSpec((tb, S, BN), row3),              # layer_input (residual)
                pl.BlockSpec((tb, S, BN), row3),              # query_tensor
                pl.BlockSpec((tb, S, BN), row3),              # key_tensor
                pl.BlockSpec((tb, S, H), row3),               # value_tensor
                pl.BlockSpec((tb, 1, S), row3),               # attention_mask
                pl.BlockSpec((BN, A), full2),                 # Wq
                pl.BlockSpec((1, A), full2),                  # bq
                pl.BlockSpec((BN, A), full2),                 # Wk
                pl.BlockSpec((1, A), full2),                  # bk
                pl.BlockSpec((H, A), full2),                  # Wv
                pl.BlockSpec((1, A), full2),                  # bv
                pl.BlockSpec((num_heads, D, BN), full3),      # Wo (per-head split)
                pl.BlockSpec((1, BN), full2),                 # bo
                pl.BlockSpec((1, BN), full2),                 # FakeLayerNorm weight
                pl.BlockSpec((1, BN), full2),                 # FakeLayerNorm bias
            ],
            out_specs=pl.BlockSpec((tb, S, BN), row3),
        ),
        compiler_params=pltpu.CompilerParams(
            dimension_semantics=("parallel",)),
    )(layer_input, qd, kd, vd, attention_mask,
      wq_c, bq2, wk_c, bk2, wv_c, bv2, wo_c, bo2, g2, beta2)

    return out[:B]


def _reference(layer_input, q_t, k_t, v_t, mask, wq, bq, wk, bk, wv, bv,
               wo, bo, ln_w, ln_b, num_heads):
    B, S, _ = q_t.shape
    A = wq.shape[1]
    D = A // num_heads
    q = q_t @ wq + bq
    k = k_t @ wk + bk
    v = v_t @ wv + bv

    def split(x):
        return x.reshape(B, S, num_heads, D).transpose(0, 2, 1, 3)

    qh, kh, vh = split(q), split(k), split(v)
    scores = jnp.einsum('bhqd,bhkd->bhqk', qh, kh) / math.sqrt(D)
    scores = scores + mask[:, :, None, :]            # (B,1,S) -> (B,1,1,S)
    probs = jax.nn.softmax(scores, axis=-1)
    ctx = jnp.einsum('bhqk,bhkd->bhqd', probs, vh)
    ctx = ctx.transpose(0, 2, 1, 3).reshape(B, S, A)
    proj = ctx @ wo + bo
    return ln_w * (proj + layer_input) + ln_b


if __name__ == "__main__":
    # Keep reference & kernel matmuls at full f32 precision for a tight check.
    jax.config.update("jax_default_matmul_precision", "highest")

    # Small MobileBERT-ish config (TPU lane aligned):
    #   intra_bottleneck_size = 128, hidden_size = 512, heads = 4, head_size = 32
    B, S = 2, 16
    BN, H, NH = 128, 512, 4
    A = BN

    key = jax.random.PRNGKey(0)
    ks = jax.random.split(key, 14)

    layer_input = jax.random.normal(ks[0], (B, S, BN), dtype=jnp.float32)
    query_tensor = jax.random.normal(ks[1], (B, S, BN), dtype=jnp.float32)
    key_tensor = jax.random.normal(ks[2], (B, S, BN), dtype=jnp.float32)
    value_tensor = jax.random.normal(ks[3], (B, S, H), dtype=jnp.float32)

    wq = jax.random.normal(ks[4], (BN, A), dtype=jnp.float32) / jnp.sqrt(BN)
    bq = jax.random.normal(ks[5], (A,), dtype=jnp.float32) * 0.02
    wk = jax.random.normal(ks[6], (BN, A), dtype=jnp.float32) / jnp.sqrt(BN)
    bk = jax.random.normal(ks[7], (A,), dtype=jnp.float32) * 0.02
    wv = jax.random.normal(ks[8], (H, A), dtype=jnp.float32) / jnp.sqrt(H)
    bv = jax.random.normal(ks[9], (A,), dtype=jnp.float32) * 0.02
    wo = jax.random.normal(ks[10], (A, BN), dtype=jnp.float32) / jnp.sqrt(A)
    bo = jax.random.normal(ks[11], (BN,), dtype=jnp.float32) * 0.02
    # FakeBertLayerNorm params (perturbed from the ones/zeros init so the
    # affine path is actually exercised by the check).
    ln_w = 1.0 + 0.1 * jax.random.normal(ks[12], (BN,), dtype=jnp.float32)
    ln_b = 0.02 * jax.random.normal(ks[13], (BN,), dtype=jnp.float32)

    # Additive key-padding mask (0 = attend, -1e9 = masked), like BERT's
    # extended attention mask, shape [B, 1, S].
    lengths = jnp.array([S, S - 5], dtype=jnp.int32)
    pos = jnp.arange(S)
    attention_mask = jnp.where(pos[None, :] < lengths[:, None], 0.0, -1e9)
    attention_mask = attention_mask.reshape(B, 1, S).astype(jnp.float32)

    out = bert_attention(layer_input, query_tensor, key_tensor, value_tensor,
                         attention_mask, wq, bq, wk, bk, wv, bv, wo, bo,
                         ln_w, ln_b, num_heads=NH)
    out = jax.block_until_ready(out)

    ref = _reference(layer_input, query_tensor, key_tensor, value_tensor,
                     attention_mask, wq, bq, wk, bk, wv, bv, wo, bo,
                     ln_w, ln_b, NH)
    assert out.shape == (B, S, BN)
    max_err = float(jnp.max(jnp.abs(out - ref)))
    assert jnp.allclose(out, ref, atol=2e-3, rtol=2e-3), f"mismatch, max|err|={max_err}"

    print("KERNEL_OK")
</pallas_src>

<mosaic_0001>
module attributes {stable_mosaic.version = 11 : i64} {
  func.func @_bert_attention_kernel(%arg0: i32, %arg1: memref<1x16x128xf32, #tpu.memory_space<vmem>>, %arg2: memref<1x16x128xf32, #tpu.memory_space<vmem>>, %arg3: memref<1x16x128xf32, #tpu.memory_space<vmem>>, %arg4: memref<1x16x512xf32, #tpu.memory_space<vmem>>, %arg5: memref<1x1x16xf32, #tpu.memory_space<vmem>>, %arg6: memref<128x128xf32, #tpu.memory_space<vmem>>, %arg7: memref<1x128xf32, #tpu.memory_space<vmem>>, %arg8: memref<128x128xf32, #tpu.memory_space<vmem>>, %arg9: memref<1x128xf32, #tpu.memory_space<vmem>>, %arg10: memref<512x128xf32, #tpu.memory_space<vmem>>, %arg11: memref<1x128xf32, #tpu.memory_space<vmem>>, %arg12: memref<4x32x128xf32, #tpu.memory_space<vmem>>, %arg13: memref<1x128xf32, #tpu.memory_space<vmem>>, %arg14: memref<1x128xf32, #tpu.memory_space<vmem>>, %arg15: memref<1x128xf32, #tpu.memory_space<vmem>>, %arg16: memref<1x16x128xf32, #tpu.memory_space<vmem>>) attributes {dimension_semantics = [#tpu.dimension_semantics<parallel>], iteration_bounds = array<i64: 2>, scalar_prefetch = 0 : i64, scratch_operands = 0 : i64, tpu.core_type = #tpu.core_type<tc>, window_params = [{transform_indices = @transform_0, window_bounds = array<i64: 1, 16, 128>}, {transform_indices = @transform_1, window_bounds = array<i64: 1, 16, 128>}, {transform_indices = @transform_2, window_bounds = array<i64: 1, 16, 128>}, {transform_indices = @transform_3, window_bounds = array<i64: 1, 16, 512>}, {transform_indices = @transform_4, window_bounds = array<i64: 1, 1, 16>}, {pipeline_mode = #tpu.pipeline_mode<synchronous>, transform_indices = @transform_5, window_bounds = array<i64: 128, 128>}, {pipeline_mode = #tpu.pipeline_mode<synchronous>, transform_indices = @transform_6, window_bounds = array<i64: 1, 128>}, {pipeline_mode = #tpu.pipeline_mode<synchronous>, transform_indices = @transform_7, window_bounds = array<i64: 128, 128>}, {pipeline_mode = #tpu.pipeline_mode<synchronous>, transform_indices = @transform_8, window_bounds = array<i64: 1, 128>}, {pipeline_mode = #tpu.pipeline_mode<synchronous>, transform_indices = @transform_9, window_bounds = array<i64: 512, 128>}, {pipeline_mode = #tpu.pipeline_mode<synchronous>, transform_indices = @transform_10, window_bounds = array<i64: 1, 128>}, {pipeline_mode = #tpu.pipeline_mode<synchronous>, transform_indices = @transform_11, window_bounds = array<i64: 4, 32, 128>}, {pipeline_mode = #tpu.pipeline_mode<synchronous>, transform_indices = @transform_12, window_bounds = array<i64: 1, 128>}, {pipeline_mode = #tpu.pipeline_mode<synchronous>, transform_indices = @transform_13, window_bounds = array<i64: 1, 128>}, {pipeline_mode = #tpu.pipeline_mode<synchronous>, transform_indices = @transform_14, window_bounds = array<i64: 1, 128>}, {transform_indices = @transform_15, window_bounds = array<i64: 1, 16, 128>}]} {
    %c0 = arith.constant 0 : index
    %c0_0 = arith.constant 0 : index
    %c0_1 = arith.constant 0 : index
    %0 = vector.load %arg2[%c0, %c0_0, %c0_1] : memref<1x16x128xf32, #tpu.memory_space<vmem>>, vector<1x16x128xf32>
    %1 = vector.shape_cast %0 : vector<1x16x128xf32> to vector<16x128xf32>
    %c0_2 = arith.constant 0 : index
    %c0_3 = arith.constant 0 : index
    %c0_4 = arith.constant 0 : index
    %2 = vector.load %arg3[%c0_2, %c0_3, %c0_4] : memref<1x16x128xf32, #tpu.memory_space<vmem>>, vector<1x16x128xf32>
    %3 = vector.shape_cast %2 : vector<1x16x128xf32> to vector<16x128xf32>
    %c0_5 = arith.constant 0 : index
    %c0_6 = arith.constant 0 : index
    %c0_7 = arith.constant 0 : index
    %4 = vector.load %arg4[%c0_5, %c0_6, %c0_7] : memref<1x16x512xf32, #tpu.memory_space<vmem>>, vector<1x16x512xf32>
    %5 = vector.shape_cast %4 : vector<1x16x512xf32> to vector<16x512xf32>
    %c0_8 = arith.constant 0 : index
    %c0_9 = arith.constant 0 : index
    %6 = vector.load %arg6[%c0_8, %c0_9] : memref<128x128xf32, #tpu.memory_space<vmem>>, vector<128x128xf32>
    %cst = arith.constant dense<0.000000e+00> : vector<16x128xf32>
    %7 = tpu.matmul %1, %6, %cst {dimension_numbers = #tpu.dot_dimension_numbers<[1], [0], [0], [1], [0, 0, 1, 1], [], []>, precision = #tpu.contract_precision<fp32>} : vector<16x128xf32>, vector<128x128xf32>, vector<16x128xf32> -> vector<16x128xf32>
    %c0_10 = arith.constant 0 : index
    %c0_11 = arith.constant 0 : index
    %8 = vector.load %arg7[%c0_10, %c0_11] : memref<1x128xf32, #tpu.memory_space<vmem>>, vector<1x128xf32>
    %9 = vector.broadcast %8 : vector<1x128xf32> to vector<16x128xf32>
    %10 = arith.addf %7, %9 : vector<16x128xf32>
    %c0_12 = arith.constant 0 : index
    %c0_13 = arith.constant 0 : index
    %11 = vector.load %arg8[%c0_12, %c0_13] : memref<128x128xf32, #tpu.memory_space<vmem>>, vector<128x128xf32>
    %cst_14 = arith.constant dense<0.000000e+00> : vector<16x128xf32>
    %12 = tpu.matmul %3, %11, %cst_14 {dimension_numbers = #tpu.dot_dimension_numbers<[1], [0], [0], [1], [0, 0, 1, 1], [], []>, precision = #tpu.contract_precision<fp32>} : vector<16x128xf32>, vector<128x128xf32>, vector<16x128xf32> -> vector<16x128xf32>
    %c0_15 = arith.constant 0 : index
    %c0_16 = arith.constant 0 : index
    %13 = vector.load %arg9[%c0_15, %c0_16] : memref<1x128xf32, #tpu.memory_space<vmem>>, vector<1x128xf32>
    %14 = vector.broadcast %13 : vector<1x128xf32> to vector<16x128xf32>
    %15 = arith.addf %12, %14 : vector<16x128xf32>
    %c0_17 = arith.constant 0 : index
    %c0_18 = arith.constant 0 : index
    %16 = vector.load %arg10[%c0_17, %c0_18] : memref<512x128xf32, #tpu.memory_space<vmem>>, vector<512x128xf32>
    %cst_19 = arith.constant dense<0.000000e+00> : vector<16x128xf32>
    %17 = tpu.matmul %5, %16, %cst_19 {dimension_numbers = #tpu.dot_dimension_numbers<[1], [0], [0], [1], [0, 0, 1, 1], [], []>, precision = #tpu.contract_precision<fp32>} : vector<16x512xf32>, vector<512x128xf32>, vector<16x128xf32> -> vector<16x128xf32>
    %c0_20 = arith.constant 0 : index
    %c0_21 = arith.constant 0 : index
    %18 = vector.load %arg11[%c0_20, %c0_21] : memref<1x128xf32, #tpu.memory_space<vmem>>, vector<1x128xf32>
    %19 = vector.broadcast %18 : vector<1x128xf32> to vector<16x128xf32>
    %20 = arith.addf %17, %19 : vector<16x128xf32>
    %c0_22 = arith.constant 0 : index
    %c0_23 = arith.constant 0 : index
    %c0_24 = arith.constant 0 : index
    %21 = vector.load %arg5[%c0_22, %c0_23, %c0_24] : memref<1x1x16xf32, #tpu.memory_space<vmem>>, vector<1x1x16xf32>
    %c0_25 = arith.constant 0 : index
    %c0_26 = arith.constant 0 : index
    %22 = vector.load %arg13[%c0_25, %c0_26] : memref<1x128xf32, #tpu.memory_space<vmem>>, vector<1x128xf32>
    %23 = vector.extract_strided_slice %10 {offsets = [0, 0], sizes = [16, 32], strides = [1, 1]} : vector<16x128xf32> to vector<16x32xf32>
    %24 = vector.shape_cast %23 : vector<16x32xf32> to vector<1x16x32xf32>
    %25 = vector.extract_strided_slice %15 {offsets = [0, 0], sizes = [16, 32], strides = [1, 1]} : vector<16x128xf32> to vector<16x32xf32>
    %26 = vector.shape_cast %25 : vector<16x32xf32> to vector<1x16x32xf32>
    %27 = vector.extract_strided_slice %20 {offsets = [0, 0], sizes = [16, 32], strides = [1, 1]} : vector<16x128xf32> to vector<16x32xf32>
    %28 = vector.shape_cast %27 : vector<16x32xf32> to vector<1x16x32xf32>
    "tpu.trace_start"() <{level = 10 : i32, message = "bqd,bkd->bqk"}> : () -> ()
    %cst_27 = arith.constant dense<0.000000e+00> : vector<1x16x16xf32>
    %29 = tpu.matmul %24, %26, %cst_27 {dimension_numbers = #tpu.dot_dimension_numbers<[2], [2], [1], [1], [0, 0, 0, 1, 1, 1], [0], [0]>, precision = #tpu.contract_precision<fp32>} : vector<1x16x32xf32>, vector<1x16x32xf32>, vector<1x16x16xf32> -> vector<1x16x16xf32>
    "tpu.trace_stop"() : () -> ()
    %cst_28 = arith.constant 0.176776692 : f32
    %30 = vector.broadcast %cst_28 : f32 to vector<1x16x16xf32>
    %31 = arith.mulf %29, %30 : vector<1x16x16xf32>
    %32 = vector.broadcast %21 : vector<1x1x16xf32> to vector<1x16x16xf32>
    %33 = arith.addf %31, %32 : vector<1x16x16xf32>
    %cst_29 = arith.constant dense<0xFF800000> : vector<1x16xf32>
    %34 = vector.multi_reduction <maximumf>, %33, %cst_29 [2] : vector<1x16x16xf32> to vector<1x16xf32>
    %35 = vector.shape_cast %34 : vector<1x16xf32> to vector<1x16x1xf32>
    %36 = vector.broadcast %35 : vector<1x16x1xf32> to vector<1x16x16xf32>
    %37 = arith.subf %33, %36 : vector<1x16x16xf32>
    %38 = math.exp %37 : vector<1x16x16xf32>
    %cst_30 = arith.constant dense<0.000000e+00> : vector<1x16xf32>
    %39 = vector.multi_reduction <add>, %38, %cst_30 [2] : vector<1x16x16xf32> to vector<1x16xf32>
    %40 = vector.shape_cast %39 : vector<1x16xf32> to vector<1x16x1xf32>
    %41 = vector.broadcast %40 : vector<1x16x1xf32> to vector<1x16x16xf32>
    %42 = arith.divf %38, %41 : vector<1x16x16xf32>
    "tpu.trace_start"() <{level = 10 : i32, message = "bqk,bkd->bqd"}> : () -> ()
    %cst_31 = arith.constant dense<0.000000e+00> : vector<1x16x32xf32>
    %43 = tpu.matmul %42, %28, %cst_31 {dimension_numbers = #tpu.dot_dimension_numbers<[2], [1], [1], [2], [0, 0, 0, 1, 1, 2], [0], [0]>, precision = #tpu.contract_precision<fp32>} : vector<1x16x16xf32>, vector<1x16x32xf32>, vector<1x16x32xf32> -> vector<1x16x32xf32>
    "tpu.trace_stop"() : () -> ()
    %44 = vector.shape_cast %43 : vector<1x16x32xf32> to vector<16x32xf32>
    %c0_32 = arith.constant 0 : index
    %c0_33 = arith.constant 0 : index
    %c0_34 = arith.constant 0 : index
    %45 = vector.load %arg12[%c0_32, %c0_33, %c0_34] : memref<4x32x128xf32, #tpu.memory_space<vmem>>, vector<1x32x128xf32>
    %46 = vector.shape_cast %45 : vector<1x32x128xf32> to vector<32x128xf32>
    %cst_35 = arith.constant dense<0.000000e+00> : vector<16x128xf32>
    %47 = tpu.matmul %44, %46, %cst_35 {dimension_numbers = #tpu.dot_dimension_numbers<[1], [0], [0], [1], [0, 0, 1, 1], [], []>, precision = #tpu.contract_precision<fp32>} : vector<16x32xf32>, vector<32x128xf32>, vector<16x128xf32> -> vector<16x128xf32>
    %48 = vector.broadcast %22 : vector<1x128xf32> to vector<16x128xf32>
    %49 = arith.addf %48, %47 : vector<16x128xf32>
    %50 = vector.extract_strided_slice %10 {offsets = [0, 32], sizes = [16, 32], strides = [1, 1]} : vector<16x128xf32> to vector<16x32xf32>
    %51 = vector.shape_cast %50 : vector<16x32xf32> to vector<1x16x32xf32>
    %52 = vector.extract_strided_slice %15 {offsets = [0, 32], sizes = [16, 32], strides = [1, 1]} : vector<16x128xf32> to vector<16x32xf32>
    %53 = vector.shape_cast %52 : vector<16x32xf32> to vector<1x16x32xf32>
    %54 = vector.extract_strided_slice %20 {offsets = [0, 32], sizes = [16, 32], strides = [1, 1]} : vector<16x128xf32> to vector<16x32xf32>
    %55 = vector.shape_cast %54 : vector<16x32xf32> to vector<1x16x32xf32>
    "tpu.trace_start"() <{level = 10 : i32, message = "bqd,bkd->bqk"}> : () -> ()
    %cst_36 = arith.constant dense<0.000000e+00> : vector<1x16x16xf32>
    %56 = tpu.matmul %51, %53, %cst_36 {dimension_numbers = #tpu.dot_dimension_numbers<[2], [2], [1], [1], [0, 0, 0, 1, 1, 1], [0], [0]>, precision = #tpu.contract_precision<fp32>} : vector<1x16x32xf32>, vector<1x16x32xf32>, vector<1x16x16xf32> -> vector<1x16x16xf32>
    "tpu.trace_stop"() : () -> ()
    %cst_37 = arith.constant 0.176776692 : f32
    %57 = vector.broadcast %cst_37 : f32 to vector<1x16x16xf32>
    %58 = arith.mulf %56, %57 : vector<1x16x16xf32>
    %59 = vector.broadcast %21 : vector<1x1x16xf32> to vector<1x16x16xf32>
    %60 = arith.addf %58, %59 : vector<1x16x16xf32>
    %cst_38 = arith.constant dense<0xFF800000> : vector<1x16xf32>
    %61 = vector.multi_reduction <maximumf>, %60, %cst_38 [2] : vector<1x16x16xf32> to vector<1x16xf32>
    %62 = vector.shape_cast %61 : vector<1x16xf32> to vector<1x16x1xf32>
    %63 = vector.broadcast %62 : vector<1x16x1xf32> to vector<1x16x16xf32>
    %64 = arith.subf %60, %63 : vector<1x16x16xf32>
    %65 = math.exp %64 : vector<1x16x16xf32>
    %cst_39 = arith.constant dense<0.000000e+00> : vector<1x16xf32>
    %66 = vector.multi_reduction <add>, %65, %cst_39 [2] : vector<1x16x16xf32> to vector<1x16xf32>
    %67 = vector.shape_cast %66 : vector<1x16xf32> to vector<1x16x1xf32>
    %68 = vector.broadcast %67 : vector<1x16x1xf32> to vector<1x16x16xf32>
    %69 = arith.divf %65, %68 : vector<1x16x16xf32>
    "tpu.trace_start"() <{level = 10 : i32, message = "bqk,bkd->bqd"}> : () -> ()
    %cst_40 = arith.constant dense<0.000000e+00> : vector<1x16x32xf32>
    %70 = tpu.matmul %69, %55, %cst_40 {dimension_numbers = #tpu.dot_dimension_numbers<[2], [1], [1], [2], [0, 0, 0, 1, 1, 2], [0], [0]>, precision = #tpu.contract_precision<fp32>} : vector<1x16x16xf32>, vector<1x16x32xf32>, vector<1x16x32xf32> -> vector<1x16x32xf32>
    "tpu.trace_stop"() : () -> ()
    %71 = vector.shape_cast %70 : vector<1x16x32xf32> to vector<16x32xf32>
    %c1 = arith.constant 1 : index
    %c0_41 = arith.constant 0 : index
    %c0_42 = arith.constant 0 : index
    %72 = vector.load %arg12[%c1, %c0_41, %c0_42] : memref<4x32x128xf32, #tpu.memory_space<vmem>>, vector<1x32x128xf32>
    %73 = vector.shape_cast %72 : vector<1x32x128xf32> to vector<32x128xf32>
    %cst_43 = arith.constant dense<0.000000e+00> : vector<16x128xf32>
    %74 = tpu.matmul %71, %73, %cst_43 {dimension_numbers = #tpu.dot_dimension_numbers<[1], [0], [0], [1], [0, 0, 1, 1], [], []>, precision = #tpu.contract_precision<fp32>} : vector<16x32xf32>, vector<32x128xf32>, vector<16x128xf32> -> vector<16x128xf32>
    %75 = arith.addf %49, %74 : vector<16x128xf32>
    %76 = vector.extract_strided_slice %10 {offsets = [0, 64], sizes = [16, 32], strides = [1, 1]} : vector<16x128xf32> to vector<16x32xf32>
    %77 = vector.shape_cast %76 : vector<16x32xf32> to vector<1x16x32xf32>
    %78 = vector.extract_strided_slice %15 {offsets = [0, 64], sizes = [16, 32], strides = [1, 1]} : vector<16x128xf32> to vector<16x32xf32>
    %79 = vector.shape_cast %78 : vector<16x32xf32> to vector<1x16x32xf32>
    %80 = vector.extract_strided_slice %20 {offsets = [0, 64], sizes = [16, 32], strides = [1, 1]} : vector<16x128xf32> to vector<16x32xf32>
    %81 = vector.shape_cast %80 : vector<16x32xf32> to vector<1x16x32xf32>
    "tpu.trace_start"() <{level = 10 : i32, message = "bqd,bkd->bqk"}> : () -> ()
    %cst_44 = arith.constant dense<0.000000e+00> : vector<1x16x16xf32>
    %82 = tpu.matmul %77, %79, %cst_44 {dimension_numbers = #tpu.dot_dimension_numbers<[2], [2], [1], [1], [0, 0, 0, 1, 1, 1], [0], [0]>, precision = #tpu.contract_precision<fp32>} : vector<1x16x32xf32>, vector<1x16x32xf32>, vector<1x16x16xf32> -> vector<1x16x16xf32>
    "tpu.trace_stop"() : () -> ()
    %cst_45 = arith.constant 0.176776692 : f32
    %83 = vector.broadcast %cst_45 : f32 to vector<1x16x16xf32>
    %84 = arith.mulf %82, %83 : vector<1x16x16xf32>
    %85 = vector.broadcast %21 : vector<1x1x16xf32> to vector<1x16x16xf32>
    %86 = arith.addf %84, %85 : vector<1x16x16xf32>
    %cst_46 = arith.constant dense<0xFF800000> : vector<1x16xf32>
    %87 = vector.multi_reduction <maximumf>, %86, %cst_46 [2] : vector<1x16x16xf32> to vector<1x16xf32>
    %88 = vector.shape_cast %87 : vector<1x16xf32> to vector<1x16x1xf32>
    %89 = vector.broadcast %88 : vector<1x16x1xf32> to vector<1x16x16xf32>
    %90 = arith.subf %86, %89 : vector<1x16x16xf32>
    %91 = math.exp %90 : vector<1x16x16xf32>
    %cst_47 = arith.constant dense<0.000000e+00> : vector<1x16xf32>
    %92 = vector.multi_reduction <add>, %91, %cst_47 [2] : vector<1x16x16xf32> to vector<1x16xf32>
    %93 = vector.shape_cast %92 : vector<1x16xf32> to vector<1x16x1xf32>
    %94 = vector.broadcast %93 : vector<1x16x1xf32> to vector<1x16x16xf32>
    %95 = arith.divf %91, %94 : vector<1x16x16xf32>
    "tpu.trace_start"() <{level = 10 : i32, message = "bqk,bkd->bqd"}> : () -> ()
    %cst_48 = arith.constant dense<0.000000e+00> : vector<1x16x32xf32>
    %96 = tpu.matmul %95, %81, %cst_48 {dimension_numbers = #tpu.dot_dimension_numbers<[2], [1], [1], [2], [0, 0, 0, 1, 1, 2], [0], [0]>, precision = #tpu.contract_precision<fp32>} : vector<1x16x16xf32>, vector<1x16x32xf32>, vector<1x16x32xf32> -> vector<1x16x32xf32>
    "tpu.trace_stop"() : () -> ()
    %97 = vector.shape_cast %96 : vector<1x16x32xf32> to vector<16x32xf32>
    %c2 = arith.constant 2 : index
    %c0_49 = arith.constant 0 : index
    %c0_50 = arith.constant 0 : index
    %98 = vector.load %arg12[%c2, %c0_49, %c0_50] : memref<4x32x128xf32, #tpu.memory_space<vmem>>, vector<1x32x128xf32>
    %99 = vector.shape_cast %98 : vector<1x32x128xf32> to vector<32x128xf32>
    %cst_51 = arith.constant dense<0.000000e+00> : vector<16x128xf32>
    %100 = tpu.matmul %97, %99, %cst_51 {dimension_numbers = #tpu.dot_dimension_numbers<[1], [0], [0], [1], [0, 0, 1, 1], [], []>, precision = #tpu.contract_precision<fp32>} : vector<16x32xf32>, vector<32x128xf32>, vector<16x128xf32> -> vector<16x128xf32>
    %101 = arith.addf %75, %100 : vector<16x128xf32>
    %102 = vector.extract_strided_slice %10 {offsets = [0, 96], sizes = [16, 32], strides = [1, 1]} : vector<16x128xf32> to vector<16x32xf32>
    %103 = vector.shape_cast %102 : vector<16x32xf32> to vector<1x16x32xf32>
    %104 = vector.extract_strided_slice %15 {offsets = [0, 96], sizes = [16, 32], strides = [1, 1]} : vector<16x128xf32> to vector<16x32xf32>
    %105 = vector.shape_cast %104 : vector<16x32xf32> to vector<1x16x32xf32>
    %106 = vector.extract_strided_slice %20 {offsets = [0, 96], sizes = [16, 32], strides = [1, 1]} : vector<16x128xf32> to vector<16x32xf32>
    %107 = vector.shape_cast %106 : vector<16x32xf32> to vector<1x16x32xf32>
    "tpu.trace_start"() <{level = 10 : i32, message = "bqd,bkd->bqk"}> : () -> ()
    %cst_52 = arith.constant dense<0.000000e+00> : vector<1x16x16xf32>
    %108 = tpu.matmul %103, %105, %cst_52 {dimension_numbers = #tpu.dot_dimension_numbers<[2], [2], [1], [1], [0, 0, 0, 1, 1, 1], [0], [0]>, precision = #tpu.contract_precision<fp32>} : vector<1x16x32xf32>, vector<1x16x32xf32>, vector<1x16x16xf32> -> vector<1x16x16xf32>
    "tpu.trace_stop"() : () -> ()
    %cst_53 = arith.constant 0.176776692 : f32
    %109 = vector.broadcast %cst_53 : f32 to vector<1x16x16xf32>
    %110 = arith.mulf %108, %109 : vector<1x16x16xf32>
    %111 = vector.broadcast %21 : vector<1x1x16xf32> to vector<1x16x16xf32>
    %112 = arith.addf %110, %111 : vector<1x16x16xf32>
    %cst_54 = arith.constant dense<0xFF800000> : vector<1x16xf32>
    %113 = vector.multi_reduction <maximumf>, %112, %cst_54 [2] : vector<1x16x16xf32> to vector<1x16xf32>
    %114 = vector.shape_cast %113 : vector<1x16xf32> to vector<1x16x1xf32>
    %115 = vector.broadcast %114 : vector<1x16x1xf32> to vector<1x16x16xf32>
    %116 = arith.subf %112, %115 : vector<1x16x16xf32>
    %117 = math.exp %116 : vector<1x16x16xf32>
    %cst_55 = arith.constant dense<0.000000e+00> : vector<1x16xf32>
    %118 = vector.multi_reduction <add>, %117, %cst_55 [2] : vector<1x16x16xf32> to vector<1x16xf32>
    %119 = vector.shape_cast %118 : vector<1x16xf32> to vector<1x16x1xf32>
    %120 = vector.broadcast %119 : vector<1x16x1xf32> to vector<1x16x16xf32>
    %121 = arith.divf %117, %120 : vector<1x16x16xf32>
    "tpu.trace_start"() <{level = 10 : i32, message = "bqk,bkd->bqd"}> : () -> ()
    %cst_56 = arith.constant dense<0.000000e+00> : vector<1x16x32xf32>
    %122 = tpu.matmul %121, %107, %cst_56 {dimension_numbers = #tpu.dot_dimension_numbers<[2], [1], [1], [2], [0, 0, 0, 1, 1, 2], [0], [0]>, precision = #tpu.contract_precision<fp32>} : vector<1x16x16xf32>, vector<1x16x32xf32>, vector<1x16x32xf32> -> vector<1x16x32xf32>
    "tpu.trace_stop"() : () -> ()
    %123 = vector.shape_cast %122 : vector<1x16x32xf32> to vector<16x32xf32>
    %c3 = arith.constant 3 : index
    %c0_57 = arith.constant 0 : index
    %c0_58 = arith.constant 0 : index
    %124 = vector.load %arg12[%c3, %c0_57, %c0_58] : memref<4x32x128xf32, #tpu.memory_space<vmem>>, vector<1x32x128xf32>
    %125 = vector.shape_cast %124 : vector<1x32x128xf32> to vector<32x128xf32>
    %cst_59 = arith.constant dense<0.000000e+00> : vector<16x128xf32>
    %126 = tpu.matmul %123, %125, %cst_59 {dimension_numbers = #tpu.dot_dimension_numbers<[1], [0], [0], [1], [0, 0, 1, 1], [], []>, precision = #tpu.contract_precision<fp32>} : vector<16x32xf32>, vector<32x128xf32>, vector<16x128xf32> -> vector<16x128xf32>
    %127 = arith.addf %101, %126 : vector<16x128xf32>
    %c0_60 = arith.constant 0 : index
    %c0_61 = arith.constant 0 : index
    %c0_62 = arith.constant 0 : index
    %128 = vector.load %arg1[%c0_60, %c0_61, %c0_62] : memref<1x16x128xf32, #tpu.memory_space<vmem>>, vector<1x16x128xf32>
    %129 = vector.shape_cast %128 : vector<1x16x128xf32> to vector<16x128xf32>
    %130 = arith.addf %127, %129 : vector<16x128xf32>
    %c0_63 = arith.constant 0 : index
    %c0_64 = arith.constant 0 : index
    %131 = vector.load %arg14[%c0_63, %c0_64] : memref<1x128xf32, #tpu.memory_space<vmem>>, vector<1x128xf32>
    %132 = vector.broadcast %131 : vector<1x128xf32> to vector<16x128xf32>
    %133 = arith.mulf %132, %130 : vector<16x128xf32>
    %c0_65 = arith.constant 0 : index
    %c0_66 = arith.constant 0 : index
    %134 = vector.load %arg15[%c0_65, %c0_66] : memref<1x128xf32, #tpu.memory_space<vmem>>, vector<1x128xf32>
    %135 = vector.broadcast %134 : vector<1x128xf32> to vector<16x128xf32>
    %136 = arith.addf %133, %135 : vector<16x128xf32>
    %137 = vector.shape_cast %136 : vector<16x128xf32> to vector<1x16x128xf32>
    %c0_67 = arith.constant 0 : index
    %c0_68 = arith.constant 0 : index
    %c0_69 = arith.constant 0 : index
    %138 = vector.load %arg16[%c0_67, %c0_68, %c0_69] : memref<1x16x128xf32, #tpu.memory_space<vmem>>, vector<1x16x128xf32>
    tpu.vector_store %arg16[%c0_67, %c0_68, %c0_69], %137 {strides = array<i32>} : memref<1x16x128xf32, #tpu.memory_space<vmem>>, vector<1x16x128xf32>,
    return
  }
  func.func @transform_0(%arg0: i32) -> (i32, i32, i32) {
    %c0_i32 = arith.constant 0 : i32
    %c0_i32_0 = arith.constant 0 : i32
    %c0_i32_1 = arith.constant 0 : i32
    return %arg0, %c0_i32, %c0_i32_0 : i32, i32, i32
  }
  func.func @transform_1(%arg0: i32) -> (i32, i32, i32) {
    %c0_i32 = arith.constant 0 : i32
    %c0_i32_0 = arith.constant 0 : i32
    %c0_i32_1 = arith.constant 0 : i32
    return %arg0, %c0_i32, %c0_i32_0 : i32, i32, i32
  }
  func.func @transform_2(%arg0: i32) -> (i32, i32, i32) {
    %c0_i32 = arith.constant 0 : i32
    %c0_i32_0 = arith.constant 0 : i32
    %c0_i32_1 = arith.constant 0 : i32
    return %arg0, %c0_i32, %c0_i32_0 : i32, i32, i32
  }
  func.func @transform_3(%arg0: i32) -> (i32, i32, i32) {
    %c0_i32 = arith.constant 0 : i32
    %c0_i32_0 = arith.constant 0 : i32
    %c0_i32_1 = arith.constant 0 : i32
    return %arg0, %c0_i32, %c0_i32_0 : i32, i32, i32
  }
  func.func @transform_4(%arg0: i32) -> (i32, i32, i32) {
    %c0_i32 = arith.constant 0 : i32
    %c0_i32_0 = arith.constant 0 : i32
    %c0_i32_1 = arith.constant 0 : i32
    return %arg0, %c0_i32, %c0_i32_0 : i32, i32, i32
  }
  func.func @transform_5(%arg0: i32) -> (i32, i32) {
    %c0_i32 = arith.constant 0 : i32
    %c0_i32_0 = arith.constant 0 : i32
    %c0_i32_1 = arith.constant 0 : i32
    return %c0_i32, %c0_i32_0 : i32, i32
  }
  func.func @transform_6(%arg0: i32) -> (i32, i32) {
    %c0_i32 = arith.constant 0 : i32
    %c0_i32_0 = arith.constant 0 : i32
    %c0_i32_1 = arith.constant 0 : i32
    return %c0_i32, %c0_i32_0 : i32, i32
  }
  func.func @transform_7(%arg0: i32) -> (i32, i32) {
    %c0_i32 = arith.constant 0 : i32
    %c0_i32_0 = arith.constant 0 : i32
    %c0_i32_1 = arith.constant 0 : i32
    return %c0_i32, %c0_i32_0 : i32, i32
  }
  func.func @transform_8(%arg0: i32) -> (i32, i32) {
    %c0_i32 = arith.constant 0 : i32
    %c0_i32_0 = arith.constant 0 : i32
    %c0_i32_1 = arith.constant 0 : i32
    return %c0_i32, %c0_i32_0 : i32, i32
  }
  func.func @transform_9(%arg0: i32) -> (i32, i32) {
    %c0_i32 = arith.constant 0 : i32
    %c0_i32_0 = arith.constant 0 : i32
    %c0_i32_1 = arith.constant 0 : i32
    return %c0_i32, %c0_i32_0 : i32, i32
  }
  func.func @transform_10(%arg0: i32) -> (i32, i32) {
    %c0_i32 = arith.constant 0 : i32
    %c0_i32_0 = arith.constant 0 : i32
    %c0_i32_1 = arith.constant 0 : i32
    return %c0_i32, %c0_i32_0 : i32, i32
  }
  func.func @transform_11(%arg0: i32) -> (i32, i32, i32) {
    %c0_i32 = arith.constant 0 : i32
    %c0_i32_0 = arith.constant 0 : i32
    %c0_i32_1 = arith.constant 0 : i32
    %c0_i32_2 = arith.constant 0 : i32
    return %c0_i32, %c0_i32_0, %c0_i32_1 : i32, i32, i32
  }
  func.func @transform_12(%arg0: i32) -> (i32, i32) {
    %c0_i32 = arith.constant 0 : i32
    %c0_i32_0 = arith.constant 0 : i32
    %c0_i32_1 = arith.constant 0 : i32
    return %c0_i32, %c0_i32_0 : i32, i32
  }
  func.func @transform_13(%arg0: i32) -> (i32, i32) {
    %c0_i32 = arith.constant 0 : i32
    %c0_i32_0 = arith.constant 0 : i32
    %c0_i32_1 = arith.constant 0 : i32
    return %c0_i32, %c0_i32_0 : i32, i32
  }
  func.func @transform_14(%arg0: i32) -> (i32, i32) {
    %c0_i32 = arith.constant 0 : i32
    %c0_i32_0 = arith.constant 0 : i32
    %c0_i32_1 = arith.constant 0 : i32
    return %c0_i32, %c0_i32_0 : i32, i32
  }
  func.func @transform_15(%arg0: i32) -> (i32, i32, i32) {
    %c0_i32 = arith.constant 0 : i32
    %c0_i32_0 = arith.constant 0 : i32
    %c0_i32_1 = arith.constant 0 : i32
    return %arg0, %c0_i32, %c0_i32_0 : i32, i32, i32
  }
}

</mosaic_0001>

<llo_original>
// kernel: bert_attention.1
$region0: #{bert_attention.1}
  #allocation0 [shape = 'u32[]', space=smem, size = 0x4, offset = 0x4, fixed_abs, tag = 'smem constant byte address 0x4 - core index']
  #allocation1 [shape = 'u32[144,128]{1,0:T(1,128)}', space=vmem, size = 0x12000, scoped, tag = 'internal scratch']
  %s0 = inlined_call_operand.hbm [shape: f32[2,16,128], index: 0, kind: input, shape index: {}]
  %s1 = inlined_call_operand.hbm [shape: f32[2,16,128], index: 1, kind: input, shape index: {}]
  %s2 = inlined_call_operand.vmem [shape: f32[2,16,128], index: 2, kind: input, shape index: {}]
  %s3 = inlined_call_operand.hbm [shape: f32[2,16,512], index: 3, kind: input, shape index: {}]
  %s4 = inlined_call_operand.vmem [shape: f32[2,1,16], index: 4, kind: input, shape index: {}]
  %s5 = inlined_call_operand.hbm [shape: f32[128,128], index: 5, kind: input, shape index: {}]
  %s6 = inlined_call_operand.vmem [shape: f32[1,128], index: 6, kind: input, shape index: {}]
  %s7 = inlined_call_operand.hbm [shape: f32[128,128], index: 7, kind: input, shape index: {}]
  %s8 = inlined_call_operand.vmem [shape: f32[1,128], index: 8, kind: input, shape index: {}]
  %s9 = inlined_call_operand.hbm [shape: f32[512,128], index: 9, kind: input, shape index: {}]
  %s10 = inlined_call_operand.vmem [shape: f32[1,128], index: 10, kind: input, shape index: {}]
  %s11 = inlined_call_operand.hbm [shape: f32[4,32,128], index: 11, kind: input, shape index: {}]
  %s12 = inlined_call_operand.vmem [shape: f32[1,128], index: 12, kind: input, shape index: {}]
  %s13 = inlined_call_operand.vmem [shape: f32[1,128], index: 13, kind: input, shape index: {}]
  %s14 = inlined_call_operand.vmem [shape: f32[1,128], index: 14, kind: input, shape index: {}]
  %s15 = inlined_call_operand.hbm [shape: f32[2,16,128], index: 15, kind: output, shape index: {}]
  %s16 = sld [smem:[#allocation0]]
  $region121: #{bert_attention.1} parent=0
    _
  %s18 = ssub.s32 1, %s16
  %s19 = scalar_select 0, %s18, %s16
  $region1: #{bert_attention.1} parent=0
    #allocation2 [shape = 'u8[16384]{0}', space=vmem, size = 0x4000, scoped, tag = 'input window, operand 0']
    #allocation3 [shape = 's32[2]{0}', space=sflag, size = 0x8, scoped, tag = 'scoped memory for bert_attention.1']
    #allocation4 [shape = 's32[2]{0}', space=sflag, size = 0x8, scoped, tag = 'scoped memory for bert_attention.1']
    #allocation5 [shape = 'u8[16384]{0}', space=vmem, size = 0x4000, scoped, tag = 'input window, operand 1']
    #allocation6 [shape = 's32[2]{0}', space=sflag, size = 0x8, scoped, tag = 'scoped memory for bert_attention.1']
    #allocation7 [shape = 'u8[65536]{0}', space=vmem, size = 0x10000, scoped, tag = 'input window, operand 3']
    #allocation8 [shape = 'u8[65536]{0}', space=vmem, size = 0x10000, scoped, tag = 'input window, operand 5, single buffered']
    #allocation9 [shape = 's32[1]{0}', space=sflag, size = 0x4, scoped, tag = 'scoped memory for bert_attention.1']
    #allocation10 [shape = 'u8[65536]{0}', space=vmem, size = 0x10000, scoped, tag = 'input window, operand 7, single buffered']
    #allocation11 [shape = 'u8[262144]{0}', space=vmem, size = 0x40000, scoped, tag = 'input window, operand 9, single buffered']
    #allocation12 [shape = 's32[1]{0}', space=sflag, size = 0x4, scoped, tag = 'scoped memory for bert_attention.1']
    #allocation13 [shape = 'u8[65536]{0}', space=vmem, size = 0x10000, scoped, tag = 'input window, operand 11, single buffered']
    #allocation14 [shape = 'u8[16384]{0}', space=vmem, size = 0x4000, scoped, tag = 'output window, operand 0']
    %20 = vsyncpa [#allocation3], 0
    %s21 = scalar_lea.sflag [#allocation3], 1
    %22 = vsyncpa %s21, 0
    %23 = vsyncpa [#allocation6], 0
    %s24 = scalar_lea.sflag [#allocation6], 1
    %25 = vsyncpa %s24, 0
    %26 = vsyncpa [#allocation9], 0
    %27 = vsyncpa [#allocation12], 0
    %28 = vsyncpa [#allocation4], 0
    %s29 = scalar_lea.sflag [#allocation4], 1
    %30 = vsyncpa %s29, 0
    loop: start=0, step=1, limit=4
    $region2: #{bert_attention.1} parent=1 // loop_pre_header
      _
    $region3: #{bert_attention.1} parent=1 // loop_header
      %s32 = sphi 0, %s36
      %p33 = scmp.ge.s32.totalorder %s32, 4
      %s42 = sphi 0, %s44
      %s45 = sphi 0, %s42
      %s46 = sphi 0, %s45
      %s62 = sphi 0, %s46
      %s68 = sphi 0, %s70
      %s71 = sphi 0, %s68
      %s72 = sphi 0, %s71
      %s88 = sphi 0, %s72
      %s94 = sphi 0, %s96
      %s97 = sphi 0, %s94
      %s98 = sphi 0, %s97
      %s114 = sphi 0, %s98
      %s120 = sphi 0, %s122
      %s123 = sphi 0, %s120
      %s124 = sphi 0, %s123
      %s140 = sphi 0, %s124
      %s146 = sphi 0, %s148
      %s149 = sphi 0, %s146
      %s150 = sphi 0, %s149
      %s166 = sphi 0, %s150
      %s170 = sphi 0, %s170
      %s172 = sphi 0, %s170
      %s173 = sphi 0, %s172
      %s187 = sphi 0, %s173
      %s191 = sphi 0, %s191
      %s193 = sphi 0, %s191
      %s194 = sphi 0, %s193
      %s208 = sphi 0, %s194
      %s212 = sphi 0, %s212
      %s214 = sphi 0, %s212
      %s215 = sphi 0, %s214
      %s229 = sphi 0, %s215
      %s233 = sphi 0, %s233
      %s235 = sphi 0, %s233
      %s236 = sphi 0, %s235
      %s250 = sphi 0, %s236
      %s254 = sphi 0, %s254
      %s256 = sphi 0, %s254
      %s257 = sphi 0, %s256
      %s271 = sphi 0, %s257
      %s275 = sphi 0, %s275
      %s277 = sphi 0, %s275
      %s278 = sphi 0, %s277
      %s292 = sphi 0, %s278
      %s296 = sphi 0, %s296
      %s298 = sphi 0, %s296
      %s299 = sphi 0, %s298
      %s313 = sphi 0, %s299
      %s317 = sphi 0, %s317
      %s319 = sphi 0, %s317
      %s320 = sphi 0, %s319
      %s334 = sphi 0, %s320
      %s338 = sphi 0, %s338
      %s340 = sphi 0, %s338
      %s341 = sphi 0, %s340
      %s355 = sphi 0, %s341
      %s359 = sphi 0, %s359
      %s361 = sphi 0, %s359
      %s362 = sphi 0, %s361
      %s376 = sphi 0, %s362
      %s382 = sphi 0, %s384
      %s385 = sphi 0, %s382
      %s386 = sphi 0, %s385
      %s402 = sphi 0, %s386
    $region4: #{bert_attention.1} parent=1 // loop_header_branch
      %35 = sbr.rel (%p33) target = $region8
    $region5: #{bert_attention.1} parent=1 // loop_body
      %s37 = ssub.s32 %s32, 1
      %s38 = ssub.s32 %s32, 2
      %s39 = sadd.s32 %s32, 1
      %s40 = ssub.s32 %s32, %s39
      %p41 = scmp.eq.s32.totalorder %s40, 0
      %s43 = sadd.s32 %s42, 1
      %s44 = scalar_select %p41, %s42, %s43
      %p47 = pneg %p41
      %p48 = scmp.eq.s32.totalorder %s32, 1
      %p49 = por %p47, %p48
      %p50 = scmp.ne.s32.totalorder %s42, %s45
      %p51 = scmp.eq.s32.totalorder %s32, 0
      %p52 = por %p50, %p51
      %p53 = scmp.ne.s32.totalorder %s42, %s45
      %p54 = scmp.eq.s32.totalorder %s37, 1
      %p55 = por %p53, %p54
      %p56 = scmp.ne.s32.totalorder %s45, %s46
      %p57 = scmp.eq.s32.totalorder %s37, 0
      %p58 = por %p56, %p57
      %p59 = scmp.ne.s32.totalorder %s45, %s46
      %p60 = scmp.eq.s32.totalorder %s38, 1
      %p61 = por %p59, %p60
      %p63 = scmp.ne.s32.totalorder %s46, %s62
      %p64 = scmp.eq.s32.totalorder %s38, 0
      %p65 = por %p63, %p64
      %s66 = ssub.s32 %s32, %s39
      %p67 = scmp.eq.s32.totalorder %s66, 0
      %s69 = sadd.s32 %s68, 1
      %s70 = scalar_select %p67, %s68, %s69
      %p73 = pneg %p67
      %p74 = scmp.eq.s32.totalorder %s32, 1
      %p75 = por %p73, %p74
      %p76 = scmp.ne.s32.totalorder %s68, %s71
      %p77 = scmp.eq.s32.totalorder %s32, 0
      %p78 = por %p76, %p77
      %p79 = scmp.ne.s32.totalorder %s68, %s71
      %p80 = scmp.eq.s32.totalorder %s37, 1
      %p81 = por %p79, %p80
      %p82 = scmp.ne.s32.totalorder %s71, %s72
      %p83 = scmp.eq.s32.totalorder %s37, 0
      %p84 = por %p82, %p83
      %p85 = scmp.ne.s32.totalorder %s71, %s72
      %p86 = scmp.eq.s32.totalorder %s38, 1
      %p87 = por %p85, %p86
      %p89 = scmp.ne.s32.totalorder %s72, %s88
      %p90 = scmp.eq.s32.totalorder %s38, 0
      %p91 = por %p89, %p90
      %s92 = ssub.s32 %s32, %s39
      %p93 = scmp.eq.s32.totalorder %s92, 0
      %s95 = sadd.s32 %s94, 1
      %s96 = scalar_select %p93, %s94, %s95
      %p99 = pneg %p93
      %p100 = scmp.eq.s32.totalorder %s32, 1
      %p101 = por %p99, %p100
      %p102 = scmp.ne.s32.totalorder %s94, %s97
      %p103 = scmp.eq.s32.totalorder %s32, 0
      %p104 = por %p102, %p103
      %p105 = scmp.ne.s32.totalorder %s94, %s97
      %p106 = scmp.eq.s32.totalorder %s37, 1
      %p107 = por %p105, %p106
      %p108 = scmp.ne.s32.totalorder %s97, %s98
      %p109 = scmp.eq.s32.totalorder %s37, 0
      %p110 = por %p108, %p109
      %p111 = scmp.ne.s32.totalorder %s97, %s98
      %p112 = scmp.eq.s32.totalorder %s38, 1
      %p113 = por %p111, %p112
      %p115 = scmp.ne.s32.totalorder %s98, %s114
      %p116 = scmp.eq.s32.totalorder %s38, 0
      %p117 = por %p115, %p116
      %s118 = ssub.s32 %s32, %s39
      %p119 = scmp.eq.s32.totalorder %s118, 0
      %s121 = sadd.s32 %s120, 1
      %s122 = scalar_select %p119, %s120, %s121
      %p125 = pneg %p119
      %p126 = scmp.eq.s32.totalorder %s32, 1
      %p127 = por %p125, %p126
      %p128 = scmp.ne.s32.totalorder %s120, %s123
      %p129 = scmp.eq.s32.totalorder %s32, 0
      %p130 = por %p128, %p129
      %p131 = scmp.ne.s32.totalorder %s120, %s123
      %p132 = scmp.eq.s32.totalorder %s37, 1
      %p133 = por %p131, %p132
      %p134 = scmp.ne.s32.totalorder %s123, %s124
      %p135 = scmp.eq.s32.totalorder %s37, 0
      %p136 = por %p134, %p135
      %p137 = scmp.ne.s32.totalorder %s123, %s124
      %p138 = scmp.eq.s32.totalorder %s38, 1
      %p139 = por %p137, %p138
      %p141 = scmp.ne.s32.totalorder %s124, %s140
      %p142 = scmp.eq.s32.totalorder %s38, 0
      %p143 = por %p141, %p142
      %s144 = ssub.s32 %s32, %s39
      %p145 = scmp.eq.s32.totalorder %s144, 0
      %s147 = sadd.s32 %s146, 1
      %s148 = scalar_select %p145, %s146, %s147
      %p151 = pneg %p145
      %p152 = scmp.eq.s32.totalorder %s32, 1
      %p153 = por %p151, %p152
      %p154 = scmp.ne.s32.totalorder %s146, %s149
      %p155 = scmp.eq.s32.totalorder %s32, 0
      %p156 = por %p154, %p155
      %p157 = scmp.ne.s32.totalorder %s146, %s149
      %p158 = scmp.eq.s32.totalorder %s37, 1
      %p159 = por %p157, %p158
      %p160 = scmp.ne.s32.totalorder %s149, %s150
      %p161 = scmp.eq.s32.totalorder %s37, 0
      %p162 = por %p160, %p161
      %p163 = scmp.ne.s32.totalorder %s149, %s150
      %p164 = scmp.eq.s32.totalorder %s38, 1
      %p165 = por %p163, %p164
      %p167 = scmp.ne.s32.totalorder %s150, %s166
      %p168 = scmp.eq.s32.totalorder %s38, 0
      %p169 = por %p167, %p168
      %s171 = sadd.s32 %s170, 1
      %p174 = scmp.eq.s32.totalorder %s32, 1
      %p175 = scmp.ne.s32.totalorder %s170, %s172
      %p176 = scmp.eq.s32.totalorder %s32, 0
      %p177 = por %p175, %p176
      %p178 = scmp.ne.s32.totalorder %s170, %s172
      %p179 = scmp.eq.s32.totalorder %s37, 1
      %p180 = por %p178, %p179
      %p181 = scmp.ne.s32.totalorder %s172, %s173
      %p182 = scmp.eq.s32.totalorder %s37, 0
      %p183 = por %p181, %p182
      %p184 = scmp.ne.s32.totalorder %s172, %s173
      %p185 = scmp.eq.s32.totalorder %s38, 1
      %p186 = por %p184, %p185
      %p188 = scmp.ne.s32.totalorder %s173, %s187
      %p189 = scmp.eq.s32.totalorder %s38, 0
      %p190 = por %p188, %p189
      %s192 = sadd.s32 %s191, 1
      %p195 = scmp.eq.s32.totalorder %s32, 1
      %p196 = scmp.ne.s32.totalorder %s191, %s193
      %p197 = scmp.eq.s32.totalorder %s32, 0
      %p198 = por %p196, %p197
      %p199 = scmp.ne.s32.totalorder %s191, %s193
      %p200 = scmp.eq.s32.totalorder %s37, 1
      %p201 = por %p199, %p200
      %p202 = scmp.ne.s32.totalorder %s193, %s194
      %p203 = scmp.eq.s32.totalorder %s37, 0
      %p204 = por %p202, %p203
      %p205 = scmp.ne.s32.totalorder %s193, %s194
      %p206 = scmp.eq.s32.totalorder %s38, 1
      %p207 = por %p205, %p206
      %p209 = scmp.ne.s32.totalorder %s194, %s208
      %p210 = scmp.eq.s32.totalorder %s38, 0
      %p211 = por %p209, %p210
      %s213 = sadd.s32 %s212, 1
      %p216 = scmp.eq.s32.totalorder %s32, 1
      %p217 = scmp.ne.s32.totalorder %s212, %s214
      %p218 = scmp.eq.s32.totalorder %s32, 0
      %p219 = por %p217, %p218
      %p220 = scmp.ne.s32.totalorder %s212, %s214
      %p221 = scmp.eq.s32.totalorder %s37, 1
      %p222 = por %p220, %p221
      %p223 = scmp.ne.s32.totalorder %s214, %s215
      %p224 = scmp.eq.s32.totalorder %s37, 0
      %p225 = por %p223, %p224
      %p226 = scmp.ne.s32.totalorder %s214, %s215
      %p227 = scmp.eq.s32.totalorder %s38, 1
      %p228 = por %p226, %p227
      %p230 = scmp.ne.s32.totalorder %s215, %s229
      %p231 = scmp.eq.s32.totalorder %s38, 0
      %p232 = por %p230, %p231
      %s234 = sadd.s32 %s233, 1
      %p237 = scmp.eq.s32.totalorder %s32, 1
      %p238 = scmp.ne.s32.totalorder %s233, %s235
      %p239 = scmp.eq.s32.totalorder %s32, 0
      %p240 = por %p238, %p239
      %p241 = scmp.ne.s32.totalorder %s233, %s235
      %p242 = scmp.eq.s32.totalorder %s37, 1
      %p243 = por %p241, %p242
      %p244 = scmp.ne.s32.totalorder %s235, %s236
      %p245 = scmp.eq.s32.totalorder %s37, 0
      %p246 = por %p244, %p245
      %p247 = scmp.ne.s32.totalorder %s235, %s236
      %p248 = scmp.eq.s32.totalorder %s38, 1
      %p249 = por %p247, %p248
      %p251 = scmp.ne.s32.totalorder %s236, %s250
      %p252 = scmp.eq.s32.totalorder %s38, 0
      %p253 = por %p251, %p252
      %s255 = sadd.s32 %s254, 1
      %p258 = scmp.eq.s32.totalorder %s32, 1
      %p259 = scmp.ne.s32.totalorder %s254, %s256
      %p260 = scmp.eq.s32.totalorder %s32, 0
      %p261 = por %p259, %p260
      %p262 = scmp.ne.s32.totalorder %s254, %s256
      %p263 = scmp.eq.s32.totalorder %s37, 1
      %p264 = por %p262, %p263
      %p265 = scmp.ne.s32.totalorder %s256, %s257
      %p266 = scmp.eq.s32.totalorder %s37, 0
      %p267 = por %p265, %p266
      %p268 = scmp.ne.s32.totalorder %s256, %s257
      %p269 = scmp.eq.s32.totalorder %s38, 1
      %p270 = por %p268, %p269
      %p272 = scmp.ne.s32.totalorder %s257, %s271
      %p273 = scmp.eq.s32.totalorder %s38, 0
      %p274 = por %p272, %p273
      %s276 = sadd.s32 %s275, 1
      %p279 = scmp.eq.s32.totalorder %s32, 1
      %p280 = scmp.ne.s32.totalorder %s275, %s277
      %p281 = scmp.eq.s32.totalorder %s32, 0
      %p282 = por %p280, %p281
      %p283 = scmp.ne.s32.totalorder %s275, %s277
      %p284 = scmp.eq.s32.totalorder %s37, 1
      %p285 = por %p283, %p284
      %p286 = scmp.ne.s32.totalorder %s277, %s278
      %p287 = scmp.eq.s32.totalorder %s37, 0
      %p288 = por %p286, %p287
      %p289 = scmp.ne.s32.totalorder %s277, %s278
      %p290 = scmp.eq.s32.totalorder %s38, 1
      %p291 = por %p289, %p290
      %p293 = scmp.ne.s32.totalorder %s278, %s292
      %p294 = scmp.eq.s32.totalorder %s38, 0
      %p295 = por %p293, %p294
      %s297 = sadd.s32 %s296, 1
      %p300 = scmp.eq.s32.totalorder %s32, 1
      %p301 = scmp.ne.s32.totalorder %s296, %s298
      %p302 = scmp.eq.s32.totalorder %s32, 0
      %p303 = por %p301, %p302
      %p304 = scmp.ne.s32.totalorder %s296, %s298
      %p305 = scmp.eq.s32.totalorder %s37, 1
      %p306 = por %p304, %p305
      %p307 = scmp.ne.s32.totalorder %s298, %s299
      %p308 = scmp.eq.s32.totalorder %s37, 0
      %p309 = por %p307, %p308
      %p310 = scmp.ne.s32.totalorder %s298, %s299
      %p311 = scmp.eq.s32.totalorder %s38, 1
      %p312 = por %p310, %p311
      %p314 = scmp.ne.s32.totalorder %s299, %s313
      %p315 = scmp.eq.s32.totalorder %s38, 0
      %p316 = por %p314, %p315
      %s318 = sadd.s32 %s317, 1
      %p321 = scmp.eq.s32.totalorder %s32, 1
      %p322 = scmp.ne.s32.totalorder %s317, %s319
      %p323 = scmp.eq.s32.totalorder %s32, 0
      %p324 = por %p322, %p323
      %p325 = scmp.ne.s32.totalorder %s317, %s319
      %p326 = scmp.eq.s32.totalorder %s37, 1
      %p327 = por %p325, %p326
      %p328 = scmp.ne.s32.totalorder %s319, %s320
      %p329 = scmp.eq.s32.totalorder %s37, 0
      %p330 = por %p328, %p329
      %p331 = scmp.ne.s32.totalorder %s319, %s320
      %p332 = scmp.eq.s32.totalorder %s38, 1
      %p333 = por %p331, %p332
      %p335 = scmp.ne.s32.totalorder %s320, %s334
      %p336 = scmp.eq.s32.totalorder %s38, 0
      %p337 = por %p335, %p336
      %s339 = sadd.s32 %s338, 1
      %p342 = scmp.eq.s32.totalorder %s32, 1
      %p343 = scmp.ne.s32.totalorder %s338, %s340
      %p344 = scmp.eq.s32.totalorder %s32, 0
      %p345 = por %p343, %p344
      %p346 = scmp.ne.s32.totalorder %s338, %s340
      %p347 = scmp.eq.s32.totalorder %s37, 1
      %p348 = por %p346, %p347
      %p349 = scmp.ne.s32.totalorder %s340, %s341
      %p350 = scmp.eq.s32.totalorder %s37, 0
      %p351 = por %p349, %p350
      %p352 = scmp.ne.s32.totalorder %s340, %s341
      %p353 = scmp.eq.s32.totalorder %s38, 1
      %p354 = por %p352, %p353
      %p356 = scmp.ne.s32.totalorder %s341, %s355
      %p357 = scmp.eq.s32.totalorder %s38, 0
      %p358 = por %p356, %p357
      %s360 = sadd.s32 %s359, 1
      %p363 = scmp.eq.s32.totalorder %s32, 1
      %p364 = scmp.ne.s32.totalorder %s359, %s361
      %p365 = scmp.eq.s32.totalorder %s32, 0
      %p366 = por %p364, %p365
      %p367 = scmp.ne.s32.totalorder %s359, %s361
      %p368 = scmp.eq.s32.totalorder %s37, 1
      %p369 = por %p367, %p368
      %p370 = scmp.ne.s32.totalorder %s361, %s362
      %p371 = scmp.eq.s32.totalorder %s37, 0
      %p372 = por %p370, %p371
      %p373 = scmp.ne.s32.totalorder %s361, %s362
      %p374 = scmp.eq.s32.totalorder %s38, 1
      %p375 = por %p373, %p374
      %p377 = scmp.ne.s32.totalorder %s362, %s376
      %p378 = scmp.eq.s32.totalorder %s38, 0
      %p379 = por %p377, %p378
      %s380 = ssub.s32 %s32, %s39
      %p381 = scmp.eq.s32.totalorder %s380, 0
      %s383 = sadd.s32 %s382, 1
      %s384 = scalar_select %p381, %s382, %s383
      %p387 = pneg %p381
      %p388 = scmp.eq.s32.totalorder %s32, 1
      %p389 = por %p387, %p388
      %p390 = scmp.ne.s32.totalorder %s382, %s385
      %p391 = scmp.eq.s32.totalorder %s32, 0
      %p392 = por %p390, %p391
      %p393 = scmp.ne.s32.totalorder %s382, %s385
      %p394 = scmp.eq.s32.totalorder %s37, 1
      %p395 = por %p393, %p394
      %p396 = scmp.ne.s32.totalorder %s385, %s386
      %p397 = scmp.eq.s32.totalorder %s37, 0
      %p398 = por %p396, %p397
      %p399 = scmp.ne.s32.totalorder %s385, %s386
      %p400 = scmp.eq.s32.totalorder %s38, 1
      %p401 = por %p399, %p400
      %p403 = scmp.ne.s32.totalorder %s386, %s402
      %p404 = scmp.eq.s32.totalorder %s38, 0
      %p405 = por %p403, %p404
      %p406 = scmp.le.s32.totalorder 1, %s32
      %p407 = scmp.lt.s32.totalorder %s32, 3
      %p408 = pnand %p406, %p407
      %p409 = pneg %p408
      // Predicated region
      $region9: #{bert_attention.1} parent=5 // pred_check
        _
      $region10: #{bert_attention.1} parent=5 // pred_check_branch
        %411 = sbr.rel (%p408) target = $region12
      $region11: #{bert_attention.1} parent=5 // pred_region
        %s412 = ssub.s32 %s32, 1
        // Predicated region
        $region13: #{bert_attention.1} parent=11 // pred_check
          %p413 = pneg %p183
        $region14: #{bert_attention.1} parent=11 // pred_check_branch
          %415 = sbr.rel (%p413) target = $region16
        $region15: #{bert_attention.1} parent=11 // pred_region
          %s417 = ssub.s32 2048, 2048
          %418 = vsyncadd [#allocation9], %s417
          %s419 = sshll.u32 [#allocation8], 4
          %s420 = int_to_ptr.vmem [resolvable:$true] %s419
          %425 = dma.hbm_to_vmem [thread:$0]  %s5, 2048, %s420, [#allocation9], 128, 128, 8
        $region16: #{bert_attention.1} parent=11 // pred_fallthru
          _
        // Predicated region
        $region17: #{bert_attention.1} parent=11 // pred_check
          %p426 = pneg %p204
        $region18: #{bert_attention.1} parent=11 // pred_check_branch
          %428 = sbr.rel (%p426) target = $region20
        $region19: #{bert_attention.1} parent=11 // pred_region
          _
        $region20: #{bert_attention.1} parent=11 // pred_fallthru
          _
        // Predicated region
        $region21: #{bert_attention.1} parent=11 // pred_check
          %p429 = pneg %p225
        $region22: #{bert_attention.1} parent=11 // pred_check_branch
          %431 = sbr.rel (%p429) target = $region24
        $region23: #{bert_attention.1} parent=11 // pred_region
          %s433 = ssub.s32 2048, 2048
          %434 = vsyncadd [#allocation9], %s433
          %s435 = sshll.u32 [#allocation10], 4
          %s436 = int_to_ptr.vmem [resolvable:$true] %s435
          %441 = dma.hbm_to_vmem [thread:$0]  %s7, 2048, %s436, [#allocation9], 128, 128, 8
        $region24: #{bert_attention.1} parent=11 // pred_fallthru
          _
        // Predicated region
        $region25: #{bert_attention.1} parent=11 // pred_check
          %p442 = pneg %p246
        $region26: #{bert_attention.1} parent=11 // pred_check_branch
          %444 = sbr.rel (%p442) target = $region28
        $region27: #{bert_attention.1} parent=11 // pred_region
          _
        $region28: #{bert_attention.1} parent=11 // pred_fallthru
          _
        // Predicated region
        $region29: #{bert_attention.1} parent=11 // pred_check
          %p445 = pneg %p267
        $region30: #{bert_attention.1} parent=11 // pred_check_branch
          %447 = sbr.rel (%p445) target = $region32
        $region31: #{bert_attention.1} parent=11 // pred_region
          %s449 = ssub.s32 8192, 8192
          %450 = vsyncadd [#allocation12], %s449
          %s451 = sshll.u32 [#allocation11], 4
          %s452 = int_to_ptr.vmem [resolvable:$true] %s451
          %457 = dma.hbm_to_vmem [thread:$0]  %s9, 8192, %s452, [#allocation12], 128, 128, 8
        $region32: #{bert_attention.1} parent=11 // pred_fallthru
          _
        // Predicated region
        $region33: #{bert_attention.1} parent=11 // pred_check
          %p458 = pneg %p288
        $region34: #{bert_attention.1} parent=11 // pred_check_branch
          %460 = sbr.rel (%p458) target = $region36
        $region35: #{bert_attention.1} parent=11 // pred_region
          _
        $region36: #{bert_attention.1} parent=11 // pred_fallthru
          _
        // Predicated region
        $region37: #{bert_attention.1} parent=11 // pred_check
          %p461 = pneg %p309
        $region38: #{bert_attention.1} parent=11 // pred_check_branch
          %463 = sbr.rel (%p461) target = $region40
        $region39: #{bert_attention.1} parent=11 // pred_region
          %s465 = ssub.s32 2048, 2048
          %466 = vsyncadd [#allocation12], %s465
          %s467 = sshll.u32 [#allocation13], 4
          %s468 = int_to_ptr.vmem [resolvable:$true] %s467
          %473 = dma.hbm_to_vmem [thread:$0]  %s11, 2048, %s468, [#allocation12], 128, 128, 8
        $region40: #{bert_attention.1} parent=11 // pred_fallthru
          _
        // Predicated region
        $region41: #{bert_attention.1} parent=11 // pred_check
          %p474 = pneg %p330
        $region42: #{bert_attention.1} parent=11 // pred_check_branch
          %476 = sbr.rel (%p474) target = $region44
        $region43: #{bert_attention.1} parent=11 // pred_region
          _
        $region44: #{bert_attention.1} parent=11 // pred_fallthru
          _
        // Predicated region
        $region45: #{bert_attention.1} parent=11 // pred_check
          %p477 = pneg %p351
        $region46: #{bert_attention.1} parent=11 // pred_check_branch
          %479 = sbr.rel (%p477) target = $region48
        $region47: #{bert_attention.1} parent=11 // pred_region
          _
        $region48: #{bert_attention.1} parent=11 // pred_fallthru
          _
        // Predicated region
        $region49: #{bert_attention.1} parent=11 // pred_check
          %p480 = pneg %p372
        $region50: #{bert_attention.1} parent=11 // pred_check_branch
          %482 = sbr.rel (%p480) target = $region52
        $region51: #{bert_attention.1} parent=11 // pred_region
          _
        $region52: #{bert_attention.1} parent=11 // pred_fallthru
          _
      $region12: #{bert_attention.1} parent=5 // pred_fallthru
        _
      %p483 = scmp.lt.s32.totalorder %s32, 2
      // Predicated region
      $region53: #{bert_attention.1} parent=5 // pred_check
        %p484 = pneg %p483
      $region54: #{bert_attention.1} parent=5 // pred_check_branch
        %486 = sbr.rel (%p484) target = $region56
      $region55: #{bert_attention.1} parent=5 // pred_region
        // Predicated region
        $region57: #{bert_attention.1} parent=55 // pred_check
          %p487 = pneg %p52
        $region58: #{bert_attention.1} parent=55 // pred_check_branch
          %489 = sbr.rel (%p487) target = $region60
        $region59: #{bert_attention.1} parent=55 // pred_region
          %s490 = sand.u32 %s42, 1
          %s491 = scalar_lea.sflag [#allocation3], %s490
          %s492 = sand.u32 %s42, 1
          %s493 = smul.addr %s492, 16
          %s494 = scalar_lea.vmem [#allocation2], %s493
          %s496 = ssub.s32 256, 256
          %497 = vsyncadd %s491, %s496
          %s498 = smul.addr %s32, 2
          %s499 = smul.addr %s498, 128
          %s500 = scalar_lea.hbm %s0, %s499
          %s501 = sshll.u32 %s494, 4
          %s502 = int_to_ptr.vmem [resolvable:$true] %s501
          %507 = dma.hbm_to_vmem [thread:$0]  %s500, 256, %s502, %s491, 128, 128, 8
        $region60: #{bert_attention.1} parent=55 // pred_fallthru
          _
        // Predicated region
        $region61: #{bert_attention.1} parent=55 // pred_check
          %p508 = pneg %p78
        $region62: #{bert_attention.1} parent=55 // pred_check_branch
          %510 = sbr.rel (%p508) target = $region64
        $region63: #{bert_attention.1} parent=55 // pred_region
          %s511 = sand.u32 %s32, 1
          %s512 = scalar_lea.sflag [#allocation6], %s511
          %s513 = sand.u32 %s68, 1
          %s514 = smul.addr %s513, 16
          %s515 = scalar_lea.vmem [#allocation5], %s514
          %s517 = ssub.s32 256, 256
          %518 = vsyncadd %s512, %s517
          %s519 = smul.addr %s32, 2
          %s520 = smul.addr %s519, 128
          %s521 = scalar_lea.hbm %s1, %s520
          %s522 = sshll.u32 %s515, 4
          %s523 = int_to_ptr.vmem [resolvable:$true] %s522
          %528 = dma.hbm_to_vmem [thread:$0]  %s521, 256, %s523, %s512, 128, 128, 8
        $region64: #{bert_attention.1} parent=55 // pred_fallthru
          _
        // Predicated region
        $region65: #{bert_attention.1} parent=55 // pred_check
          %p529 = pneg %p104
        $region66: #{bert_attention.1} parent=55 // pred_check_branch
          %531 = sbr.rel (%p529) target = $region68
        $region67: #{bert_attention.1} parent=55 // pred_region
          %p532 = scmp.lt.s32.totalorder %s32, 1
          %s533 = scalar_select %p532, %s32, 1
          %s534 = smul.addr %s533, 2
          %s535 = smul.addr %s534, 8
          %s536 = scalar_lea.vmem %s2, %s535
        $region68: #{bert_attention.1} parent=55 // pred_fallthru
          _
        // Predicated region
        $region69: #{bert_attention.1} parent=55 // pred_check
          %p537 = pneg %p130
        $region70: #{bert_attention.1} parent=55 // pred_check_branch
          %539 = sbr.rel (%p537) target = $region72
        $region71: #{bert_attention.1} parent=55 // pred_region
          %s540 = sand.u32 %s32, 1
          %s541 = scalar_lea.sflag [#allocation6], %s540
          %s542 = sand.u32 %s120, 1
          %s543 = smul.addr %s542, 64
          %s544 = scalar_lea.vmem [#allocation7], %s543
          %s546 = ssub.s32 1024, 1024
          %547 = vsyncadd %s541, %s546
          %s548 = smul.addr %s32, 8
          %s549 = smul.addr %s548, 128
          %s550 = scalar_lea.hbm %s3, %s549
          %s551 = sshll.u32 %s544, 4
          %s552 = int_to_ptr.vmem [resolvable:$true] %s551
          %557 = dma.hbm_to_vmem [thread:$0]  %s550, 1024, %s552, %s541, 512, 512, 32
        $region72: #{bert_attention.1} parent=55 // pred_fallthru
          _
        // Predicated region
        $region73: #{bert_attention.1} parent=55 // pred_check
          %p558 = pneg %p156
        $region74: #{bert_attention.1} parent=55 // pred_check_branch
          %560 = sbr.rel (%p558) target = $region76
        $region75: #{bert_attention.1} parent=55 // pred_region
          %p561 = scmp.lt.s32.totalorder %s32, 1
          %s562 = scalar_select %p561, %s32, 1
          %s563 = scalar_lea.vmem %s4, %s562
        $region76: #{bert_attention.1} parent=55 // pred_fallthru
          _
      $region56: #{bert_attention.1} parent=5 // pred_fallthru
        _
      %p564 = scmp.le.s32.totalorder 1, %s32
      %p565 = scmp.lt.s32.totalorder %s32, 3
      %p566 = pnand %p564, %p565
      %p567 = pneg %p566
      // Predicated region
      $region77: #{bert_attention.1} parent=5 // pred_check
        _
      $region78: #{bert_attention.1} parent=5 // pred_check_branch
        %569 = sbr.rel (%p566) target = $region80
      $region79: #{bert_attention.1} parent=5 // pred_region
        %s570 = ssub.s32 %s32, 1
        %s571 = sand.u32 %s45, 1
        %s572 = scalar_lea.sflag [#allocation3], %s571
        %s573 = sand.u32 %s45, 1
        %s574 = smul.addr %s573, 16
        %s575 = scalar_lea.vmem [#allocation2], %s574
        // Predicated region
        $region81: #{bert_attention.1} parent=79 // pred_check
          %p576 = pneg %p58
        $region82: #{bert_attention.1} parent=79 // pred_check_branch
          %578 = sbr.rel (%p576) target = $region84
        $region83: #{bert_attention.1} parent=79 // pred_region
          %579 = dma.done %s572, 256
        $region84: #{bert_attention.1} parent=79 // pred_fallthru
          _
        %s580 = sand.u32 %s37, 1
        %s581 = scalar_lea.sflag [#allocation6], %s580
        %s582 = sand.u32 %s71, 1
        %s583 = smul.addr %s582, 16
        %s584 = scalar_lea.vmem [#allocation5], %s583
        // Predicated region
        $region85: #{bert_attention.1} parent=79 // pred_check
          %p585 = pneg %p84
        $region86: #{bert_attention.1} parent=79 // pred_check_branch
          %587 = sbr.rel (%p585) target = $region88
        $region87: #{bert_attention.1} parent=79 // pred_region
          %588 = dma.done %s581, 256
        $region88: #{bert_attention.1} parent=79 // pred_fallthru
          _
        %s589 = sand.u32 %s37, 1
        %s590 = scalar_lea.sflag [#allocation6], %s589
        %s591 = sand.u32 %s123, 1
        %s592 = smul.addr %s591, 64
        %s593 = scalar_lea.vmem [#allocation7], %s592
        // Predicated region
        $region89: #{bert_attention.1} parent=79 // pred_check
          %p594 = pneg %p136
        $region90: #{bert_attention.1} parent=79 // pred_check_branch
          %596 = sbr.rel (%p594) target = $region92
        $region91: #{bert_attention.1} parent=79 // pred_region
          %597 = dma.done %s590, 1024
        $region92: #{bert_attention.1} parent=79 // pred_fallthru
          _
        // Predicated region
        $region93: #{bert_attention.1} parent=79 // pred_check
          %p598 = pneg %p183
        $region94: #{bert_attention.1} parent=79 // pred_check_branch
          %600 = sbr.rel (%p598) target = $region96
        $region95: #{bert_attention.1} parent=79 // pred_region
          %601 = dma.done [#allocation9], 2048
        $region96: #{bert_attention.1} parent=79 // pred_fallthru
          _
        // Predicated region
        $region97: #{bert_attention.1} parent=79 // pred_check
          %p602 = pneg %p225
        $region98: #{bert_attention.1} parent=79 // pred_check_branch
          %604 = sbr.rel (%p602) target = $region100
        $region99: #{bert_attention.1} parent=79 // pred_region
          %605 = dma.done [#allocation9], 2048
        $region100: #{bert_attention.1} parent=79 // pred_fallthru
          _
        // Predicated region
        $region101: #{bert_attention.1} parent=79 // pred_check
          %p606 = pneg %p267
        $region102: #{bert_attention.1} parent=79 // pred_check_branch
          %608 = sbr.rel (%p606) target = $region104
        $region103: #{bert_attention.1} parent=79 // pred_region
          %609 = dma.done [#allocation12], 8192
        $region104: #{bert_attention.1} parent=79 // pred_fallthru
          _
        // Predicated region
        $region105: #{bert_attention.1} parent=79 // pred_check
          %p610 = pneg %p309
        $region106: #{bert_attention.1} parent=79 // pred_check_branch
          %612 = sbr.rel (%p610) target = $region108
        $region107: #{bert_attention.1} parent=79 // pred_region
          %613 = dma.done [#allocation12], 2048
        $region108: #{bert_attention.1} parent=79 // pred_fallthru
          _
        %s614 = sand.u32 %s45, 1
        %s615 = scalar_lea.sflag [#allocation3], %s614
        %s616 = sand.u32 %s45, 1
        %s617 = smul.addr %s616, 16
        %s618 = scalar_lea.vmem [#allocation2], %s617
        %p619 = pneg %p58
        %p620 = pneg %p55
        %s621 = sand.u32 %s37, 1
        %s622 = scalar_lea.sflag [#allocation6], %s621
        %s623 = sand.u32 %s71, 1
        %s624 = smul.addr %s623, 16
        %s625 = scalar_lea.vmem [#allocation5], %s624
        %p626 = pneg %p84
        %p627 = pneg %p81
        %p628 = scmp.lt.s32.totalorder %s37, 1
        %s629 = scalar_select %p628, %s37, 1
        %s630 = smul.addr %s629, 2
        %s631 = smul.addr %s630, 8
        %s632 = scalar_lea.vmem %s2, %s631
        %p633 = pneg %p110
        %p634 = pneg %p107
        %s635 = sand.u32 %s37, 1
        %s636 = scalar_lea.sflag [#allocation6], %s635
        %s637 = sand.u32 %s123, 1
        %s638 = smul.addr %s637, 64
        %s639 = scalar_lea.vmem [#allocation7], %s638
        %p640 = pneg %p136
        %p641 = pneg %p133
        %p642 = scmp.lt.s32.totalorder %s37, 1
        %s643 = scalar_select %p642, %s37, 1
        %s644 = scalar_lea.vmem %s4, %s643
        %p645 = pneg %p162
        %p646 = pneg %p159
        %p647 = pneg %p183
        %p648 = pneg %p180
        %p649 = pneg %p204
        %p650 = pneg %p201
        %p651 = pneg %p225
        %p652 = pneg %p222
        %p653 = pneg %p246
        %p654 = pneg %p243
        %p655 = pneg %p267
        %p656 = pneg %p264
        %p657 = pneg %p288
        %p658 = pneg %p285
        %p659 = pneg %p309
        %p660 = pneg %p306
        %p661 = pneg %p330
        %p662 = pneg %p327
        %p663 = pneg %p351
        %p664 = pneg %p348
        %p665 = pneg %p372
        %p666 = pneg %p369
        %p667 = pneg %p398
        %p668 = pneg %p395
        %s669 = sand.u32 %s385, 1
        %s670 = scalar_lea.sflag [#allocation4], %s669
        %s671 = sand.u32 %s385, 1
        %s672 = smul.addr %s671, 16
        %s673 = scalar_lea.vmem [#allocation14], %s672
        %p674 = scmp.lt.s32.totalorder %s37, 1
        %s675 = scalar_select %p674, %s37, 1
        %s676 = smul.addr %s675, 2
        %s677 = smul.addr %s676, 8
        %s678 = scalar_lea.vmem %s2, %s677
        %p679 = scmp.lt.s32.totalorder %s37, 1
        %s680 = scalar_select %p679, %s37, 1
        %s681 = scalar_lea.vmem %s4, %s680
        %v682 = vld [vmem:[%s584] sm:$0xff]
        %v683 = vld [vmem:[%s584 + $0x8] sm:$0xff]
        %v684 = vld [vmem:[%s678] sm:$0xff]
        %v685 = vld [vmem:[%s678 + $0x8] sm:$0xff]
        %v686 = vld [vmem:[%s593] sm:$0xff]
        %v687 = vld [vmem:[%s593 + $0x8] sm:$0xff]
        %v688 = vld [vmem:[%s593 + $0x10] sm:$0xff]
        %v689 = vld [vmem:[%s593 + $0x18] sm:$0xff]
        %v690 = vld [vmem:[%s593 + $0x20] sm:$0xff]
        %v691 = vld [vmem:[%s593 + $0x28] sm:$0xff]
        %v692 = vld [vmem:[%s593 + $0x30] sm:$0xff]
        %v693 = vld [vmem:[%s593 + $0x38] sm:$0xff]
        %v694 = vld [vmem:[#allocation8] sm:$0xff]
        %v695 = vld [vmem:[#allocation8 + $0x8] sm:$0xff]
        %v696 = vld [vmem:[#allocation8 + $0x10] sm:$0xff]
        %v697 = vld [vmem:[#allocation8 + $0x18] sm:$0xff]
        %v698 = vld [vmem:[#allocation8 + $0x20] sm:$0xff]
        %v699 = vld [vmem:[#allocation8 + $0x28] sm:$0xff]
        %v700 = vld [vmem:[#allocation8 + $0x30] sm:$0xff]
        %v701 = vld [vmem:[#allocation8 + $0x38] sm:$0xff]
        %v702 = vld [vmem:[#allocation8 + $0x40] sm:$0xff]
        %v703 = vld [vmem:[#allocation8 + $0x48] sm:$0xff]
        %v704 = vld [vmem:[#allocation8 + $0x50] sm:$0xff]
        %v705 = vld [vmem:[#allocation8 + $0x58] sm:$0xff]
        %v706 = vld [vmem:[#allocation8 + $0x60] sm:$0xff]
        %v707 = vld [vmem:[#allocation8 + $0x68] sm:$0xff]
        %v708 = vld [vmem:[#allocation8 + $0x70] sm:$0xff]
        %v709 = vld [vmem:[#allocation8 + $0x78] sm:$0xff]
        %v710 = vld [vmem:[%s6] sm:$0x1]
        %v712 = vlaneseq
        %v713 = vshrl.u32 %v712, 7
        %v714 = vsub.s32 0, %v713
        %v715 = vrot.slane %v710, %v714
        %717 = vmatprep.subr.mxu0 0.0
        %v718 = vand.u32 %v694, 4294901760
        %719 = vmatpush1.msra.mxu0 %v718
        %720 = vmatprep.subr.mxu0 0.0
        %v721 = vand.u32 %v695, 4294901760
        %722 = vmatpush1.msra.mxu0 %v721
        %723 = vmatprep.subr.mxu0 0.0
        %v724 = vand.u32 %v696, 4294901760
        %725 = vmatpush1.msra.mxu0 %v724
        %726 = vmatprep.subr.mxu0 0.0
        %v727 = vand.u32 %v697, 4294901760
        %728 = vmatpush1.msra.mxu0 %v727
        %729 = vmatprep.subr.mxu0 0.0
        %v730 = vand.u32 %v698, 4294901760
        %731 = vmatpush1.msra.mxu0 %v730
        %732 = vmatprep.subr.mxu0 0.0
        %v733 = vand.u32 %v699, 4294901760
        %734 = vmatpush1.msra.mxu0 %v733
        %735 = vmatprep.subr.mxu0 0.0
        %v736 = vand.u32 %v700, 4294901760
        %737 = vmatpush1.msra.mxu0 %v736
        %738 = vmatprep.subr.mxu0 0.0
        %v739 = vand.u32 %v701, 4294901760
        %740 = vmatpush1.msra.mxu0 %v739
        %741 = vmatprep.subr.mxu0 0.0
        %v742 = vand.u32 %v702, 4294901760
        %743 = vmatpush1.msra.mxu0 %v742
        %744 = vmatprep.subr.mxu0 0.0
        %v745 = vand.u32 %v703, 4294901760
        %746 = vmatpush1.msra.mxu0 %v745
        %747 = vmatprep.subr.mxu0 0.0
        %v748 = vand.u32 %v704, 4294901760
        %749 = vmatpush1.msra.mxu0 %v748
        %750 = vmatprep.subr.mxu0 0.0
        %v751 = vand.u32 %v705, 4294901760
        %752 = vmatpush1.msra.mxu0 %v751
        %753 = vmatprep.subr.mxu0 0.0
        %v754 = vand.u32 %v706, 4294901760
        %755 = vmatpush1.msra.mxu0 %v754
        %756 = vmatprep.subr.mxu0 0.0
        %v757 = vand.u32 %v707, 4294901760
        %758 = vmatpush1.msra.mxu0 %v757
        %759 = vmatprep.subr.mxu0 0.0
        %v760 = vand.u32 %v708, 4294901760
        %761 = vmatpush1.msra.mxu0 %v760
        %762 = vmatprep.subr.mxu0 0.0
        %v763 = vand.u32 %v709, 4294901760
        %764 = vmatpush1.msra.mxu0 %v763
        %765 = vmatprep.subr.mxu0 0.0
        %766 = vmatpush1.msra.mxu0 0.0
        %767 = vmatprep.subr.mxu0 0.0
        %768 = vmatpush1.msra.mxu0 0.0
        %769 = vmatprep.subr.mxu0 0.0
        %770 = vmatpush1.msra.mxu0 0.0
        %771 = vmatprep.subr.mxu0 0.0
        %772 = vmatpush1.msra.mxu0 0.0
        %773 = vmatprep.subr.mxu0 0.0
        %774 = vmatpush1.msra.mxu0 0.0
        %775 = vmatprep.subr.mxu0 0.0
        %776 = vmatpush1.msra.mxu0 0.0
        %777 = vmatprep.subr.mxu0 0.0
        %778 = vmatpush1.msra.mxu0 0.0
        %779 = vmatprep.subr.mxu0 0.0
        %780 = vmatpush1.msra.mxu0 0.0
        %781 = vmatprep.subr.mxu0 0.0
        %782 = vmatpush1.msra.mxu0 0.0
        %783 = vmatprep.subr.mxu0 0.0
        %784 = vmatpush1.msra.mxu0 0.0
        %785 = vmatprep.subr.mxu0 0.0
        %786 = vmatpush1.msra.mxu0 0.0
        %787 = vmatprep.subr.mxu0 0.0
        %788 = vmatpush1.msra.mxu0 0.0
        %789 = vmatprep.subr.mxu0 0.0
        %790 = vmatpush1.msra.mxu0 0.0
        %791 = vmatprep.subr.mxu0 0.0
        %792 = vmatpush1.msra.mxu0 0.0
        %793 = vmatprep.subr.mxu0 0.0
        %794 = vmatpush1.msra.mxu0 0.0
        %795 = vmatprep.subr.mxu0 0.0
        %796 = vmatpush1.msra.mxu0 0.0
        %797 = vmatprep.mubr.f32.mxu0 0.0
        %v798 = vand.u32 %v682, 4294901760
        %v799 = vsub.f32 %v682, %v798
        %v800 = vand.u32 %v799, 4294901760
        %v801 = vsub.f32 %v799, %v800
        %v802 = vand.u32 %v801, 4294901760
        %803 = vmatmul.mubr.f32.gmra.mrb[0].mxu0 %v802
        %v804 = vpop.f32.mrb[0].mxu0
        %v805 = vadd.f32 %v715, %v804
        %v806 = vpop.f32.mrb[0].mxu0
        %807 = vmatprep.mubr.f32.mxu0 0.0
        %v808 = vand.u32 %v683, 4294901760
        %v809 = vsub.f32 %v683, %v808
        %v810 = vand.u32 %v809, 4294901760
        %v811 = vsub.f32 %v809, %v810
        %v812 = vand.u32 %v811, 4294901760
        %813 = vmatmul.mubr.f32.gmra.mrb[0].mxu0 %v812
        %v814 = vpop.f32.mrb[0].mxu0
        %v815 = vadd.f32 %v715, %v814
        %v816 = vpop.f32.mrb[0].mxu0
        %817 = vdwg.mxu0
        %818 = vmatprep.subr.mxu0 0.0
        %v819 = vand.u32 %v694, 4294901760
        %v820 = vsub.f32 %v694, %v819
        %v821 = vand.u32 %v820, 4294901760
        %v822 = vsub.f32 %v820, %v821
        %v823 = vand.u32 %v822, 4294901760
        %824 = vmatpush1.msra.mxu0 %v823
        %825 = vmatprep.subr.mxu0 0.0
        %v826 = vand.u32 %v695, 4294901760
        %v827 = vsub.f32 %v695, %v826
        %v828 = vand.u32 %v827, 4294901760
        %v829 = vsub.f32 %v827, %v828
        %v830 = vand.u32 %v829, 4294901760
        %831 = vmatpush1.msra.mxu0 %v830
        %832 = vmatprep.subr.mxu0 0.0
        %v833 = vand.u32 %v696, 4294901760
        %v834 = vsub.f32 %v696, %v833
        %v835 = vand.u32 %v834, 4294901760
        %v836 = vsub.f32 %v834, %v835
        %v837 = vand.u32 %v836, 4294901760
        %838 = vmatpush1.msra.mxu0 %v837
        %839 = vmatprep.subr.mxu0 0.0
        %v840 = vand.u32 %v697, 4294901760
        %v841 = vsub.f32 %v697, %v840
        %v842 = vand.u32 %v841, 4294901760
        %v843 = vsub.f32 %v841, %v842
        %v844 = vand.u32 %v843, 4294901760
        %845 = vmatpush1.msra.mxu0 %v844
        %846 = vmatprep.subr.mxu0 0.0
        %v847 = vand.u32 %v698, 4294901760
        %v848 = vsub.f32 %v698, %v847
        %v849 = vand.u32 %v848, 4294901760
        %v850 = vsub.f32 %v848, %v849
        %v851 = vand.u32 %v850, 4294901760
        %852 = vmatpush1.msra.mxu0 %v851
        %853 = vmatprep.subr.mxu0 0.0
        %v854 = vand.u32 %v699, 4294901760
        %v855 = vsub.f32 %v699, %v854
        %v856 = vand.u32 %v855, 4294901760
        %v857 = vsub.f32 %v855, %v856
        %v858 = vand.u32 %v857, 4294901760
        %859 = vmatpush1.msra.mxu0 %v858
        %860 = vmatprep.subr.mxu0 0.0
        %v861 = vand.u32 %v700, 4294901760
        %v862 = vsub.f32 %v700, %v861
        %v863 = vand.u32 %v862, 4294901760
        %v864 = vsub.f32 %v862, %v863
        %v865 = vand.u32 %v864, 4294901760
        %866 = vmatpush1.msra.mxu0 %v865
        %867 = vmatprep.subr.mxu0 0.0
        %v868 = vand.u32 %v701, 4294901760
        %v869 = vsub.f32 %v701, %v868
        %v870 = vand.u32 %v869, 4294901760
        %v871 = vsub.f32 %v869, %v870
        %v872 = vand.u32 %v871, 4294901760
        %873 = vmatpush1.msra.mxu0 %v872
        %874 = vmatprep.subr.mxu0 0.0
        %v875 = vand.u32 %v702, 4294901760
        %v876 = vsub.f32 %v702, %v875
        %v877 = vand.u32 %v876, 4294901760
        %v878 = vsub.f32 %v876, %v877
        %v879 = vand.u32 %v878, 4294901760
        %880 = vmatpush1.msra.mxu0 %v879
        %881 = vmatprep.subr.mxu0 0.0
        %v882 = vand.u32 %v703, 4294901760
        %v883 = vsub.f32 %v703, %v882
        %v884 = vand.u32 %v883, 4294901760
        %v885 = vsub.f32 %v883, %v884
        %v886 = vand.u32 %v885, 4294901760
        %887 = vmatpush1.msra.mxu0 %v886
        %888 = vmatprep.subr.mxu0 0.0
        %v889 = vand.u32 %v704, 4294901760
        %v890 = vsub.f32 %v704, %v889
        %v891 = vand.u32 %v890, 4294901760
        %v892 = vsub.f32 %v890, %v891
        %v893 = vand.u32 %v892, 4294901760
        %894 = vmatpush1.msra.mxu0 %v893
        %895 = vmatprep.subr.mxu0 0.0
        %v896 = vand.u32 %v705, 4294901760
        %v897 = vsub.f32 %v705, %v896
        %v898 = vand.u32 %v897, 4294901760
        %v899 = vsub.f32 %v897, %v898
        %v900 = vand.u32 %v899, 4294901760
        %901 = vmatpush1.msra.mxu0 %v900
        %902 = vmatprep.subr.mxu0 0.0
        %v903 = vand.u32 %v706, 4294901760
        %v904 = vsub.f32 %v706, %v903
        %v905 = vand.u32 %v904, 4294901760
        %v906 = vsub.f32 %v904, %v905
        %v907 = vand.u32 %v906, 4294901760
        %908 = vmatpush1.msra.mxu0 %v907
        %909 = vmatprep.subr.mxu0 0.0
        %v910 = vand.u32 %v707, 4294901760
        %v911 = vsub.f32 %v707, %v910
        %v912 = vand.u32 %v911, 4294901760
        %v913 = vsub.f32 %v911, %v912
        %v914 = vand.u32 %v913, 4294901760
        %915 = vmatpush1.msra.mxu0 %v914
        %916 = vmatprep.subr.mxu0 0.0
        %v917 = vand.u32 %v708, 4294901760
        %v918 = vsub.f32 %v708, %v917
        %v919 = vand.u32 %v918, 4294901760
        %v920 = vsub.f32 %v918, %v919
        %v921 = vand.u32 %v920, 4294901760
        %922 = vmatpush1.msra.mxu0 %v921
        %923 = vmatprep.subr.mxu0 0.0
        %v924 = vand.u32 %v709, 4294901760
        %v925 = vsub.f32 %v709, %v924
        %v926 = vand.u32 %v925, 4294901760
        %v927 = vsub.f32 %v925, %v926
        %v928 = vand.u32 %v927, 4294901760
        %929 = vmatpush1.msra.mxu0 %v928
        %930 = vmatprep.subr.mxu0 0.0
        %931 = vmatpush1.msra.mxu0 0.0
        %932 = vmatprep.subr.mxu0 0.0
        %933 = vmatpush1.msra.mxu0 0.0
        %934 = vmatprep.subr.mxu0 0.0
        %935 = vmatpush1.msra.mxu0 0.0
        %936 = vmatprep.subr.mxu0 0.0
        %937 = vmatpush1.msra.mxu0 0.0
        %938 = vmatprep.subr.mxu0 0.0
        %939 = vmatpush1.msra.mxu0 0.0
        %940 = vmatprep.subr.mxu0 0.0
        %941 = vmatpush1.msra.mxu0 0.0
        %942 = vmatprep.subr.mxu0 0.0
        %943 = vmatpush1.msra.mxu0 0.0
        %944 = vmatprep.subr.mxu0 0.0
        %945 = vmatpush1.msra.mxu0 0.0
        %946 = vmatprep.subr.mxu0 0.0
        %947 = vmatpush1.msra.mxu0 0.0
        %948 = vmatprep.subr.mxu0 0.0
        %949 = vmatpush1.msra.mxu0 0.0
        %950 = vmatprep.subr.mxu0 0.0
        %951 = vmatpush1.msra.mxu0 0.0
        %952 = vmatprep.subr.mxu0 0.0
        %953 = vmatpush1.msra.mxu0 0.0
        %954 = vmatprep.subr.mxu0 0.0
        %955 = vmatpush1.msra.mxu0 0.0
        %956 = vmatprep.subr.mxu0 0.0
        %957 = vmatpush1.msra.mxu0 0.0
        %958 = vmatprep.subr.mxu0 0.0
        %959 = vmatpush1.msra.mxu0 0.0
        %960 = vmatprep.subr.mxu0 0.0
        %961 = vmatpush1.msra.mxu0 0.0
        %962 = vmatprep.mubr.f32.mxu0 0.0
        %v963 = vand.u32 %v682, 4294901760
        %964 = vmatmul.mubr.f32.gmra.mrb[0].mxu0 %v963
        %v965 = vpop.f32.mrb[0].mxu0
        %v966 = vadd.f32 %v805, %v965
        %v967 = vpop.f32.mrb[0].mxu0
        %968 = vmatprep.mubr.f32.mxu0 0.0
        %v969 = vand.u32 %v683, 4294901760
        %970 = vmatmul.mubr.f32.gmra.mrb[0].mxu0 %v969
        %v971 = vpop.f32.mrb[0].mxu0
        %v972 = vadd.f32 %v815, %v971
        %v973 = vpop.f32.mrb[0].mxu0
        %974 = vdwg.mxu0
        %975 = vmatprep.subr.mxu0 0.0
        %v976 = vand.u32 %v694, 4294901760
        %v977 = vsub.f32 %v694, %v976
        %978 = vmatpush1.msra.mxu0 %v977
        %979 = vmatprep.subr.mxu0 0.0
        %v980 = vand.u32 %v695, 4294901760
        %v981 = vsub.f32 %v695, %v980
        %982 = vmatpush1.msra.mxu0 %v981
        %983 = vmatprep.subr.mxu0 0.0
        %v984 = vand.u32 %v696, 4294901760
        %v985 = vsub.f32 %v696, %v984
        %986 = vmatpush1.msra.mxu0 %v985
        %987 = vmatprep.subr.mxu0 0.0
        %v988 = vand.u32 %v697, 4294901760
        %v989 = vsub.f32 %v697, %v988
        %990 = vmatpush1.msra.mxu0 %v989
        %991 = vmatprep.subr.mxu0 0.0
        %v992 = vand.u32 %v698, 4294901760
        %v993 = vsub.f32 %v698, %v992
        %994 = vmatpush1.msra.mxu0 %v993
        %995 = vmatprep.subr.mxu0 0.0
        %v996 = vand.u32 %v699, 4294901760
        %v997 = vsub.f32 %v699, %v996
        %998 = vmatpush1.msra.mxu0 %v997
        %999 = vmatprep.subr.mxu0 0.0
        %v1000 = vand.u32 %v700, 4294901760
        %v1001 = vsub.f32 %v700, %v1000
        %1002 = vmatpush1.msra.mxu0 %v1001
        %1003 = vmatprep.subr.mxu0 0.0
        %v1004 = vand.u32 %v701, 4294901760
        %v1005 = vsub.f32 %v701, %v1004
        %1006 = vmatpush1.msra.mxu0 %v1005
        %1007 = vmatprep.subr.mxu0 0.0
        %v1008 = vand.u32 %v702, 4294901760
        %v1009 = vsub.f32 %v702, %v1008
        %1010 = vmatpush1.msra.mxu0 %v1009
        %1011 = vmatprep.subr.mxu0 0.0
        %v1012 = vand.u32 %v703, 4294901760
        %v1013 = vsub.f32 %v703, %v1012
        %1014 = vmatpush1.msra.mxu0 %v1013
        %1015 = vmatprep.subr.mxu0 0.0
        %v1016 = vand.u32 %v704, 4294901760
        %v1017 = vsub.f32 %v704, %v1016
        %1018 = vmatpush1.msra.mxu0 %v1017
        %1019 = vmatprep.subr.mxu0 0.0
        %v1020 = vand.u32 %v705, 4294901760
        %v1021 = vsub.f32 %v705, %v1020
        %1022 = vmatpush1.msra.mxu0 %v1021
        %1023 = vmatprep.subr.mxu0 0.0
        %v1024 = vand.u32 %v706, 4294901760
        %v1025 = vsub.f32 %v706, %v1024
        %1026 = vmatpush1.msra.mxu0 %v1025
        %1027 = vmatprep.subr.mxu0 0.0
        %v1028 = vand.u32 %v707, 4294901760
        %v1029 = vsub.f32 %v707, %v1028
        %1030 = vmatpush1.msra.mxu0 %v1029
        %1031 = vmatprep.subr.mxu0 0.0
        %v1032 = vand.u32 %v708, 4294901760
        %v1033 = vsub.f32 %v708, %v1032
        %1034 = vmatpush1.msra.mxu0 %v1033
        %1035 = vmatprep.subr.mxu0 0.0
        %v1036 = vand.u32 %v709, 4294901760
        %v1037 = vsub.f32 %v709, %v1036
        %1038 = vmatpush1.msra.mxu0 %v1037
        %1039 = vmatprep.subr.mxu0 0.0
        %1040 = vmatpush1.msra.mxu0 0.0
        %1041 = vmatprep.subr.mxu0 0.0
        %1042 = vmatpush1.msra.mxu0 0.0
        %1043 = vmatprep.subr.mxu0 0.0
        %1044 = vmatpush1.msra.mxu0 0.0
        %1045 = vmatprep.subr.mxu0 0.0
        %1046 = vmatpush1.msra.mxu0 0.0
        %1047 = vmatprep.subr.mxu0 0.0
        %1048 = vmatpush1.msra.mxu0 0.0
        %1049 = vmatprep.subr.mxu0 0.0
        %1050 = vmatpush1.msra.mxu0 0.0
        %1051 = vmatprep.subr.mxu0 0.0
        %1052 = vmatpush1.msra.mxu0 0.0
        %1053 = vmatprep.subr.mxu0 0.0
        %1054 = vmatpush1.msra.mxu0 0.0
        %1055 = vmatprep.subr.mxu0 0.0
        %1056 = vmatpush1.msra.mxu0 0.0
        %1057 = vmatprep.subr.mxu0 0.0
        %1058 = vmatpush1.msra.mxu0 0.0
        %1059 = vmatprep.subr.mxu0 0.0
        %1060 = vmatpush1.msra.mxu0 0.0
        %1061 = vmatprep.subr.mxu0 0.0
        %1062 = vmatpush1.msra.mxu0 0.0
        %1063 = vmatprep.subr.mxu0 0.0
        %1064 = vmatpush1.msra.mxu0 0.0
        %1065 = vmatprep.subr.mxu0 0.0
        %1066 = vmatpush1.msra.mxu0 0.0
        %1067 = vmatprep.subr.mxu0 0.0
        %1068 = vmatpush1.msra.mxu0 0.0
        %1069 = vmatprep.subr.mxu0 0.0
        %1070 = vmatpush1.msra.mxu0 0.0
        %1071 = vmatprep.mubr.f32.mxu0 0.0
        %v1072 = vand.u32 %v682, 4294901760
        %v1073 = vsub.f32 %v682, %v1072
        %1074 = vmatmul.mubr.f32.gmra.mrb[0].mxu0 %v1073
        %v1075 = vpop.f32.mrb[0].mxu0
        %v1076 = vadd.f32 %v966, %v1075
        %v1077 = vpop.f32.mrb[0].mxu0
        %1078 = vmatprep.mubr.f32.mxu0 0.0
        %v1079 = vand.u32 %v683, 4294901760
        %v1080 = vsub.f32 %v683, %v1079
        %1081 = vmatmul.mubr.f32.gmra.mrb[0].mxu0 %v1080
        %v1082 = vpop.f32.mrb[0].mxu0
        %v1083 = vadd.f32 %v972, %v1082
        %v1084 = vpop.f32.mrb[0].mxu0
        %1085 = vdwg.mxu0
        %1086 = vmatprep.subr.mxu0 0.0
        %v1087 = vand.u32 %v694, 4294901760
        %1088 = vmatpush1.msra.mxu0 %v1087
        %1089 = vmatprep.subr.mxu0 0.0
        %v1090 = vand.u32 %v695, 4294901760
        %1091 = vmatpush1.msra.mxu0 %v1090
        %1092 = vmatprep.subr.mxu0 0.0
        %v1093 = vand.u32 %v696, 4294901760
        %1094 = vmatpush1.msra.mxu0 %v1093
        %1095 = vmatprep.subr.mxu0 0.0
        %v1096 = vand.u32 %v697, 4294901760
        %1097 = vmatpush1.msra.mxu0 %v1096
        %1098 = vmatprep.subr.mxu0 0.0
        %v1099 = vand.u32 %v698, 4294901760
        %1100 = vmatpush1.msra.mxu0 %v1099
        %1101 = vmatprep.subr.mxu0 0.0
        %v1102 = vand.u32 %v699, 4294901760
        %1103 = vmatpush1.msra.mxu0 %v1102
        %1104 = vmatprep.subr.mxu0 0.0
        %v1105 = vand.u32 %v700, 4294901760
        %1106 = vmatpush1.msra.mxu0 %v1105
        %1107 = vmatprep.subr.mxu0 0.0
        %v1108 = vand.u32 %v701, 4294901760
        %1109 = vmatpush1.msra.mxu0 %v1108
        %1110 = vmatprep.subr.mxu0 0.0
        %v1111 = vand.u32 %v702, 4294901760
        %1112 = vmatpush1.msra.mxu0 %v1111
        %1113 = vmatprep.subr.mxu0 0.0
        %v1114 = vand.u32 %v703, 4294901760
        %1115 = vmatpush1.msra.mxu0 %v1114
        %1116 = vmatprep.subr.mxu0 0.0
        %v1117 = vand.u32 %v704, 4294901760
        %1118 = vmatpush1.msra.mxu0 %v1117
        %1119 = vmatprep.subr.mxu0 0.0
        %v1120 = vand.u32 %v705, 4294901760
        %1121 = vmatpush1.msra.mxu0 %v1120
        %1122 = vmatprep.subr.mxu0 0.0
        %v1123 = vand.u32 %v706, 4294901760
        %1124 = vmatpush1.msra.mxu0 %v1123
        %1125 = vmatprep.subr.mxu0 0.0
        %v1126 = vand.u32 %v707, 4294901760
        %1127 = vmatpush1.msra.mxu0 %v1126
        %1128 = vmatprep.subr.mxu0 0.0
        %v1129 = vand.u32 %v708, 4294901760
        %1130 = vmatpush1.msra.mxu0 %v1129
        %1131 = vmatprep.subr.mxu0 0.0
        %v1132 = vand.u32 %v709, 4294901760
        %1133 = vmatpush1.msra.mxu0 %v1132
        %1134 = vmatprep.subr.mxu0 0.0
        %1135 = vmatpush1.msra.mxu0 0.0
        %1136 = vmatprep.subr.mxu0 0.0
        %1137 = vmatpush1.msra.mxu0 0.0
        %1138 = vmatprep.subr.mxu0 0.0
        %1139 = vmatpush1.msra.mxu0 0.0
        %1140 = vmatprep.subr.mxu0 0.0
        %1141 = vmatpush1.msra.mxu0 0.0
        %1142 = vmatprep.subr.mxu0 0.0
        %1143 = vmatpush1.msra.mxu0 0.0
        %1144 = vmatprep.subr.mxu0 0.0
        %1145 = vmatpush1.msra.mxu0 0.0
        %1146 = vmatprep.subr.mxu0 0.0
        %1147 = vmatpush1.msra.mxu0 0.0
        %1148 = vmatprep.subr.mxu0 0.0
        %1149 = vmatpush1.msra.mxu0 0.0
        %1150 = vmatprep.subr.mxu0 0.0
        %1151 = vmatpush1.msra.mxu0 0.0
        %1152 = vmatprep.subr.mxu0 0.0
        %1153 = vmatpush1.msra.mxu0 0.0
        %1154 = vmatprep.subr.mxu0 0.0
        %1155 = vmatpush1.msra.mxu0 0.0
        %1156 = vmatprep.subr.mxu0 0.0
        %1157 = vmatpush1.msra.mxu0 0.0
        %1158 = vmatprep.subr.mxu0 0.0
        %1159 = vmatpush1.msra.mxu0 0.0
        %1160 = vmatprep.subr.mxu0 0.0
        %1161 = vmatpush1.msra.mxu0 0.0
        %1162 = vmatprep.subr.mxu0 0.0
        %1163 = vmatpush1.msra.mxu0 0.0
        %1164 = vmatprep.subr.mxu0 0.0
        %1165 = vmatpush1.msra.mxu0 0.0
        %1166 = vmatprep.mubr.f32.mxu0 0.0
        %v1167 = vand.u32 %v682, 4294901760
        %v1168 = vsub.f32 %v682, %v1167
        %v1169 = vand.u32 %v1168, 4294901760
        %1170 = vmatmul.mubr.f32.gmra.mrb[0].mxu0 %v1169
        %v1171 = vpop.f32.mrb[0].mxu0
        %v1172 = vadd.f32 %v1076, %v1171
        %v1173 = vpop.f32.mrb[0].mxu0
        %1174 = vmatprep.mubr.f32.mxu0 0.0
        %v1175 = vand.u32 %v683, 4294901760
        %v1176 = vsub.f32 %v683, %v1175
        %v1177 = vand.u32 %v1176, 4294901760
        %1178 = vmatmul.mubr.f32.gmra.mrb[0].mxu0 %v1177
        %v1179 = vpop.f32.mrb[0].mxu0
        %v1180 = vadd.f32 %v1083, %v1179
        %v1181 = vpop.f32.mrb[0].mxu0
        %1182 = vdwg.mxu0
        %1183 = vmatprep.subr.mxu0 0.0
        %v1184 = vand.u32 %v694, 4294901760
        %v1185 = vsub.f32 %v694, %v1184
        %v1186 = vand.u32 %v1185, 4294901760
        %1187 = vmatpush1.msra.mxu0 %v1186
        %1188 = vmatprep.subr.mxu0 0.0
        %v1189 = vand.u32 %v695, 4294901760
        %v1190 = vsub.f32 %v695, %v1189
        %v1191 = vand.u32 %v1190, 4294901760
        %1192 = vmatpush1.msra.mxu0 %v1191
        %1193 = vmatprep.subr.mxu0 0.0
        %v1194 = vand.u32 %v696, 4294901760
        %v1195 = vsub.f32 %v696, %v1194
        %v1196 = vand.u32 %v1195, 4294901760
        %1197 = vmatpush1.msra.mxu0 %v1196
        %1198 = vmatprep.subr.mxu0 0.0
        %v1199 = vand.u32 %v697, 4294901760
        %v1200 = vsub.f32 %v697, %v1199
        %v1201 = vand.u32 %v1200, 4294901760
        %1202 = vmatpush1.msra.mxu0 %v1201
        %1203 = vmatprep.subr.mxu0 0.0
        %v1204 = vand.u32 %v698, 4294901760
        %v1205 = vsub.f32 %v698, %v1204
        %v1206 = vand.u32 %v1205, 4294901760
        %1207 = vmatpush1.msra.mxu0 %v1206
        %1208 = vmatprep.subr.mxu0 0.0
        %v1209 = vand.u32 %v699, 4294901760
        %v1210 = vsub.f32 %v699, %v1209
        %v1211 = vand.u32 %v1210, 4294901760
        %1212 = vmatpush1.msra.mxu0 %v1211
        %1213 = vmatprep.subr.mxu0 0.0
        %v1214 = vand.u32 %v700, 4294901760
        %v1215 = vsub.f32 %v700, %v1214
        %v1216 = vand.u32 %v1215, 4294901760
        %1217 = vmatpush1.msra.mxu0 %v1216
        %1218 = vmatprep.subr.mxu0 0.0
        %v1219 = vand.u32 %v701, 4294901760
        %v1220 = vsub.f32 %v701, %v1219
        %v1221 = vand.u32 %v1220, 4294901760
        %1222 = vmatpush1.msra.mxu0 %v1221
        %1223 = vmatprep.subr.mxu0 0.0
        %v1224 = vand.u32 %v702, 4294901760
        %v1225 = vsub.f32 %v702, %v1224
        %v1226 = vand.u32 %v1225, 4294901760
        %1227 = vmatpush1.msra.mxu0 %v1226
        %1228 = vmatprep.subr.mxu0 0.0
        %v1229 = vand.u32 %v703, 4294901760
        %v1230 = vsub.f32 %v703, %v1229
        %v1231 = vand.u32 %v1230, 4294901760
        %1232 = vmatpush1.msra.mxu0 %v1231
        %1233 = vmatprep.subr.mxu0 0.0
        %v1234 = vand.u32 %v704, 4294901760
        %v1235 = vsub.f32 %v704, %v1234
        %v1236 = vand.u32 %v1235, 4294901760
        %1237 = vmatpush1.msra.mxu0 %v1236
        %1238 = vmatprep.subr.mxu0 0.0
        %v1239 = vand.u32 %v705, 4294901760
        %v1240 = vsub.f32 %v705, %v1239
        %v1241 = vand.u32 %v1240, 4294901760
        %1242 = vmatpush1.msra.mxu0 %v1241
        %1243 = vmatprep.subr.mxu0 0.0
        %v1244 = vand.u32 %v706, 4294901760
        %v1245 = vsub.f32 %v706, %v1244
        %v1246 = vand.u32 %v1245, 4294901760
        %1247 = vmatpush1.msra.mxu0 %v1246
        %1248 = vmatprep.subr.mxu0 0.0
        %v1249 = vand.u32 %v707, 4294901760
        %v1250 = vsub.f32 %v707, %v1249
        %v1251 = vand.u32 %v1250, 4294901760
        %1252 = vmatpush1.msra.mxu0 %v1251
        %1253 = vmatprep.subr.mxu0 0.0
        %v1254 = vand.u32 %v708, 4294901760
        %v1255 = vsub.f32 %v708, %v1254
        %v1256 = vand.u32 %v1255, 4294901760
        %1257 = vmatpush1.msra.mxu0 %v1256
        %1258 = vmatprep.subr.mxu0 0.0
        %v1259 = vand.u32 %v709, 4294901760
        %v1260 = vsub.f32 %v709, %v1259
        %v1261 = vand.u32 %v1260, 4294901760
        %1262 = vmatpush1.msra.mxu0 %v1261
        %1263 = vmatprep.subr.mxu0 0.0
        %1264 = vmatpush1.msra.mxu0 0.0
        %1265 = vmatprep.subr.mxu0 0.0
        %1266 = vmatpush1.msra.mxu0 0.0
        %1267 = vmatprep.subr.mxu0 0.0
        %1268 = vmatpush1.msra.mxu0 0.0
        %1269 = vmatprep.subr.mxu0 0.0
        %1270 = vmatpush1.msra.mxu0 0.0
        %1271 = vmatprep.subr.mxu0 0.0
        %1272 = vmatpush1.msra.mxu0 0.0
        %1273 = vmatprep.subr.mxu0 0.0
        %1274 = vmatpush1.msra.mxu0 0.0
        %1275 = vmatprep.subr.mxu0 0.0
        %1276 = vmatpush1.msra.mxu0 0.0
        %1277 = vmatprep.subr.mxu0 0.0
        %1278 = vmatpush1.msra.mxu0 0.0
        %1279 = vmatprep.subr.mxu0 0.0
        %1280 = vmatpush1.msra.mxu0 0.0
        %1281 = vmatprep.subr.mxu0 0.0
        %1282 = vmatpush1.msra.mxu0 0.0
        %1283 = vmatprep.subr.mxu0 0.0
        %1284 = vmatpush1.msra.mxu0 0.0
        %1285 = vmatprep.subr.mxu0 0.0
        %1286 = vmatpush1.msra.mxu0 0.0
        %1287 = vmatprep.subr.mxu0 0.0
        %1288 = vmatpush1.msra.mxu0 0.0
        %1289 = vmatprep.subr.mxu0 0.0
        %1290 = vmatpush1.msra.mxu0 0.0
        %1291 = vmatprep.subr.mxu0 0.0
        %1292 = vmatpush1.msra.mxu0 0.0
        %1293 = vmatprep.subr.mxu0 0.0
        %1294 = vmatpush1.msra.mxu0 0.0
        %1295 = vmatprep.mubr.f32.mxu0 0.0
        %v1296 = vand.u32 %v682, 4294901760
        %1297 = vmatmul.mubr.f32.gmra.mrb[0].mxu0 %v1296
        %v1298 = vpop.f32.mrb[0].mxu0
        %v1299 = vadd.f32 %v1172, %v1298
        %v1300 = vpop.f32.mrb[0].mxu0
        %1301 = vmatprep.mubr.f32.mxu0 0.0
        %v1302 = vand.u32 %v683, 4294901760
        %1303 = vmatmul.mubr.f32.gmra.mrb[0].mxu0 %v1302
        %v1304 = vpop.f32.mrb[0].mxu0
        %v1305 = vadd.f32 %v1180, %v1304
        %v1306 = vpop.f32.mrb[0].mxu0
        %1307 = vdwg.mxu0
        %1308 = vmatprep.subr.mxu0 0.0
        %v1309 = vand.u32 %v694, 4294901760
        %1310 = vmatpush1.msra.mxu0 %v1309
        %1311 = vmatprep.subr.mxu0 0.0
        %v1312 = vand.u32 %v695, 4294901760
        %1313 = vmatpush1.msra.mxu0 %v1312
        %1314 = vmatprep.subr.mxu0 0.0
        %v1315 = vand.u32 %v696, 4294901760
        %1316 = vmatpush1.msra.mxu0 %v1315
        %1317 = vmatprep.subr.mxu0 0.0
        %v1318 = vand.u32 %v697, 4294901760
        %1319 = vmatpush1.msra.mxu0 %v1318
        %1320 = vmatprep.subr.mxu0 0.0
        %v1321 = vand.u32 %v698, 4294901760
        %1322 = vmatpush1.msra.mxu0 %v1321
        %1323 = vmatprep.subr.mxu0 0.0
        %v1324 = vand.u32 %v699, 4294901760
        %1325 = vmatpush1.msra.mxu0 %v1324
        %1326 = vmatprep.subr.mxu0 0.0
        %v1327 = vand.u32 %v700, 4294901760
        %1328 = vmatpush1.msra.mxu0 %v1327
        %1329 = vmatprep.subr.mxu0 0.0
        %v1330 = vand.u32 %v701, 4294901760
        %1331 = vmatpush1.msra.mxu0 %v1330
        %1332 = vmatprep.subr.mxu0 0.0
        %v1333 = vand.u32 %v702, 4294901760
        %1334 = vmatpush1.msra.mxu0 %v1333
        %1335 = vmatprep.subr.mxu0 0.0
        %v1336 = vand.u32 %v703, 4294901760
        %1337 = vmatpush1.msra.mxu0 %v1336
        %1338 = vmatprep.subr.mxu0 0.0
        %v1339 = vand.u32 %v704, 4294901760
        %1340 = vmatpush1.msra.mxu0 %v1339
        %1341 = vmatprep.subr.mxu0 0.0
        %v1342 = vand.u32 %v705, 4294901760
        %1343 = vmatpush1.msra.mxu0 %v1342
        %1344 = vmatprep.subr.mxu0 0.0
        %v1345 = vand.u32 %v706, 4294901760
        %1346 = vmatpush1.msra.mxu0 %v1345
        %1347 = vmatprep.subr.mxu0 0.0
        %v1348 = vand.u32 %v707, 4294901760
        %1349 = vmatpush1.msra.mxu0 %v1348
        %1350 = vmatprep.subr.mxu0 0.0
        %v1351 = vand.u32 %v708, 4294901760
        %1352 = vmatpush1.msra.mxu0 %v1351
        %1353 = vmatprep.subr.mxu0 0.0
        %v1354 = vand.u32 %v709, 4294901760
        %1355 = vmatpush1.msra.mxu0 %v1354
        %1356 = vmatprep.subr.mxu0 0.0
        %1357 = vmatpush1.msra.mxu0 0.0
        %1358 = vmatprep.subr.mxu0 0.0
        %1359 = vmatpush1.msra.mxu0 0.0
        %1360 = vmatprep.subr.mxu0 0.0
        %1361 = vmatpush1.msra.mxu0 0.0
        %1362 = vmatprep.subr.mxu0 0.0
        %1363 = vmatpush1.msra.mxu0 0.0
        %1364 = vmatprep.subr.mxu0 0.0
        %1365 = vmatpush1.msra.mxu0 0.0
        %1366 = vmatprep.subr.mxu0 0.0
        %1367 = vmatpush1.msra.mxu0 0.0
        %1368 = vmatprep.subr.mxu0 0.0
        %1369 = vmatpush1.msra.mxu0 0.0
        %1370 = vmatprep.subr.mxu0 0.0
        %1371 = vmatpush1.msra.mxu0 0.0
        %1372 = vmatprep.subr.mxu0 0.0
        %1373 = vmatpush1.msra.mxu0 0.0
        %1374 = vmatprep.subr.mxu0 0.0
        %1375 = vmatpush1.msra.mxu0 0.0
        %1376 = vmatprep.subr.mxu0 0.0
        %1377 = vmatpush1.msra.mxu0 0.0
        %1378 = vmatprep.subr.mxu0 0.0
        %1379 = vmatpush1.msra.mxu0 0.0
        %1380 = vmatprep.subr.mxu0 0.0
        %1381 = vmatpush1.msra.mxu0 0.0
        %1382 = vmatprep.subr.mxu0 0.0
        %1383 = vmatpush1.msra.mxu0 0.0
        %1384 = vmatprep.subr.mxu0 0.0
        %1385 = vmatpush1.msra.mxu0 0.0
        %1386 = vmatprep.subr.mxu0 0.0
        %1387 = vmatpush1.msra.mxu0 0.0
        %1388 = vmatprep.mubr.f32.mxu0 0.0
        %v1389 = vand.u32 %v682, 4294901760
        %1390 = vmatmul.mubr.f32.gmra.mrb[0].mxu0 %v1389
        %v1391 = vpop.f32.mrb[0].mxu0
        %v1392 = vadd.f32 %v1299, %v1391
        %v1393 = vpop.f32.mrb[0].mxu0
        %1394 = vmatprep.mubr.f32.mxu0 0.0
        %v1395 = vand.u32 %v683, 4294901760
        %1396 = vmatmul.mubr.f32.gmra.mrb[0].mxu0 %v1395
        %v1397 = vpop.f32.mrb[0].mxu0
        %v1398 = vadd.f32 %v1305, %v1397
        %v1399 = vpop.f32.mrb[0].mxu0
        %1400 = vdwg.mxu0
        %v1401 = vld [vmem:[#allocation10] sm:$0xff]
        %v1402 = vld [vmem:[#allocation10 + $0x8] sm:$0xff]
        %v1403 = vld [vmem:[#allocation10 + $0x10] sm:$0xff]
        %v1404 = vld [vmem:[#allocation10 + $0x18] sm:$0xff]
        %v1405 = vld [vmem:[#allocation10 + $0x20] sm:$0xff]
        %v1406 = vld [vmem:[#allocation10 + $0x28] sm:$0xff]
        %v1407 = vld [vmem:[#allocation10 + $0x30] sm:$0xff]
        %v1408 = vld [vmem:[#allocation10 + $0x38] sm:$0xff]
        %v1409 = vld [vmem:[#allocation10 + $0x40] sm:$0xff]
        %v1410 = vld [vmem:[#allocation10 + $0x48] sm:$0xff]
        %v1411 = vld [vmem:[#allocation10 + $0x50] sm:$0xff]
        %v1412 = vld [vmem:[#allocation10 + $0x58] sm:$0xff]
        %v1413 = vld [vmem:[#allocation10 + $0x60] sm:$0xff]
        %v1414 = vld [vmem:[#allocation10 + $0x68] sm:$0xff]
        %v1415 = vld [vmem:[#allocation10 + $0x70] sm:$0xff]
        %v1416 = vld [vmem:[#allocation10 + $0x78] sm:$0xff]
        %v1417 = vld [vmem:[%s8] sm:$0x1]
        %v1419 = vlaneseq
        %v1420 = vshrl.u32 %v1419, 7
        %v1421 = vsub.s32 0, %v1420
        %v1422 = vrot.slane %v1417, %v1421
        %1424 = vmatprep.subr.mxu0 0.0
        %v1425 = vand.u32 %v1401, 4294901760
        %1426 = vmatpush1.msra.mxu0 %v1425
        %1427 = vmatprep.subr.mxu0 0.0
        %v1428 = vand.u32 %v1402, 4294901760
        %1429 = vmatpush1.msra.mxu0 %v1428
        %1430 = vmatprep.subr.mxu0 0.0
        %v1431 = vand.u32 %v1403, 4294901760
        %1432 = vmatpush1.msra.mxu0 %v1431
        %1433 = vmatprep.subr.mxu0 0.0
        %v1434 = vand.u32 %v1404, 4294901760
        %1435 = vmatpush1.msra.mxu0 %v1434
        %1436 = vmatprep.subr.mxu0 0.0
        %v1437 = vand.u32 %v1405, 4294901760
        %1438 = vmatpush1.msra.mxu0 %v1437
        %1439 = vmatprep.subr.mxu0 0.0
        %v1440 = vand.u32 %v1406, 4294901760
        %1441 = vmatpush1.msra.mxu0 %v1440
        %1442 = vmatprep.subr.mxu0 0.0
        %v1443 = vand.u32 %v1407, 4294901760
        %1444 = vmatpush1.msra.mxu0 %v1443
        %1445 = vmatprep.subr.mxu0 0.0
        %v1446 = vand.u32 %v1408, 4294901760
        %1447 = vmatpush1.msra.mxu0 %v1446
        %1448 = vmatprep.subr.mxu0 0.0
        %v1449 = vand.u32 %v1409, 4294901760
        %1450 = vmatpush1.msra.mxu0 %v1449
        %1451 = vmatprep.subr.mxu0 0.0
        %v1452 = vand.u32 %v1410, 4294901760
        %1453 = vmatpush1.msra.mxu0 %v1452
        %1454 = vmatprep.subr.mxu0 0.0
        %v1455 = vand.u32 %v1411, 4294901760
        %1456 = vmatpush1.msra.mxu0 %v1455
        %1457 = vmatprep.subr.mxu0 0.0
        %v1458 = vand.u32 %v1412, 4294901760
        %1459 = vmatpush1.msra.mxu0 %v1458
        %1460 = vmatprep.subr.mxu0 0.0
        %v1461 = vand.u32 %v1413, 4294901760
        %1462 = vmatpush1.msra.mxu0 %v1461
        %1463 = vmatprep.subr.mxu0 0.0
        %v1464 = vand.u32 %v1414, 4294901760
        %1465 = vmatpush1.msra.mxu0 %v1464
        %1466 = vmatprep.subr.mxu0 0.0
        %v1467 = vand.u32 %v1415, 4294901760
        %1468 = vmatpush1.msra.mxu0 %v1467
        %1469 = vmatprep.subr.mxu0 0.0
        %v1470 = vand.u32 %v1416, 4294901760
        %1471 = vmatpush1.msra.mxu0 %v1470
        %1472 = vmatprep.subr.mxu0 0.0
        %1473 = vmatpush1.msra.mxu0 0.0
        %1474 = vmatprep.subr.mxu0 0.0
        %1475 = vmatpush1.msra.mxu0 0.0
        %1476 = vmatprep.subr.mxu0 0.0
        %1477 = vmatpush1.msra.mxu0 0.0
        %1478 = vmatprep.subr.mxu0 0.0
        %1479 = vmatpush1.msra.mxu0 0.0
        %1480 = vmatprep.subr.mxu0 0.0
        %1481 = vmatpush1.msra.mxu0 0.0
        %1482 = vmatprep.subr.mxu0 0.0
        %1483 = vmatpush1.msra.mxu0 0.0
        %1484 = vmatprep.subr.mxu0 0.0
        %1485 = vmatpush1.msra.mxu0 0.0
        %1486 = vmatprep.subr.mxu0 0.0
        %1487 = vmatpush1.msra.mxu0 0.0
        %1488 = vmatprep.subr.mxu0 0.0
        %1489 = vmatpush1.msra.mxu0 0.0
        %1490 = vmatprep.subr.mxu0 0.0
        %1491 = vmatpush1.msra.mxu0 0.0
        %1492 = vmatprep.subr.mxu0 0.0
        %1493 = vmatpush1.msra.mxu0 0.0
        %1494 = vmatprep.subr.mxu0 0.0
        %1495 = vmatpush1.msra.mxu0 0.0
        %1496 = vmatprep.subr.mxu0 0.0
        %1497 = vmatpush1.msra.mxu0 0.0
        %1498 = vmatprep.subr.mxu0 0.0
        %1499 = vmatpush1.msra.mxu0 0.0
        %1500 = vmatprep.subr.mxu0 0.0
        %1501 = vmatpush1.msra.mxu0 0.0
        %1502 = vmatprep.subr.mxu0 0.0
        %1503 = vmatpush1.msra.mxu0 0.0
        %1504 = vmatprep.mubr.f32.mxu0 0.0
        %v1505 = vand.u32 %v684, 4294901760
        %v1506 = vsub.f32 %v684, %v1505
        %v1507 = vand.u32 %v1506, 4294901760
        %v1508 = vsub.f32 %v1506, %v1507
        %v1509 = vand.u32 %v1508, 4294901760
        %1510 = vmatmul.mubr.f32.gmra.mrb[0].mxu0 %v1509
        %v1511 = vpop.f32.mrb[0].mxu0
        %v1512 = vadd.f32 %v1422, %v1511
        %v1513 = vpop.f32.mrb[0].mxu0
        %1514 = vmatprep.mubr.f32.mxu0 0.0
        %v1515 = vand.u32 %v685, 4294901760
        %v1516 = vsub.f32 %v685, %v1515
        %v1517 = vand.u32 %v1516, 4294901760
        %v1518 = vsub.f32 %v1516, %v1517
        %v1519 = vand.u32 %v1518, 4294901760
        %1520 = vmatmul.mubr.f32.gmra.mrb[0].mxu0 %v1519
        %v1521 = vpop.f32.mrb[0].mxu0
        %v1522 = vadd.f32 %v1422, %v1521
        %v1523 = vpop.f32.mrb[0].mxu0
        %1524 = vdwg.mxu0
        %1525 = vmatprep.subr.mxu0 0.0
        %v1526 = vand.u32 %v1401, 4294901760
        %v1527 = vsub.f32 %v1401, %v1526
        %v1528 = vand.u32 %v1527, 4294901760
        %v1529 = vsub.f32 %v1527, %v1528
        %v1530 = vand.u32 %v1529, 4294901760
        %1531 = vmatpush1.msra.mxu0 %v1530
        %1532 = vmatprep.subr.mxu0 0.0
        %v1533 = vand.u32 %v1402, 4294901760
        %v1534 = vsub.f32 %v1402, %v1533
        %v1535 = vand.u32 %v1534, 4294901760
        %v1536 = vsub.f32 %v1534, %v1535
        %v1537 = vand.u32 %v1536, 4294901760
        %1538 = vmatpush1.msra.mxu0 %v1537
        %1539 = vmatprep.subr.mxu0 0.0
        %v1540 = vand.u32 %v1403, 4294901760
        %v1541 = vsub.f32 %v1403, %v1540
        %v1542 = vand.u32 %v1541, 4294901760
        %v1543 = vsub.f32 %v1541, %v1542
        %v1544 = vand.u32 %v1543, 4294901760
        %1545 = vmatpush1.msra.mxu0 %v1544
        %1546 = vmatprep.subr.mxu0 0.0
        %v1547 = vand.u32 %v1404, 4294901760
        %v1548 = vsub.f32 %v1404, %v1547
        %v1549 = vand.u32 %v1548, 4294901760
        %v1550 = vsub.f32 %v1548, %v1549
        %v1551 = vand.u32 %v1550, 4294901760
        %1552 = vmatpush1.msra.mxu0 %v1551
        %1553 = vmatprep.subr.mxu0 0.0
        %v1554 = vand.u32 %v1405, 4294901760
        %v1555 = vsub.f32 %v1405, %v1554
        %v1556 = vand.u32 %v1555, 4294901760
        %v1557 = vsub.f32 %v1555, %v1556
        %v1558 = vand.u32 %v1557, 4294901760
        %1559 = vmatpush1.msra.mxu0 %v1558
        %1560 = vmatprep.subr.mxu0 0.0
        %v1561 = vand.u32 %v1406, 4294901760
        %v1562 = vsub.f32 %v1406, %v1561
        %v1563 = vand.u32 %v1562, 4294901760
        %v1564 = vsub.f32 %v1562, %v1563
        %v1565 = vand.u32 %v1564, 4294901760
        %1566 = vmatpush1.msra.mxu0 %v1565
        %1567 = vmatprep.subr.mxu0 0.0
        %v1568 = vand.u32 %v1407, 4294901760
        %v1569 = vsub.f32 %v1407, %v1568
        %v1570 = vand.u32 %v1569, 4294901760
        %v1571 = vsub.f32 %v1569, %v1570
        %v1572 = vand.u32 %v1571, 4294901760
        %1573 = vmatpush1.msra.mxu0 %v1572
        %1574 = vmatprep.subr.mxu0 0.0
        %v1575 = vand.u32 %v1408, 4294901760
        %v1576 = vsub.f32 %v1408, %v1575
        %v1577 = vand.u32 %v1576, 4294901760
        %v1578 = vsub.f32 %v1576, %v1577
        %v1579 = vand.u32 %v1578, 4294901760
        %1580 = vmatpush1.msra.mxu0 %v1579
        %1581 = vmatprep.subr.mxu0 0.0
        %v1582 = vand.u32 %v1409, 4294901760
        %v1583 = vsub.f32 %v1409, %v1582
        %v1584 = vand.u32 %v1583, 4294901760
        %v1585 = vsub.f32 %v1583, %v1584
        %v1586 = vand.u32 %v1585, 4294901760
        %1587 = vmatpush1.msra.mxu0 %v1586
        %1588 = vmatprep.subr.mxu0 0.0
        %v1589 = vand.u32 %v1410, 4294901760
        %v1590 = vsub.f32 %v1410, %v1589
        %v1591 = vand.u32 %v1590, 4294901760
        %v1592 = vsub.f32 %v1590, %v1591
        %v1593 = vand.u32 %v1592, 4294901760
        %1594 = vmatpush1.msra.mxu0 %v1593
        %1595 = vmatprep.subr.mxu0 0.0
        %v1596 = vand.u32 %v1411, 4294901760
        %v1597 = vsub.f32 %v1411, %v1596
        %v1598 = vand.u32 %v1597, 4294901760
        %v1599 = vsub.f32 %v1597, %v1598
        %v1600 = vand.u32 %v1599, 4294901760
        %1601 = vmatpush1.msra.mxu0 %v1600
        %1602 = vmatprep.subr.mxu0 0.0
        %v1603 = vand.u32 %v1412, 4294901760
        %v1604 = vsub.f32 %v1412, %v1603
        %v1605 = vand.u32 %v1604, 4294901760
        %v1606 = vsub.f32 %v1604, %v1605
        %v1607 = vand.u32 %v1606, 4294901760
        %1608 = vmatpush1.msra.mxu0 %v1607
        %1609 = vmatprep.subr.mxu0 0.0
        %v1610 = vand.u32 %v1413, 4294901760
        %v1611 = vsub.f32 %v1413, %v1610
        %v1612 = vand.u32 %v1611, 4294901760
        %v1613 = vsub.f32 %v1611, %v1612
        %v1614 = vand.u32 %v1613, 4294901760
        %1615 = vmatpush1.msra.mxu0 %v1614
        %1616 = vmatprep.subr.mxu0 0.0
        %v1617 = vand.u32 %v1414, 4294901760
        %v1618 = vsub.f32 %v1414, %v1617
        %v1619 = vand.u32 %v1618, 4294901760
        %v1620 = vsub.f32 %v1618, %v1619
        %v1621 = vand.u32 %v1620, 4294901760
        %1622 = vmatpush1.msra.mxu0 %v1621
        %1623 = vmatprep.subr.mxu0 0.0
        %v1624 = vand.u32 %v1415, 4294901760
        %v1625 = vsub.f32 %v1415, %v1624
        %v1626 = vand.u32 %v1625, 4294901760
        %v1627 = vsub.f32 %v1625, %v1626
        %v1628 = vand.u32 %v1627, 4294901760
        %1629 = vmatpush1.msra.mxu0 %v1628
        %1630 = vmatprep.subr.mxu0 0.0
        %v1631 = vand.u32 %v1416, 4294901760
        %v1632 = vsub.f32 %v1416, %v1631
        %v1633 = vand.u32 %v1632, 4294901760
        %v1634 = vsub.f32 %v1632, %v1633
        %v1635 = vand.u32 %v1634, 4294901760
        %1636 = vmatpush1.msra.mxu0 %v1635
        %1637 = vmatprep.subr.mxu0 0.0
        %1638 = vmatpush1.msra.mxu0 0.0
        %1639 = vmatprep.subr.mxu0 0.0
        %1640 = vmatpush1.msra.mxu0 0.0
        %1641 = vmatprep.subr.mxu0 0.0
        %1642 = vmatpush1.msra.mxu0 0.0
        %1643 = vmatprep.subr.mxu0 0.0
        %1644 = vmatpush1.msra.mxu0 0.0
        %1645 = vmatprep.subr.mxu0 0.0
        %1646 = vmatpush1.msra.mxu0 0.0
        %1647 = vmatprep.subr.mxu0 0.0
        %1648 = vmatpush1.msra.mxu0 0.0
        %1649 = vmatprep.subr.mxu0 0.0
        %1650 = vmatpush1.msra.mxu0 0.0
        %1651 = vmatprep.subr.mxu0 0.0
        %1652 = vmatpush1.msra.mxu0 0.0
        %1653 = vmatprep.subr.mxu0 0.0
        %1654 = vmatpush1.msra.mxu0 0.0
        %1655 = vmatprep.subr.mxu0 0.0
        %1656 = vmatpush1.msra.mxu0 0.0
        %1657 = vmatprep.subr.mxu0 0.0
        %1658 = vmatpush1.msra.mxu0 0.0
        %1659 = vmatprep.subr.mxu0 0.0
        %1660 = vmatpush1.msra.mxu0 0.0
        %1661 = vmatprep.subr.mxu0 0.0
        %1662 = vmatpush1.msra.mxu0 0.0
        %1663 = vmatprep.subr.mxu0 0.0
        %1664 = vmatpush1.msra.mxu0 0.0
        %1665 = vmatprep.subr.mxu0 0.0
        %1666 = vmatpush1.msra.mxu0 0.0
        %1667 = vmatprep.subr.mxu0 0.0
        %1668 = vmatpush1.msra.mxu0 0.0
        %1669 = vmatprep.mubr.f32.mxu0 0.0
        %v1670 = vand.u32 %v684, 4294901760
        %1671 = vmatmul.mubr.f32.gmra.mrb[0].mxu0 %v1670
        %v1672 = vpop.f32.mrb[0].mxu0
        %v1673 = vadd.f32 %v1512, %v1672
        %v1674 = vpop.f32.mrb[0].mxu0
        %1675 = vmatprep.mubr.f32.mxu0 0.0
        %v1676 = vand.u32 %v685, 4294901760
        %1677 = vmatmul.mubr.f32.gmra.mrb[0].mxu0 %v1676
        %v1678 = vpop.f32.mrb[0].mxu0
        %v1679 = vadd.f32 %v1522, %v1678
        %v1680 = vpop.f32.mrb[0].mxu0
        %1681 = vdwg.mxu0
        %1682 = vmatprep.subr.mxu0 0.0
        %v1683 = vand.u32 %v1401, 4294901760
        %v1684 = vsub.f32 %v1401, %v1683
        %1685 = vmatpush1.msra.mxu0 %v1684
        %1686 = vmatprep.subr.mxu0 0.0
        %v1687 = vand.u32 %v1402, 4294901760
        %v1688 = vsub.f32 %v1402, %v1687
        %1689 = vmatpush1.msra.mxu0 %v1688
        %1690 = vmatprep.subr.mxu0 0.0
        %v1691 = vand.u32 %v1403, 4294901760
        %v1692 = vsub.f32 %v1403, %v1691
        %1693 = vmatpush1.msra.mxu0 %v1692
        %1694 = vmatprep.subr.mxu0 0.0
        %v1695 = vand.u32 %v1404, 4294901760
        %v1696 = vsub.f32 %v1404, %v1695
        %1697 = vmatpush1.msra.mxu0 %v1696
        %1698 = vmatprep.subr.mxu0 0.0
        %v1699 = vand.u32 %v1405, 4294901760
        %v1700 = vsub.f32 %v1405, %v1699
        %1701 = vmatpush1.msra.mxu0 %v1700
        %1702 = vmatprep.subr.mxu0 0.0
        %v1703 = vand.u32 %v1406, 4294901760
        %v1704 = vsub.f32 %v1406, %v1703
        %1705 = vmatpush1.msra.mxu0 %v1704
        %1706 = vmatprep.subr.mxu0 0.0
        %v1707 = vand.u32 %v1407, 4294901760
        %v1708 = vsub.f32 %v1407, %v1707
        %1709 = vmatpush1.msra.mxu0 %v1708
        %1710 = vmatprep.subr.mxu0 0.0
        %v1711 = vand.u32 %v1408, 4294901760
        %v1712 = vsub.f32 %v1408, %v1711
        %1713 = vmatpush1.msra.mxu0 %v1712
        %1714 = vmatprep.subr.mxu0 0.0
        %v1715 = vand.u32 %v1409, 4294901760
        %v1716 = vsub.f32 %v1409, %v1715
        %1717 = vmatpush1.msra.mxu0 %v1716
        %1718 = vmatprep.subr.mxu0 0.0
        %v1719 = vand.u32 %v1410, 4294901760
        %v1720 = vsub.f32 %v1410, %v1719
        %1721 = vmatpush1.msra.mxu0 %v1720
        %1722 = vmatprep.subr.mxu0 0.0
        %v1723 = vand.u32 %v1411, 4294901760
        %v1724 = vsub.f32 %v1411, %v1723
        %1725 = vmatpush1.msra.mxu0 %v1724
        %1726 = vmatprep.subr.mxu0 0.0
        %v1727 = vand.u32 %v1412, 4294901760
        %v1728 = vsub.f32 %v1412, %v1727
        %1729 = vmatpush1.msra.mxu0 %v1728
        %1730 = vmatprep.subr.mxu0 0.0
        %v1731 = vand.u32 %v1413, 4294901760
        %v1732 = vsub.f32 %v1413, %v1731
        %1733 = vmatpush1.msra.mxu0 %v1732
        %1734 = vmatprep.subr.mxu0 0.0
        %v1735 = vand.u32 %v1414, 4294901760
        %v1736 = vsub.f32 %v1414, %v1735
        %1737 = vmatpush1.msra.mxu0 %v1736
        %1738 = vmatprep.subr.mxu0 0.0
        %v1739 = vand.u32 %v1415, 4294901760
        %v1740 = vsub.f32 %v1415, %v1739
        %1741 = vmatpush1.msra.mxu0 %v1740
        %1742 = vmatprep.subr.mxu0 0.0
        %v1743 = vand.u32 %v1416, 4294901760
        %v1744 = vsub.f32 %v1416, %v1743
        %1745 = vmatpush1.msra.mxu0 %v1744
        %1746 = vmatprep.subr.mxu0 0.0
        %1747 = vmatpush1.msra.mxu0 0.0
        %1748 = vmatprep.subr.mxu0 0.0
        %1749 = vmatpush1.msra.mxu0 0.0
        %1750 = vmatprep.subr.mxu0 0.0
        %1751 = vmatpush1.msra.mxu0 0.0
        %1752 = vmatprep.subr.mxu0 0.0
        %1753 = vmatpush1.msra.mxu0 0.0
        %1754 = vmatprep.subr.mxu0 0.0
        %1755 = vmatpush1.msra.mxu0 0.0
        %1756 = vmatprep.subr.mxu0 0.0
        %1757 = vmatpush1.msra.mxu0 0.0
        %1758 = vmatprep.subr.mxu0 0.0
        %1759 = vmatpush1.msra.mxu0 0.0
        %1760 = vmatprep.subr.mxu0 0.0
        %1761 = vmatpush1.msra.mxu0 0.0
        %1762 = vmatprep.subr.mxu0 0.0
        %1763 = vmatpush1.msra.mxu0 0.0
        %1764 = vmatprep.subr.mxu0 0.0
        %1765 = vmatpush1.msra.mxu0 0.0
        %1766 = vmatprep.subr.mxu0 0.0
        %1767 = vmatpush1.msra.mxu0 0.0
        %1768 = vmatprep.subr.mxu0 0.0
        %1769 = vmatpush1.msra.mxu0 0.0
        %1770 = vmatprep.subr.mxu0 0.0
        %1771 = vmatpush1.msra.mxu0 0.0
        %1772 = vmatprep.subr.mxu0 0.0
        %1773 = vmatpush1.msra.mxu0 0.0
        %1774 = vmatprep.subr.mxu0 0.0
        %1775 = vmatpush1.msra.mxu0 0.0
        %1776 = vmatprep.subr.mxu0 0.0
        %1777 = vmatpush1.msra.mxu0 0.0
        %1778 = vmatprep.mubr.f32.mxu0 0.0
        %v1779 = vand.u32 %v684, 4294901760
        %v1780 = vsub.f32 %v684, %v1779
        %1781 = vmatmul.mubr.f32.gmra.mrb[0].mxu0 %v1780
        %v1782 = vpop.f32.mrb[0].mxu0
        %v1783 = vadd.f32 %v1673, %v1782
        %v1784 = vpop.f32.mrb[0].mxu0
        %1785 = vmatprep.mubr.f32.mxu0 0.0
        %v1786 = vand.u32 %v685, 4294901760
        %v1787 = vsub.f32 %v685, %v1786
        %1788 = vmatmul.mubr.f32.gmra.mrb[0].mxu0 %v1787
        %v1789 = vpop.f32.mrb[0].mxu0
        %v1790 = vadd.f32 %v1679, %v1789
        %v1791 = vpop.f32.mrb[0].mxu0
        %1792 = vdwg.mxu0
        %1793 = vmatprep.subr.mxu0 0.0
        %v1794 = vand.u32 %v1401, 4294901760
        %1795 = vmatpush1.msra.mxu0 %v1794
        %1796 = vmatprep.subr.mxu0 0.0
        %v1797 = vand.u32 %v1402, 4294901760
        %1798 = vmatpush1.msra.mxu0 %v1797
        %1799 = vmatprep.subr.mxu0 0.0
        %v1800 = vand.u32 %v1403, 4294901760
        %1801 = vmatpush1.msra.mxu0 %v1800
        %1802 = vmatprep.subr.mxu0 0.0
        %v1803 = vand.u32 %v1404, 4294901760
        %1804 = vmatpush1.msra.mxu0 %v1803
        %1805 = vmatprep.subr.mxu0 0.0
        %v1806 = vand.u32 %v1405, 4294901760
        %1807 = vmatpush1.msra.mxu0 %v1806
        %1808 = vmatprep.subr.mxu0 0.0
        %v1809 = vand.u32 %v1406, 4294901760
        %1810 = vmatpush1.msra.mxu0 %v1809
        %1811 = vmatprep.subr.mxu0 0.0
        %v1812 = vand.u32 %v1407, 4294901760
        %1813 = vmatpush1.msra.mxu0 %v1812
        %1814 = vmatprep.subr.mxu0 0.0
        %v1815 = vand.u32 %v1408, 4294901760
        %1816 = vmatpush1.msra.mxu0 %v1815
        %1817 = vmatprep.subr.mxu0 0.0
        %v1818 = vand.u32 %v1409, 4294901760
        %1819 = vmatpush1.msra.mxu0 %v1818
        %1820 = vmatprep.subr.mxu0 0.0
        %v1821 = vand.u32 %v1410, 4294901760
        %1822 = vmatpush1.msra.mxu0 %v1821
        %1823 = vmatprep.subr.mxu0 0.0
        %v1824 = vand.u32 %v1411, 4294901760
        %1825 = vmatpush1.msra.mxu0 %v1824
        %1826 = vmatprep.subr.mxu0 0.0
        %v1827 = vand.u32 %v1412, 4294901760
        %1828 = vmatpush1.msra.mxu0 %v1827
        %1829 = vmatprep.subr.mxu0 0.0
        %v1830 = vand.u32 %v1413, 4294901760
        %1831 = vmatpush1.msra.mxu0 %v1830
        %1832 = vmatprep.subr.mxu0 0.0
        %v1833 = vand.u32 %v1414, 4294901760
        %1834 = vmatpush1.msra.mxu0 %v1833
        %1835 = vmatprep.subr.mxu0 0.0
        %v1836 = vand.u32 %v1415, 4294901760
        %1837 = vmatpush1.msra.mxu0 %v1836
        %1838 = vmatprep.subr.mxu0 0.0
        %v1839 = vand.u32 %v1416, 4294901760
        %1840 = vmatpush1.msra.mxu0 %v1839
        %1841 = vmatprep.subr.mxu0 0.0
        %1842 = vmatpush1.msra.mxu0 0.0
        %1843 = vmatprep.subr.mxu0 0.0
        %1844 = vmatpush1.msra.mxu0 0.0
        %1845 = vmatprep.subr.mxu0 0.0
        %1846 = vmatpush1.msra.mxu0 0.0
        %1847 = vmatprep.subr.mxu0 0.0
        %1848 = vmatpush1.msra.mxu0 0.0
        %1849 = vmatprep.subr.mxu0 0.0
        %1850 = vmatpush1.msra.mxu0 0.0
        %1851 = vmatprep.subr.mxu0 0.0
        %1852 = vmatpush1.msra.mxu0 0.0
        %1853 = vmatprep.subr.mxu0 0.0
        %1854 = vmatpush1.msra.mxu0 0.0
        %1855 = vmatprep.subr.mxu0 0.0
        %1856 = vmatpush1.msra.mxu0 0.0
        %1857 = vmatprep.subr.mxu0 0.0
        %1858 = vmatpush1.msra.mxu0 0.0
        %1859 = vmatprep.subr.mxu0 0.0
        %1860 = vmatpush1.msra.mxu0 0.0
        %1861 = vmatprep.subr.mxu0 0.0
        %1862 = vmatpush1.msra.mxu0 0.0
        %1863 = vmatprep.subr.mxu0 0.0
        %1864 = vmatpush1.msra.mxu0 0.0
        %1865 = vmatprep.subr.mxu0 0.0
        %1866 = vmatpush1.msra.mxu0 0.0
        %1867 = vmatprep.subr.mxu0 0.0
        %1868 = vmatpush1.msra.mxu0 0.0
        %1869 = vmatprep.subr.mxu0 0.0
        %1870 = vmatpush1.msra.mxu0 0.0
        %1871 = vmatprep.subr.mxu0 0.0
        %1872 = vmatpush1.msra.mxu0 0.0
        %1873 = vmatprep.mubr.f32.mxu0 0.0
        %v1874 = vand.u32 %v684, 4294901760
        %v1875 = vsub.f32 %v684, %v1874
        %v1876 = vand.u32 %v1875, 4294901760
        %1877 = vmatmul.mubr.f32.gmra.mrb[0].mxu0 %v1876
        %v1878 = vpop.f32.mrb[0].mxu0
        %v1879 = vadd.f32 %v1783, %v1878
        %v1880 = vpop.f32.mrb[0].mxu0
        %1881 = vmatprep.mubr.f32.mxu0 0.0
        %v1882 = vand.u32 %v685, 4294901760
        %v1883 = vsub.f32 %v685, %v1882
        %v1884 = vand.u32 %v1883, 4294901760
        %1885 = vmatmul.mubr.f32.gmra.mrb[0].mxu0 %v1884
        %v1886 = vpop.f32.mrb[0].mxu0
        %v1887 = vadd.f32 %v1790, %v1886
        %v1888 = vpop.f32.mrb[0].mxu0
        %1889 = vdwg.mxu0
        %1890 = vmatprep.subr.mxu0 0.0
        %v1891 = vand.u32 %v1401, 4294901760
        %v1892 = vsub.f32 %v1401, %v1891
        %v1893 = vand.u32 %v1892, 4294901760
        %1894 = vmatpush1.msra.mxu0 %v1893
        %1895 = vmatprep.subr.mxu0 0.0
        %v1896 = vand.u32 %v1402, 4294901760
        %v1897 = vsub.f32 %v1402, %v1896
        %v1898 = vand.u32 %v1897, 4294901760
        %1899 = vmatpush1.msra.mxu0 %v1898
        %1900 = vmatprep.subr.mxu0 0.0
        %v1901 = vand.u32 %v1403, 4294901760
        %v1902 = vsub.f32 %v1403, %v1901
        %v1903 = vand.u32 %v1902, 4294901760
        %1904 = vmatpush1.msra.mxu0 %v1903
        %1905 = vmatprep.subr.mxu0 0.0
        %v1906 = vand.u32 %v1404, 4294901760
        %v1907 = vsub.f32 %v1404, %v1906
        %v1908 = vand.u32 %v1907, 4294901760
        %1909 = vmatpush1.msra.mxu0 %v1908
        %1910 = vmatprep.subr.mxu0 0.0
        %v1911 = vand.u32 %v1405, 4294901760
        %v1912 = vsub.f32 %v1405, %v1911
        %v1913 = vand.u32 %v1912, 4294901760
        %1914 = vmatpush1.msra.mxu0 %v1913
        %1915 = vmatprep.subr.mxu0 0.0
        %v1916 = vand.u32 %v1406, 4294901760
        %v1917 = vsub.f32 %v1406, %v1916
        %v1918 = vand.u32 %v1917, 4294901760
        %1919 = vmatpush1.msra.mxu0 %v1918
        %1920 = vmatprep.subr.mxu0 0.0
        %v1921 = vand.u32 %v1407, 4294901760
        %v1922 = vsub.f32 %v1407, %v1921
        %v1923 = vand.u32 %v1922, 4294901760
        %1924 = vmatpush1.msra.mxu0 %v1923
        %1925 = vmatprep.subr.mxu0 0.0
        %v1926 = vand.u32 %v1408, 4294901760
        %v1927 = vsub.f32 %v1408, %v1926
        %v1928 = vand.u32 %v1927, 4294901760
        %1929 = vmatpush1.msra.mxu0 %v1928
        %1930 = vmatprep.subr.mxu0 0.0
        %v1931 = vand.u32 %v1409, 4294901760
        %v1932 = vsub.f32 %v1409, %v1931
        %v1933 = vand.u32 %v1932, 4294901760
        %1934 = vmatpush1.msra.mxu0 %v1933
        %1935 = vmatprep.subr.mxu0 0.0
        %v1936 = vand.u32 %v1410, 4294901760
        %v1937 = vsub.f32 %v1410, %v1936
        %v1938 = vand.u32 %v1937, 4294901760
        %1939 = vmatpush1.msra.mxu0 %v1938
        %1940 = vmatprep.subr.mxu0 0.0
        %v1941 = vand.u32 %v1411, 4294901760
        %v1942 = vsub.f32 %v1411, %v1941
        %v1943 = vand.u32 %v1942, 4294901760
        %1944 = vmatpush1.msra.mxu0 %v1943
        %1945 = vmatprep.subr.mxu0 0.0
        %v1946 = vand.u32 %v1412, 4294901760
        %v1947 = vsub.f32 %v1412, %v1946
        %v1948 = vand.u32 %v1947, 4294901760
        %1949 = vmatpush1.msra.mxu0 %v1948
        %1950 = vmatprep.subr.mxu0 0.0
        %v1951 = vand.u32 %v1413, 4294901760
        %v1952 = vsub.f32 %v1413, %v1951
        %v1953 = vand.u32 %v1952, 4294901760
        %1954 = vmatpush1.msra.mxu0 %v1953
        %1955 = vmatprep.subr.mxu0 0.0
        %v1956 = vand.u32 %v1414, 4294901760
        %v1957 = vsub.f32 %v1414, %v1956
        %v1958 = vand.u32 %v1957, 4294901760
        %1959 = vmatpush1.msra.mxu0 %v1958
        %1960 = vmatprep.subr.mxu0 0.0
        %v1961 = vand.u32 %v1415, 4294901760
        %v1962 = vsub.f32 %v1415, %v1961
        %v1963 = vand.u32 %v1962, 4294901760
        %1964 = vmatpush1.msra.mxu0 %v1963
        %1965 = vmatprep.subr.mxu0 0.0
        %v1966 = vand.u32 %v1416, 4294901760
        %v1967 = vsub.f32 %v1416, %v1966
        %v1968 = vand.u32 %v1967, 4294901760
        %1969 = vmatpush1.msra.mxu0 %v1968
        %1970 = vmatprep.subr.mxu0 0.0
        %1971 = vmatpush1.msra.mxu0 0.0
        %1972 = vmatprep.subr.mxu0 0.0
        %1973 = vmatpush1.msra.mxu0 0.0
        %1974 = vmatprep.subr.mxu0 0.0
        %1975 = vmatpush1.msra.mxu0 0.0
        %1976 = vmatprep.subr.mxu0 0.0
        %1977 = vmatpush1.msra.mxu0 0.0
        %1978 = vmatprep.subr.mxu0 0.0
        %1979 = vmatpush1.msra.mxu0 0.0
        %1980 = vmatprep.subr.mxu0 0.0
        %1981 = vmatpush1.msra.mxu0 0.0
        %1982 = vmatprep.subr.mxu0 0.0
        %1983 = vmatpush1.msra.mxu0 0.0
        %1984 = vmatprep.subr.mxu0 0.0
        %1985 = vmatpush1.msra.mxu0 0.0
        %1986 = vmatprep.subr.mxu0 0.0
        %1987 = vmatpush1.msra.mxu0 0.0
        %1988 = vmatprep.subr.mxu0 0.0
        %1989 = vmatpush1.msra.mxu0 0.0
        %1990 = vmatprep.subr.mxu0 0.0
        %1991 = vmatpush1.msra.mxu0 0.0
        %1992 = vmatprep.subr.mxu0 0.0
        %1993 = vmatpush1.msra.mxu0 0.0
        %1994 = vmatprep.subr.mxu0 0.0
        %1995 = vmatpush1.msra.mxu0 0.0
        %1996 = vmatprep.subr.mxu0 0.0
        %1997 = vmatpush1.msra.mxu0 0.0
        %1998 = vmatprep.subr.mxu0 0.0
        %1999 = vmatpush1.msra.mxu0 0.0
        %2000 = vmatprep.subr.mxu0 0.0
        %2001 = vmatpush1.msra.mxu0 0.0
        %2002 = vmatprep.mubr.f32.mxu0 0.0
        %v2003 = vand.u32 %v684, 4294901760
        %2004 = vmatmul.mubr.f32.gmra.mrb[0].mxu0 %v2003
        %v2005 = vpop.f32.mrb[0].mxu0
        %v2006 = vadd.f32 %v1879, %v2005
        %v2007 = vpop.f32.mrb[0].mxu0
        %2008 = vmatprep.mubr.f32.mxu0 0.0
        %v2009 = vand.u32 %v685, 4294901760
        %2010 = vmatmul.mubr.f32.gmra.mrb[0].mxu0 %v2009
        %v2011 = vpop.f32.mrb[0].mxu0
        %v2012 = vadd.f32 %v1887, %v2011
        %v2013 = vpop.f32.mrb[0].mxu0
        %2014 = vdwg.mxu0
        %2015 = vmatprep.subr.mxu0 0.0
        %v2016 = vand.u32 %v1401, 4294901760
        %2017 = vmatpush1.msra.mxu0 %v2016
        %2018 = vmatprep.subr.mxu0 0.0
        %v2019 = vand.u32 %v1402, 4294901760
        %2020 = vmatpush1.msra.mxu0 %v2019
        %2021 = vmatprep.subr.mxu0 0.0
        %v2022 = vand.u32 %v1403, 4294901760
        %2023 = vmatpush1.msra.mxu0 %v2022
        %2024 = vmatprep.subr.mxu0 0.0
        %v2025 = vand.u32 %v1404, 4294901760
        %2026 = vmatpush1.msra.mxu0 %v2025
        %2027 = vmatprep.subr.mxu0 0.0
        %v2028 = vand.u32 %v1405, 4294901760
        %2029 = vmatpush1.msra.mxu0 %v2028
        %2030 = vmatprep.subr.mxu0 0.0
        %v2031 = vand.u32 %v1406, 4294901760
        %2032 = vmatpush1.msra.mxu0 %v2031
        %2033 = vmatprep.subr.mxu0 0.0
        %v2034 = vand.u32 %v1407, 4294901760
        %2035 = vmatpush1.msra.mxu0 %v2034
        %2036 = vmatprep.subr.mxu0 0.0
        %v2037 = vand.u32 %v1408, 4294901760
        %2038 = vmatpush1.msra.mxu0 %v2037
        %2039 = vmatprep.subr.mxu0 0.0
        %v2040 = vand.u32 %v1409, 4294901760
        %2041 = vmatpush1.msra.mxu0 %v2040
        %2042 = vmatprep.subr.mxu0 0.0
        %v2043 = vand.u32 %v1410, 4294901760
        %2044 = vmatpush1.msra.mxu0 %v2043
        %2045 = vmatprep.subr.mxu0 0.0
        %v2046 = vand.u32 %v1411, 4294901760
        %2047 = vmatpush1.msra.mxu0 %v2046
        %2048 = vmatprep.subr.mxu0 0.0
        %v2049 = vand.u32 %v1412, 4294901760
        %2050 = vmatpush1.msra.mxu0 %v2049
        %2051 = vmatprep.subr.mxu0 0.0
        %v2052 = vand.u32 %v1413, 4294901760
        %2053 = vmatpush1.msra.mxu0 %v2052
        %2054 = vmatprep.subr.mxu0 0.0
        %v2055 = vand.u32 %v1414, 4294901760
        %2056 = vmatpush1.msra.mxu0 %v2055
        %2057 = vmatprep.subr.mxu0 0.0
        %v2058 = vand.u32 %v1415, 4294901760
        %2059 = vmatpush1.msra.mxu0 %v2058
        %2060 = vmatprep.subr.mxu0 0.0
        %v2061 = vand.u32 %v1416, 4294901760
        %2062 = vmatpush1.msra.mxu0 %v2061
        %2063 = vmatprep.subr.mxu0 0.0
        %2064 = vmatpush1.msra.mxu0 0.0
        %2065 = vmatprep.subr.mxu0 0.0
        %2066 = vmatpush1.msra.mxu0 0.0
        %2067 = vmatprep.subr.mxu0 0.0
        %2068 = vmatpush1.msra.mxu0 0.0
        %2069 = vmatprep.subr.mxu0 0.0
        %2070 = vmatpush1.msra.mxu0 0.0
        %2071 = vmatprep.subr.mxu0 0.0
        %2072 = vmatpush1.msra.mxu0 0.0
        %2073 = vmatprep.subr.mxu0 0.0
        %2074 = vmatpush1.msra.mxu0 0.0
        %2075 = vmatprep.subr.mxu0 0.0
        %2076 = vmatpush1.msra.mxu0 0.0
        %2077 = vmatprep.subr.mxu0 0.0
        %2078 = vmatpush1.msra.mxu0 0.0
        %2079 = vmatprep.subr.mxu0 0.0
        %2080 = vmatpush1.msra.mxu0 0.0
        %2081 = vmatprep.subr.mxu0 0.0
        %2082 = vmatpush1.msra.mxu0 0.0
        %2083 = vmatprep.subr.mxu0 0.0
        %2084 = vmatpush1.msra.mxu0 0.0
        %2085 = vmatprep.subr.mxu0 0.0
        %2086 = vmatpush1.msra.mxu0 0.0
        %2087 = vmatprep.subr.mxu0 0.0
        %2088 = vmatpush1.msra.mxu0 0.0
        %2089 = vmatprep.subr.mxu0 0.0
        %2090 = vmatpush1.msra.mxu0 0.0
        %2091 = vmatprep.subr.mxu0 0.0
        %2092 = vmatpush1.msra.mxu0 0.0
        %2093 = vmatprep.subr.mxu0 0.0
        %2094 = vmatpush1.msra.mxu0 0.0
        %2095 = vmatprep.mubr.f32.mxu0 0.0
        %v2096 = vand.u32 %v684, 4294901760
        %2097 = vmatmul.mubr.f32.gmra.mrb[0].mxu0 %v2096
        %v2098 = vpop.f32.mrb[0].mxu0
        %v2099 = vadd.f32 %v2006, %v2098
        %v2100 = vpop.f32.mrb[0].mxu0
        %2101 = vmatprep.mubr.f32.mxu0 0.0
        %v2102 = vand.u32 %v685, 4294901760
        %2103 = vmatmul.mubr.f32.gmra.mrb[0].mxu0 %v2102
        %v2104 = vpop.f32.mrb[0].mxu0
        %v2105 = vadd.f32 %v2012, %v2104
        %v2106 = vpop.f32.mrb[0].mxu0
        %2107 = vdwg.mxu0
        %v2108 = vld [vmem:[#allocation11] sm:$0xff]
        %v2109 = vld [vmem:[#allocation11 + $0x8] sm:$0xff]
        %v2110 = vld [vmem:[#allocation11 + $0x10] sm:$0xff]
        %v2111 = vld [vmem:[#allocation11 + $0x18] sm:$0xff]
        %v2112 = vld [vmem:[#allocation11 + $0x20] sm:$0xff]
        %v2113 = vld [vmem:[#allocation11 + $0x28] sm:$0xff]
        %v2114 = vld [vmem:[#allocation11 + $0x30] sm:$0xff]
        %v2115 = vld [vmem:[#allocation11 + $0x38] sm:$0xff]
        %v2116 = vld [vmem:[#allocation11 + $0x40] sm:$0xff]
        %v2117 = vld [vmem:[#allocation11 + $0x48] sm:$0xff]
        %v2118 = vld [vmem:[#allocation11 + $0x50] sm:$0xff]
        %v2119 = vld [vmem:[#allocation11 + $0x58] sm:$0xff]
        %v2120 = vld [vmem:[#allocation11 + $0x60] sm:$0xff]
        %v2121 = vld [vmem:[#allocation11 + $0x68] sm:$0xff]
        %v2122 = vld [vmem:[#allocation11 + $0x70] sm:$0xff]
        %v2123 = vld [vmem:[#allocation11 + $0x78] sm:$0xff]
        %v2124 = vld [vmem:[#allocation11 + $0x80] sm:$0xff]
        %v2125 = vld [vmem:[#allocation11 + $0x88] sm:$0xff]
        %v2126 = vld [vmem:[#allocation11 + $0x90] sm:$0xff]
        %v2127 = vld [vmem:[#allocation11 + $0x98] sm:$0xff]
        %v2128 = vld [vmem:[#allocation11 + $0xa0] sm:$0xff]
        %v2129 = vld [vmem:[#allocation11 + $0xa8] sm:$0xff]
        %v2130 = vld [vmem:[#allocation11 + $0xb0] sm:$0xff]
        %v2131 = vld [vmem:[#allocation11 + $0xb8] sm:$0xff]
        %v2132 = vld [vmem:[#allocation11 + $0xc0] sm:$0xff]
        %v2133 = vld [vmem:[#allocation11 + $0xc8] sm:$0xff]
        %v2134 = vld [vmem:[#allocation11 + $0xd0] sm:$0xff]
        %v2135 = vld [vmem:[#allocation11 + $0xd8] sm:$0xff]
        %v2136 = vld [vmem:[#allocation11 + $0xe0] sm:$0xff]
        %v2137 = vld [vmem:[#allocation11 + $0xe8] sm:$0xff]
        %v2138 = vld [vmem:[#allocation11 + $0xf0] sm:$0xff]
        %v2139 = vld [vmem:[#allocation11 + $0xf8] sm:$0xff]
        %v2140 = vld [vmem:[#allocation11 + $0x100] sm:$0xff]
        %v2141 = vld [vmem:[#allocation11 + $0x108] sm:$0xff]
        %v2142 = vld [vmem:[#allocation11 + $0x110] sm:$0xff]
        %v2143 = vld [vmem:[#allocation11 + $0x118] sm:$0xff]
        %v2144 = vld [vmem:[#allocation11 + $0x120] sm:$0xff]
        %v2145 = vld [vmem:[#allocation11 + $0x128] sm:$0xff]
        %v2146 = vld [vmem:[#allocation11 + $0x130] sm:$0xff]
        %v2147 = vld [vmem:[#allocation11 + $0x138] sm:$0xff]
        %v2148 = vld [vmem:[#allocation11 + $0x140] sm:$0xff]
        %v2149 = vld [vmem:[#allocation11 + $0x148] sm:$0xff]
        %v2150 = vld [vmem:[#allocation11 + $0x150] sm:$0xff]
        %v2151 = vld [vmem:[#allocation11 + $0x158] sm:$0xff]
        %v2152 = vld [vmem:[#allocation11 + $0x160] sm:$0xff]
        %v2153 = vld [vmem:[#allocation11 + $0x168] sm:$0xff]
        %v2154 = vld [vmem:[#allocation11 + $0x170] sm:$0xff]
        %v2155 = vld [vmem:[#allocation11 + $0x178] sm:$0xff]
        %v2156 = vld [vmem:[#allocation11 + $0x180] sm:$0xff]
        %v2157 = vld [vmem:[#allocation11 + $0x188] sm:$0xff]
        %v2158 = vld [vmem:[#allocation11 + $0x190] sm:$0xff]
        %v2159 = vld [vmem:[#allocation11 + $0x198] sm:$0xff]
        %v2160 = vld [vmem:[#allocation11 + $0x1a0] sm:$0xff]
        %v2161 = vld [vmem:[#allocation11 + $0x1a8] sm:$0xff]
        %v2162 = vld [vmem:[#allocation11 + $0x1b0] sm:$0xff]
        %v2163 = vld [vmem:[#allocation11 + $0x1b8] sm:$0xff]
        %v2164 = vld [vmem:[#allocation11 + $0x1c0] sm:$0xff]
        %v2165 = vld [vmem:[#allocation11 + $0x1c8] sm:$0xff]
        %v2166 = vld [vmem:[#allocation11 + $0x1d0] sm:$0xff]
        %v2167 = vld [vmem:[#allocation11 + $0x1d8] sm:$0xff]
        %v2168 = vld [vmem:[#allocation11 + $0x1e0] sm:$0xff]
        %v2169 = vld [vmem:[#allocation11 + $0x1e8] sm:$0xff]
        %v2170 = vld [vmem:[#allocation11 + $0x1f0] sm:$0xff]
        %v2171 = vld [vmem:[#allocation11 + $0x1f8] sm:$0xff]
        %v2172 = vld [vmem:[%s10] sm:$0x1]
        %v2174 = vlaneseq
        %v2175 = vshrl.u32 %v2174, 7
        %v2176 = vsub.s32 0, %v2175
        %v2177 = vrot.slane %v2172, %v2176
        %2179 = vmatprep.subr.mxu0 0.0
        %v2180 = vand.u32 %v2108, 4294901760
        %2181 = vmatpush1.msra.mxu0 %v2180
        %2182 = vmatprep.subr.mxu0 0.0
        %v2183 = vand.u32 %v2109, 4294901760
        %2184 = vmatpush1.msra.mxu0 %v2183
        %2185 = vmatprep.subr.mxu0 0.0
        %v2186 = vand.u32 %v2110, 4294901760
        %2187 = vmatpush1.msra.mxu0 %v2186
        %2188 = vmatprep.subr.mxu0 0.0
        %v2189 = vand.u32 %v2111, 4294901760
        %2190 = vmatpush1.msra.mxu0 %v2189
        %2191 = vmatprep.subr.mxu0 0.0
        %v2192 = vand.u32 %v2112, 4294901760
        %2193 = vmatpush1.msra.mxu0 %v2192
        %2194 = vmatprep.subr.mxu0 0.0
        %v2195 = vand.u32 %v2113, 4294901760
        %2196 = vmatpush1.msra.mxu0 %v2195
        %2197 = vmatprep.subr.mxu0 0.0
        %v2198 = vand.u32 %v2114, 4294901760
        %2199 = vmatpush1.msra.mxu0 %v2198
        %2200 = vmatprep.subr.mxu0 0.0
        %v2201 = vand.u32 %v2115, 4294901760
        %2202 = vmatpush1.msra.mxu0 %v2201
        %2203 = vmatprep.subr.mxu0 0.0
        %v2204 = vand.u32 %v2116, 4294901760
        %2205 = vmatpush1.msra.mxu0 %v2204
        %2206 = vmatprep.subr.mxu0 0.0
        %v2207 = vand.u32 %v2117, 4294901760
        %2208 = vmatpush1.msra.mxu0 %v2207
        %2209 = vmatprep.subr.mxu0 0.0
        %v2210 = vand.u32 %v2118, 4294901760
        %2211 = vmatpush1.msra.mxu0 %v2210
        %2212 = vmatprep.subr.mxu0 0.0
        %v2213 = vand.u32 %v2119, 4294901760
        %2214 = vmatpush1.msra.mxu0 %v2213
        %2215 = vmatprep.subr.mxu0 0.0
        %v2216 = vand.u32 %v2120, 4294901760
        %2217 = vmatpush1.msra.mxu0 %v2216
        %2218 = vmatprep.subr.mxu0 0.0
        %v2219 = vand.u32 %v2121, 4294901760
        %2220 = vmatpush1.msra.mxu0 %v2219
        %2221 = vmatprep.subr.mxu0 0.0
        %v2222 = vand.u32 %v2122, 4294901760
        %2223 = vmatpush1.msra.mxu0 %v2222
        %2224 = vmatprep.subr.mxu0 0.0
        %v2225 = vand.u32 %v2123, 4294901760
        %2226 = vmatpush1.msra.mxu0 %v2225
        %2227 = vmatprep.subr.mxu0 0.0
        %v2228 = vand.u32 %v2124, 4294901760
        %2229 = vmatpush1.msra.mxu0 %v2228
        %2230 = vmatprep.subr.mxu0 0.0
        %v2231 = vand.u32 %v2125, 4294901760
        %2232 = vmatpush1.msra.mxu0 %v2231
        %2233 = vmatprep.subr.mxu0 0.0
        %v2234 = vand.u32 %v2126, 4294901760
        %2235 = vmatpush1.msra.mxu0 %v2234
        %2236 = vmatprep.subr.mxu0 0.0
        %v2237 = vand.u32 %v2127, 4294901760
        %2238 = vmatpush1.msra.mxu0 %v2237
        %2239 = vmatprep.subr.mxu0 0.0
        %v2240 = vand.u32 %v2128, 4294901760
        %2241 = vmatpush1.msra.mxu0 %v2240
        %2242 = vmatprep.subr.mxu0 0.0
        %v2243 = vand.u32 %v2129, 4294901760
        %2244 = vmatpush1.msra.mxu0 %v2243
        %2245 = vmatprep.subr.mxu0 0.0
        %v2246 = vand.u32 %v2130, 4294901760
        %2247 = vmatpush1.msra.mxu0 %v2246
        %2248 = vmatprep.subr.mxu0 0.0
        %v2249 = vand.u32 %v2131, 4294901760
        %2250 = vmatpush1.msra.mxu0 %v2249
        %2251 = vmatprep.subr.mxu0 0.0
        %v2252 = vand.u32 %v2132, 4294901760
        %2253 = vmatpush1.msra.mxu0 %v2252
        %2254 = vmatprep.subr.mxu0 0.0
        %v2255 = vand.u32 %v2133, 4294901760
        %2256 = vmatpush1.msra.mxu0 %v2255
        %2257 = vmatprep.subr.mxu0 0.0
        %v2258 = vand.u32 %v2134, 4294901760
        %2259 = vmatpush1.msra.mxu0 %v2258
        %2260 = vmatprep.subr.mxu0 0.0
        %v2261 = vand.u32 %v2135, 4294901760
        %2262 = vmatpush1.msra.mxu0 %v2261
        %2263 = vmatprep.subr.mxu0 0.0
        %v2264 = vand.u32 %v2136, 4294901760
        %2265 = vmatpush1.msra.mxu0 %v2264
        %2266 = vmatprep.subr.mxu0 0.0
        %v2267 = vand.u32 %v2137, 4294901760
        %2268 = vmatpush1.msra.mxu0 %v2267
        %2269 = vmatprep.subr.mxu0 0.0
        %v2270 = vand.u32 %v2138, 4294901760
        %2271 = vmatpush1.msra.mxu0 %v2270
        %2272 = vmatprep.subr.mxu0 0.0
        %v2273 = vand.u32 %v2139, 4294901760
        %2274 = vmatpush1.msra.mxu0 %v2273
        %v2275 = vand.u32 %v687, 4294901760
        %v2276 = vsub.f32 %v687, %v2275
        %v2277 = vand.u32 %v2276, 4294901760
        %v2278 = vsub.f32 %v2276, %v2277
        %v2279 = vand.u32 %v2278, 4294901760
        %2280 = vmatprep.mubr.f32.mxu0 %v2279
        %v2281 = vand.u32 %v686, 4294901760
        %v2282 = vsub.f32 %v686, %v2281
        %v2283 = vand.u32 %v2282, 4294901760
        %v2284 = vsub.f32 %v2282, %v2283
        %v2285 = vand.u32 %v2284, 4294901760
        %2286 = vmatmul.mubr.f32.gmra.mrb[0].mxu0 %v2285
        %v2287 = vpop.f32.mrb[0].mxu0
        %v2288 = vadd.f32 %v2177, %v2287
        %v2289 = vpop.f32.mrb[0].mxu0
        %v2290 = vand.u32 %v691, 4294901760
        %v2291 = vsub.f32 %v691, %v2290
        %v2292 = vand.u32 %v2291, 4294901760
        %v2293 = vsub.f32 %v2291, %v2292
        %v2294 = vand.u32 %v2293, 4294901760
        %2295 = vmatprep.mubr.f32.mxu0 %v2294
        %v2296 = vand.u32 %v690, 4294901760
        %v2297 = vsub.f32 %v690, %v2296
        %v2298 = vand.u32 %v2297, 4294901760
        %v2299 = vsub.f32 %v2297, %v2298
        %v2300 = vand.u32 %v2299, 4294901760
        %2301 = vmatmul.mubr.f32.gmra.mrb[0].mxu0 %v2300
        %v2302 = vpop.f32.mrb[0].mxu0
        %v2303 = vadd.f32 %v2177, %v2302
        %v2304 = vpop.f32.mrb[0].mxu0
        %2305 = vdwg.mxu0
        %2306 = vmatprep.subr.mxu0 0.0
        %v2307 = vand.u32 %v2108, 4294901760
        %v2308 = vsub.f32 %v2108, %v2307
        %v2309 = vand.u32 %v2308, 4294901760
        %v2310 = vsub.f32 %v2308, %v2309
        %v2311 = vand.u32 %v2310, 4294901760
        %2312 = vmatpush1.msra.mxu0 %v2311
        %2313 = vmatprep.subr.mxu0 0.0
        %v2314 = vand.u32 %v2109, 4294901760
        %v2315 = vsub.f32 %v2109, %v2314
        %v2316 = vand.u32 %v2315, 4294901760
        %v2317 = vsub.f32 %v2315, %v2316
        %v2318 = vand.u32 %v2317, 4294901760
        %2319 = vmatpush1.msra.mxu0 %v2318
        %2320 = vmatprep.subr.mxu0 0.0
        %v2321 = vand.u32 %v2110, 4294901760
        %v2322 = vsub.f32 %v2110, %v2321
        %v2323 = vand.u32 %v2322, 4294901760
        %v2324 = vsub.f32 %v2322, %v2323
        %v2325 = vand.u32 %v2324, 4294901760
        %2326 = vmatpush1.msra.mxu0 %v2325
        %2327 = vmatprep.subr.mxu0 0.0
        %v2328 = vand.u32 %v2111, 4294901760
        %v2329 = vsub.f32 %v2111, %v2328
        %v2330 = vand.u32 %v2329, 4294901760
        %v2331 = vsub.f32 %v2329, %v2330
        %v2332 = vand.u32 %v2331, 4294901760
        %2333 = vmatpush1.msra.mxu0 %v2332
        %2334 = vmatprep.subr.mxu0 0.0
        %v2335 = vand.u32 %v2112, 4294901760
        %v2336 = vsub.f32 %v2112, %v2335
        %v2337 = vand.u32 %v2336, 4294901760
        %v2338 = vsub.f32 %v2336, %v2337
        %v2339 = vand.u32 %v2338, 4294901760
        %2340 = vmatpush1.msra.mxu0 %v2339
        %2341 = vmatprep.subr.mxu0 0.0
        %v2342 = vand.u32 %v2113, 4294901760
        %v2343 = vsub.f32 %v2113, %v2342
        %v2344 = vand.u32 %v2343, 4294901760
        %v2345 = vsub.f32 %v2343, %v2344
        %v2346 = vand.u32 %v2345, 4294901760
        %2347 = vmatpush1.msra.mxu0 %v2346
        %2348 = vmatprep.subr.mxu0 0.0
        %v2349 = vand.u32 %v2114, 4294901760
        %v2350 = vsub.f32 %v2114, %v2349
        %v2351 = vand.u32 %v2350, 4294901760
        %v2352 = vsub.f32 %v2350, %v2351
        %v2353 = vand.u32 %v2352, 4294901760
        %2354 = vmatpush1.msra.mxu0 %v2353
        %2355 = vmatprep.subr.mxu0 0.0
        %v2356 = vand.u32 %v2115, 4294901760
        %v2357 = vsub.f32 %v2115, %v2356
        %v2358 = vand.u32 %v2357, 4294901760
        %v2359 = vsub.f32 %v2357, %v2358
        %v2360 = vand.u32 %v2359, 4294901760
        %2361 = vmatpush1.msra.mxu0 %v2360
        %2362 = vmatprep.subr.mxu0 0.0
        %v2363 = vand.u32 %v2116, 4294901760
        %v2364 = vsub.f32 %v2116, %v2363
        %v2365 = vand.u32 %v2364, 4294901760
        %v2366 = vsub.f32 %v2364, %v2365
        %v2367 = vand.u32 %v2366, 4294901760
        %2368 = vmatpush1.msra.mxu0 %v2367
        %2369 = vmatprep.subr.mxu0 0.0
        %v2370 = vand.u32 %v2117, 4294901760
        %v2371 = vsub.f32 %v2117, %v2370
        %v2372 = vand.u32 %v2371, 4294901760
        %v2373 = vsub.f32 %v2371, %v2372
        %v2374 = vand.u32 %v2373, 4294901760
        %2375 = vmatpush1.msra.mxu0 %v2374
        %2376 = vmatprep.subr.mxu0 0.0
        %v2377 = vand.u32 %v2118, 4294901760
        %v2378 = vsub.f32 %v2118, %v2377
        %v2379 = vand.u32 %v2378, 4294901760
        %v2380 = vsub.f32 %v2378, %v2379
        %v2381 = vand.u32 %v2380, 4294901760
        %2382 = vmatpush1.msra.mxu0 %v2381
        %2383 = vmatprep.subr.mxu0 0.0
        %v2384 = vand.u32 %v2119, 4294901760
        %v2385 = vsub.f32 %v2119, %v2384
        %v2386 = vand.u32 %v2385, 4294901760
        %v2387 = vsub.f32 %v2385, %v2386
        %v2388 = vand.u32 %v2387, 4294901760
        %2389 = vmatpush1.msra.mxu0 %v2388
        %2390 = vmatprep.subr.mxu0 0.0
        %v2391 = vand.u32 %v2120, 4294901760
        %v2392 = vsub.f32 %v2120, %v2391
        %v2393 = vand.u32 %v2392, 4294901760
        %v2394 = vsub.f32 %v2392, %v2393
        %v2395 = vand.u32 %v2394, 4294901760
        %2396 = vmatpush1.msra.mxu0 %v2395
        %2397 = vmatprep.subr.mxu0 0.0
        %v2398 = vand.u32 %v2121, 4294901760
        %v2399 = vsub.f32 %v2121, %v2398
        %v2400 = vand.u32 %v2399, 4294901760
        %v2401 = vsub.f32 %v2399, %v2400
        %v2402 = vand.u32 %v2401, 4294901760
        %2403 = vmatpush1.msra.mxu0 %v2402
        %2404 = vmatprep.subr.mxu0 0.0
        %v2405 = vand.u32 %v2122, 4294901760
        %v2406 = vsub.f32 %v2122, %v2405
        %v2407 = vand.u32 %v2406, 4294901760
        %v2408 = vsub.f32 %v2406, %v2407
        %v2409 = vand.u32 %v2408, 4294901760
        %2410 = vmatpush1.msra.mxu0 %v2409
        %2411 = vmatprep.subr.mxu0 0.0
        %v2412 = vand.u32 %v2123, 4294901760
        %v2413 = vsub.f32 %v2123, %v2412
        %v2414 = vand.u32 %v2413, 4294901760
        %v2415 = vsub.f32 %v2413, %v2414
        %v2416 = vand.u32 %v2415, 4294901760
        %2417 = vmatpush1.msra.mxu0 %v2416
        %2418 = vmatprep.subr.mxu0 0.0
        %v2419 = vand.u32 %v2124, 4294901760
        %v2420 = vsub.f32 %v2124, %v2419
        %v2421 = vand.u32 %v2420, 4294901760
        %v2422 = vsub.f32 %v2420, %v2421
        %v2423 = vand.u32 %v2422, 4294901760
        %2424 = vmatpush1.msra.mxu0 %v2423
        %2425 = vmatprep.subr.mxu0 0.0
        %v2426 = vand.u32 %v2125, 4294901760
        %v2427 = vsub.f32 %v2125, %v2426
        %v2428 = vand.u32 %v2427, 4294901760
        %v2429 = vsub.f32 %v2427, %v2428
        %v2430 = vand.u32 %v2429, 4294901760
        %2431 = vmatpush1.msra.mxu0 %v2430
        %2432 = vmatprep.subr.mxu0 0.0
        %v2433 = vand.u32 %v2126, 4294901760
        %v2434 = vsub.f32 %v2126, %v2433
        %v2435 = vand.u32 %v2434, 4294901760
        %v2436 = vsub.f32 %v2434, %v2435
        %v2437 = vand.u32 %v2436, 4294901760
        %2438 = vmatpush1.msra.mxu0 %v2437
        %2439 = vmatprep.subr.mxu0 0.0
        %v2440 = vand.u32 %v2127, 4294901760
        %v2441 = vsub.f32 %v2127, %v2440
        %v2442 = vand.u32 %v2441, 4294901760
        %v2443 = vsub.f32 %v2441, %v2442
        %v2444 = vand.u32 %v2443, 4294901760
        %2445 = vmatpush1.msra.mxu0 %v2444
        %2446 = vmatprep.subr.mxu0 0.0
        %v2447 = vand.u32 %v2128, 4294901760
        %v2448 = vsub.f32 %v2128, %v2447
        %v2449 = vand.u32 %v2448, 4294901760
        %v2450 = vsub.f32 %v2448, %v2449
        %v2451 = vand.u32 %v2450, 4294901760
        %2452 = vmatpush1.msra.mxu0 %v2451
        %2453 = vmatprep.subr.mxu0 0.0
        %v2454 = vand.u32 %v2129, 4294901760
        %v2455 = vsub.f32 %v2129, %v2454
        %v2456 = vand.u32 %v2455, 4294901760
        %v2457 = vsub.f32 %v2455, %v2456
        %v2458 = vand.u32 %v2457, 4294901760
        %2459 = vmatpush1.msra.mxu0 %v2458
        %2460 = vmatprep.subr.mxu0 0.0
        %v2461 = vand.u32 %v2130, 4294901760
        %v2462 = vsub.f32 %v2130, %v2461
        %v2463 = vand.u32 %v2462, 4294901760
        %v2464 = vsub.f32 %v2462, %v2463
        %v2465 = vand.u32 %v2464, 4294901760
        %2466 = vmatpush1.msra.mxu0 %v2465
        %2467 = vmatprep.subr.mxu0 0.0
        %v2468 = vand.u32 %v2131, 4294901760
        %v2469 = vsub.f32 %v2131, %v2468
        %v2470 = vand.u32 %v2469, 4294901760
        %v2471 = vsub.f32 %v2469, %v2470
        %v2472 = vand.u32 %v2471, 4294901760
        %2473 = vmatpush1.msra.mxu0 %v2472
        %2474 = vmatprep.subr.mxu0 0.0
        %v2475 = vand.u32 %v2132, 4294901760
        %v2476 = vsub.f32 %v2132, %v2475
        %v2477 = vand.u32 %v2476, 4294901760
        %v2478 = vsub.f32 %v2476, %v2477
        %v2479 = vand.u32 %v2478, 4294901760
        %2480 = vmatpush1.msra.mxu0 %v2479
        %2481 = vmatprep.subr.mxu0 0.0
        %v2482 = vand.u32 %v2133, 4294901760
        %v2483 = vsub.f32 %v2133, %v2482
        %v2484 = vand.u32 %v2483, 4294901760
        %v2485 = vsub.f32 %v2483, %v2484
        %v2486 = vand.u32 %v2485, 4294901760
        %2487 = vmatpush1.msra.mxu0 %v2486
        %2488 = vmatprep.subr.mxu0 0.0
        %v2489 = vand.u32 %v2134, 4294901760
        %v2490 = vsub.f32 %v2134, %v2489
        %v2491 = vand.u32 %v2490, 4294901760
        %v2492 = vsub.f32 %v2490, %v2491
        %v2493 = vand.u32 %v2492, 4294901760
        %2494 = vmatpush1.msra.mxu0 %v2493
        %2495 = vmatprep.subr.mxu0 0.0
        %v2496 = vand.u32 %v2135, 4294901760
        %v2497 = vsub.f32 %v2135, %v2496
        %v2498 = vand.u32 %v2497, 4294901760
        %v2499 = vsub.f32 %v2497, %v2498
        %v2500 = vand.u32 %v2499, 4294901760
        %2501 = vmatpush1.msra.mxu0 %v2500
        %2502 = vmatprep.subr.mxu0 0.0
        %v2503 = vand.u32 %v2136, 4294901760
        %v2504 = vsub.f32 %v2136, %v2503
        %v2505 = vand.u32 %v2504, 4294901760
        %v2506 = vsub.f32 %v2504, %v2505
        %v2507 = vand.u32 %v2506, 4294901760
        %2508 = vmatpush1.msra.mxu0 %v2507
        %2509 = vmatprep.subr.mxu0 0.0
        %v2510 = vand.u32 %v2137, 4294901760
        %v2511 = vsub.f32 %v2137, %v2510
        %v2512 = vand.u32 %v2511, 4294901760
        %v2513 = vsub.f32 %v2511, %v2512
        %v2514 = vand.u32 %v2513, 4294901760
        %2515 = vmatpush1.msra.mxu0 %v2514
        %2516 = vmatprep.subr.mxu0 0.0
        %v2517 = vand.u32 %v2138, 4294901760
        %v2518 = vsub.f32 %v2138, %v2517
        %v2519 = vand.u32 %v2518, 4294901760
        %v2520 = vsub.f32 %v2518, %v2519
        %v2521 = vand.u32 %v2520, 4294901760
        %2522 = vmatpush1.msra.mxu0 %v2521
        %2523 = vmatprep.subr.mxu0 0.0
        %v2524 = vand.u32 %v2139, 4294901760
        %v2525 = vsub.f32 %v2139, %v2524
        %v2526 = vand.u32 %v2525, 4294901760
        %v2527 = vsub.f32 %v2525, %v2526
        %v2528 = vand.u32 %v2527, 4294901760
        %2529 = vmatpush1.msra.mxu0 %v2528
        %v2530 = vand.u32 %v687, 4294901760
        %2531 = vmatprep.mubr.f32.mxu0 %v2530
        %v2532 = vand.u32 %v686, 4294901760
        %2533 = vmatmul.mubr.f32.gmra.mrb[0].mxu0 %v2532
        %v2534 = vpop.f32.mrb[0].mxu0
        %v2535 = vadd.f32 %v2288, %v2534
        %v2536 = vpop.f32.mrb[0].mxu0
        %v2537 = vand.u32 %v691, 4294901760
        %2538 = vmatprep.mubr.f32.mxu0 %v2537
        %v2539 = vand.u32 %v690, 4294901760
        %2540 = vmatmul.mubr.f32.gmra.mrb[0].mxu0 %v2539
        %v2541 = vpop.f32.mrb[0].mxu0
        %v2542 = vadd.f32 %v2303, %v2541
        %v2543 = vpop.f32.mrb[0].mxu0
        %2544 = vdwg.mxu0
        %2545 = vmatprep.subr.mxu0 0.0
        %v2546 = vand.u32 %v2108, 4294901760
        %v2547 = vsub.f32 %v2108, %v2546
        %2548 = vmatpush1.msra.mxu0 %v2547
        %2549 = vmatprep.subr.mxu0 0.0
        %v2550 = vand.u32 %v2109, 4294901760
        %v2551 = vsub.f32 %v2109, %v2550
        %2552 = vmatpush1.msra.mxu0 %v2551
        %2553 = vmatprep.subr.mxu0 0.0
        %v2554 = vand.u32 %v2110, 4294901760
        %v2555 = vsub.f32 %v2110, %v2554
        %2556 = vmatpush1.msra.mxu0 %v2555
        %2557 = vmatprep.subr.mxu0 0.0
        %v2558 = vand.u32 %v2111, 4294901760
        %v2559 = vsub.f32 %v2111, %v2558
        %2560 = vmatpush1.msra.mxu0 %v2559
        %2561 = vmatprep.subr.mxu0 0.0
        %v2562 = vand.u32 %v2112, 4294901760
        %v2563 = vsub.f32 %v2112, %v2562
        %2564 = vmatpush1.msra.mxu0 %v2563
        %2565 = vmatprep.subr.mxu0 0.0
        %v2566 = vand.u32 %v2113, 4294901760
        %v2567 = vsub.f32 %v2113, %v2566
        %2568 = vmatpush1.msra.mxu0 %v2567
        %2569 = vmatprep.subr.mxu0 0.0
        %v2570 = vand.u32 %v2114, 4294901760
        %v2571 = vsub.f32 %v2114, %v2570
        %2572 = vmatpush1.msra.mxu0 %v2571
        %2573 = vmatprep.subr.mxu0 0.0
        %v2574 = vand.u32 %v2115, 4294901760
        %v2575 = vsub.f32 %v2115, %v2574
        %2576 = vmatpush1.msra.mxu0 %v2575
        %2577 = vmatprep.subr.mxu0 0.0
        %v2578 = vand.u32 %v2116, 4294901760
        %v2579 = vsub.f32 %v2116, %v2578
        %2580 = vmatpush1.msra.mxu0 %v2579
        %2581 = vmatprep.subr.mxu0 0.0
        %v2582 = vand.u32 %v2117, 4294901760
        %v2583 = vsub.f32 %v2117, %v2582
        %2584 = vmatpush1.msra.mxu0 %v2583
        %2585 = vmatprep.subr.mxu0 0.0
        %v2586 = vand.u32 %v2118, 4294901760
        %v2587 = vsub.f32 %v2118, %v2586
        %2588 = vmatpush1.msra.mxu0 %v2587
        %2589 = vmatprep.subr.mxu0 0.0
        %v2590 = vand.u32 %v2119, 4294901760
        %v2591 = vsub.f32 %v2119, %v2590
        %2592 = vmatpush1.msra.mxu0 %v2591
        %2593 = vmatprep.subr.mxu0 0.0
        %v2594 = vand.u32 %v2120, 4294901760
        %v2595 = vsub.f32 %v2120, %v2594
        %2596 = vmatpush1.msra.mxu0 %v2595
        %2597 = vmatprep.subr.mxu0 0.0
        %v2598 = vand.u32 %v2121, 4294901760
        %v2599 = vsub.f32 %v2121, %v2598
        %2600 = vmatpush1.msra.mxu0 %v2599
        %2601 = vmatprep.subr.mxu0 0.0
        %v2602 = vand.u32 %v2122, 4294901760
        %v2603 = vsub.f32 %v2122, %v2602
        %2604 = vmatpush1.msra.mxu0 %v2603
        %2605 = vmatprep.subr.mxu0 0.0
        %v2606 = vand.u32 %v2123, 4294901760
        %v2607 = vsub.f32 %v2123, %v2606
        %2608 = vmatpush1.msra.mxu0 %v2607
        %2609 = vmatprep.subr.mxu0 0.0
        %v2610 = vand.u32 %v2124, 4294901760
        %v2611 = vsub.f32 %v2124, %v2610
        %2612 = vmatpush1.msra.mxu0 %v2611
        %2613 = vmatprep.subr.mxu0 0.0
        %v2614 = vand.u32 %v2125, 4294901760
        %v2615 = vsub.f32 %v2125, %v2614
        %2616 = vmatpush1.msra.mxu0 %v2615
        %2617 = vmatprep.subr.mxu0 0.0
        %v2618 = vand.u32 %v2126, 4294901760
        %v2619 = vsub.f32 %v2126, %v2618
        %2620 = vmatpush1.msra.mxu0 %v2619
        %2621 = vmatprep.subr.mxu0 0.0
        %v2622 = vand.u32 %v2127, 4294901760
        %v2623 = vsub.f32 %v2127, %v2622
        %2624 = vmatpush1.msra.mxu0 %v2623
        %2625 = vmatprep.subr.mxu0 0.0
        %v2626 = vand.u32 %v2128, 4294901760
        %v2627 = vsub.f32 %v2128, %v2626
        %2628 = vmatpush1.msra.mxu0 %v2627
        %2629 = vmatprep.subr.mxu0 0.0
        %v2630 = vand.u32 %v2129, 4294901760
        %v2631 = vsub.f32 %v2129, %v2630
        %2632 = vmatpush1.msra.mxu0 %v2631
        %2633 = vmatprep.subr.mxu0 0.0
        %v2634 = vand.u32 %v2130, 4294901760
        %v2635 = vsub.f32 %v2130, %v2634
        %2636 = vmatpush1.msra.mxu0 %v2635
        %2637 = vmatprep.subr.mxu0 0.0
        %v2638 = vand.u32 %v2131, 4294901760
        %v2639 = vsub.f32 %v2131, %v2638
        %2640 = vmatpush1.msra.mxu0 %v2639
        %2641 = vmatprep.subr.mxu0 0.0
        %v2642 = vand.u32 %v2132, 4294901760
        %v2643 = vsub.f32 %v2132, %v2642
        %2644 = vmatpush1.msra.mxu0 %v2643
        %2645 = vmatprep.subr.mxu0 0.0
        %v2646 = vand.u32 %v2133, 4294901760
        %v2647 = vsub.f32 %v2133, %v2646
        %2648 = vmatpush1.msra.mxu0 %v2647
        %2649 = vmatprep.subr.mxu0 0.0
        %v2650 = vand.u32 %v2134, 4294901760
        %v2651 = vsub.f32 %v2134, %v2650
        %2652 = vmatpush1.msra.mxu0 %v2651
        %2653 = vmatprep.subr.mxu0 0.0
        %v2654 = vand.u32 %v2135, 4294901760
        %v2655 = vsub.f32 %v2135, %v2654
        %2656 = vmatpush1.msra.mxu0 %v2655
        %2657 = vmatprep.subr.mxu0 0.0
        %v2658 = vand.u32 %v2136, 4294901760
        %v2659 = vsub.f32 %v2136, %v2658
        %2660 = vmatpush1.msra.mxu0 %v2659
        %2661 = vmatprep.subr.mxu0 0.0
        %v2662 = vand.u32 %v2137, 4294901760
        %v2663 = vsub.f32 %v2137, %v2662
        %2664 = vmatpush1.msra.mxu0 %v2663
        %2665 = vmatprep.subr.mxu0 0.0
        %v2666 = vand.u32 %v2138, 4294901760
        %v2667 = vsub.f32 %v2138, %v2666
        %2668 = vmatpush1.msra.mxu0 %v2667
        %2669 = vmatprep.subr.mxu0 0.0
        %v2670 = vand.u32 %v2139, 4294901760
        %v2671 = vsub.f32 %v2139, %v2670
        %2672 = vmatpush1.msra.mxu0 %v2671
        %v2673 = vand.u32 %v687, 4294901760
        %v2674 = vsub.f32 %v687, %v2673
        %2675 = vmatprep.mubr.f32.mxu0 %v2674
        %v2676 = vand.u32 %v686, 4294901760
        %v2677 = vsub.f32 %v686, %v2676
        %2678 = vmatmul.mubr.f32.gmra.mrb[0].mxu0 %v2677
        %v2679 = vpop.f32.mrb[0].mxu0
        %v2680 = vadd.f32 %v2535, %v2679
        %v2681 = vpop.f32.mrb[0].mxu0
        %v2682 = vand.u32 %v691, 4294901760
        %v2683 = vsub.f32 %v691, %v2682
        %2684 = vmatprep.mubr.f32.mxu0 %v2683
        %v2685 = vand.u32 %v690, 4294901760
        %v2686 = vsub.f32 %v690, %v2685
        %2687 = vmatmul.mubr.f32.gmra.mrb[0].mxu0 %v2686
        %v2688 = vpop.f32.mrb[0].mxu0
        %v2689 = vadd.f32 %v2542, %v2688
        %v2690 = vpop.f32.mrb[0].mxu0
        %2691 = vdwg.mxu0
        %2692 = vmatprep.subr.mxu0 0.0
        %v2693 = vand.u32 %v2108, 4294901760
        %2694 = vmatpush1.msra.mxu0 %v2693
        %2695 = vmatprep.subr.mxu0 0.0
        %v2696 = vand.u32 %v2109, 4294901760
        %2697 = vmatpush1.msra.mxu0 %v2696
        %2698 = vmatprep.subr.mxu0 0.0
        %v2699 = vand.u32 %v2110, 4294901760
        %2700 = vmatpush1.msra.mxu0 %v2699
        %2701 = vmatprep.subr.mxu0 0.0
        %v2702 = vand.u32 %v2111, 4294901760
        %2703 = vmatpush1.msra.mxu0 %v2702
        %2704 = vmatprep.subr.mxu0 0.0
        %v2705 = vand.u32 %v2112, 4294901760
        %2706 = vmatpush1.msra.mxu0 %v2705
        %2707 = vmatprep.subr.mxu0 0.0
        %v2708 = vand.u32 %v2113, 4294901760
        %2709 = vmatpush1.msra.mxu0 %v2708
        %2710 = vmatprep.subr.mxu0 0.0
        %v2711 = vand.u32 %v2114, 4294901760
        %2712 = vmatpush1.msra.mxu0 %v2711
        %2713 = vmatprep.subr.mxu0 0.0
        %v2714 = vand.u32 %v2115, 4294901760
        %2715 = vmatpush1.msra.mxu0 %v2714
        %2716 = vmatprep.subr.mxu0 0.0
        %v2717 = vand.u32 %v2116, 4294901760
        %2718 = vmatpush1.msra.mxu0 %v2717
        %2719 = vmatprep.subr.mxu0 0.0
        %v2720 = vand.u32 %v2117, 4294901760
        %2721 = vmatpush1.msra.mxu0 %v2720
        %2722 = vmatprep.subr.mxu0 0.0
        %v2723 = vand.u32 %v2118, 4294901760
        %2724 = vmatpush1.msra.mxu0 %v2723
        %2725 = vmatprep.subr.mxu0 0.0
        %v2726 = vand.u32 %v2119, 4294901760
        %2727 = vmatpush1.msra.mxu0 %v2726
        %2728 = vmatprep.subr.mxu0 0.0
        %v2729 = vand.u32 %v2120, 4294901760
        %2730 = vmatpush1.msra.mxu0 %v2729
        %2731 = vmatprep.subr.mxu0 0.0
        %v2732 = vand.u32 %v2121, 4294901760
        %2733 = vmatpush1.msra.mxu0 %v2732
        %2734 = vmatprep.subr.mxu0 0.0
        %v2735 = vand.u32 %v2122, 4294901760
        %2736 = vmatpush1.msra.mxu0 %v2735
        %2737 = vmatprep.subr.mxu0 0.0
        %v2738 = vand.u32 %v2123, 4294901760
        %2739 = vmatpush1.msra.mxu0 %v2738
        %2740 = vmatprep.subr.mxu0 0.0
        %v2741 = vand.u32 %v2124, 4294901760
        %2742 = vmatpush1.msra.mxu0 %v2741
        %2743 = vmatprep.subr.mxu0 0.0
        %v2744 = vand.u32 %v2125, 4294901760
        %2745 = vmatpush1.msra.mxu0 %v2744
        %2746 = vmatprep.subr.mxu0 0.0
        %v2747 = vand.u32 %v2126, 4294901760
        %2748 = vmatpush1.msra.mxu0 %v2747
        %2749 = vmatprep.subr.mxu0 0.0
        %v2750 = vand.u32 %v2127, 4294901760
        %2751 = vmatpush1.msra.mxu0 %v2750
        %2752 = vmatprep.subr.mxu0 0.0
        %v2753 = vand.u32 %v2128, 4294901760
        %2754 = vmatpush1.msra.mxu0 %v2753
        %2755 = vmatprep.subr.mxu0 0.0
        %v2756 = vand.u32 %v2129, 4294901760
        %2757 = vmatpush1.msra.mxu0 %v2756
        %2758 = vmatprep.subr.mxu0 0.0
        %v2759 = vand.u32 %v2130, 4294901760
        %2760 = vmatpush1.msra.mxu0 %v2759
        %2761 = vmatprep.subr.mxu0 0.0
        %v2762 = vand.u32 %v2131, 4294901760
        %2763 = vmatpush1.msra.mxu0 %v2762
        %2764 = vmatprep.subr.mxu0 0.0
        %v2765 = vand.u32 %v2132, 4294901760
        %2766 = vmatpush1.msra.mxu0 %v2765
        %2767 = vmatprep.subr.mxu0 0.0
        %v2768 = vand.u32 %v2133, 4294901760
        %2769 = vmatpush1.msra.mxu0 %v2768
        %2770 = vmatprep.subr.mxu0 0.0
        %v2771 = vand.u32 %v2134, 4294901760
        %2772 = vmatpush1.msra.mxu0 %v2771
        %2773 = vmatprep.subr.mxu0 0.0
        %v2774 = vand.u32 %v2135, 4294901760
        %2775 = vmatpush1.msra.mxu0 %v2774
        %2776 = vmatprep.subr.mxu0 0.0
        %v2777 = vand.u32 %v2136, 4294901760
        %2778 = vmatpush1.msra.mxu0 %v2777
        %2779 = vmatprep.subr.mxu0 0.0
        %v2780 = vand.u32 %v2137, 4294901760
        %2781 = vmatpush1.msra.mxu0 %v2780
        %2782 = vmatprep.subr.mxu0 0.0
        %v2783 = vand.u32 %v2138, 4294901760
        %2784 = vmatpush1.msra.mxu0 %v2783
        %2785 = vmatprep.subr.mxu0 0.0
        %v2786 = vand.u32 %v2139, 4294901760
        %2787 = vmatpush1.msra.mxu0 %v2786
        %v2788 = vand.u32 %v687, 4294901760
        %v2789 = vsub.f32 %v687, %v2788
        %v2790 = vand.u32 %v2789, 4294901760
        %2791 = vmatprep.mubr.f32.mxu0 %v2790
        %v2792 = vand.u32 %v686, 4294901760
        %v2793 = vsub.f32 %v686, %v2792
        %v2794 = vand.u32 %v2793, 4294901760
        %2795 = vmatmul.mubr.f32.gmra.mrb[0].mxu0 %v2794
        %v2796 = vpop.f32.mrb[0].mxu0
        %v2797 = vadd.f32 %v2680, %v2796
        %v2798 = vpop.f32.mrb[0].mxu0
        %v2799 = vand.u32 %v691, 4294901760
        %v2800 = vsub.f32 %v691, %v2799
        %v2801 = vand.u32 %v2800, 4294901760
        %2802 = vmatprep.mubr.f32.mxu0 %v2801
        %v2803 = vand.u32 %v690, 4294901760
        %v2804 = vsub.f32 %v690, %v2803
        %v2805 = vand.u32 %v2804, 4294901760
        %2806 = vmatmul.mubr.f32.gmra.mrb[0].mxu0 %v2805
        %v2807 = vpop.f32.mrb[0].mxu0
        %v2808 = vadd.f32 %v2689, %v2807
        %v2809 = vpop.f32.mrb[0].mxu0
        %2810 = vdwg.mxu0
        %2811 = vmatprep.subr.mxu0 0.0
        %v2812 = vand.u32 %v2108, 4294901760
        %v2813 = vsub.f32 %v2108, %v2812
        %v2814 = vand.u32 %v2813, 4294901760
        %2815 = vmatpush1.msra.mxu0 %v2814
        %2816 = vmatprep.subr.mxu0 0.0
        %v2817 = vand.u32 %v2109, 4294901760
        %v2818 = vsub.f32 %v2109, %v2817
        %v2819 = vand.u32 %v2818, 4294901760
        %2820 = vmatpush1.msra.mxu0 %v2819
        %2821 = vmatprep.subr.mxu0 0.0
        %v2822 = vand.u32 %v2110, 4294901760
        %v2823 = vsub.f32 %v2110, %v2822
        %v2824 = vand.u32 %v2823, 4294901760
        %2825 = vmatpush1.msra.mxu0 %v2824
        %2826 = vmatprep.subr.mxu0 0.0
        %v2827 = vand.u32 %v2111, 4294901760
        %v2828 = vsub.f32 %v2111, %v2827
        %v2829 = vand.u32 %v2828, 4294901760
        %2830 = vmatpush1.msra.mxu0 %v2829
        %2831 = vmatprep.subr.mxu0 0.0
        %v2832 = vand.u32 %v2112, 4294901760
        %v2833 = vsub.f32 %v2112, %v2832
        %v2834 = vand.u32 %v2833, 4294901760
        %2835 = vmatpush1.msra.mxu0 %v2834
        %2836 = vmatprep.subr.mxu0 0.0
        %v2837 = vand.u32 %v2113, 4294901760
        %v2838 = vsub.f32 %v2113, %v2837
        %v2839 = vand.u32 %v2838, 4294901760
        %2840 = vmatpush1.msra.mxu0 %v2839
        %2841 = vmatprep.subr.mxu0 0.0
        %v2842 = vand.u32 %v2114, 4294901760
        %v2843 = vsub.f32 %v2114, %v2842
        %v2844 = vand.u32 %v2843, 4294901760
        %2845 = vmatpush1.msra.mxu0 %v2844
        %2846 = vmatprep.subr.mxu0 0.0
        %v2847 = vand.u32 %v2115, 4294901760
        %v2848 = vsub.f32 %v2115, %v2847
        %v2849 = vand.u32 %v2848, 4294901760
        %2850 = vmatpush1.msra.mxu0 %v2849
        %2851 = vmatprep.subr.mxu0 0.0
        %v2852 = vand.u32 %v2116, 4294901760
        %v2853 = vsub.f32 %v2116, %v2852
        %v2854 = vand.u32 %v2853, 4294901760
        %2855 = vmatpush1.msra.mxu0 %v2854
        %2856 = vmatprep.subr.mxu0 0.0
        %v2857 = vand.u32 %v2117, 4294901760
        %v2858 = vsub.f32 %v2117, %v2857
        %v2859 = vand.u32 %v2858, 4294901760
        %2860 = vmatpush1.msra.mxu0 %v2859
        %2861 = vmatprep.subr.mxu0 0.0
        %v2862 = vand.u32 %v2118, 4294901760
        %v2863 = vsub.f32 %v2118, %v2862
        %v2864 = vand.u32 %v2863, 4294901760
        %2865 = vmatpush1.msra.mxu0 %v2864
        %2866 = vmatprep.subr.mxu0 0.0
        %v2867 = vand.u32 %v2119, 4294901760
        %v2868 = vsub.f32 %v2119, %v2867
        %v2869 = vand.u32 %v2868, 4294901760
        %2870 = vmatpush1.msra.mxu0 %v2869
        %2871 = vmatprep.subr.mxu0 0.0
        %v2872 = vand.u32 %v2120, 4294901760
        %v2873 = vsub.f32 %v2120, %v2872
        %v2874 = vand.u32 %v2873, 4294901760
        %2875 = vmatpush1.msra.mxu0 %v2874
        %2876 = vmatprep.subr.mxu0 0.0
        %v2877 = vand.u32 %v2121, 4294901760
        %v2878 = vsub.f32 %v2121, %v2877
        %v2879 = vand.u32 %v2878, 4294901760
        %2880 = vmatpush1.msra.mxu0 %v2879
        %2881 = vmatprep.subr.mxu0 0.0
        %v2882 = vand.u32 %v2122, 4294901760
        %v2883 = vsub.f32 %v2122, %v2882
        %v2884 = vand.u32 %v2883, 4294901760
        %2885 = vmatpush1.msra.mxu0 %v2884
        %2886 = vmatprep.subr.mxu0 0.0
        %v2887 = vand.u32 %v2123, 4294901760
        %v2888 = vsub.f32 %v2123, %v2887
        %v2889 = vand.u32 %v2888, 4294901760
        %2890 = vmatpush1.msra.mxu0 %v2889
        %2891 = vmatprep.subr.mxu0 0.0
        %v2892 = vand.u32 %v2124, 4294901760
        %v2893 = vsub.f32 %v2124, %v2892
        %v2894 = vand.u32 %v2893, 4294901760
        %2895 = vmatpush1.msra.mxu0 %v2894
        %2896 = vmatprep.subr.mxu0 0.0
        %v2897 = vand.u32 %v2125, 4294901760
        %v2898 = vsub.f32 %v2125, %v2897
        %v2899 = vand.u32 %v2898, 4294901760
        %2900 = vmatpush1.msra.mxu0 %v2899
        %2901 = vmatprep.subr.mxu0 0.0
        %v2902 = vand.u32 %v2126, 4294901760
        %v2903 = vsub.f32 %v2126, %v2902
        %v2904 = vand.u32 %v2903, 4294901760
        %2905 = vmatpush1.msra.mxu0 %v2904
        %2906 = vmatprep.subr.mxu0 0.0
        %v2907 = vand.u32 %v2127, 4294901760
        %v2908 = vsub.f32 %v2127, %v2907
        %v2909 = vand.u32 %v2908, 4294901760
        %2910 = vmatpush1.msra.mxu0 %v2909
        %2911 = vmatprep.subr.mxu0 0.0
        %v2912 = vand.u32 %v2128, 4294901760
        %v2913 = vsub.f32 %v2128, %v2912
        %v2914 = vand.u32 %v2913, 4294901760
        %2915 = vmatpush1.msra.mxu0 %v2914
        %2916 = vmatprep.subr.mxu0 0.0
        %v2917 = vand.u32 %v2129, 4294901760
        %v2918 = vsub.f32 %v2129, %v2917
        %v2919 = vand.u32 %v2918, 4294901760
        %2920 = vmatpush1.msra.mxu0 %v2919
        %2921 = vmatprep.subr.mxu0 0.0
        %v2922 = vand.u32 %v2130, 4294901760
        %v2923 = vsub.f32 %v2130, %v2922
        %v2924 = vand.u32 %v2923, 4294901760
        %2925 = vmatpush1.msra.mxu0 %v2924
        %2926 = vmatprep.subr.mxu0 0.0
        %v2927 = vand.u32 %v2131, 4294901760
        %v2928 = vsub.f32 %v2131, %v2927
        %v2929 = vand.u32 %v2928, 4294901760
        %2930 = vmatpush1.msra.mxu0 %v2929
        %2931 = vmatprep.subr.mxu0 0.0
        %v2932 = vand.u32 %v2132, 4294901760
        %v2933 = vsub.f32 %v2132, %v2932
        %v2934 = vand.u32 %v2933, 4294901760
        %2935 = vmatpush1.msra.mxu0 %v2934
        %2936 = vmatprep.subr.mxu0 0.0
        %v2937 = vand.u32 %v2133, 4294901760
        %v2938 = vsub.f32 %v2133, %v2937
        %v2939 = vand.u32 %v2938, 4294901760
        %2940 = vmatpush1.msra.mxu0 %v2939
        %2941 = vmatprep.subr.mxu0 0.0
        %v2942 = vand.u32 %v2134, 4294901760
        %v2943 = vsub.f32 %v2134, %v2942
        %v2944 = vand.u32 %v2943, 4294901760
        %2945 = vmatpush1.msra.mxu0 %v2944
        %2946 = vmatprep.subr.mxu0 0.0
        %v2947 = vand.u32 %v2135, 4294901760
        %v2948 = vsub.f32 %v2135, %v2947
        %v2949 = vand.u32 %v2948, 4294901760
        %2950 = vmatpush1.msra.mxu0 %v2949
        %2951 = vmatprep.subr.mxu0 0.0
        %v2952 = vand.u32 %v2136, 4294901760
        %v2953 = vsub.f32 %v2136, %v2952
        %v2954 = vand.u32 %v2953, 4294901760
        %2955 = vmatpush1.msra.mxu0 %v2954
        %2956 = vmatprep.subr.mxu0 0.0
        %v2957 = vand.u32 %v2137, 4294901760
        %v2958 = vsub.f32 %v2137, %v2957
        %v2959 = vand.u32 %v2958, 4294901760
        %2960 = vmatpush1.msra.mxu0 %v2959
        %2961 = vmatprep.subr.mxu0 0.0
        %v2962 = vand.u32 %v2138, 4294901760
        %v2963 = vsub.f32 %v2138, %v2962
        %v2964 = vand.u32 %v2963, 4294901760
        %2965 = vmatpush1.msra.mxu0 %v2964
        %2966 = vmatprep.subr.mxu0 0.0
        %v2967 = vand.u32 %v2139, 4294901760
        %v2968 = vsub.f32 %v2139, %v2967
        %v2969 = vand.u32 %v2968, 4294901760
        %2970 = vmatpush1.msra.mxu0 %v2969
        %v2971 = vand.u32 %v687, 4294901760
        %2972 = vmatprep.mubr.f32.mxu0 %v2971
        %v2973 = vand.u32 %v686, 4294901760
        %2974 = vmatmul.mubr.f32.gmra.mrb[0].mxu0 %v2973
        %v2975 = vpop.f32.mrb[0].mxu0
        %v2976 = vadd.f32 %v2797, %v2975
        %v2977 = vpop.f32.mrb[0].mxu0
        %v2978 = vand.u32 %v691, 4294901760
        %2979 = vmatprep.mubr.f32.mxu0 %v2978
        %v2980 = vand.u32 %v690, 4294901760
        %2981 = vmatmul.mubr.f32.gmra.mrb[0].mxu0 %v2980
        %v2982 = vpop.f32.mrb[0].mxu0
        %v2983 = vadd.f32 %v2808, %v2982
        %v2984 = vpop.f32.mrb[0].mxu0
        %2985 = vdwg.mxu0
        %2986 = vmatprep.subr.mxu0 0.0
        %v2987 = vand.u32 %v2108, 4294901760
        %2988 = vmatpush1.msra.mxu0 %v2987
        %2989 = vmatprep.subr.mxu0 0.0
        %v2990 = vand.u32 %v2109, 4294901760
        %2991 = vmatpush1.msra.mxu0 %v2990
        %2992 = vmatprep.subr.mxu0 0.0
        %v2993 = vand.u32 %v2110, 4294901760
        %2994 = vmatpush1.msra.mxu0 %v2993
        %2995 = vmatprep.subr.mxu0 0.0
        %v2996 = vand.u32 %v2111, 4294901760
        %2997 = vmatpush1.msra.mxu0 %v2996
        %2998 = vmatprep.subr.mxu0 0.0
        %v2999 = vand.u32 %v2112, 4294901760
        %3000 = vmatpush1.msra.mxu0 %v2999
        %3001 = vmatprep.subr.mxu0 0.0
        %v3002 = vand.u32 %v2113, 4294901760
        %3003 = vmatpush1.msra.mxu0 %v3002
        %3004 = vmatprep.subr.mxu0 0.0
        %v3005 = vand.u32 %v2114, 4294901760
        %3006 = vmatpush1.msra.mxu0 %v3005
        %3007 = vmatprep.subr.mxu0 0.0
        %v3008 = vand.u32 %v2115, 4294901760
        %3009 = vmatpush1.msra.mxu0 %v3008
        %3010 = vmatprep.subr.mxu0 0.0
        %v3011 = vand.u32 %v2116, 4294901760
        %3012 = vmatpush1.msra.mxu0 %v3011
        %3013 = vmatprep.subr.mxu0 0.0
        %v3014 = vand.u32 %v2117, 4294901760
        %3015 = vmatpush1.msra.mxu0 %v3014
        %3016 = vmatprep.subr.mxu0 0.0
        %v3017 = vand.u32 %v2118, 4294901760
        %3018 = vmatpush1.msra.mxu0 %v3017
        %3019 = vmatprep.subr.mxu0 0.0
        %v3020 = vand.u32 %v2119, 4294901760
        %3021 = vmatpush1.msra.mxu0 %v3020
        %3022 = vmatprep.subr.mxu0 0.0
        %v3023 = vand.u32 %v2120, 4294901760
        %3024 = vmatpush1.msra.mxu0 %v3023
        %3025 = vmatprep.subr.mxu0 0.0
        %v3026 = vand.u32 %v2121, 4294901760
        %3027 = vmatpush1.msra.mxu0 %v3026
        %3028 = vmatprep.subr.mxu0 0.0
        %v3029 = vand.u32 %v2122, 4294901760
        %3030 = vmatpush1.msra.mxu0 %v3029
        %3031 = vmatprep.subr.mxu0 0.0
        %v3032 = vand.u32 %v2123, 4294901760
        %3033 = vmatpush1.msra.mxu0 %v3032
        %3034 = vmatprep.subr.mxu0 0.0
        %v3035 = vand.u32 %v2124, 4294901760
        %3036 = vmatpush1.msra.mxu0 %v3035
        %3037 = vmatprep.subr.mxu0 0.0
        %v3038 = vand.u32 %v2125, 4294901760
        %3039 = vmatpush1.msra.mxu0 %v3038
        %3040 = vmatprep.subr.mxu0 0.0
        %v3041 = vand.u32 %v2126, 4294901760
        %3042 = vmatpush1.msra.mxu0 %v3041
        %3043 = vmatprep.subr.mxu0 0.0
        %v3044 = vand.u32 %v2127, 4294901760
        %3045 = vmatpush1.msra.mxu0 %v3044
        %3046 = vmatprep.subr.mxu0 0.0
        %v3047 = vand.u32 %v2128, 4294901760
        %3048 = vmatpush1.msra.mxu0 %v3047
        %3049 = vmatprep.subr.mxu0 0.0
        %v3050 = vand.u32 %v2129, 4294901760
        %3051 = vmatpush1.msra.mxu0 %v3050
        %3052 = vmatprep.subr.mxu0 0.0
        %v3053 = vand.u32 %v2130, 4294901760
        %3054 = vmatpush1.msra.mxu0 %v3053
        %3055 = vmatprep.subr.mxu0 0.0
        %v3056 = vand.u32 %v2131, 4294901760
        %3057 = vmatpush1.msra.mxu0 %v3056
        %3058 = vmatprep.subr.mxu0 0.0
        %v3059 = vand.u32 %v2132, 4294901760
        %3060 = vmatpush1.msra.mxu0 %v3059
        %3061 = vmatprep.subr.mxu0 0.0
        %v3062 = vand.u32 %v2133, 4294901760
        %3063 = vmatpush1.msra.mxu0 %v3062
        %3064 = vmatprep.subr.mxu0 0.0
        %v3065 = vand.u32 %v2134, 4294901760
        %3066 = vmatpush1.msra.mxu0 %v3065
        %3067 = vmatprep.subr.mxu0 0.0
        %v3068 = vand.u32 %v2135, 4294901760
        %3069 = vmatpush1.msra.mxu0 %v3068
        %3070 = vmatprep.subr.mxu0 0.0
        %v3071 = vand.u32 %v2136, 4294901760
        %3072 = vmatpush1.msra.mxu0 %v3071
        %3073 = vmatprep.subr.mxu0 0.0
        %v3074 = vand.u32 %v2137, 4294901760
        %3075 = vmatpush1.msra.mxu0 %v3074
        %3076 = vmatprep.subr.mxu0 0.0
        %v3077 = vand.u32 %v2138, 4294901760
        %3078 = vmatpush1.msra.mxu0 %v3077
        %3079 = vmatprep.subr.mxu0 0.0
        %v3080 = vand.u32 %v2139, 4294901760
        %3081 = vmatpush1.msra.mxu0 %v3080
        %v3082 = vand.u32 %v687, 4294901760
        %3083 = vmatprep.mubr.f32.mxu0 %v3082
        %v3084 = vand.u32 %v686, 4294901760
        %3085 = vmatmul.mubr.f32.gmra.mrb[0].mxu0 %v3084
        %v3086 = vpop.f32.mrb[0].mxu0
        %v3087 = vadd.f32 %v2976, %v3086
        %v3088 = vpop.f32.mrb[0].mxu0
        %v3089 = vand.u32 %v691, 4294901760
        %3090 = vmatprep.mubr.f32.mxu0 %v3089
        %v3091 = vand.u32 %v690, 4294901760
        %3092 = vmatmul.mubr.f32.gmra.mrb[0].mxu0 %v3091
        %v3093 = vpop.f32.mrb[0].mxu0
        %v3094 = vadd.f32 %v2983, %v3093
        %v3095 = vpop.f32.mrb[0].mxu0
        %3096 = vdwg.mxu0
        %3097 = vmatprep.subr.mxu0 0.0
        %v3098 = vand.u32 %v2140, 4294901760
        %3099 = vmatpush1.msra.mxu0 %v3098
        %3100 = vmatprep.subr.mxu0 0.0
        %v3101 = vand.u32 %v2141, 4294901760
        %3102 = vmatpush1.msra.mxu0 %v3101
        %3103 = vmatprep.subr.mxu0 0.0
        %v3104 = vand.u32 %v2142, 4294901760
        %3105 = vmatpush1.msra.mxu0 %v3104
        %3106 = vmatprep.subr.mxu0 0.0
        %v3107 = vand.u32 %v2143, 4294901760
        %3108 = vmatpush1.msra.mxu0 %v3107
        %3109 = vmatprep.subr.mxu0 0.0
        %v3110 = vand.u32 %v2144, 4294901760
        %3111 = vmatpush1.msra.mxu0 %v3110
        %3112 = vmatprep.subr.mxu0 0.0
        %v3113 = vand.u32 %v2145, 4294901760
        %3114 = vmatpush1.msra.mxu0 %v3113
        %3115 = vmatprep.subr.mxu0 0.0
        %v3116 = vand.u32 %v2146, 4294901760
        %3117 = vmatpush1.msra.mxu0 %v3116
        %3118 = vmatprep.subr.mxu0 0.0
        %v3119 = vand.u32 %v2147, 4294901760
        %3120 = vmatpush1.msra.mxu0 %v3119
        %3121 = vmatprep.subr.mxu0 0.0
        %v3122 = vand.u32 %v2148, 4294901760
        %3123 = vmatpush1.msra.mxu0 %v3122
        %3124 = vmatprep.subr.mxu0 0.0
        %v3125 = vand.u32 %v2149, 4294901760
        %3126 = vmatpush1.msra.mxu0 %v3125
        %3127 = vmatprep.subr.mxu0 0.0
        %v3128 = vand.u32 %v2150, 4294901760
        %3129 = vmatpush1.msra.mxu0 %v3128
        %3130 = vmatprep.subr.mxu0 0.0
        %v3131 = vand.u32 %v2151, 4294901760
        %3132 = vmatpush1.msra.mxu0 %v3131
        %3133 = vmatprep.subr.mxu0 0.0
        %v3134 = vand.u32 %v2152, 4294901760
        %3135 = vmatpush1.msra.mxu0 %v3134
        %3136 = vmatprep.subr.mxu0 0.0
        %v3137 = vand.u32 %v2153, 4294901760
        %3138 = vmatpush1.msra.mxu0 %v3137
        %3139 = vmatprep.subr.mxu0 0.0
        %v3140 = vand.u32 %v2154, 4294901760
        %3141 = vmatpush1.msra.mxu0 %v3140
        %3142 = vmatprep.subr.mxu0 0.0
        %v3143 = vand.u32 %v2155, 4294901760
        %3144 = vmatpush1.msra.mxu0 %v3143
        %3145 = vmatprep.subr.mxu0 0.0
        %v3146 = vand.u32 %v2156, 4294901760
        %3147 = vmatpush1.msra.mxu0 %v3146
        %3148 = vmatprep.subr.mxu0 0.0
        %v3149 = vand.u32 %v2157, 4294901760
        %3150 = vmatpush1.msra.mxu0 %v3149
        %3151 = vmatprep.subr.mxu0 0.0
        %v3152 = vand.u32 %v2158, 4294901760
        %3153 = vmatpush1.msra.mxu0 %v3152
        %3154 = vmatprep.subr.mxu0 0.0
        %v3155 = vand.u32 %v2159, 4294901760
        %3156 = vmatpush1.msra.mxu0 %v3155
        %3157 = vmatprep.subr.mxu0 0.0
        %v3158 = vand.u32 %v2160, 4294901760
        %3159 = vmatpush1.msra.mxu0 %v3158
        %3160 = vmatprep.subr.mxu0 0.0
        %v3161 = vand.u32 %v2161, 4294901760
        %3162 = vmatpush1.msra.mxu0 %v3161
        %3163 = vmatprep.subr.mxu0 0.0
        %v3164 = vand.u32 %v2162, 4294901760
        %3165 = vmatpush1.msra.mxu0 %v3164
        %3166 = vmatprep.subr.mxu0 0.0
        %v3167 = vand.u32 %v2163, 4294901760
        %3168 = vmatpush1.msra.mxu0 %v3167
        %3169 = vmatprep.subr.mxu0 0.0
        %v3170 = vand.u32 %v2164, 4294901760
        %3171 = vmatpush1.msra.mxu0 %v3170
        %3172 = vmatprep.subr.mxu0 0.0
        %v3173 = vand.u32 %v2165, 4294901760
        %3174 = vmatpush1.msra.mxu0 %v3173
        %3175 = vmatprep.subr.mxu0 0.0
        %v3176 = vand.u32 %v2166, 4294901760
        %3177 = vmatpush1.msra.mxu0 %v3176
        %3178 = vmatprep.subr.mxu0 0.0
        %v3179 = vand.u32 %v2167, 4294901760
        %3180 = vmatpush1.msra.mxu0 %v3179
        %3181 = vmatprep.subr.mxu0 0.0
        %v3182 = vand.u32 %v2168, 4294901760
        %3183 = vmatpush1.msra.mxu0 %v3182
        %3184 = vmatprep.subr.mxu0 0.0
        %v3185 = vand.u32 %v2169, 4294901760
        %3186 = vmatpush1.msra.mxu0 %v3185
        %3187 = vmatprep.subr.mxu0 0.0
        %v3188 = vand.u32 %v2170, 4294901760
        %3189 = vmatpush1.msra.mxu0 %v3188
        %3190 = vmatprep.subr.mxu0 0.0
        %v3191 = vand.u32 %v2171, 4294901760
        %3192 = vmatpush1.msra.mxu0 %v3191
        %v3193 = vand.u32 %v689, 4294901760
        %v3194 = vsub.f32 %v689, %v3193
        %v3195 = vand.u32 %v3194, 4294901760
        %v3196 = vsub.f32 %v3194, %v3195
        %v3197 = vand.u32 %v3196, 4294901760
        %3198 = vmatprep.mubr.f32.mxu0 %v3197
        %v3199 = vand.u32 %v688, 4294901760
        %v3200 = vsub.f32 %v688, %v3199
        %v3201 = vand.u32 %v3200, 4294901760
        %v3202 = vsub.f32 %v3200, %v3201
        %v3203 = vand.u32 %v3202, 4294901760
        %3204 = vmatmul.mubr.f32.gmra.mrb[0].mxu0 %v3203
        %v3205 = vpop.f32.mrb[0].mxu0
        %v3206 = vadd.f32 %v3087, %v3205
        %v3207 = vpop.f32.mrb[0].mxu0
        %v3208 = vand.u32 %v693, 4294901760
        %v3209 = vsub.f32 %v693, %v3208
        %v3210 = vand.u32 %v3209, 4294901760
        %v3211 = vsub.f32 %v3209, %v3210
        %v3212 = vand.u32 %v3211, 4294901760
        %3213 = vmatprep.mubr.f32.mxu0 %v3212
        %v3214 = vand.u32 %v692, 4294901760
        %v3215 = vsub.f32 %v692, %v3214
        %v3216 = vand.u32 %v3215, 4294901760
        %v3217 = vsub.f32 %v3215, %v3216
        %v3218 = vand.u32 %v3217, 4294901760
        %3219 = vmatmul.mubr.f32.gmra.mrb[0].mxu0 %v3218
        %v3220 = vpop.f32.mrb[0].mxu0
        %v3221 = vadd.f32 %v3094, %v3220
        %v3222 = vpop.f32.mrb[0].mxu0
        %3223 = vdwg.mxu0
        %3224 = vmatprep.subr.mxu0 0.0
        %v3225 = vand.u32 %v2140, 4294901760
        %v3226 = vsub.f32 %v2140, %v3225
        %v3227 = vand.u32 %v3226, 4294901760
        %v3228 = vsub.f32 %v3226, %v3227
        %v3229 = vand.u32 %v3228, 4294901760
        %3230 = vmatpush1.msra.mxu0 %v3229
        %3231 = vmatprep.subr.mxu0 0.0
        %v3232 = vand.u32 %v2141, 4294901760
        %v3233 = vsub.f32 %v2141, %v3232
        %v3234 = vand.u32 %v3233, 4294901760
        %v3235 = vsub.f32 %v3233, %v3234
        %v3236 = vand.u32 %v3235, 4294901760
        %3237 = vmatpush1.msra.mxu0 %v3236
        %3238 = vmatprep.subr.mxu0 0.0
        %v3239 = vand.u32 %v2142, 4294901760
        %v3240 = vsub.f32 %v2142, %v3239
        %v3241 = vand.u32 %v3240, 4294901760
        %v3242 = vsub.f32 %v3240, %v3241
        %v3243 = vand.u32 %v3242, 4294901760
        %3244 = vmatpush1.msra.mxu0 %v3243
        %3245 = vmatprep.subr.mxu0 0.0
        %v3246 = vand.u32 %v2143, 4294901760
        %v3247 = vsub.f32 %v2143, %v3246
        %v3248 = vand.u32 %v3247, 4294901760
        %v3249 = vsub.f32 %v3247, %v3248
        %v3250 = vand.u32 %v3249, 4294901760
        %3251 = vmatpush1.msra.mxu0 %v3250
        %3252 = vmatprep.subr.mxu0 0.0
        %v3253 = vand.u32 %v2144, 4294901760
        %v3254 = vsub.f32 %v2144, %v3253
        %v3255 = vand.u32 %v3254, 4294901760
        %v3256 = vsub.f32 %v3254, %v3255
        %v3257 = vand.u32 %v3256, 4294901760
        %3258 = vmatpush1.msra.mxu0 %v3257
        %3259 = vmatprep.subr.mxu0 0.0
        %v3260 = vand.u32 %v2145, 4294901760
        %v3261 = vsub.f32 %v2145, %v3260
        %v3262 = vand.u32 %v3261, 4294901760
        %v3263 = vsub.f32 %v3261, %v3262
        %v3264 = vand.u32 %v3263, 4294901760
        %3265 = vmatpush1.msra.mxu0 %v3264
        %3266 = vmatprep.subr.mxu0 0.0
        %v3267 = vand.u32 %v2146, 4294901760
        %v3268 = vsub.f32 %v2146, %v3267
        %v3269 = vand.u32 %v3268, 4294901760
        %v3270 = vsub.f32 %v3268, %v3269
        %v3271 = vand.u32 %v3270, 4294901760
        %3272 = vmatpush1.msra.mxu0 %v3271
        %3273 = vmatprep.subr.mxu0 0.0
        %v3274 = vand.u32 %v2147, 4294901760
        %v3275 = vsub.f32 %v2147, %v3274
        %v3276 = vand.u32 %v3275, 4294901760
        %v3277 = vsub.f32 %v3275, %v3276
        %v3278 = vand.u32 %v3277, 4294901760
        %3279 = vmatpush1.msra.mxu0 %v3278
        %3280 = vmatprep.subr.mxu0 0.0
        %v3281 = vand.u32 %v2148, 4294901760
        %v3282 = vsub.f32 %v2148, %v3281
        %v3283 = vand.u32 %v3282, 4294901760
        %v3284 = vsub.f32 %v3282, %v3283
        %v3285 = vand.u32 %v3284, 4294901760
        %3286 = vmatpush1.msra.mxu0 %v3285
        %3287 = vmatprep.subr.mxu0 0.0
        %v3288 = vand.u32 %v2149, 4294901760
        %v3289 = vsub.f32 %v2149, %v3288
        %v3290 = vand.u32 %v3289, 4294901760
        %v3291 = vsub.f32 %v3289, %v3290
        %v3292 = vand.u32 %v3291, 4294901760
        %3293 = vmatpush1.msra.mxu0 %v3292
        %3294 = vmatprep.subr.mxu0 0.0
        %v3295 = vand.u32 %v2150, 4294901760
        %v3296 = vsub.f32 %v2150, %v3295
        %v3297 = vand.u32 %v3296, 4294901760
        %v3298 = vsub.f32 %v3296, %v3297
        %v3299 = vand.u32 %v3298, 4294901760
        %3300 = vmatpush1.msra.mxu0 %v3299
        %3301 = vmatprep.subr.mxu0 0.0
        %v3302 = vand.u32 %v2151, 4294901760
        %v3303 = vsub.f32 %v2151, %v3302
        %v3304 = vand.u32 %v3303, 4294901760
        %v3305 = vsub.f32 %v3303, %v3304
        %v3306 = vand.u32 %v3305, 4294901760
        %3307 = vmatpush1.msra.mxu0 %v3306
        %3308 = vmatprep.subr.mxu0 0.0
        %v3309 = vand.u32 %v2152, 4294901760
        %v3310 = vsub.f32 %v2152, %v3309
        %v3311 = vand.u32 %v3310, 4294901760
        %v3312 = vsub.f32 %v3310, %v3311
        %v3313 = vand.u32 %v3312, 4294901760
        %3314 = vmatpush1.msra.mxu0 %v3313
        %3315 = vmatprep.subr.mxu0 0.0
        %v3316 = vand.u32 %v2153, 4294901760
        %v3317 = vsub.f32 %v2153, %v3316
        %v3318 = vand.u32 %v3317, 4294901760
        %v3319 = vsub.f32 %v3317, %v3318
        %v3320 = vand.u32 %v3319, 4294901760
        %3321 = vmatpush1.msra.mxu0 %v3320
        %3322 = vmatprep.subr.mxu0 0.0
        %v3323 = vand.u32 %v2154, 4294901760
        %v3324 = vsub.f32 %v2154, %v3323
        %v3325 = vand.u32 %v3324, 4294901760
        %v3326 = vsub.f32 %v3324, %v3325
        %v3327 = vand.u32 %v3326, 4294901760
        %3328 = vmatpush1.msra.mxu0 %v3327
        %3329 = vmatprep.subr.mxu0 0.0
        %v3330 = vand.u32 %v2155, 4294901760
        %v3331 = vsub.f32 %v2155, %v3330
        %v3332 = vand.u32 %v3331, 4294901760
        %v3333 = vsub.f32 %v3331, %v3332
        %v3334 = vand.u32 %v3333, 4294901760
        %3335 = vmatpush1.msra.mxu0 %v3334
        %3336 = vmatprep.subr.mxu0 0.0
        %v3337 = vand.u32 %v2156, 4294901760
        %v3338 = vsub.f32 %v2156, %v3337
        %v3339 = vand.u32 %v3338, 4294901760
        %v3340 = vsub.f32 %v3338, %v3339
        %v3341 = vand.u32 %v3340, 4294901760
        %3342 = vmatpush1.msra.mxu0 %v3341
        %3343 = vmatprep.subr.mxu0 0.0
        %v3344 = vand.u32 %v2157, 4294901760
        %v3345 = vsub.f32 %v2157, %v3344
        %v3346 = vand.u32 %v3345, 4294901760
        %v3347 = vsub.f32 %v3345, %v3346
        %v3348 = vand.u32 %v3347, 4294901760
        %3349 = vmatpush1.msra.mxu0 %v3348
        %3350 = vmatprep.subr.mxu0 0.0
        %v3351 = vand.u32 %v2158, 4294901760
        %v3352 = vsub.f32 %v2158, %v3351
        %v3353 = vand.u32 %v3352, 4294901760
        %v3354 = vsub.f32 %v3352, %v3353
        %v3355 = vand.u32 %v3354, 4294901760
        %3356 = vmatpush1.msra.mxu0 %v3355
        %3357 = vmatprep.subr.mxu0 0.0
        %v3358 = vand.u32 %v2159, 4294901760
        %v3359 = vsub.f32 %v2159, %v3358
        %v3360 = vand.u32 %v3359, 4294901760
        %v3361 = vsub.f32 %v3359, %v3360
        %v3362 = vand.u32 %v3361, 4294901760
        %3363 = vmatpush1.msra.mxu0 %v3362
        %3364 = vmatprep.subr.mxu0 0.0
        %v3365 = vand.u32 %v2160, 4294901760
        %v3366 = vsub.f32 %v2160, %v3365
        %v3367 = vand.u32 %v3366, 4294901760
        %v3368 = vsub.f32 %v3366, %v3367
        %v3369 = vand.u32 %v3368, 4294901760
        %3370 = vmatpush1.msra.mxu0 %v3369
        %3371 = vmatprep.subr.mxu0 0.0
        %v3372 = vand.u32 %v2161, 4294901760
        %v3373 = vsub.f32 %v2161, %v3372
        %v3374 = vand.u32 %v3373, 4294901760
        %v3375 = vsub.f32 %v3373, %v3374
        %v3376 = vand.u32 %v3375, 4294901760
        %3377 = vmatpush1.msra.mxu0 %v3376
        %3378 = vmatprep.subr.mxu0 0.0
        %v3379 = vand.u32 %v2162, 4294901760
        %v3380 = vsub.f32 %v2162, %v3379
        %v3381 = vand.u32 %v3380, 4294901760
        %v3382 = vsub.f32 %v3380, %v3381
        %v3383 = vand.u32 %v3382, 4294901760
        %3384 = vmatpush1.msra.mxu0 %v3383
        %3385 = vmatprep.subr.mxu0 0.0
        %v3386 = vand.u32 %v2163, 4294901760
        %v3387 = vsub.f32 %v2163, %v3386
        %v3388 = vand.u32 %v3387, 4294901760
        %v3389 = vsub.f32 %v3387, %v3388
        %v3390 = vand.u32 %v3389, 4294901760
        %3391 = vmatpush1.msra.mxu0 %v3390
        %3392 = vmatprep.subr.mxu0 0.0
        %v3393 = vand.u32 %v2164, 4294901760
        %v3394 = vsub.f32 %v2164, %v3393
        %v3395 = vand.u32 %v3394, 4294901760
        %v3396 = vsub.f32 %v3394, %v3395
        %v3397 = vand.u32 %v3396, 4294901760
        %3398 = vmatpush1.msra.mxu0 %v3397
        %3399 = vmatprep.subr.mxu0 0.0
        %v3400 = vand.u32 %v2165, 4294901760
        %v3401 = vsub.f32 %v2165, %v3400
        %v3402 = vand.u32 %v3401, 4294901760
        %v3403 = vsub.f32 %v3401, %v3402
        %v3404 = vand.u32 %v3403, 4294901760
        %3405 = vmatpush1.msra.mxu0 %v3404
        %3406 = vmatprep.subr.mxu0 0.0
        %v3407 = vand.u32 %v2166, 4294901760
        %v3408 = vsub.f32 %v2166, %v3407
        %v3409 = vand.u32 %v3408, 4294901760
        %v3410 = vsub.f32 %v3408, %v3409
        %v3411 = vand.u32 %v3410, 4294901760
        %3412 = vmatpush1.msra.mxu0 %v3411
        %3413 = vmatprep.subr.mxu0 0.0
        %v3414 = vand.u32 %v2167, 4294901760
        %v3415 = vsub.f32 %v2167, %v3414
        %v3416 = vand.u32 %v3415, 4294901760
        %v3417 = vsub.f32 %v3415, %v3416
        %v3418 = vand.u32 %v3417, 4294901760
        %3419 = vmatpush1.msra.mxu0 %v3418
        %3420 = vmatprep.subr.mxu0 0.0
        %v3421 = vand.u32 %v2168, 4294901760
        %v3422 = vsub.f32 %v2168, %v3421
        %v3423 = vand.u32 %v3422, 4294901760
        %v3424 = vsub.f32 %v3422, %v3423
        %v3425 = vand.u32 %v3424, 4294901760
        %3426 = vmatpush1.msra.mxu0 %v3425
        %3427 = vmatprep.subr.mxu0 0.0
        %v3428 = vand.u32 %v2169, 4294901760
        %v3429 = vsub.f32 %v2169, %v3428
        %v3430 = vand.u32 %v3429, 4294901760
        %v3431 = vsub.f32 %v3429, %v3430
        %v3432 = vand.u32 %v3431, 4294901760
        %3433 = vmatpush1.msra.mxu0 %v3432
        %3434 = vmatprep.subr.mxu0 0.0
        %v3435 = vand.u32 %v2170, 4294901760
        %v3436 = vsub.f32 %v2170, %v3435
        %v3437 = vand.u32 %v3436, 4294901760
        %v3438 = vsub.f32 %v3436, %v3437
        %v3439 = vand.u32 %v3438, 4294901760
        %3440 = vmatpush1.msra.mxu0 %v3439
        %3441 = vmatprep.subr.mxu0 0.0
        %v3442 = vand.u32 %v2171, 4294901760
        %v3443 = vsub.f32 %v2171, %v3442
        %v3444 = vand.u32 %v3443, 4294901760
        %v3445 = vsub.f32 %v3443, %v3444
        %v3446 = vand.u32 %v3445, 4294901760
        %3447 = vmatpush1.msra.mxu0 %v3446
        %v3448 = vand.u32 %v689, 4294901760
        %3449 = vmatprep.mubr.f32.mxu0 %v3448
        %v3450 = vand.u32 %v688, 4294901760
        %3451 = vmatmul.mubr.f32.gmra.mrb[0].mxu0 %v3450
        %v3452 = vpop.f32.mrb[0].mxu0
        %v3453 = vadd.f32 %v3206, %v3452
        %v3454 = vpop.f32.mrb[0].mxu0
        %v3455 = vand.u32 %v693, 4294901760
        %3456 = vmatprep.mubr.f32.mxu0 %v3455
        %v3457 = vand.u32 %v692, 4294901760
        %3458 = vmatmul.mubr.f32.gmra.mrb[0].mxu0 %v3457
        %v3459 = vpop.f32.mrb[0].mxu0
        %v3460 = vadd.f32 %v3221, %v3459
        %v3461 = vpop.f32.mrb[0].mxu0
        %3462 = vdwg.mxu0
        %3463 = vmatprep.subr.mxu0 0.0
        %v3464 = vand.u32 %v2140, 4294901760
        %v3465 = vsub.f32 %v2140, %v3464
        %3466 = vmatpush1.msra.mxu0 %v3465
        %3467 = vmatprep.subr.mxu0 0.0
        %v3468 = vand.u32 %v2141, 4294901760
        %v3469 = vsub.f32 %v2141, %v3468
        %3470 = vmatpush1.msra.mxu0 %v3469
        %3471 = vmatprep.subr.mxu0 0.0
        %v3472 = vand.u32 %v2142, 4294901760
        %v3473 = vsub.f32 %v2142, %v3472
        %3474 = vmatpush1.msra.mxu0 %v3473
        %3475 = vmatprep.subr.mxu0 0.0
        %v3476 = vand.u32 %v2143, 4294901760
        %v3477 = vsub.f32 %v2143, %v3476
        %3478 = vmatpush1.msra.mxu0 %v3477
        %3479 = vmatprep.subr.mxu0 0.0
        %v3480 = vand.u32 %v2144, 4294901760
        %v3481 = vsub.f32 %v2144, %v3480
        %3482 = vmatpush1.msra.mxu0 %v3481
        %3483 = vmatprep.subr.mxu0 0.0
        %v3484 = vand.u32 %v2145, 4294901760
        %v3485 = vsub.f32 %v2145, %v3484
        %3486 = vmatpush1.msra.mxu0 %v3485
        %3487 = vmatprep.subr.mxu0 0.0
        %v3488 = vand.u32 %v2146, 4294901760
        %v3489 = vsub.f32 %v2146, %v3488
        %3490 = vmatpush1.msra.mxu0 %v3489
        %3491 = vmatprep.subr.mxu0 0.0
        %v3492 = vand.u32 %v2147, 4294901760
        %v3493 = vsub.f32 %v2147, %v3492
        %3494 = vmatpush1.msra.mxu0 %v3493
        %3495 = vmatprep.subr.mxu0 0.0
        %v3496 = vand.u32 %v2148, 4294901760
        %v3497 = vsub.f32 %v2148, %v3496
        %3498 = vmatpush1.msra.mxu0 %v3497
        %3499 = vmatprep.subr.mxu0 0.0
        %v3500 = vand.u32 %v2149, 4294901760
        %v3501 = vsub.f32 %v2149, %v3500
        %3502 = vmatpush1.msra.mxu0 %v3501
        %3503 = vmatprep.subr.mxu0 0.0
        %v3504 = vand.u32 %v2150, 4294901760
        %v3505 = vsub.f32 %v2150, %v3504
        %3506 = vmatpush1.msra.mxu0 %v3505
        %3507 = vmatprep.subr.mxu0 0.0
        %v3508 = vand.u32 %v2151, 4294901760
        %v3509 = vsub.f32 %v2151, %v3508
        %3510 = vmatpush1.msra.mxu0 %v3509
        %3511 = vmatprep.subr.mxu0 0.0
        %v3512 = vand.u32 %v2152, 4294901760
        %v3513 = vsub.f32 %v2152, %v3512
        %3514 = vmatpush1.msra.mxu0 %v3513
        %3515 = vmatprep.subr.mxu0 0.0
        %v3516 = vand.u32 %v2153, 4294901760
        %v3517 = vsub.f32 %v2153, %v3516
        %3518 = vmatpush1.msra.mxu0 %v3517
        %3519 = vmatprep.subr.mxu0 0.0
        %v3520 = vand.u32 %v2154, 4294901760
        %v3521 = vsub.f32 %v2154, %v3520
        %3522 = vmatpush1.msra.mxu0 %v3521
        %3523 = vmatprep.subr.mxu0 0.0
        %v3524 = vand.u32 %v2155, 4294901760
        %v3525 = vsub.f32 %v2155, %v3524
        %3526 = vmatpush1.msra.mxu0 %v3525
        %3527 = vmatprep.subr.mxu0 0.0
        %v3528 = vand.u32 %v2156, 4294901760
        %v3529 = vsub.f32 %v2156, %v3528
        %3530 = vmatpush1.msra.mxu0 %v3529
        %3531 = vmatprep.subr.mxu0 0.0
        %v3532 = vand.u32 %v2157, 4294901760
        %v3533 = vsub.f32 %v2157, %v3532
        %3534 = vmatpush1.msra.mxu0 %v3533
        %3535 = vmatprep.subr.mxu0 0.0
        %v3536 = vand.u32 %v2158, 4294901760
        %v3537 = vsub.f32 %v2158, %v3536
        %3538 = vmatpush1.msra.mxu0 %v3537
        %3539 = vmatprep.subr.mxu0 0.0
        %v3540 = vand.u32 %v2159, 4294901760
        %v3541 = vsub.f32 %v2159, %v3540
        %3542 = vmatpush1.msra.mxu0 %v3541
        %3543 = vmatprep.subr.mxu0 0.0
        %v3544 = vand.u32 %v2160, 4294901760
        %v3545 = vsub.f32 %v2160, %v3544
        %3546 = vmatpush1.msra.mxu0 %v3545
        %3547 = vmatprep.subr.mxu0 0.0
        %v3548 = vand.u32 %v2161, 4294901760
        %v3549 = vsub.f32 %v2161, %v3548
        %3550 = vmatpush1.msra.mxu0 %v3549
        %3551 = vmatprep.subr.mxu0 0.0
        %v3552 = vand.u32 %v2162, 4294901760
        %v3553 = vsub.f32 %v2162, %v3552
        %3554 = vmatpush1.msra.mxu0 %v3553
        %3555 = vmatprep.subr.mxu0 0.0
        %v3556 = vand.u32 %v2163, 4294901760
        %v3557 = vsub.f32 %v2163, %v3556
        %3558 = vmatpush1.msra.mxu0 %v3557
        %3559 = vmatprep.subr.mxu0 0.0
        %v3560 = vand.u32 %v2164, 4294901760
        %v3561 = vsub.f32 %v2164, %v3560
        %3562 = vmatpush1.msra.mxu0 %v3561
        %3563 = vmatprep.subr.mxu0 0.0
        %v3564 = vand.u32 %v2165, 4294901760
        %v3565 = vsub.f32 %v2165, %v3564
        %3566 = vmatpush1.msra.mxu0 %v3565
        %3567 = vmatprep.subr.mxu0 0.0
        %v3568 = vand.u32 %v2166, 4294901760
        %v3569 = vsub.f32 %v2166, %v3568
        %3570 = vmatpush1.msra.mxu0 %v3569
        %3571 = vmatprep.subr.mxu0 0.0
        %v3572 = vand.u32 %v2167, 4294901760
        %v3573 = vsub.f32 %v2167, %v3572
        %3574 = vmatpush1.msra.mxu0 %v3573
        %3575 = vmatprep.subr.mxu0 0.0
        %v3576 = vand.u32 %v2168, 4294901760
        %v3577 = vsub.f32 %v2168, %v3576
        %3578 = vmatpush1.msra.mxu0 %v3577
        %3579 = vmatprep.subr.mxu0 0.0
        %v3580 = vand.u32 %v2169, 4294901760
        %v3581 = vsub.f32 %v2169, %v3580
        %3582 = vmatpush1.msra.mxu0 %v3581
        %3583 = vmatprep.subr.mxu0 0.0
        %v3584 = vand.u32 %v2170, 4294901760
        %v3585 = vsub.f32 %v2170, %v3584
        %3586 = vmatpush1.msra.mxu0 %v3585
        %3587 = vmatprep.subr.mxu0 0.0
        %v3588 = vand.u32 %v2171, 4294901760
        %v3589 = vsub.f32 %v2171, %v3588
        %3590 = vmatpush1.msra.mxu0 %v3589
        %v3591 = vand.u32 %v689, 4294901760
        %v3592 = vsub.f32 %v689, %v3591
        %3593 = vmatprep.mubr.f32.mxu0 %v3592
        %v3594 = vand.u32 %v688, 4294901760
        %v3595 = vsub.f32 %v688, %v3594
        %3596 = vmatmul.mubr.f32.gmra.mrb[0].mxu0 %v3595
        %v3597 = vpop.f32.mrb[0].mxu0
        %v3598 = vadd.f32 %v3453, %v3597
        %v3599 = vpop.f32.mrb[0].mxu0
        %v3600 = vand.u32 %v693, 4294901760
        %v3601 = vsub.f32 %v693, %v3600
        %3602 = vmatprep.mubr.f32.mxu0 %v3601
        %v3603 = vand.u32 %v692, 4294901760
        %v3604 = vsub.f32 %v692, %v3603
        %3605 = vmatmul.mubr.f32.gmra.mrb[0].mxu0 %v3604
        %v3606 = vpop.f32.mrb[0].mxu0
        %v3607 = vadd.f32 %v3460, %v3606
        %v3608 = vpop.f32.mrb[0].mxu0
        %3609 = vdwg.mxu0
        %3610 = vmatprep.subr.mxu0 0.0
        %v3611 = vand.u32 %v2140, 4294901760
        %3612 = vmatpush1.msra.mxu0 %v3611
        %3613 = vmatprep.subr.mxu0 0.0
        %v3614 = vand.u32 %v2141, 4294901760
        %3615 = vmatpush1.msra.mxu0 %v3614
        %3616 = vmatprep.subr.mxu0 0.0
        %v3617 = vand.u32 %v2142, 4294901760
        %3618 = vmatpush1.msra.mxu0 %v3617
        %3619 = vmatprep.subr.mxu0 0.0
        %v3620 = vand.u32 %v2143, 4294901760
        %3621 = vmatpush1.msra.mxu0 %v3620
        %3622 = vmatprep.subr.mxu0 0.0
        %v3623 = vand.u32 %v2144, 4294901760
        %3624 = vmatpush1.msra.mxu0 %v3623
        %3625 = vmatprep.subr.mxu0 0.0
        %v3626 = vand.u32 %v2145, 4294901760
        %3627 = vmatpush1.msra.mxu0 %v3626
        %3628 = vmatprep.subr.mxu0 0.0
        %v3629 = vand.u32 %v2146, 4294901760
        %3630 = vmatpush1.msra.mxu0 %v3629
        %3631 = vmatprep.subr.mxu0 0.0
        %v3632 = vand.u32 %v2147, 4294901760
        %3633 = vmatpush1.msra.mxu0 %v3632
        %3634 = vmatprep.subr.mxu0 0.0
        %v3635 = vand.u32 %v2148, 4294901760
        %3636 = vmatpush1.msra.mxu0 %v3635
        %3637 = vmatprep.subr.mxu0 0.0
        %v3638 = vand.u32 %v2149, 4294901760
        %3639 = vmatpush1.msra.mxu0 %v3638
        %3640 = vmatprep.subr.mxu0 0.0
        %v3641 = vand.u32 %v2150, 4294901760
        %3642 = vmatpush1.msra.mxu0 %v3641
        %3643 = vmatprep.subr.mxu0 0.0
        %v3644 = vand.u32 %v2151, 4294901760
        %3645 = vmatpush1.msra.mxu0 %v3644
        %3646 = vmatprep.subr.mxu0 0.0
        %v3647 = vand.u32 %v2152, 4294901760
        %3648 = vmatpush1.msra.mxu0 %v3647
        %3649 = vmatprep.subr.mxu0 0.0
        %v3650 = vand.u32 %v2153, 4294901760
        %3651 = vmatpush1.msra.mxu0 %v3650
        %3652 = vmatprep.subr.mxu0 0.0
        %v3653 = vand.u32 %v2154, 4294901760
        %3654 = vmatpush1.msra.mxu0 %v3653
        %3655 = vmatprep.subr.mxu0 0.0
        %v3656 = vand.u32 %v2155, 4294901760
        %3657 = vmatpush1.msra.mxu0 %v3656
        %3658 = vmatprep.subr.mxu0 0.0
        %v3659 = vand.u32 %v2156, 4294901760
        %3660 = vmatpush1.msra.mxu0 %v3659
        %3661 = vmatprep.subr.mxu0 0.0
        %v3662 = vand.u32 %v2157, 4294901760
        %3663 = vmatpush1.msra.mxu0 %v3662
        %3664 = vmatprep.subr.mxu0 0.0
        %v3665 = vand.u32 %v2158, 4294901760
        %3666 = vmatpush1.msra.mxu0 %v3665
        %3667 = vmatprep.subr.mxu0 0.0
        %v3668 = vand.u32 %v2159, 4294901760
        %3669 = vmatpush1.msra.mxu0 %v3668
        %3670 = vmatprep.subr.mxu0 0.0
        %v3671 = vand.u32 %v2160, 4294901760
        %3672 = vmatpush1.msra.mxu0 %v3671
        %3673 = vmatprep.subr.mxu0 0.0
        %v3674 = vand.u32 %v2161, 4294901760
        %3675 = vmatpush1.msra.mxu0 %v3674
        %3676 = vmatprep.subr.mxu0 0.0
        %v3677 = vand.u32 %v2162, 4294901760
        %3678 = vmatpush1.msra.mxu0 %v3677
        %3679 = vmatprep.subr.mxu0 0.0
        %v3680 = vand.u32 %v2163, 4294901760
        %3681 = vmatpush1.msra.mxu0 %v3680
        %3682 = vmatprep.subr.mxu0 0.0
        %v3683 = vand.u32 %v2164, 4294901760
        %3684 = vmatpush1.msra.mxu0 %v3683
        %3685 = vmatprep.subr.mxu0 0.0
        %v3686 = vand.u32 %v2165, 4294901760
        %3687 = vmatpush1.msra.mxu0 %v3686
        %3688 = vmatprep.subr.mxu0 0.0
        %v3689 = vand.u32 %v2166, 4294901760
        %3690 = vmatpush1.msra.mxu0 %v3689
        %3691 = vmatprep.subr.mxu0 0.0
        %v3692 = vand.u32 %v2167, 4294901760
        %3693 = vmatpush1.msra.mxu0 %v3692
        %3694 = vmatprep.subr.mxu0 0.0
        %v3695 = vand.u32 %v2168, 4294901760
        %3696 = vmatpush1.msra.mxu0 %v3695
        %3697 = vmatprep.subr.mxu0 0.0
        %v3698 = vand.u32 %v2169, 4294901760
        %3699 = vmatpush1.msra.mxu0 %v3698
        %3700 = vmatprep.subr.mxu0 0.0
        %v3701 = vand.u32 %v2170, 4294901760
        %3702 = vmatpush1.msra.mxu0 %v3701
        %3703 = vmatprep.subr.mxu0 0.0
        %v3704 = vand.u32 %v2171, 4294901760
        %3705 = vmatpush1.msra.mxu0 %v3704
        %v3706 = vand.u32 %v689, 4294901760
        %v3707 = vsub.f32 %v689, %v3706
        %v3708 = vand.u32 %v3707, 4294901760
        %3709 = vmatprep.mubr.f32.mxu0 %v3708
        %v3710 = vand.u32 %v688, 4294901760
        %v3711 = vsub.f32 %v688, %v3710
        %v3712 = vand.u32 %v3711, 4294901760
        %3713 = vmatmul.mubr.f32.gmra.mrb[0].mxu0 %v3712
        %v3714 = vpop.f32.mrb[0].mxu0
        %v3715 = vadd.f32 %v3598, %v3714
        %v3716 = vpop.f32.mrb[0].mxu0
        %v3717 = vand.u32 %v693, 4294901760
        %v3718 = vsub.f32 %v693, %v3717
        %v3719 = vand.u32 %v3718, 4294901760
        %3720 = vmatprep.mubr.f32.mxu0 %v3719
        %v3721 = vand.u32 %v692, 4294901760
        %v3722 = vsub.f32 %v692, %v3721
        %v3723 = vand.u32 %v3722, 4294901760
        %3724 = vmatmul.mubr.f32.gmra.mrb[0].mxu0 %v3723
        %v3725 = vpop.f32.mrb[0].mxu0
        %v3726 = vadd.f32 %v3607, %v3725
        %v3727 = vpop.f32.mrb[0].mxu0
        %3728 = vdwg.mxu0
        %3729 = vmatprep.subr.mxu0 0.0
        %v3730 = vand.u32 %v2140, 4294901760
        %v3731 = vsub.f32 %v2140, %v3730
        %v3732 = vand.u32 %v3731, 4294901760
        %3733 = vmatpush1.msra.mxu0 %v3732
        %3734 = vmatprep.subr.mxu0 0.0
        %v3735 = vand.u32 %v2141, 4294901760
        %v3736 = vsub.f32 %v2141, %v3735
        %v3737 = vand.u32 %v3736, 4294901760
        %3738 = vmatpush1.msra.mxu0 %v3737
        %3739 = vmatprep.subr.mxu0 0.0
        %v3740 = vand.u32 %v2142, 4294901760
        %v3741 = vsub.f32 %v2142, %v3740
        %v3742 = vand.u32 %v3741, 4294901760
        %3743 = vmatpush1.msra.mxu0 %v3742
        %3744 = vmatprep.subr.mxu0 0.0
        %v3745 = vand.u32 %v2143, 4294901760
        %v3746 = vsub.f32 %v2143, %v3745
        %v3747 = vand.u32 %v3746, 4294901760
        %3748 = vmatpush1.msra.mxu0 %v3747
        %3749 = vmatprep.subr.mxu0 0.0
        %v3750 = vand.u32 %v2144, 4294901760
        %v3751 = vsub.f32 %v2144, %v3750
        %v3752 = vand.u32 %v3751, 4294901760
        %3753 = vmatpush1.msra.mxu0 %v3752
        %3754 = vmatprep.subr.mxu0 0.0
        %v3755 = vand.u32 %v2145, 4294901760
        %v3756 = vsub.f32 %v2145, %v3755
        %v3757 = vand.u32 %v3756, 4294901760
        %3758 = vmatpush1.msra.mxu0 %v3757
        %3759 = vmatprep.subr.mxu0 0.0
        %v3760 = vand.u32 %v2146, 4294901760
        %v3761 = vsub.f32 %v2146, %v3760
        %v3762 = vand.u32 %v3761, 4294901760
        %3763 = vmatpush1.msra.mxu0 %v3762
        %3764 = vmatprep.subr.mxu0 0.0
        %v3765 = vand.u32 %v2147, 4294901760
        %v3766 = vsub.f32 %v2147, %v3765
        %v3767 = vand.u32 %v3766, 4294901760
        %3768 = vmatpush1.msra.mxu0 %v3767
        %3769 = vmatprep.subr.mxu0 0.0
        %v3770 = vand.u32 %v2148, 4294901760
        %v3771 = vsub.f32 %v2148, %v3770
        %v3772 = vand.u32 %v3771, 4294901760
        %3773 = vmatpush1.msra.mxu0 %v3772
        %3774 = vmatprep.subr.mxu0 0.0
        %v3775 = vand.u32 %v2149, 4294901760
        %v3776 = vsub.f32 %v2149, %v3775
        %v3777 = vand.u32 %v3776, 4294901760
        %3778 = vmatpush1.msra.mxu0 %v3777
        %3779 = vmatprep.subr.mxu0 0.0
        %v3780 = vand.u32 %v2150, 4294901760
        %v3781 = vsub.f32 %v2150, %v3780
        %v3782 = vand.u32 %v3781, 4294901760
        %3783 = vmatpush1.msra.mxu0 %v3782
        %3784 = vmatprep.subr.mxu0 0.0
        %v3785 = vand.u32 %v2151, 4294901760
        %v3786 = vsub.f32 %v2151, %v3785
        %v3787 = vand.u32 %v3786, 4294901760
        %3788 = vmatpush1.msra.mxu0 %v3787
        %3789 = vmatprep.subr.mxu0 0.0
        %v3790 = vand.u32 %v2152, 4294901760
        %v3791 = vsub.f32 %v2152, %v3790
        %v3792 = vand.u32 %v3791, 4294901760
        %3793 = vmatpush1.msra.mxu0 %v3792
        %3794 = vmatprep.subr.mxu0 0.0
        %v3795 = vand.u32 %v2153, 4294901760
        %v3796 = vsub.f32 %v2153, %v3795
        %v3797 = vand.u32 %v3796, 4294901760
        %3798 = vmatpush1.msra.mxu0 %v3797
        %3799 = vmatprep.subr.mxu0 0.0
        %v3800 = vand.u32 %v2154, 4294901760
        %v3801 = vsub.f32 %v2154, %v3800
        %v3802 = vand.u32 %v3801, 4294901760
        %3803 = vmatpush1.msra.mxu0 %v3802
        %3804 = vmatprep.subr.mxu0 0.0
        %v3805 = vand.u32 %v2155, 4294901760
        %v3806 = vsub.f32 %v2155, %v3805
        %v3807 = vand.u32 %v3806, 4294901760
        %3808 = vmatpush1.msra.mxu0 %v3807
        %3809 = vmatprep.subr.mxu0 0.0
        %v3810 = vand.u32 %v2156, 4294901760
        %v3811 = vsub.f32 %v2156, %v3810
        %v3812 = vand.u32 %v3811, 4294901760
        %3813 = vmatpush1.msra.mxu0 %v3812
        %3814 = vmatprep.subr.mxu0 0.0
        %v3815 = vand.u32 %v2157, 4294901760
        %v3816 = vsub.f32 %v2157, %v3815
        %v3817 = vand.u32 %v3816, 4294901760
        %3818 = vmatpush1.msra.mxu0 %v3817
        %3819 = vmatprep.subr.mxu0 0.0
        %v3820 = vand.u32 %v2158, 4294901760
        %v3821 = vsub.f32 %v2158, %v3820
        %v3822 = vand.u32 %v3821, 4294901760
        %3823 = vmatpush1.msra.mxu0 %v3822
        %3824 = vmatprep.subr.mxu0 0.0
        %v3825 = vand.u32 %v2159, 4294901760
        %v3826 = vsub.f32 %v2159, %v3825
        %v3827 = vand.u32 %v3826, 4294901760
        %3828 = vmatpush1.msra.mxu0 %v3827
        %3829 = vmatprep.subr.mxu0 0.0
        %v3830 = vand.u32 %v2160, 4294901760
        %v3831 = vsub.f32 %v2160, %v3830
        %v3832 = vand.u32 %v3831, 4294901760
        %3833 = vmatpush1.msra.mxu0 %v3832
        %3834 = vmatprep.subr.mxu0 0.0
        %v3835 = vand.u32 %v2161, 4294901760
        %v3836 = vsub.f32 %v2161, %v3835
        %v3837 = vand.u32 %v3836, 4294901760
        %3838 = vmatpush1.msra.mxu0 %v3837
        %3839 = vmatprep.subr.mxu0 0.0
        %v3840 = vand.u32 %v2162, 4294901760
        %v3841 = vsub.f32 %v2162, %v3840
        %v3842 = vand.u32 %v3841, 4294901760
        %3843 = vmatpush1.msra.mxu0 %v3842
        %3844 = vmatprep.subr.mxu0 0.0
        %v3845 = vand.u32 %v2163, 4294901760
        %v3846 = vsub.f32 %v2163, %v3845
        %v3847 = vand.u32 %v3846, 4294901760
        %3848 = vmatpush1.msra.mxu0 %v3847
        %3849 = vmatprep.subr.mxu0 0.0
        %v3850 = vand.u32 %v2164, 4294901760
        %v3851 = vsub.f32 %v2164, %v3850
        %v3852 = vand.u32 %v3851, 4294901760
        %3853 = vmatpush1.msra.mxu0 %v3852
        %3854 = vmatprep.subr.mxu0 0.0
        %v3855 = vand.u32 %v2165, 4294901760
        %v3856 = vsub.f32 %v2165, %v3855
        %v3857 = vand.u32 %v3856, 4294901760
        %3858 = vmatpush1.msra.mxu0 %v3857
        %3859 = vmatprep.subr.mxu0 0.0
        %v3860 = vand.u32 %v2166, 4294901760
        %v3861 = vsub.f32 %v2166, %v3860
        %v3862 = vand.u32 %v3861, 4294901760
        %3863 = vmatpush1.msra.mxu0 %v3862
        %3864 = vmatprep.subr.mxu0 0.0
        %v3865 = vand.u32 %v2167, 4294901760
        %v3866 = vsub.f32 %v2167, %v3865
        %v3867 = vand.u32 %v3866, 4294901760
        %3868 = vmatpush1.msra.mxu0 %v3867
        %3869 = vmatprep.subr.mxu0 0.0
        %v3870 = vand.u32 %v2168, 4294901760
        %v3871 = vsub.f32 %v2168, %v3870
        %v3872 = vand.u32 %v3871, 4294901760
        %3873 = vmatpush1.msra.mxu0 %v3872
        %3874 = vmatprep.subr.mxu0 0.0
        %v3875 = vand.u32 %v2169, 4294901760
        %v3876 = vsub.f32 %v2169, %v3875
        %v3877 = vand.u32 %v3876, 4294901760
        %3878 = vmatpush1.msra.mxu0 %v3877
        %3879 = vmatprep.subr.mxu0 0.0
        %v3880 = vand.u32 %v2170, 4294901760
        %v3881 = vsub.f32 %v2170, %v3880
        %v3882 = vand.u32 %v3881, 4294901760
        %3883 = vmatpush1.msra.mxu0 %v3882
        %3884 = vmatprep.subr.mxu0 0.0
        %v3885 = vand.u32 %v2171, 4294901760
        %v3886 = vsub.f32 %v2171, %v3885
        %v3887 = vand.u32 %v3886, 4294901760
        %3888 = vmatpush1.msra.mxu0 %v3887
        %v3889 = vand.u32 %v689, 4294901760
        %3890 = vmatprep.mubr.f32.mxu0 %v3889
        %v3891 = vand.u32 %v688, 4294901760
        %3892 = vmatmul.mubr.f32.gmra.mrb[0].mxu0 %v3891
        %v3893 = vpop.f32.mrb[0].mxu0
        %v3894 = vadd.f32 %v3715, %v3893
        %v3895 = vpop.f32.mrb[0].mxu0
        %v3896 = vand.u32 %v693, 4294901760
        %3897 = vmatprep.mubr.f32.mxu0 %v3896
        %v3898 = vand.u32 %v692, 4294901760
        %3899 = vmatmul.mubr.f32.gmra.mrb[0].mxu0 %v3898
        %v3900 = vpop.f32.mrb[0].mxu0
        %v3901 = vadd.f32 %v3726, %v3900
        %v3902 = vpop.f32.mrb[0].mxu0
        %3903 = vdwg.mxu0
        %3904 = vmatprep.subr.mxu0 0.0
        %v3905 = vand.u32 %v2140, 4294901760
        %3906 = vmatpush1.msra.mxu0 %v3905
        %3907 = vmatprep.subr.mxu0 0.0
        %v3908 = vand.u32 %v2141, 4294901760
        %3909 = vmatpush1.msra.mxu0 %v3908
        %3910 = vmatprep.subr.mxu0 0.0
        %v3911 = vand.u32 %v2142, 4294901760
        %3912 = vmatpush1.msra.mxu0 %v3911
        %3913 = vmatprep.subr.mxu0 0.0
        %v3914 = vand.u32 %v2143, 4294901760
        %3915 = vmatpush1.msra.mxu0 %v3914
        %3916 = vmatprep.subr.mxu0 0.0
        %v3917 = vand.u32 %v2144, 4294901760
        %3918 = vmatpush1.msra.mxu0 %v3917
        %3919 = vmatprep.subr.mxu0 0.0
        %v3920 = vand.u32 %v2145, 4294901760
        %3921 = vmatpush1.msra.mxu0 %v3920
        %3922 = vmatprep.subr.mxu0 0.0
        %v3923 = vand.u32 %v2146, 4294901760
        %3924 = vmatpush1.msra.mxu0 %v3923
        %3925 = vmatprep.subr.mxu0 0.0
        %v3926 = vand.u32 %v2147, 4294901760
        %3927 = vmatpush1.msra.mxu0 %v3926
        %3928 = vmatprep.subr.mxu0 0.0
        %v3929 = vand.u32 %v2148, 4294901760
        %3930 = vmatpush1.msra.mxu0 %v3929
        %3931 = vmatprep.subr.mxu0 0.0
        %v3932 = vand.u32 %v2149, 4294901760
        %3933 = vmatpush1.msra.mxu0 %v3932
        %3934 = vmatprep.subr.mxu0 0.0
        %v3935 = vand.u32 %v2150, 4294901760
        %3936 = vmatpush1.msra.mxu0 %v3935
        %3937 = vmatprep.subr.mxu0 0.0
        %v3938 = vand.u32 %v2151, 4294901760
        %3939 = vmatpush1.msra.mxu0 %v3938
        %3940 = vmatprep.subr.mxu0 0.0
        %v3941 = vand.u32 %v2152, 4294901760
        %3942 = vmatpush1.msra.mxu0 %v3941
        %3943 = vmatprep.subr.mxu0 0.0
        %v3944 = vand.u32 %v2153, 4294901760
        %3945 = vmatpush1.msra.mxu0 %v3944
        %3946 = vmatprep.subr.mxu0 0.0
        %v3947 = vand.u32 %v2154, 4294901760
        %3948 = vmatpush1.msra.mxu0 %v3947
        %3949 = vmatprep.subr.mxu0 0.0
        %v3950 = vand.u32 %v2155, 4294901760
        %3951 = vmatpush1.msra.mxu0 %v3950
        %3952 = vmatprep.subr.mxu0 0.0
        %v3953 = vand.u32 %v2156, 4294901760
        %3954 = vmatpush1.msra.mxu0 %v3953
        %3955 = vmatprep.subr.mxu0 0.0
        %v3956 = vand.u32 %v2157, 4294901760
        %3957 = vmatpush1.msra.mxu0 %v3956
        %3958 = vmatprep.subr.mxu0 0.0
        %v3959 = vand.u32 %v2158, 4294901760
        %3960 = vmatpush1.msra.mxu0 %v3959
        %3961 = vmatprep.subr.mxu0 0.0
        %v3962 = vand.u32 %v2159, 4294901760
        %3963 = vmatpush1.msra.mxu0 %v3962
        %3964 = vmatprep.subr.mxu0 0.0
        %v3965 = vand.u32 %v2160, 4294901760
        %3966 = vmatpush1.msra.mxu0 %v3965
        %3967 = vmatprep.subr.mxu0 0.0
        %v3968 = vand.u32 %v2161, 4294901760
        %3969 = vmatpush1.msra.mxu0 %v3968
        %3970 = vmatprep.subr.mxu0 0.0
        %v3971 = vand.u32 %v2162, 4294901760
        %3972 = vmatpush1.msra.mxu0 %v3971
        %3973 = vmatprep.subr.mxu0 0.0
        %v3974 = vand.u32 %v2163, 4294901760
        %3975 = vmatpush1.msra.mxu0 %v3974
        %3976 = vmatprep.subr.mxu0 0.0
        %v3977 = vand.u32 %v2164, 4294901760
        %3978 = vmatpush1.msra.mxu0 %v3977
        %3979 = vmatprep.subr.mxu0 0.0
        %v3980 = vand.u32 %v2165, 4294901760
        %3981 = vmatpush1.msra.mxu0 %v3980
        %3982 = vmatprep.subr.mxu0 0.0
        %v3983 = vand.u32 %v2166, 4294901760
        %3984 = vmatpush1.msra.mxu0 %v3983
        %3985 = vmatprep.subr.mxu0 0.0
        %v3986 = vand.u32 %v2167, 4294901760
        %3987 = vmatpush1.msra.mxu0 %v3986
        %3988 = vmatprep.subr.mxu0 0.0
        %v3989 = vand.u32 %v2168, 4294901760
        %3990 = vmatpush1.msra.mxu0 %v3989
        %3991 = vmatprep.subr.mxu0 0.0
        %v3992 = vand.u32 %v2169, 4294901760
        %3993 = vmatpush1.msra.mxu0 %v3992
        %3994 = vmatprep.subr.mxu0 0.0
        %v3995 = vand.u32 %v2170, 4294901760
        %3996 = vmatpush1.msra.mxu0 %v3995
        %3997 = vmatprep.subr.mxu0 0.0
        %v3998 = vand.u32 %v2171, 4294901760
        %3999 = vmatpush1.msra.mxu0 %v3998
        %v4000 = vand.u32 %v689, 4294901760
        %4001 = vmatprep.mubr.f32.mxu0 %v4000
        %v4002 = vand.u32 %v688, 4294901760
        %4003 = vmatmul.mubr.f32.gmra.mrb[0].mxu0 %v4002
        %v4004 = vpop.f32.mrb[0].mxu0
        %v4005 = vadd.f32 %v3894, %v4004
        %v4006 = vpop.f32.mrb[0].mxu0
        %v4007 = vand.u32 %v693, 4294901760
        %4008 = vmatprep.mubr.f32.mxu0 %v4007
        %v4009 = vand.u32 %v692, 4294901760
        %4010 = vmatmul.mubr.f32.gmra.mrb[0].mxu0 %v4009
        %v4011 = vpop.f32.mrb[0].mxu0
        %v4012 = vadd.f32 %v3901, %v4011
        %v4013 = vpop.f32.mrb[0].mxu0
        %4014 = vdwg.mxu0
        %v4015 = vld [vmem:[%s681] sm:$0x1]
        %v4016 = vld [vmem:[%s12] sm:$0x1]
        %vm4017 = vcmask 261120
        %v4019 = vsel %vm4017, %v1392, 0
        %v4022 = vsel %vm4017, %v1398, 0
        %v4025 = vsel %vm4017, %v2099, 0
        %v4028 = vsel %vm4017, %v2105, 0
        %4030 = vmatprep.subr.mxu0 0.0
        %v4031 = vand.u32 %v4025, 4294901760
        %4032 = vmatpush1.xpose.msra.mxu0 %v4031
        %4033 = vmatprep.subr.mxu0 0.0
        %v4034 = vand.u32 %v4028, 4294901760
        %4035 = vmatpush1.xpose.msra.mxu0 %v4034
        %4036 = vmatprep.subr.mxu0 0.0
        %4037 = vmatpush1.xpose.msra.mxu0 0.0
        %4038 = vmatprep.subr.mxu0 0.0
        %4039 = vmatpush1.xpose.msra.mxu0 0.0
        %4040 = vmatprep.subr.mxu0 0.0
        %4041 = vmatpush1.xpose.msra.mxu0 0.0
        %4042 = vmatprep.subr.mxu0 0.0
        %4043 = vmatpush1.xpose.msra.mxu0 0.0
        %4044 = vmatprep.subr.mxu0 0.0
        %4045 = vmatpush1.xpose.msra.mxu0 0.0
        %4046 = vmatprep.subr.mxu0 0.0
        %4047 = vmatpush1.xpose.msra.mxu0 0.0
        %4048 = vmatprep.subr.mxu0 0.0
        %4049 = vmatpush1.xpose.msra.mxu0 0.0
        %4050 = vmatprep.subr.mxu0 0.0
        %4051 = vmatpush1.xpose.msra.mxu0 0.0
        %4052 = vmatprep.subr.mxu0 0.0
        %4053 = vmatpush1.xpose.msra.mxu0 0.0
        %4054 = vmatprep.subr.mxu0 0.0
        %4055 = vmatpush1.xpose.msra.mxu0 0.0
        %4056 = vmatprep.subr.mxu0 0.0
        %4057 = vmatpush1.xpose.msra.mxu0 0.0
        %4058 = vmatprep.subr.mxu0 0.0
        %4059 = vmatpush1.xpose.msra.mxu0 0.0
        %4060 = vmatprep.subr.mxu0 0.0
        %4061 = vmatpush1.xpose.msra.mxu0 0.0
        %4062 = vmatprep.subr.mxu0 0.0
        %4063 = vmatpush1.xpose.msra.mxu0 0.0
        %4064 = vmatprep.subr.mxu0 0.0
        %4065 = vmatpush1.xpose.msra.mxu0 0.0
        %4066 = vmatprep.subr.mxu0 0.0
        %4067 = vmatpush1.xpose.msra.mxu0 0.0
        %4068 = vmatprep.subr.mxu0 0.0
        %4069 = vmatpush1.xpose.msra.mxu0 0.0
        %4070 = vmatprep.subr.mxu0 0.0
        %4071 = vmatpush1.xpose.msra.mxu0 0.0
        %4072 = vmatprep.subr.mxu0 0.0
        %4073 = vmatpush1.xpose.msra.mxu0 0.0
        %4074 = vmatprep.subr.mxu0 0.0
        %4075 = vmatpush1.xpose.msra.mxu0 0.0
        %4076 = vmatprep.subr.mxu0 0.0
        %4077 = vmatpush1.xpose.msra.mxu0 0.0
        %4078 = vmatprep.subr.mxu0 0.0
        %4079 = vmatpush1.xpose.msra.mxu0 0.0
        %4080 = vmatprep.subr.mxu0 0.0
        %4081 = vmatpush1.xpose.msra.mxu0 0.0
        %4082 = vmatprep.subr.mxu0 0.0
        %4083 = vmatpush1.xpose.msra.mxu0 0.0
        %4084 = vmatprep.subr.mxu0 0.0
        %4085 = vmatpush1.xpose.msra.mxu0 0.0
        %4086 = vmatprep.subr.mxu0 0.0
        %4087 = vmatpush1.xpose.msra.mxu0 0.0
        %4088 = vmatprep.subr.mxu0 0.0
        %4089 = vmatpush1.xpose.msra.mxu0 0.0
        %4090 = vmatprep.subr.mxu0 0.0
        %4091 = vmatpush1.xpose.msra.mxu0 0.0
        %4092 = vmatprep.subr.mxu0 0.0
        %4093 = vmatpush1.xpose.msra.mxu0 0.0
        %4094 = vmatprep.subr.mxu0 0.0
        %4095 = vmatpush1.xpose.msra.mxu0 0.0
        %4096 = vmatprep.mubr.f32.mxu0 0.0
        %v4097 = vand.u32 %v4019, 4294901760
        %v4098 = vsub.f32 %v4019, %v4097
        %v4099 = vand.u32 %v4098, 4294901760
        %v4100 = vsub.f32 %v4098, %v4099
        %v4101 = vand.u32 %v4100, 4294901760
        %4102 = vmatmul.mubr.f32.gmra.mrb[0].mxu0 %v4101
        %v4103 = vpop.f32.mrb[0].mxu0
        %v4104 = vadd.f32 0.0, %v4103
        %v4105 = vpop.f32.mrb[0].mxu0
        %4106 = vmatprep.mubr.f32.mxu0 0.0
        %v4107 = vand.u32 %v4022, 4294901760
        %v4108 = vsub.f32 %v4022, %v4107
        %v4109 = vand.u32 %v4108, 4294901760
        %v4110 = vsub.f32 %v4108, %v4109
        %v4111 = vand.u32 %v4110, 4294901760
        %4112 = vmatmul.mubr.f32.gmra.mrb[0].mxu0 %v4111
        %v4113 = vpop.f32.mrb[0].mxu0
        %v4114 = vadd.f32 0.0, %v4113
        %v4115 = vpop.f32.mrb[0].mxu0
        %4116 = vdwg.mxu0
        %4117 = vmatprep.subr.mxu0 0.0
        %v4118 = vand.u32 %v4025, 4294901760
        %v4119 = vsub.f32 %v4025, %v4118
        %v4120 = vand.u32 %v4119, 4294901760
        %v4121 = vsub.f32 %v4119, %v4120
        %v4122 = vand.u32 %v4121, 4294901760
        %4123 = vmatpush1.xpose.msra.mxu0 %v4122
        %4124 = vmatprep.subr.mxu0 0.0
        %v4125 = vand.u32 %v4028, 4294901760
        %v4126 = vsub.f32 %v4028, %v4125
        %v4127 = vand.u32 %v4126, 4294901760
        %v4128 = vsub.f32 %v4126, %v4127
        %v4129 = vand.u32 %v4128, 4294901760
        %4130 = vmatpush1.xpose.msra.mxu0 %v4129
        %4131 = vmatprep.subr.mxu0 0.0
        %4132 = vmatpush1.xpose.msra.mxu0 0.0
        %4133 = vmatprep.subr.mxu0 0.0
        %4134 = vmatpush1.xpose.msra.mxu0 0.0
        %4135 = vmatprep.subr.mxu0 0.0
        %4136 = vmatpush1.xpose.msra.mxu0 0.0
        %4137 = vmatprep.subr.mxu0 0.0
        %4138 = vmatpush1.xpose.msra.mxu0 0.0
        %4139 = vmatprep.subr.mxu0 0.0
        %4140 = vmatpush1.xpose.msra.mxu0 0.0
        %4141 = vmatprep.subr.mxu0 0.0
        %4142 = vmatpush1.xpose.msra.mxu0 0.0
        %4143 = vmatprep.subr.mxu0 0.0
        %4144 = vmatpush1.xpose.msra.mxu0 0.0
        %4145 = vmatprep.subr.mxu0 0.0
        %4146 = vmatpush1.xpose.msra.mxu0 0.0
        %4147 = vmatprep.subr.mxu0 0.0
        %4148 = vmatpush1.xpose.msra.mxu0 0.0
        %4149 = vmatprep.subr.mxu0 0.0
        %4150 = vmatpush1.xpose.msra.mxu0 0.0
        %4151 = vmatprep.subr.mxu0 0.0
        %4152 = vmatpush1.xpose.msra.mxu0 0.0
        %4153 = vmatprep.subr.mxu0 0.0
        %4154 = vmatpush1.xpose.msra.mxu0 0.0
        %4155 = vmatprep.subr.mxu0 0.0
        %4156 = vmatpush1.xpose.msra.mxu0 0.0
        %4157 = vmatprep.subr.mxu0 0.0
        %4158 = vmatpush1.xpose.msra.mxu0 0.0
        %4159 = vmatprep.subr.mxu0 0.0
        %4160 = vmatpush1.xpose.msra.mxu0 0.0
        %4161 = vmatprep.subr.mxu0 0.0
        %4162 = vmatpush1.xpose.msra.mxu0 0.0
        %4163 = vmatprep.subr.mxu0 0.0
        %4164 = vmatpush1.xpose.msra.mxu0 0.0
        %4165 = vmatprep.subr.mxu0 0.0
        %4166 = vmatpush1.xpose.msra.mxu0 0.0
        %4167 = vmatprep.subr.mxu0 0.0
        %4168 = vmatpush1.xpose.msra.mxu0 0.0
        %4169 = vmatprep.subr.mxu0 0.0
        %4170 = vmatpush1.xpose.msra.mxu0 0.0
        %4171 = vmatprep.subr.mxu0 0.0
        %4172 = vmatpush1.xpose.msra.mxu0 0.0
        %4173 = vmatprep.subr.mxu0 0.0
        %4174 = vmatpush1.xpose.msra.mxu0 0.0
        %4175 = vmatprep.subr.mxu0 0.0
        %4176 = vmatpush1.xpose.msra.mxu0 0.0
        %4177 = vmatprep.subr.mxu0 0.0
        %4178 = vmatpush1.xpose.msra.mxu0 0.0
        %4179 = vmatprep.subr.mxu0 0.0
        %4180 = vmatpush1.xpose.msra.mxu0 0.0
        %4181 = vmatprep.subr.mxu0 0.0
        %4182 = vmatpush1.xpose.msra.mxu0 0.0
        %4183 = vmatprep.subr.mxu0 0.0
        %4184 = vmatpush1.xpose.msra.mxu0 0.0
        %4185 = vmatprep.subr.mxu0 0.0
        %4186 = vmatpush1.xpose.msra.mxu0 0.0
        %4187 = vmatprep.subr.mxu0 0.0
        %4188 = vmatpush1.xpose.msra.mxu0 0.0
        %4189 = vmatprep.subr.mxu0 0.0
        %4190 = vmatpush1.xpose.msra.mxu0 0.0
        %4191 = vmatprep.mubr.f32.mxu0 0.0
        %v4192 = vand.u32 %v4019, 4294901760
        %4193 = vmatmul.mubr.f32.gmra.mrb[0].mxu0 %v4192
        %v4194 = vpop.f32.mrb[0].mxu0
        %v4195 = vadd.f32 %v4104, %v4194
        %v4196 = vpop.f32.mrb[0].mxu0
        %4197 = vmatprep.mubr.f32.mxu0 0.0
        %v4198 = vand.u32 %v4022, 4294901760
        %4199 = vmatmul.mubr.f32.gmra.mrb[0].mxu0 %v4198
        %v4200 = vpop.f32.mrb[0].mxu0
        %v4201 = vadd.f32 %v4114, %v4200
        %v4202 = vpop.f32.mrb[0].mxu0
        %4203 = vdwg.mxu0
        %4204 = vmatprep.subr.mxu0 0.0
        %v4205 = vand.u32 %v4025, 4294901760
        %v4206 = vsub.f32 %v4025, %v4205
        %4207 = vmatpush1.xpose.msra.mxu0 %v4206
        %4208 = vmatprep.subr.mxu0 0.0
        %v4209 = vand.u32 %v4028, 4294901760
        %v4210 = vsub.f32 %v4028, %v4209
        %4211 = vmatpush1.xpose.msra.mxu0 %v4210
        %4212 = vmatprep.subr.mxu0 0.0
        %4213 = vmatpush1.xpose.msra.mxu0 0.0
        %4214 = vmatprep.subr.mxu0 0.0
        %4215 = vmatpush1.xpose.msra.mxu0 0.0
        %4216 = vmatprep.subr.mxu0 0.0
        %4217 = vmatpush1.xpose.msra.mxu0 0.0
        %4218 = vmatprep.subr.mxu0 0.0
        %4219 = vmatpush1.xpose.msra.mxu0 0.0
        %4220 = vmatprep.subr.mxu0 0.0
        %4221 = vmatpush1.xpose.msra.mxu0 0.0
        %4222 = vmatprep.subr.mxu0 0.0
        %4223 = vmatpush1.xpose.msra.mxu0 0.0
        %4224 = vmatprep.subr.mxu0 0.0
        %4225 = vmatpush1.xpose.msra.mxu0 0.0
        %4226 = vmatprep.subr.mxu0 0.0
        %4227 = vmatpush1.xpose.msra.mxu0 0.0
        %4228 = vmatprep.subr.mxu0 0.0
        %4229 = vmatpush1.xpose.msra.mxu0 0.0
        %4230 = vmatprep.subr.mxu0 0.0
        %4231 = vmatpush1.xpose.msra.mxu0 0.0
        %4232 = vmatprep.subr.mxu0 0.0
        %4233 = vmatpush1.xpose.msra.mxu0 0.0
        %4234 = vmatprep.subr.mxu0 0.0
        %4235 = vmatpush1.xpose.msra.mxu0 0.0
        %4236 = vmatprep.subr.mxu0 0.0
        %4237 = vmatpush1.xpose.msra.mxu0 0.0
        %4238 = vmatprep.subr.mxu0 0.0
        %4239 = vmatpush1.xpose.msra.mxu0 0.0
        %4240 = vmatprep.subr.mxu0 0.0
        %4241 = vmatpush1.xpose.msra.mxu0 0.0
        %4242 = vmatprep.subr.mxu0 0.0
        %4243 = vmatpush1.xpose.msra.mxu0 0.0
        %4244 = vmatprep.subr.mxu0 0.0
        %4245 = vmatpush1.xpose.msra.mxu0 0.0
        %4246 = vmatprep.subr.mxu0 0.0
        %4247 = vmatpush1.xpose.msra.mxu0 0.0
        %4248 = vmatprep.subr.mxu0 0.0
        %4249 = vmatpush1.xpose.msra.mxu0 0.0
        %4250 = vmatprep.subr.mxu0 0.0
        %4251 = vmatpush1.xpose.msra.mxu0 0.0
        %4252 = vmatprep.subr.mxu0 0.0
        %4253 = vmatpush1.xpose.msra.mxu0 0.0
        %4254 = vmatprep.subr.mxu0 0.0
        %4255 = vmatpush1.xpose.msra.mxu0 0.0
        %4256 = vmatprep.subr.mxu0 0.0
        %4257 = vmatpush1.xpose.msra.mxu0 0.0
        %4258 = vmatprep.subr.mxu0 0.0
        %4259 = vmatpush1.xpose.msra.mxu0 0.0
        %4260 = vmatprep.subr.mxu0 0.0
        %4261 = vmatpush1.xpose.msra.mxu0 0.0
        %4262 = vmatprep.subr.mxu0 0.0
        %4263 = vmatpush1.xpose.msra.mxu0 0.0
        %4264 = vmatprep.subr.mxu0 0.0
        %4265 = vmatpush1.xpose.msra.mxu0 0.0
        %4266 = vmatprep.subr.mxu0 0.0
        %4267 = vmatpush1.xpose.msra.mxu0 0.0
        %4268 = vmatprep.subr.mxu0 0.0
        %4269 = vmatpush1.xpose.msra.mxu0 0.0
        %4270 = vmatprep.subr.mxu0 0.0
        %4271 = vmatpush1.xpose.msra.mxu0 0.0
        %4272 = vmatprep.mubr.f32.mxu0 0.0
        %v4273 = vand.u32 %v4019, 4294901760
        %v4274 = vsub.f32 %v4019, %v4273
        %4275 = vmatmul.mubr.f32.gmra.mrb[0].mxu0 %v4274
        %v4276 = vpop.f32.mrb[0].mxu0
        %v4277 = vadd.f32 %v4195, %v4276
        %v4278 = vpop.f32.mrb[0].mxu0
        %4279 = vmatprep.mubr.f32.mxu0 0.0
        %v4280 = vand.u32 %v4022, 4294901760
        %v4281 = vsub.f32 %v4022, %v4280
        %4282 = vmatmul.mubr.f32.gmra.mrb[0].mxu0 %v4281
        %v4283 = vpop.f32.mrb[0].mxu0
        %v4284 = vadd.f32 %v4201, %v4283
        %v4285 = vpop.f32.mrb[0].mxu0
        %4286 = vdwg.mxu0
        %4287 = vmatprep.subr.mxu0 0.0
        %v4288 = vand.u32 %v4025, 4294901760
        %4289 = vmatpush1.xpose.msra.mxu0 %v4288
        %4290 = vmatprep.subr.mxu0 0.0
        %v4291 = vand.u32 %v4028, 4294901760
        %4292 = vmatpush1.xpose.msra.mxu0 %v4291
        %4293 = vmatprep.subr.mxu0 0.0
        %4294 = vmatpush1.xpose.msra.mxu0 0.0
        %4295 = vmatprep.subr.mxu0 0.0
        %4296 = vmatpush1.xpose.msra.mxu0 0.0
        %4297 = vmatprep.subr.mxu0 0.0
        %4298 = vmatpush1.xpose.msra.mxu0 0.0
        %4299 = vmatprep.subr.mxu0 0.0
        %4300 = vmatpush1.xpose.msra.mxu0 0.0
        %4301 = vmatprep.subr.mxu0 0.0
        %4302 = vmatpush1.xpose.msra.mxu0 0.0
        %4303 = vmatprep.subr.mxu0 0.0
        %4304 = vmatpush1.xpose.msra.mxu0 0.0
        %4305 = vmatprep.subr.mxu0 0.0
        %4306 = vmatpush1.xpose.msra.mxu0 0.0
        %4307 = vmatprep.subr.mxu0 0.0
        %4308 = vmatpush1.xpose.msra.mxu0 0.0
        %4309 = vmatprep.subr.mxu0 0.0
        %4310 = vmatpush1.xpose.msra.mxu0 0.0
        %4311 = vmatprep.subr.mxu0 0.0
        %4312 = vmatpush1.xpose.msra.mxu0 0.0
        %4313 = vmatprep.subr.mxu0 0.0
        %4314 = vmatpush1.xpose.msra.mxu0 0.0
        %4315 = vmatprep.subr.mxu0 0.0
        %4316 = vmatpush1.xpose.msra.mxu0 0.0
        %4317 = vmatprep.subr.mxu0 0.0
        %4318 = vmatpush1.xpose.msra.mxu0 0.0
        %4319 = vmatprep.subr.mxu0 0.0
        %4320 = vmatpush1.xpose.msra.mxu0 0.0
        %4321 = vmatprep.subr.mxu0 0.0
        %4322 = vmatpush1.xpose.msra.mxu0 0.0
        %4323 = vmatprep.subr.mxu0 0.0
        %4324 = vmatpush1.xpose.msra.mxu0 0.0
        %4325 = vmatprep.subr.mxu0 0.0
        %4326 = vmatpush1.xpose.msra.mxu0 0.0
        %4327 = vmatprep.subr.mxu0 0.0
        %4328 = vmatpush1.xpose.msra.mxu0 0.0
        %4329 = vmatprep.subr.mxu0 0.0
        %4330 = vmatpush1.xpose.msra.mxu0 0.0
        %4331 = vmatprep.subr.mxu0 0.0
        %4332 = vmatpush1.xpose.msra.mxu0 0.0
        %4333 = vmatprep.subr.mxu0 0.0
        %4334 = vmatpush1.xpose.msra.mxu0 0.0
        %4335 = vmatprep.subr.mxu0 0.0
        %4336 = vmatpush1.xpose.msra.mxu0 0.0
        %4337 = vmatprep.subr.mxu0 0.0
        %4338 = vmatpush1.xpose.msra.mxu0 0.0
        %4339 = vmatprep.subr.mxu0 0.0
        %4340 = vmatpush1.xpose.msra.mxu0 0.0
        %4341 = vmatprep.subr.mxu0 0.0
        %4342 = vmatpush1.xpose.msra.mxu0 0.0
        %4343 = vmatprep.subr.mxu0 0.0
        %4344 = vmatpush1.xpose.msra.mxu0 0.0
        %4345 = vmatprep.subr.mxu0 0.0
        %4346 = vmatpush1.xpose.msra.mxu0 0.0
        %4347 = vmatprep.subr.mxu0 0.0
        %4348 = vmatpush1.xpose.msra.mxu0 0.0
        %4349 = vmatprep.subr.mxu0 0.0
        %4350 = vmatpush1.xpose.msra.mxu0 0.0
        %4351 = vmatprep.subr.mxu0 0.0
        %4352 = vmatpush1.xpose.msra.mxu0 0.0
        %4353 = vmatprep.mubr.f32.mxu0 0.0
        %v4354 = vand.u32 %v4019, 4294901760
        %v4355 = vsub.f32 %v4019, %v4354
        %v4356 = vand.u32 %v4355, 4294901760
        %4357 = vmatmul.mubr.f32.gmra.mrb[0].mxu0 %v4356
        %v4358 = vpop.f32.mrb[0].mxu0
        %v4359 = vadd.f32 %v4277, %v4358
        %v4360 = vpop.f32.mrb[0].mxu0
        %4361 = vmatprep.mubr.f32.mxu0 0.0
        %v4362 = vand.u32 %v4022, 4294901760
        %v4363 = vsub.f32 %v4022, %v4362
        %v4364 = vand.u32 %v4363, 4294901760
        %4365 = vmatmul.mubr.f32.gmra.mrb[0].mxu0 %v4364
        %v4366 = vpop.f32.mrb[0].mxu0
        %v4367 = vadd.f32 %v4284, %v4366
        %v4368 = vpop.f32.mrb[0].mxu0
        %4369 = vdwg.mxu0
        %4370 = vmatprep.subr.mxu0 0.0
        %v4371 = vand.u32 %v4025, 4294901760
        %v4372 = vsub.f32 %v4025, %v4371
        %v4373 = vand.u32 %v4372, 4294901760
        %4374 = vmatpush1.xpose.msra.mxu0 %v4373
        %4375 = vmatprep.subr.mxu0 0.0
        %v4376 = vand.u32 %v4028, 4294901760
        %v4377 = vsub.f32 %v4028, %v4376
        %v4378 = vand.u32 %v4377, 4294901760
        %4379 = vmatpush1.xpose.msra.mxu0 %v4378
        %4380 = vmatprep.subr.mxu0 0.0
        %4381 = vmatpush1.xpose.msra.mxu0 0.0
        %4382 = vmatprep.subr.mxu0 0.0
        %4383 = vmatpush1.xpose.msra.mxu0 0.0
        %4384 = vmatprep.subr.mxu0 0.0
        %4385 = vmatpush1.xpose.msra.mxu0 0.0
        %4386 = vmatprep.subr.mxu0 0.0
        %4387 = vmatpush1.xpose.msra.mxu0 0.0
        %4388 = vmatprep.subr.mxu0 0.0
        %4389 = vmatpush1.xpose.msra.mxu0 0.0
        %4390 = vmatprep.subr.mxu0 0.0
        %4391 = vmatpush1.xpose.msra.mxu0 0.0
        %4392 = vmatprep.subr.mxu0 0.0
        %4393 = vmatpush1.xpose.msra.mxu0 0.0
        %4394 = vmatprep.subr.mxu0 0.0
        %4395 = vmatpush1.xpose.msra.mxu0 0.0
        %4396 = vmatprep.subr.mxu0 0.0
        %4397 = vmatpush1.xpose.msra.mxu0 0.0
        %4398 = vmatprep.subr.mxu0 0.0
        %4399 = vmatpush1.xpose.msra.mxu0 0.0
        %4400 = vmatprep.subr.mxu0 0.0
        %4401 = vmatpush1.xpose.msra.mxu0 0.0
        %4402 = vmatprep.subr.mxu0 0.0
        %4403 = vmatpush1.xpose.msra.mxu0 0.0
        %4404 = vmatprep.subr.mxu0 0.0
        %4405 = vmatpush1.xpose.msra.mxu0 0.0
        %4406 = vmatprep.subr.mxu0 0.0
        %4407 = vmatpush1.xpose.msra.mxu0 0.0
        %4408 = vmatprep.subr.mxu0 0.0
        %4409 = vmatpush1.xpose.msra.mxu0 0.0
        %4410 = vmatprep.subr.mxu0 0.0
        %4411 = vmatpush1.xpose.msra.mxu0 0.0
        %4412 = vmatprep.subr.mxu0 0.0
        %4413 = vmatpush1.xpose.msra.mxu0 0.0
        %4414 = vmatprep.subr.mxu0 0.0
        %4415 = vmatpush1.xpose.msra.mxu0 0.0
        %4416 = vmatprep.subr.mxu0 0.0
        %4417 = vmatpush1.xpose.msra.mxu0 0.0
        %4418 = vmatprep.subr.mxu0 0.0
        %4419 = vmatpush1.xpose.msra.mxu0 0.0
        %4420 = vmatprep.subr.mxu0 0.0
        %4421 = vmatpush1.xpose.msra.mxu0 0.0
        %4422 = vmatprep.subr.mxu0 0.0
        %4423 = vmatpush1.xpose.msra.mxu0 0.0
        %4424 = vmatprep.subr.mxu0 0.0
        %4425 = vmatpush1.xpose.msra.mxu0 0.0
        %4426 = vmatprep.subr.mxu0 0.0
        %4427 = vmatpush1.xpose.msra.mxu0 0.0
        %4428 = vmatprep.subr.mxu0 0.0
        %4429 = vmatpush1.xpose.msra.mxu0 0.0
        %4430 = vmatprep.subr.mxu0 0.0
        %4431 = vmatpush1.xpose.msra.mxu0 0.0
        %4432 = vmatprep.subr.mxu0 0.0
        %4433 = vmatpush1.xpose.msra.mxu0 0.0
        %4434 = vmatprep.subr.mxu0 0.0
        %4435 = vmatpush1.xpose.msra.mxu0 0.0
        %4436 = vmatprep.subr.mxu0 0.0
        %4437 = vmatpush1.xpose.msra.mxu0 0.0
        %4438 = vmatprep.subr.mxu0 0.0
        %4439 = vmatpush1.xpose.msra.mxu0 0.0
        %4440 = vmatprep.mubr.f32.mxu0 0.0
        %v4441 = vand.u32 %v4019, 4294901760
        %4442 = vmatmul.mubr.f32.gmra.mrb[0].mxu0 %v4441
        %v4443 = vpop.f32.mrb[0].mxu0
        %v4444 = vadd.f32 %v4359, %v4443
        %v4445 = vpop.f32.mrb[0].mxu0
        %4446 = vmatprep.mubr.f32.mxu0 0.0
        %v4447 = vand.u32 %v4022, 4294901760
        %4448 = vmatmul.mubr.f32.gmra.mrb[0].mxu0 %v4447
        %v4449 = vpop.f32.mrb[0].mxu0
        %v4450 = vadd.f32 %v4367, %v4449
        %v4451 = vpop.f32.mrb[0].mxu0
        %4452 = vdwg.mxu0
        %4453 = vmatprep.subr.mxu0 0.0
        %v4454 = vand.u32 %v4025, 4294901760
        %4455 = vmatpush1.xpose.msra.mxu0 %v4454
        %4456 = vmatprep.subr.mxu0 0.0
        %v4457 = vand.u32 %v4028, 4294901760
        %4458 = vmatpush1.xpose.msra.mxu0 %v4457
        %4459 = vmatprep.subr.mxu0 0.0
        %4460 = vmatpush1.xpose.msra.mxu0 0.0
        %4461 = vmatprep.subr.mxu0 0.0
        %4462 = vmatpush1.xpose.msra.mxu0 0.0
        %4463 = vmatprep.subr.mxu0 0.0
        %4464 = vmatpush1.xpose.msra.mxu0 0.0
        %4465 = vmatprep.subr.mxu0 0.0
        %4466 = vmatpush1.xpose.msra.mxu0 0.0
        %4467 = vmatprep.subr.mxu0 0.0
        %4468 = vmatpush1.xpose.msra.mxu0 0.0
        %4469 = vmatprep.subr.mxu0 0.0
        %4470 = vmatpush1.xpose.msra.mxu0 0.0
        %4471 = vmatprep.subr.mxu0 0.0
        %4472 = vmatpush1.xpose.msra.mxu0 0.0
        %4473 = vmatprep.subr.mxu0 0.0
        %4474 = vmatpush1.xpose.msra.mxu0 0.0
        %4475 = vmatprep.subr.mxu0 0.0
        %4476 = vmatpush1.xpose.msra.mxu0 0.0
        %4477 = vmatprep.subr.mxu0 0.0
        %4478 = vmatpush1.xpose.msra.mxu0 0.0
        %4479 = vmatprep.subr.mxu0 0.0
        %4480 = vmatpush1.xpose.msra.mxu0 0.0
        %4481 = vmatprep.subr.mxu0 0.0
        %4482 = vmatpush1.xpose.msra.mxu0 0.0
        %4483 = vmatprep.subr.mxu0 0.0
        %4484 = vmatpush1.xpose.msra.mxu0 0.0
        %4485 = vmatprep.subr.mxu0 0.0
        %4486 = vmatpush1.xpose.msra.mxu0 0.0
        %4487 = vmatprep.subr.mxu0 0.0
        %4488 = vmatpush1.xpose.msra.mxu0 0.0
        %4489 = vmatprep.subr.mxu0 0.0
        %4490 = vmatpush1.xpose.msra.mxu0 0.0
        %4491 = vmatprep.subr.mxu0 0.0
        %4492 = vmatpush1.xpose.msra.mxu0 0.0
        %4493 = vmatprep.subr.mxu0 0.0
        %4494 = vmatpush1.xpose.msra.mxu0 0.0
        %4495 = vmatprep.subr.mxu0 0.0
        %4496 = vmatpush1.xpose.msra.mxu0 0.0
        %4497 = vmatprep.subr.mxu0 0.0
        %4498 = vmatpush1.xpose.msra.mxu0 0.0
        %4499 = vmatprep.subr.mxu0 0.0
        %4500 = vmatpush1.xpose.msra.mxu0 0.0
        %4501 = vmatprep.subr.mxu0 0.0
        %4502 = vmatpush1.xpose.msra.mxu0 0.0
        %4503 = vmatprep.subr.mxu0 0.0
        %4504 = vmatpush1.xpose.msra.mxu0 0.0
        %4505 = vmatprep.subr.mxu0 0.0
        %4506 = vmatpush1.xpose.msra.mxu0 0.0
        %4507 = vmatprep.subr.mxu0 0.0
        %4508 = vmatpush1.xpose.msra.mxu0 0.0
        %4509 = vmatprep.subr.mxu0 0.0
        %4510 = vmatpush1.xpose.msra.mxu0 0.0
        %4511 = vmatprep.subr.mxu0 0.0
        %4512 = vmatpush1.xpose.msra.mxu0 0.0
        %4513 = vmatprep.subr.mxu0 0.0
        %4514 = vmatpush1.xpose.msra.mxu0 0.0
        %4515 = vmatprep.subr.mxu0 0.0
        %4516 = vmatpush1.xpose.msra.mxu0 0.0
        %4517 = vmatprep.subr.mxu0 0.0
        %4518 = vmatpush1.xpose.msra.mxu0 0.0
        %4519 = vmatprep.mubr.f32.mxu0 0.0
        %v4520 = vand.u32 %v4019, 4294901760
        %4521 = vmatmul.mubr.f32.gmra.mrb[0].mxu0 %v4520
        %v4522 = vpop.f32.mrb[0].mxu0
        %v4523 = vadd.f32 %v4444, %v4522
        %v4524 = vpop.f32.mrb[0].mxu0
        %4525 = vmatprep.mubr.f32.mxu0 0.0
        %v4526 = vand.u32 %v4022, 4294901760
        %4527 = vmatmul.mubr.f32.gmra.mrb[0].mxu0 %v4526
        %v4528 = vpop.f32.mrb[0].mxu0
        %v4529 = vadd.f32 %v4450, %v4528
        %v4530 = vpop.f32.mrb[0].mxu0
        %4531 = vdwg.mxu0
        %v4532 = vmul.f32 %v4523, 0.17677669
        %v4533 = vmul.f32 %v4529, 0.17677669
        %v4535 = vlaneseq
        %v4536 = vshrl.u32 %v4535, 7
        %v4537 = vsub.s32 0, %v4536
        %v4538 = vrot.slane %v4015, %v4537
        %v4540 = vadd.f32 %v4532, %v4538
        %v4541 = vadd.f32 %v4533, %v4538
        %vm4542 = vcmask 130048
        %v4543 = vsel %vm4542, %v4540, -inf
        %4544 = vmax.xlane.f32.xlu0 %v4543
        %v4545 = vpop.xlane.xlu0 %4544
        %v4546 = vsel %vm4542, %v4541, -inf
        %4547 = vmax.xlane.f32.xlu0 %v4546
        %v4548 = vpop.xlane.xlu0 %4547
        %v4549 = vsub.f32 %v4540, %v4545
        %v4550 = vsub.f32 %v4541, %v4548
        %v4551 = vmul.f32 %v4549, 1.442695
        %v4552 = vpow.pop %v4551
        %v4553 = vmul.f32 %v4550, 1.442695
        %v4554 = vpow.pop %v4553
        %v4555 = vsel %vm4542, %v4552, 0.0
        %4556 = vadd.xlane.f32.xlu0 %v4555
        %v4557 = vpop.xlane.xlu0 %4556
        %v4558 = vsel %vm4542, %v4554, 0.0
        %4559 = vadd.xlane.f32.xlu0 %v4558
        %v4560 = vpop.xlane.xlu0 %4559
        %v4561 = vrcp.pop %v4557
        %v4562 = vmul.f32 %v4552, %v4561
        %v4563 = vrcp.pop %v4560
        %v4564 = vmul.f32 %v4554, %v4563
        %v4566 = vsel %vm4542, %v4562, 0
        %v4569 = vsel %vm4542, %v4564, 0
        %4571 = vmatprep.subr.mxu0 0.0
        %v4572 = vand.u32 %v4005, 4294901760
        %4573 = vmatpush1.msra.mxu0 %v4572
        %4574 = vmatprep.subr.mxu0 0.0
        %v4575 = vand.u32 %v4012, 4294901760
        %4576 = vmatpush1.msra.mxu0 %v4575
        %4577 = vmatprep.subr.mxu0 0.0
        %4578 = vmatpush1.msra.mxu0 0.0
        %4579 = vmatprep.subr.mxu0 0.0
        %4580 = vmatpush1.msra.mxu0 0.0
        %4581 = vmatprep.subr.mxu0 0.0
        %4582 = vmatpush1.msra.mxu0 0.0
        %4583 = vmatprep.subr.mxu0 0.0
        %4584 = vmatpush1.msra.mxu0 0.0
        %4585 = vmatprep.subr.mxu0 0.0
        %4586 = vmatpush1.msra.mxu0 0.0
        %4587 = vmatprep.subr.mxu0 0.0
        %4588 = vmatpush1.msra.mxu0 0.0
        %4589 = vmatprep.subr.mxu0 0.0
        %4590 = vmatpush1.msra.mxu0 0.0
        %4591 = vmatprep.subr.mxu0 0.0
        %4592 = vmatpush1.msra.mxu0 0.0
        %4593 = vmatprep.subr.mxu0 0.0
        %4594 = vmatpush1.msra.mxu0 0.0
        %4595 = vmatprep.subr.mxu0 0.0
        %4596 = vmatpush1.msra.mxu0 0.0
        %4597 = vmatprep.subr.mxu0 0.0
        %4598 = vmatpush1.msra.mxu0 0.0
        %4599 = vmatprep.subr.mxu0 0.0
        %4600 = vmatpush1.msra.mxu0 0.0
        %4601 = vmatprep.subr.mxu0 0.0
        %4602 = vmatpush1.msra.mxu0 0.0
        %4603 = vmatprep.subr.mxu0 0.0
        %4604 = vmatpush1.msra.mxu0 0.0
        %4605 = vmatprep.subr.mxu0 0.0
        %4606 = vmatpush1.msra.mxu0 0.0
        %4607 = vmatprep.subr.mxu0 0.0
        %4608 = vmatpush1.msra.mxu0 0.0
        %4609 = vmatprep.subr.mxu0 0.0
        %4610 = vmatpush1.msra.mxu0 0.0
        %4611 = vmatprep.subr.mxu0 0.0
        %4612 = vmatpush1.msra.mxu0 0.0
        %4613 = vmatprep.subr.mxu0 0.0
        %4614 = vmatpush1.msra.mxu0 0.0
        %4615 = vmatprep.subr.mxu0 0.0
        %4616 = vmatpush1.msra.mxu0 0.0
        %4617 = vmatprep.subr.mxu0 0.0
        %4618 = vmatpush1.msra.mxu0 0.0
        %4619 = vmatprep.subr.mxu0 0.0
        %4620 = vmatpush1.msra.mxu0 0.0
        %4621 = vmatprep.subr.mxu0 0.0
        %4622 = vmatpush1.msra.mxu0 0.0
        %4623 = vmatprep.subr.mxu0 0.0
        %4624 = vmatpush1.msra.mxu0 0.0
        %4625 = vmatprep.subr.mxu0 0.0
        %4626 = vmatpush1.msra.mxu0 0.0
        %4627 = vmatprep.subr.mxu0 0.0
        %4628 = vmatpush1.msra.mxu0 0.0
        %4629 = vmatprep.subr.mxu0 0.0
        %4630 = vmatpush1.msra.mxu0 0.0
        %4631 = vmatprep.subr.mxu0 0.0
        %4632 = vmatpush1.msra.mxu0 0.0
        %4633 = vmatprep.subr.mxu0 0.0
        %4634 = vmatpush1.msra.mxu0 0.0
        %4635 = vmatprep.subr.mxu0 0.0
        %4636 = vmatpush1.msra.mxu0 0.0
        %4637 = vmatprep.mubr.f32.mxu0 0.0
        %v4638 = vand.u32 %v4566, 4294901760
        %v4639 = vsub.f32 %v4566, %v4638
        %v4640 = vand.u32 %v4639, 4294901760
        %v4641 = vsub.f32 %v4639, %v4640
        %v4642 = vand.u32 %v4641, 4294901760
        %4643 = vmatmul.mubr.f32.gmra.mrb[0].mxu0 %v4642
        %v4644 = vpop.f32.mrb[0].mxu0
        %v4645 = vadd.f32 0.0, %v4644
        %v4646 = vpop.f32.mrb[0].mxu0
        %4647 = vmatprep.mubr.f32.mxu0 0.0
        %v4648 = vand.u32 %v4569, 4294901760
        %v4649 = vsub.f32 %v4569, %v4648
        %v4650 = vand.u32 %v4649, 4294901760
        %v4651 = vsub.f32 %v4649, %v4650
        %v4652 = vand.u32 %v4651, 4294901760
        %4653 = vmatmul.mubr.f32.gmra.mrb[0].mxu0 %v4652
        %v4654 = vpop.f32.mrb[0].mxu0
        %v4655 = vadd.f32 0.0, %v4654
        %v4656 = vpop.f32.mrb[0].mxu0
        %4657 = vdwg.mxu0
        %4658 = vmatprep.subr.mxu0 0.0
        %v4659 = vand.u32 %v4005, 4294901760
        %v4660 = vsub.f32 %v4005, %v4659
        %v4661 = vand.u32 %v4660, 4294901760
        %v4662 = vsub.f32 %v4660, %v4661
        %v4663 = vand.u32 %v4662, 4294901760
        %4664 = vmatpush1.msra.mxu0 %v4663
        %4665 = vmatprep.subr.mxu0 0.0
        %v4666 = vand.u32 %v4012, 4294901760
        %v4667 = vsub.f32 %v4012, %v4666
        %v4668 = vand.u32 %v4667, 4294901760
        %v4669 = vsub.f32 %v4667, %v4668
        %v4670 = vand.u32 %v4669, 4294901760
        %4671 = vmatpush1.msra.mxu0 %v4670
        %4672 = vmatprep.subr.mxu0 0.0
        %4673 = vmatpush1.msra.mxu0 0.0
        %4674 = vmatprep.subr.mxu0 0.0
        %4675 = vmatpush1.msra.mxu0 0.0
        %4676 = vmatprep.subr.mxu0 0.0
        %4677 = vmatpush1.msra.mxu0 0.0
        %4678 = vmatprep.subr.mxu0 0.0
        %4679 = vmatpush1.msra.mxu0 0.0
        %4680 = vmatprep.subr.mxu0 0.0
        %4681 = vmatpush1.msra.mxu0 0.0
        %4682 = vmatprep.subr.mxu0 0.0
        %4683 = vmatpush1.msra.mxu0 0.0
        %4684 = vmatprep.subr.mxu0 0.0
        %4685 = vmatpush1.msra.mxu0 0.0
        %4686 = vmatprep.subr.mxu0 0.0
        %4687 = vmatpush1.msra.mxu0 0.0
        %4688 = vmatprep.subr.mxu0 0.0
        %4689 = vmatpush1.msra.mxu0 0.0
        %4690 = vmatprep.subr.mxu0 0.0
        %4691 = vmatpush1.msra.mxu0 0.0
        %4692 = vmatprep.subr.mxu0 0.0
        %4693 = vmatpush1.msra.mxu0 0.0
        %4694 = vmatprep.subr.mxu0 0.0
        %4695 = vmatpush1.msra.mxu0 0.0
        %4696 = vmatprep.subr.mxu0 0.0
        %4697 = vmatpush1.msra.mxu0 0.0
        %4698 = vmatprep.subr.mxu0 0.0
        %4699 = vmatpush1.msra.mxu0 0.0
        %4700 = vmatprep.subr.mxu0 0.0
        %4701 = vmatpush1.msra.mxu0 0.0
        %4702 = vmatprep.subr.mxu0 0.0
        %4703 = vmatpush1.msra.mxu0 0.0
        %4704 = vmatprep.subr.mxu0 0.0
        %4705 = vmatpush1.msra.mxu0 0.0
        %4706 = vmatprep.subr.mxu0 0.0
        %4707 = vmatpush1.msra.mxu0 0.0
        %4708 = vmatprep.subr.mxu0 0.0
        %4709 = vmatpush1.msra.mxu0 0.0
        %4710 = vmatprep.subr.mxu0 0.0
        %4711 = vmatpush1.msra.mxu0 0.0
        %4712 = vmatprep.subr.mxu0 0.0
        %4713 = vmatpush1.msra.mxu0 0.0
        %4714 = vmatprep.subr.mxu0 0.0
        %4715 = vmatpush1.msra.mxu0 0.0
        %4716 = vmatprep.subr.mxu0 0.0
        %4717 = vmatpush1.msra.mxu0 0.0
        %4718 = vmatprep.subr.mxu0 0.0
        %4719 = vmatpush1.msra.mxu0 0.0
        %4720 = vmatprep.subr.mxu0 0.0
        %4721 = vmatpush1.msra.mxu0 0.0
        %4722 = vmatprep.subr.mxu0 0.0
        %4723 = vmatpush1.msra.mxu0 0.0
        %4724 = vmatprep.subr.mxu0 0.0
        %4725 = vmatpush1.msra.mxu0 0.0
        %4726 = vmatprep.subr.mxu0 0.0
        %4727 = vmatpush1.msra.mxu0 0.0
        %4728 = vmatprep.subr.mxu0 0.0
        %4729 = vmatpush1.msra.mxu0 0.0
        %4730 = vmatprep.subr.mxu0 0.0
        %4731 = vmatpush1.msra.mxu0 0.0
        %4732 = vmatprep.mubr.f32.mxu0 0.0
        %v4733 = vand.u32 %v4566, 4294901760
        %4734 = vmatmul.mubr.f32.gmra.mrb[0].mxu0 %v4733
        %v4735 = vpop.f32.mrb[0].mxu0
        %v4736 = vadd.f32 %v4645, %v4735
        %v4737 = vpop.f32.mrb[0].mxu0
        %4738 = vmatprep.mubr.f32.mxu0 0.0
        %v4739 = vand.u32 %v4569, 4294901760
        %4740 = vmatmul.mubr.f32.gmra.mrb[0].mxu0 %v4739
        %v4741 = vpop.f32.mrb[0].mxu0
        %v4742 = vadd.f32 %v4655, %v4741
        %v4743 = vpop.f32.mrb[0].mxu0
        %4744 = vdwg.mxu0
        %4745 = vmatprep.subr.mxu0 0.0
        %v4746 = vand.u32 %v4005, 4294901760
        %v4747 = vsub.f32 %v4005, %v4746
        %4748 = vmatpush1.msra.mxu0 %v4747
        %4749 = vmatprep.subr.mxu0 0.0
        %v4750 = vand.u32 %v4012, 4294901760
        %v4751 = vsub.f32 %v4012, %v4750
        %4752 = vmatpush1.msra.mxu0 %v4751
        %4753 = vmatprep.subr.mxu0 0.0
        %4754 = vmatpush1.msra.mxu0 0.0
        %4755 = vmatprep.subr.mxu0 0.0
        %4756 = vmatpush1.msra.mxu0 0.0
        %4757 = vmatprep.subr.mxu0 0.0
        %4758 = vmatpush1.msra.mxu0 0.0
        %4759 = vmatprep.subr.mxu0 0.0
        %4760 = vmatpush1.msra.mxu0 0.0
        %4761 = vmatprep.subr.mxu0 0.0
        %4762 = vmatpush1.msra.mxu0 0.0
        %4763 = vmatprep.subr.mxu0 0.0
        %4764 = vmatpush1.msra.mxu0 0.0
        %4765 = vmatprep.subr.mxu0 0.0
        %4766 = vmatpush1.msra.mxu0 0.0
        %4767 = vmatprep.subr.mxu0 0.0
        %4768 = vmatpush1.msra.mxu0 0.0
        %4769 = vmatprep.subr.mxu0 0.0
        %4770 = vmatpush1.msra.mxu0 0.0
        %4771 = vmatprep.subr.mxu0 0.0
        %4772 = vmatpush1.msra.mxu0 0.0
        %4773 = vmatprep.subr.mxu0 0.0
        %4774 = vmatpush1.msra.mxu0 0.0
        %4775 = vmatprep.subr.mxu0 0.0
        %4776 = vmatpush1.msra.mxu0 0.0
        %4777 = vmatprep.subr.mxu0 0.0
        %4778 = vmatpush1.msra.mxu0 0.0
        %4779 = vmatprep.subr.mxu0 0.0
        %4780 = vmatpush1.msra.mxu0 0.0
        %4781 = vmatprep.subr.mxu0 0.0
        %4782 = vmatpush1.msra.mxu0 0.0
        %4783 = vmatprep.subr.mxu0 0.0
        %4784 = vmatpush1.msra.mxu0 0.0
        %4785 = vmatprep.subr.mxu0 0.0
        %4786 = vmatpush1.msra.mxu0 0.0
        %4787 = vmatprep.subr.mxu0 0.0
        %4788 = vmatpush1.msra.mxu0 0.0
        %4789 = vmatprep.subr.mxu0 0.0
        %4790 = vmatpush1.msra.mxu0 0.0
        %4791 = vmatprep.subr.mxu0 0.0
        %4792 = vmatpush1.msra.mxu0 0.0
        %4793 = vmatprep.subr.mxu0 0.0
        %4794 = vmatpush1.msra.mxu0 0.0
        %4795 = vmatprep.subr.mxu0 0.0
        %4796 = vmatpush1.msra.mxu0 0.0
        %4797 = vmatprep.subr.mxu0 0.0
        %4798 = vmatpush1.msra.mxu0 0.0
        %4799 = vmatprep.subr.mxu0 0.0
        %4800 = vmatpush1.msra.mxu0 0.0
        %4801 = vmatprep.subr.mxu0 0.0
        %4802 = vmatpush1.msra.mxu0 0.0
        %4803 = vmatprep.subr.mxu0 0.0
        %4804 = vmatpush1.msra.mxu0 0.0
        %4805 = vmatprep.subr.mxu0 0.0
        %4806 = vmatpush1.msra.mxu0 0.0
        %4807 = vmatprep.subr.mxu0 0.0
        %4808 = vmatpush1.msra.mxu0 0.0
        %4809 = vmatprep.subr.mxu0 0.0
        %4810 = vmatpush1.msra.mxu0 0.0
        %4811 = vmatprep.subr.mxu0 0.0
        %4812 = vmatpush1.msra.mxu0 0.0
        %4813 = vmatprep.mubr.f32.mxu0 0.0
        %v4814 = vand.u32 %v4566, 4294901760
        %v4815 = vsub.f32 %v4566, %v4814
        %4816 = vmatmul.mubr.f32.gmra.mrb[0].mxu0 %v4815
        %v4817 = vpop.f32.mrb[0].mxu0
        %v4818 = vadd.f32 %v4736, %v4817
        %v4819 = vpop.f32.mrb[0].mxu0
        %4820 = vmatprep.mubr.f32.mxu0 0.0
        %v4821 = vand.u32 %v4569, 4294901760
        %v4822 = vsub.f32 %v4569, %v4821
        %4823 = vmatmul.mubr.f32.gmra.mrb[0].mxu0 %v4822
        %v4824 = vpop.f32.mrb[0].mxu0
        %v4825 = vadd.f32 %v4742, %v4824
        %v4826 = vpop.f32.mrb[0].mxu0
        %4827 = vdwg.mxu0
        %4828 = vmatprep.subr.mxu0 0.0
        %v4829 = vand.u32 %v4005, 4294901760
        %4830 = vmatpush1.msra.mxu0 %v4829
        %4831 = vmatprep.subr.mxu0 0.0
        %v4832 = vand.u32 %v4012, 4294901760
        %4833 = vmatpush1.msra.mxu0 %v4832
        %4834 = vmatprep.subr.mxu0 0.0
        %4835 = vmatpush1.msra.mxu0 0.0
        %4836 = vmatprep.subr.mxu0 0.0
        %4837 = vmatpush1.msra.mxu0 0.0
        %4838 = vmatprep.subr.mxu0 0.0
        %4839 = vmatpush1.msra.mxu0 0.0
        %4840 = vmatprep.subr.mxu0 0.0
        %4841 = vmatpush1.msra.mxu0 0.0
        %4842 = vmatprep.subr.mxu0 0.0
        %4843 = vmatpush1.msra.mxu0 0.0
        %4844 = vmatprep.subr.mxu0 0.0
        %4845 = vmatpush1.msra.mxu0 0.0
        %4846 = vmatprep.subr.mxu0 0.0
        %4847 = vmatpush1.msra.mxu0 0.0
        %4848 = vmatprep.subr.mxu0 0.0
        %4849 = vmatpush1.msra.mxu0 0.0
        %4850 = vmatprep.subr.mxu0 0.0
        %4851 = vmatpush1.msra.mxu0 0.0
        %4852 = vmatprep.subr.mxu0 0.0
        %4853 = vmatpush1.msra.mxu0 0.0
        %4854 = vmatprep.subr.mxu0 0.0
        %4855 = vmatpush1.msra.mxu0 0.0
        %4856 = vmatprep.subr.mxu0 0.0
        %4857 = vmatpush1.msra.mxu0 0.0
        %4858 = vmatprep.subr.mxu0 0.0
        %4859 = vmatpush1.msra.mxu0 0.0
        %4860 = vmatprep.subr.mxu0 0.0
        %4861 = vmatpush1.msra.mxu0 0.0
        %4862 = vmatprep.subr.mxu0 0.0
        %4863 = vmatpush1.msra.mxu0 0.0
        %4864 = vmatprep.subr.mxu0 0.0
        %4865 = vmatpush1.msra.mxu0 0.0
        %4866 = vmatprep.subr.mxu0 0.0
        %4867 = vmatpush1.msra.mxu0 0.0
        %4868 = vmatprep.subr.mxu0 0.0
        %4869 = vmatpush1.msra.mxu0 0.0
        %4870 = vmatprep.subr.mxu0 0.0
        %4871 = vmatpush1.msra.mxu0 0.0
        %4872 = vmatprep.subr.mxu0 0.0
        %4873 = vmatpush1.msra.mxu0 0.0
        %4874 = vmatprep.subr.mxu0 0.0
        %4875 = vmatpush1.msra.mxu0 0.0
        %4876 = vmatprep.subr.mxu0 0.0
        %4877 = vmatpush1.msra.mxu0 0.0
        %4878 = vmatprep.subr.mxu0 0.0
        %4879 = vmatpush1.msra.mxu0 0.0
        %4880 = vmatprep.subr.mxu0 0.0
        %4881 = vmatpush1.msra.mxu0 0.0
        %4882 = vmatprep.subr.mxu0 0.0
        %4883 = vmatpush1.msra.mxu0 0.0
        %4884 = vmatprep.subr.mxu0 0.0
        %4885 = vmatpush1.msra.mxu0 0.0
        %4886 = vmatprep.subr.mxu0 0.0
        %4887 = vmatpush1.msra.mxu0 0.0
        %4888 = vmatprep.subr.mxu0 0.0
        %4889 = vmatpush1.msra.mxu0 0.0
        %4890 = vmatprep.subr.mxu0 0.0
        %4891 = vmatpush1.msra.mxu0 0.0
        %4892 = vmatprep.subr.mxu0 0.0
        %4893 = vmatpush1.msra.mxu0 0.0
        %4894 = vmatprep.mubr.f32.mxu0 0.0
        %v4895 = vand.u32 %v4566, 4294901760
        %v4896 = vsub.f32 %v4566, %v4895
        %v4897 = vand.u32 %v4896, 4294901760
        %4898 = vmatmul.mubr.f32.gmra.mrb[0].mxu0 %v4897
        %v4899 = vpop.f32.mrb[0].mxu0
        %v4900 = vadd.f32 %v4818, %v4899
        %v4901 = vpop.f32.mrb[0].mxu0
        %4902 = vmatprep.mubr.f32.mxu0 0.0
        %v4903 = vand.u32 %v4569, 4294901760
        %v4904 = vsub.f32 %v4569, %v4903
        %v4905 = vand.u32 %v4904, 4294901760
        %4906 = vmatmul.mubr.f32.gmra.mrb[0].mxu0 %v4905
        %v4907 = vpop.f32.mrb[0].mxu0
        %v4908 = vadd.f32 %v4825, %v4907
        %v4909 = vpop.f32.mrb[0].mxu0
        %4910 = vdwg.mxu0
        %4911 = vmatprep.subr.mxu0 0.0
        %v4912 = vand.u32 %v4005, 4294901760
        %v4913 = vsub.f32 %v4005, %v4912
        %v4914 = vand.u32 %v4913, 4294901760
        %4915 = vmatpush1.msra.mxu0 %v4914
        %4916 = vmatprep.subr.mxu0 0.0
        %v4917 = vand.u32 %v4012, 4294901760
        %v4918 = vsub.f32 %v4012, %v4917
        %v4919 = vand.u32 %v4918, 4294901760
        %4920 = vmatpush1.msra.mxu0 %v4919
        %4921 = vmatprep.subr.mxu0 0.0
        %4922 = vmatpush1.msra.mxu0 0.0
        %4923 = vmatprep.subr.mxu0 0.0
        %4924 = vmatpush1.msra.mxu0 0.0
        %4925 = vmatprep.subr.mxu0 0.0
        %4926 = vmatpush1.msra.mxu0 0.0
        %4927 = vmatprep.subr.mxu0 0.0
        %4928 = vmatpush1.msra.mxu0 0.0
        %4929 = vmatprep.subr.mxu0 0.0
        %4930 = vmatpush1.msra.mxu0 0.0
        %4931 = vmatprep.subr.mxu0 0.0
        %4932 = vmatpush1.msra.mxu0 0.0
        %4933 = vmatprep.subr.mxu0 0.0
        %4934 = vmatpush1.msra.mxu0 0.0
        %4935 = vmatprep.subr.mxu0 0.0
        %4936 = vmatpush1.msra.mxu0 0.0
        %4937 = vmatprep.subr.mxu0 0.0
        %4938 = vmatpush1.msra.mxu0 0.0
        %4939 = vmatprep.subr.mxu0 0.0
        %4940 = vmatpush1.msra.mxu0 0.0
        %4941 = vmatprep.subr.mxu0 0.0
        %4942 = vmatpush1.msra.mxu0 0.0
        %4943 = vmatprep.subr.mxu0 0.0
        %4944 = vmatpush1.msra.mxu0 0.0
        %4945 = vmatprep.subr.mxu0 0.0
        %4946 = vmatpush1.msra.mxu0 0.0
        %4947 = vmatprep.subr.mxu0 0.0
        %4948 = vmatpush1.msra.mxu0 0.0
        %4949 = vmatprep.subr.mxu0 0.0
        %4950 = vmatpush1.msra.mxu0 0.0
        %4951 = vmatprep.subr.mxu0 0.0
        %4952 = vmatpush1.msra.mxu0 0.0
        %4953 = vmatprep.subr.mxu0 0.0
        %4954 = vmatpush1.msra.mxu0 0.0
        %4955 = vmatprep.subr.mxu0 0.0
        %4956 = vmatpush1.msra.mxu0 0.0
        %4957 = vmatprep.subr.mxu0 0.0
        %4958 = vmatpush1.msra.mxu0 0.0
        %4959 = vmatprep.subr.mxu0 0.0
        %4960 = vmatpush1.msra.mxu0 0.0
        %4961 = vmatprep.subr.mxu0 0.0
        %4962 = vmatpush1.msra.mxu0 0.0
        %4963 = vmatprep.subr.mxu0 0.0
        %4964 = vmatpush1.msra.mxu0 0.0
        %4965 = vmatprep.subr.mxu0 0.0
        %4966 = vmatpush1.msra.mxu0 0.0
        %4967 = vmatprep.subr.mxu0 0.0
        %4968 = vmatpush1.msra.mxu0 0.0
        %4969 = vmatprep.subr.mxu0 0.0
        %4970 = vmatpush1.msra.mxu0 0.0
        %4971 = vmatprep.subr.mxu0 0.0
        %4972 = vmatpush1.msra.mxu0 0.0
        %4973 = vmatprep.subr.mxu0 0.0
        %4974 = vmatpush1.msra.mxu0 0.0
        %4975 = vmatprep.subr.mxu0 0.0
        %4976 = vmatpush1.msra.mxu0 0.0
        %4977 = vmatprep.subr.mxu0 0.0
        %4978 = vmatpush1.msra.mxu0 0.0
        %4979 = vmatprep.subr.mxu0 0.0
        %4980 = vmatpush1.msra.mxu0 0.0
        %4981 = vmatprep.mubr.f32.mxu0 0.0
        %v4982 = vand.u32 %v4566, 4294901760
        %4983 = vmatmul.mubr.f32.gmra.mrb[0].mxu0 %v4982
        %v4984 = vpop.f32.mrb[0].mxu0
        %v4985 = vadd.f32 %v4900, %v4984
        %v4986 = vpop.f32.mrb[0].mxu0
        %4987 = vmatprep.mubr.f32.mxu0 0.0
        %v4988 = vand.u32 %v4569, 4294901760
        %4989 = vmatmul.mubr.f32.gmra.mrb[0].mxu0 %v4988
        %v4990 = vpop.f32.mrb[0].mxu0
        %v4991 = vadd.f32 %v4908, %v4990
        %v4992 = vpop.f32.mrb[0].mxu0
        %4993 = vdwg.mxu0
        %4994 = vmatprep.subr.mxu0 0.0
        %v4995 = vand.u32 %v4005, 4294901760
        %4996 = vmatpush1.msra.mxu0 %v4995
        %4997 = vmatprep.subr.mxu0 0.0
        %v4998 = vand.u32 %v4012, 4294901760
        %4999 = vmatpush1.msra.mxu0 %v4998
        %5000 = vmatprep.subr.mxu0 0.0
        %5001 = vmatpush1.msra.mxu0 0.0
        %5002 = vmatprep.subr.mxu0 0.0
        %5003 = vmatpush1.msra.mxu0 0.0
        %5004 = vmatprep.subr.mxu0 0.0
        %5005 = vmatpush1.msra.mxu0 0.0
        %5006 = vmatprep.subr.mxu0 0.0
        %5007 = vmatpush1.msra.mxu0 0.0
        %5008 = vmatprep.subr.mxu0 0.0
        %5009 = vmatpush1.msra.mxu0 0.0
        %5010 = vmatprep.subr.mxu0 0.0
        %5011 = vmatpush1.msra.mxu0 0.0
        %5012 = vmatprep.subr.mxu0 0.0
        %5013 = vmatpush1.msra.mxu0 0.0
        %5014 = vmatprep.subr.mxu0 0.0
        %5015 = vmatpush1.msra.mxu0 0.0
        %5016 = vmatprep.subr.mxu0 0.0
        %5017 = vmatpush1.msra.mxu0 0.0
        %5018 = vmatprep.subr.mxu0 0.0
        %5019 = vmatpush1.msra.mxu0 0.0
        %5020 = vmatprep.subr.mxu0 0.0
        %5021 = vmatpush1.msra.mxu0 0.0
        %5022 = vmatprep.subr.mxu0 0.0
        %5023 = vmatpush1.msra.mxu0 0.0
        %5024 = vmatprep.subr.mxu0 0.0
        %5025 = vmatpush1.msra.mxu0 0.0
        %5026 = vmatprep.subr.mxu0 0.0
        %5027 = vmatpush1.msra.mxu0 0.0
        %5028 = vmatprep.subr.mxu0 0.0
        %5029 = vmatpush1.msra.mxu0 0.0
        %5030 = vmatprep.subr.mxu0 0.0
        %5031 = vmatpush1.msra.mxu0 0.0
        %5032 = vmatprep.subr.mxu0 0.0
        %5033 = vmatpush1.msra.mxu0 0.0
        %5034 = vmatprep.subr.mxu0 0.0
        %5035 = vmatpush1.msra.mxu0 0.0
        %5036 = vmatprep.subr.mxu0 0.0
        %5037 = vmatpush1.msra.mxu0 0.0
        %5038 = vmatprep.subr.mxu0 0.0
        %5039 = vmatpush1.msra.mxu0 0.0
        %5040 = vmatprep.subr.mxu0 0.0
        %5041 = vmatpush1.msra.mxu0 0.0
        %5042 = vmatprep.subr.mxu0 0.0
        %5043 = vmatpush1.msra.mxu0 0.0
        %5044 = vmatprep.subr.mxu0 0.0
        %5045 = vmatpush1.msra.mxu0 0.0
        %5046 = vmatprep.subr.mxu0 0.0
        %5047 = vmatpush1.msra.mxu0 0.0
        %5048 = vmatprep.subr.mxu0 0.0
        %5049 = vmatpush1.msra.mxu0 0.0
        %5050 = vmatprep.subr.mxu0 0.0
        %5051 = vmatpush1.msra.mxu0 0.0
        %5052 = vmatprep.subr.mxu0 0.0
        %5053 = vmatpush1.msra.mxu0 0.0
        %5054 = vmatprep.subr.mxu0 0.0
        %5055 = vmatpush1.msra.mxu0 0.0
        %5056 = vmatprep.subr.mxu0 0.0
        %5057 = vmatpush1.msra.mxu0 0.0
        %5058 = vmatprep.subr.mxu0 0.0
        %5059 = vmatpush1.msra.mxu0 0.0
        %5060 = vmatprep.mubr.f32.mxu0 0.0
        %v5061 = vand.u32 %v4566, 4294901760
        %5062 = vmatmul.mubr.f32.gmra.mrb[0].mxu0 %v5061
        %v5063 = vpop.f32.mrb[0].mxu0
        %v5064 = vadd.f32 %v4985, %v5063
        %v5065 = vpop.f32.mrb[0].mxu0
        %5066 = vmatprep.mubr.f32.mxu0 0.0
        %v5067 = vand.u32 %v4569, 4294901760
        %5068 = vmatmul.mubr.f32.gmra.mrb[0].mxu0 %v5067
        %v5069 = vpop.f32.mrb[0].mxu0
        %v5070 = vadd.f32 %v4991, %v5069
        %v5071 = vpop.f32.mrb[0].mxu0
        %5072 = vdwg.mxu0
        %v5073 = vld [vmem:[#allocation13] sm:$0xff]
        %v5074 = vld [vmem:[#allocation13 + $0x8] sm:$0xff]
        %v5075 = vld [vmem:[#allocation13 + $0x10] sm:$0xff]
        %v5076 = vld [vmem:[#allocation13 + $0x18] sm:$0xff]
        %v5078 = vsel %vm4017, %v5064, 0
        %v5081 = vsel %vm4017, %v5070, 0
        %5083 = vmatprep.subr.mxu0 0.0
        %v5084 = vand.u32 %v5073, 4294901760
        %5085 = vmatpush1.msra.mxu0 %v5084
        %5086 = vmatprep.subr.mxu0 0.0
        %v5087 = vand.u32 %v5074, 4294901760
        %5088 = vmatpush1.msra.mxu0 %v5087
        %5089 = vmatprep.subr.mxu0 0.0
        %v5090 = vand.u32 %v5075, 4294901760
        %5091 = vmatpush1.msra.mxu0 %v5090
        %5092 = vmatprep.subr.mxu0 0.0
        %v5093 = vand.u32 %v5076, 4294901760
        %5094 = vmatpush1.msra.mxu0 %v5093
        %5095 = vmatprep.subr.mxu0 0.0
        %5096 = vmatpush1.msra.mxu0 0.0
        %5097 = vmatprep.subr.mxu0 0.0
        %5098 = vmatpush1.msra.mxu0 0.0
        %5099 = vmatprep.subr.mxu0 0.0
        %5100 = vmatpush1.msra.mxu0 0.0
        %5101 = vmatprep.subr.mxu0 0.0
        %5102 = vmatpush1.msra.mxu0 0.0
        %5103 = vmatprep.subr.mxu0 0.0
        %5104 = vmatpush1.msra.mxu0 0.0
        %5105 = vmatprep.subr.mxu0 0.0
        %5106 = vmatpush1.msra.mxu0 0.0
        %5107 = vmatprep.subr.mxu0 0.0
        %5108 = vmatpush1.msra.mxu0 0.0
        %5109 = vmatprep.subr.mxu0 0.0
        %5110 = vmatpush1.msra.mxu0 0.0
        %5111 = vmatprep.subr.mxu0 0.0
        %5112 = vmatpush1.msra.mxu0 0.0
        %5113 = vmatprep.subr.mxu0 0.0
        %5114 = vmatpush1.msra.mxu0 0.0
        %5115 = vmatprep.subr.mxu0 0.0
        %5116 = vmatpush1.msra.mxu0 0.0
        %5117 = vmatprep.subr.mxu0 0.0
        %5118 = vmatpush1.msra.mxu0 0.0
        %5119 = vmatprep.subr.mxu0 0.0
        %5120 = vmatpush1.msra.mxu0 0.0
        %5121 = vmatprep.subr.mxu0 0.0
        %5122 = vmatpush1.msra.mxu0 0.0
        %5123 = vmatprep.subr.mxu0 0.0
        %5124 = vmatpush1.msra.mxu0 0.0
        %5125 = vmatprep.subr.mxu0 0.0
        %5126 = vmatpush1.msra.mxu0 0.0
        %5127 = vmatprep.subr.mxu0 0.0
        %5128 = vmatpush1.msra.mxu0 0.0
        %5129 = vmatprep.subr.mxu0 0.0
        %5130 = vmatpush1.msra.mxu0 0.0
        %5131 = vmatprep.subr.mxu0 0.0
        %5132 = vmatpush1.msra.mxu0 0.0
        %5133 = vmatprep.subr.mxu0 0.0
        %5134 = vmatpush1.msra.mxu0 0.0
        %5135 = vmatprep.subr.mxu0 0.0
        %5136 = vmatpush1.msra.mxu0 0.0
        %5137 = vmatprep.subr.mxu0 0.0
        %5138 = vmatpush1.msra.mxu0 0.0
        %5139 = vmatprep.subr.mxu0 0.0
        %5140 = vmatpush1.msra.mxu0 0.0
        %5141 = vmatprep.subr.mxu0 0.0
        %5142 = vmatpush1.msra.mxu0 0.0
        %5143 = vmatprep.subr.mxu0 0.0
        %5144 = vmatpush1.msra.mxu0 0.0
        %5145 = vmatprep.subr.mxu0 0.0
        %5146 = vmatpush1.msra.mxu0 0.0
        %5147 = vmatprep.subr.mxu0 0.0
        %5148 = vmatpush1.msra.mxu0 0.0
        %5149 = vmatprep.subr.mxu0 0.0
        %5150 = vmatpush1.msra.mxu0 0.0
        %5151 = vmatprep.mubr.f32.mxu0 0.0
        %v5152 = vand.u32 %v5078, 4294901760
        %v5153 = vsub.f32 %v5078, %v5152
        %v5154 = vand.u32 %v5153, 4294901760
        %v5155 = vsub.f32 %v5153, %v5154
        %v5156 = vand.u32 %v5155, 4294901760
        %5157 = vmatmul.mubr.f32.gmra.mrb[0].mxu0 %v5156
        %v5158 = vpop.f32.mrb[0].mxu0
        %v5159 = vadd.f32 0.0, %v5158
        %v5160 = vpop.f32.mrb[0].mxu0
        %5161 = vmatprep.mubr.f32.mxu0 0.0
        %v5162 = vand.u32 %v5081, 4294901760
        %v5163 = vsub.f32 %v5081, %v5162
        %v5164 = vand.u32 %v5163, 4294901760
        %v5165 = vsub.f32 %v5163, %v5164
        %v5166 = vand.u32 %v5165, 4294901760
        %5167 = vmatmul.mubr.f32.gmra.mrb[0].mxu0 %v5166
        %v5168 = vpop.f32.mrb[0].mxu0
        %v5169 = vadd.f32 0.0, %v5168
        %v5170 = vpop.f32.mrb[0].mxu0
        %5171 = vdwg.mxu0
        %5172 = vmatprep.subr.mxu0 0.0
        %v5173 = vand.u32 %v5073, 4294901760
        %v5174 = vsub.f32 %v5073, %v5173
        %v5175 = vand.u32 %v5174, 4294901760
        %v5176 = vsub.f32 %v5174, %v5175
        %v5177 = vand.u32 %v5176, 4294901760
        %5178 = vmatpush1.msra.mxu0 %v5177
        %5179 = vmatprep.subr.mxu0 0.0
        %v5180 = vand.u32 %v5074, 4294901760
        %v5181 = vsub.f32 %v5074, %v5180
        %v5182 = vand.u32 %v5181, 4294901760
        %v5183 = vsub.f32 %v5181, %v5182
        %v5184 = vand.u32 %v5183, 4294901760
        %5185 = vmatpush1.msra.mxu0 %v5184
        %5186 = vmatprep.subr.mxu0 0.0
        %v5187 = vand.u32 %v5075, 4294901760
        %v5188 = vsub.f32 %v5075, %v5187
        %v5189 = vand.u32 %v5188, 4294901760
        %v5190 = vsub.f32 %v5188, %v5189
        %v5191 = vand.u32 %v5190, 4294901760
        %5192 = vmatpush1.msra.mxu0 %v5191
        %5193 = vmatprep.subr.mxu0 0.0
        %v5194 = vand.u32 %v5076, 4294901760
        %v5195 = vsub.f32 %v5076, %v5194
        %v5196 = vand.u32 %v5195, 4294901760
        %v5197 = vsub.f32 %v5195, %v5196
        %v5198 = vand.u32 %v5197, 4294901760
        %5199 = vmatpush1.msra.mxu0 %v5198
        %5200 = vmatprep.subr.mxu0 0.0
        %5201 = vmatpush1.msra.mxu0 0.0
        %5202 = vmatprep.subr.mxu0 0.0
        %5203 = vmatpush1.msra.mxu0 0.0
        %5204 = vmatprep.subr.mxu0 0.0
        %5205 = vmatpush1.msra.mxu0 0.0
        %5206 = vmatprep.subr.mxu0 0.0
        %5207 = vmatpush1.msra.mxu0 0.0
        %5208 = vmatprep.subr.mxu0 0.0
        %5209 = vmatpush1.msra.mxu0 0.0
        %5210 = vmatprep.subr.mxu0 0.0
        %5211 = vmatpush1.msra.mxu0 0.0
        %5212 = vmatprep.subr.mxu0 0.0
        %5213 = vmatpush1.msra.mxu0 0.0
        %5214 = vmatprep.subr.mxu0 0.0
        %5215 = vmatpush1.msra.mxu0 0.0
        %5216 = vmatprep.subr.mxu0 0.0
        %5217 = vmatpush1.msra.mxu0 0.0
        %5218 = vmatprep.subr.mxu0 0.0
        %5219 = vmatpush1.msra.mxu0 0.0
        %5220 = vmatprep.subr.mxu0 0.0
        %5221 = vmatpush1.msra.mxu0 0.0
        %5222 = vmatprep.subr.mxu0 0.0
        %5223 = vmatpush1.msra.mxu0 0.0
        %5224 = vmatprep.subr.mxu0 0.0
        %5225 = vmatpush1.msra.mxu0 0.0
        %5226 = vmatprep.subr.mxu0 0.0
        %5227 = vmatpush1.msra.mxu0 0.0
        %5228 = vmatprep.subr.mxu0 0.0
        %5229 = vmatpush1.msra.mxu0 0.0
        %5230 = vmatprep.subr.mxu0 0.0
        %5231 = vmatpush1.msra.mxu0 0.0
        %5232 = vmatprep.subr.mxu0 0.0
        %5233 = vmatpush1.msra.mxu0 0.0
        %5234 = vmatprep.subr.mxu0 0.0
        %5235 = vmatpush1.msra.mxu0 0.0
        %5236 = vmatprep.subr.mxu0 0.0
        %5237 = vmatpush1.msra.mxu0 0.0
        %5238 = vmatprep.subr.mxu0 0.0
        %5239 = vmatpush1.msra.mxu0 0.0
        %5240 = vmatprep.subr.mxu0 0.0
        %5241 = vmatpush1.msra.mxu0 0.0
        %5242 = vmatprep.subr.mxu0 0.0
        %5243 = vmatpush1.msra.mxu0 0.0
        %5244 = vmatprep.subr.mxu0 0.0
        %5245 = vmatpush1.msra.mxu0 0.0
        %5246 = vmatprep.subr.mxu0 0.0
        %5247 = vmatpush1.msra.mxu0 0.0
        %5248 = vmatprep.subr.mxu0 0.0
        %5249 = vmatpush1.msra.mxu0 0.0
        %5250 = vmatprep.subr.mxu0 0.0
        %5251 = vmatpush1.msra.mxu0 0.0
        %5252 = vmatprep.subr.mxu0 0.0
        %5253 = vmatpush1.msra.mxu0 0.0
        %5254 = vmatprep.subr.mxu0 0.0
        %5255 = vmatpush1.msra.mxu0 0.0
        %5256 = vmatprep.mubr.f32.mxu0 0.0
        %v5257 = vand.u32 %v5078, 4294901760
        %5258 = vmatmul.mubr.f32.gmra.mrb[0].mxu0 %v5257
        %v5259 = vpop.f32.mrb[0].mxu0
        %v5260 = vadd.f32 %v5159, %v5259
        %v5261 = vpop.f32.mrb[0].mxu0
        %5262 = vmatprep.mubr.f32.mxu0 0.0
        %v5263 = vand.u32 %v5081, 4294901760
        %5264 = vmatmul.mubr.f32.gmra.mrb[0].mxu0 %v5263
        %v5265 = vpop.f32.mrb[0].mxu0
        %v5266 = vadd.f32 %v5169, %v5265
        %v5267 = vpop.f32.mrb[0].mxu0
        %5268 = vdwg.mxu0
        %5269 = vmatprep.subr.mxu0 0.0
        %v5270 = vand.u32 %v5073, 4294901760
        %v5271 = vsub.f32 %v5073, %v5270
        %5272 = vmatpush1.msra.mxu0 %v5271
        %5273 = vmatprep.subr.mxu0 0.0
        %v5274 = vand.u32 %v5074, 4294901760
        %v5275 = vsub.f32 %v5074, %v5274
        %5276 = vmatpush1.msra.mxu0 %v5275
        %5277 = vmatprep.subr.mxu0 0.0
        %v5278 = vand.u32 %v5075, 4294901760
        %v5279 = vsub.f32 %v5075, %v5278
        %5280 = vmatpush1.msra.mxu0 %v5279
        %5281 = vmatprep.subr.mxu0 0.0
        %v5282 = vand.u32 %v5076, 4294901760
        %v5283 = vsub.f32 %v5076, %v5282
        %5284 = vmatpush1.msra.mxu0 %v5283
        %5285 = vmatprep.subr.mxu0 0.0
        %5286 = vmatpush1.msra.mxu0 0.0
        %5287 = vmatprep.subr.mxu0 0.0
        %5288 = vmatpush1.msra.mxu0 0.0
        %5289 = vmatprep.subr.mxu0 0.0
        %5290 = vmatpush1.msra.mxu0 0.0
        %5291 = vmatprep.subr.mxu0 0.0
        %5292 = vmatpush1.msra.mxu0 0.0
        %5293 = vmatprep.subr.mxu0 0.0
        %5294 = vmatpush1.msra.mxu0 0.0
        %5295 = vmatprep.subr.mxu0 0.0
        %5296 = vmatpush1.msra.mxu0 0.0
        %5297 = vmatprep.subr.mxu0 0.0
        %5298 = vmatpush1.msra.mxu0 0.0
        %5299 = vmatprep.subr.mxu0 0.0
        %5300 = vmatpush1.msra.mxu0 0.0
        %5301 = vmatprep.subr.mxu0 0.0
        %5302 = vmatpush1.msra.mxu0 0.0
        %5303 = vmatprep.subr.mxu0 0.0
        %5304 = vmatpush1.msra.mxu0 0.0
        %5305 = vmatprep.subr.mxu0 0.0
        %5306 = vmatpush1.msra.mxu0 0.0
        %5307 = vmatprep.subr.mxu0 0.0
        %5308 = vmatpush1.msra.mxu0 0.0
        %5309 = vmatprep.subr.mxu0 0.0
        %5310 = vmatpush1.msra.mxu0 0.0
        %5311 = vmatprep.subr.mxu0 0.0
        %5312 = vmatpush1.msra.mxu0 0.0
        %5313 = vmatprep.subr.mxu0 0.0
        %5314 = vmatpush1.msra.mxu0 0.0
        %5315 = vmatprep.subr.mxu0 0.0
        %5316 = vmatpush1.msra.mxu0 0.0
        %5317 = vmatprep.subr.mxu0 0.0
        %5318 = vmatpush1.msra.mxu0 0.0
        %5319 = vmatprep.subr.mxu0 0.0
        %5320 = vmatpush1.msra.mxu0 0.0
        %5321 = vmatprep.subr.mxu0 0.0
        %5322 = vmatpush1.msra.mxu0 0.0
        %5323 = vmatprep.subr.mxu0 0.0
        %5324 = vmatpush1.msra.mxu0 0.0
        %5325 = vmatprep.subr.mxu0 0.0
        %5326 = vmatpush1.msra.mxu0 0.0
        %5327 = vmatprep.subr.mxu0 0.0
        %5328 = vmatpush1.msra.mxu0 0.0
        %5329 = vmatprep.subr.mxu0 0.0
        %5330 = vmatpush1.msra.mxu0 0.0
        %5331 = vmatprep.subr.mxu0 0.0
        %5332 = vmatpush1.msra.mxu0 0.0
        %5333 = vmatprep.subr.mxu0 0.0
        %5334 = vmatpush1.msra.mxu0 0.0
        %5335 = vmatprep.subr.mxu0 0.0
        %5336 = vmatpush1.msra.mxu0 0.0
        %5337 = vmatprep.subr.mxu0 0.0
        %5338 = vmatpush1.msra.mxu0 0.0
        %5339 = vmatprep.subr.mxu0 0.0
        %5340 = vmatpush1.msra.mxu0 0.0
        %5341 = vmatprep.mubr.f32.mxu0 0.0
        %v5342 = vand.u32 %v5078, 4294901760
        %v5343 = vsub.f32 %v5078, %v5342
        %5344 = vmatmul.mubr.f32.gmra.mrb[0].mxu0 %v5343
        %v5345 = vpop.f32.mrb[0].mxu0
        %v5346 = vadd.f32 %v5260, %v5345
        %v5347 = vpop.f32.mrb[0].mxu0
        %5348 = vmatprep.mubr.f32.mxu0 0.0
        %v5349 = vand.u32 %v5081, 4294901760
        %v5350 = vsub.f32 %v5081, %v5349
        %5351 = vmatmul.mubr.f32.gmra.mrb[0].mxu0 %v5350
        %v5352 = vpop.f32.mrb[0].mxu0
        %v5353 = vadd.f32 %v5266, %v5352
        %v5354 = vpop.f32.mrb[0].mxu0
        %5355 = vdwg.mxu0
        %5356 = vmatprep.subr.mxu0 0.0
        %v5357 = vand.u32 %v5073, 4294901760
        %5358 = vmatpush1.msra.mxu0 %v5357
        %5359 = vmatprep.subr.mxu0 0.0
        %v5360 = vand.u32 %v5074, 4294901760
        %5361 = vmatpush1.msra.mxu0 %v5360
        %5362 = vmatprep.subr.mxu0 0.0
        %v5363 = vand.u32 %v5075, 4294901760
        %5364 = vmatpush1.msra.mxu0 %v5363
        %5365 = vmatprep.subr.mxu0 0.0
        %v5366 = vand.u32 %v5076, 4294901760
        %5367 = vmatpush1.msra.mxu0 %v5366
        %5368 = vmatprep.subr.mxu0 0.0
        %5369 = vmatpush1.msra.mxu0 0.0
        %5370 = vmatprep.subr.mxu0 0.0
        %5371 = vmatpush1.msra.mxu0 0.0
        %5372 = vmatprep.subr.mxu0 0.0
        %5373 = vmatpush1.msra.mxu0 0.0
        %5374 = vmatprep.subr.mxu0 0.0
        %5375 = vmatpush1.msra.mxu0 0.0
        %5376 = vmatprep.subr.mxu0 0.0
        %5377 = vmatpush1.msra.mxu0 0.0
        %5378 = vmatprep.subr.mxu0 0.0
        %5379 = vmatpush1.msra.mxu0 0.0
        %5380 = vmatprep.subr.mxu0 0.0
        %5381 = vmatpush1.msra.mxu0 0.0
        %5382 = vmatprep.subr.mxu0 0.0
        %5383 = vmatpush1.msra.mxu0 0.0
        %5384 = vmatprep.subr.mxu0 0.0
        %5385 = vmatpush1.msra.mxu0 0.0
        %5386 = vmatprep.subr.mxu0 0.0
        %5387 = vmatpush1.msra.mxu0 0.0
        %5388 = vmatprep.subr.mxu0 0.0
        %5389 = vmatpush1.msra.mxu0 0.0
        %5390 = vmatprep.subr.mxu0 0.0
        %5391 = vmatpush1.msra.mxu0 0.0
        %5392 = vmatprep.subr.mxu0 0.0
        %5393 = vmatpush1.msra.mxu0 0.0
        %5394 = vmatprep.subr.mxu0 0.0
        %5395 = vmatpush1.msra.mxu0 0.0
        %5396 = vmatprep.subr.mxu0 0.0
        %5397 = vmatpush1.msra.mxu0 0.0
        %5398 = vmatprep.subr.mxu0 0.0
        %5399 = vmatpush1.msra.mxu0 0.0
        %5400 = vmatprep.subr.mxu0 0.0
        %5401 = vmatpush1.msra.mxu0 0.0
        %5402 = vmatprep.subr.mxu0 0.0
        %5403 = vmatpush1.msra.mxu0 0.0
        %5404 = vmatprep.subr.mxu0 0.0
        %5405 = vmatpush1.msra.mxu0 0.0
        %5406 = vmatprep.subr.mxu0 0.0
        %5407 = vmatpush1.msra.mxu0 0.0
        %5408 = vmatprep.subr.mxu0 0.0
        %5409 = vmatpush1.msra.mxu0 0.0
        %5410 = vmatprep.subr.mxu0 0.0
        %5411 = vmatpush1.msra.mxu0 0.0
        %5412 = vmatprep.subr.mxu0 0.0
        %5413 = vmatpush1.msra.mxu0 0.0
        %5414 = vmatprep.subr.mxu0 0.0
        %5415 = vmatpush1.msra.mxu0 0.0
        %5416 = vmatprep.subr.mxu0 0.0
        %5417 = vmatpush1.msra.mxu0 0.0
        %5418 = vmatprep.subr.mxu0 0.0
        %5419 = vmatpush1.msra.mxu0 0.0
        %5420 = vmatprep.subr.mxu0 0.0
        %5421 = vmatpush1.msra.mxu0 0.0
        %5422 = vmatprep.subr.mxu0 0.0
        %5423 = vmatpush1.msra.mxu0 0.0
        %5424 = vmatprep.mubr.f32.mxu0 0.0
        %v5425 = vand.u32 %v5078, 4294901760
        %v5426 = vsub.f32 %v5078, %v5425
        %v5427 = vand.u32 %v5426, 4294901760
        %5428 = vmatmul.mubr.f32.gmra.mrb[0].mxu0 %v5427
        %v5429 = vpop.f32.mrb[0].mxu0
        %v5430 = vadd.f32 %v5346, %v5429
        %v5431 = vpop.f32.mrb[0].mxu0
        %5432 = vmatprep.mubr.f32.mxu0 0.0
        %v5433 = vand.u32 %v5081, 4294901760
        %v5434 = vsub.f32 %v5081, %v5433
        %v5435 = vand.u32 %v5434, 4294901760
        %5436 = vmatmul.mubr.f32.gmra.mrb[0].mxu0 %v5435
        %v5437 = vpop.f32.mrb[0].mxu0
        %v5438 = vadd.f32 %v5353, %v5437
        %v5439 = vpop.f32.mrb[0].mxu0
        %5440 = vdwg.mxu0
        %5441 = vmatprep.subr.mxu0 0.0
        %v5442 = vand.u32 %v5073, 4294901760
        %v5443 = vsub.f32 %v5073, %v5442
        %v5444 = vand.u32 %v5443, 4294901760
        %5445 = vmatpush1.msra.mxu0 %v5444
        %5446 = vmatprep.subr.mxu0 0.0
        %v5447 = vand.u32 %v5074, 4294901760
        %v5448 = vsub.f32 %v5074, %v5447
        %v5449 = vand.u32 %v5448, 4294901760
        %5450 = vmatpush1.msra.mxu0 %v5449
        %5451 = vmatprep.subr.mxu0 0.0
        %v5452 = vand.u32 %v5075, 4294901760
        %v5453 = vsub.f32 %v5075, %v5452
        %v5454 = vand.u32 %v5453, 4294901760
        %5455 = vmatpush1.msra.mxu0 %v5454
        %5456 = vmatprep.subr.mxu0 0.0
        %v5457 = vand.u32 %v5076, 4294901760
        %v5458 = vsub.f32 %v5076, %v5457
        %v5459 = vand.u32 %v5458, 4294901760
        %5460 = vmatpush1.msra.mxu0 %v5459
        %5461 = vmatprep.subr.mxu0 0.0
        %5462 = vmatpush1.msra.mxu0 0.0
        %5463 = vmatprep.subr.mxu0 0.0
        %5464 = vmatpush1.msra.mxu0 0.0
        %5465 = vmatprep.subr.mxu0 0.0
        %5466 = vmatpush1.msra.mxu0 0.0
        %5467 = vmatprep.subr.mxu0 0.0
        %5468 = vmatpush1.msra.mxu0 0.0
        %5469 = vmatprep.subr.mxu0 0.0
        %5470 = vmatpush1.msra.mxu0 0.0
        %5471 = vmatprep.subr.mxu0 0.0
        %5472 = vmatpush1.msra.mxu0 0.0
        %5473 = vmatprep.subr.mxu0 0.0
        %5474 = vmatpush1.msra.mxu0 0.0
        %5475 = vmatprep.subr.mxu0 0.0
        %5476 = vmatpush1.msra.mxu0 0.0
        %5477 = vmatprep.subr.mxu0 0.0
        %5478 = vmatpush1.msra.mxu0 0.0
        %5479 = vmatprep.subr.mxu0 0.0
        %5480 = vmatpush1.msra.mxu0 0.0
        %5481 = vmatprep.subr.mxu0 0.0
        %5482 = vmatpush1.msra.mxu0 0.0
        %5483 = vmatprep.subr.mxu0 0.0
        %5484 = vmatpush1.msra.mxu0 0.0
        %5485 = vmatprep.subr.mxu0 0.0
        %5486 = vmatpush1.msra.mxu0 0.0
        %5487 = vmatprep.subr.mxu0 0.0
        %5488 = vmatpush1.msra.mxu0 0.0
        %5489 = vmatprep.subr.mxu0 0.0
        %5490 = vmatpush1.msra.mxu0 0.0
        %5491 = vmatprep.subr.mxu0 0.0
        %5492 = vmatpush1.msra.mxu0 0.0
        %5493 = vmatprep.subr.mxu0 0.0
        %5494 = vmatpush1.msra.mxu0 0.0
        %5495 = vmatprep.subr.mxu0 0.0
        %5496 = vmatpush1.msra.mxu0 0.0
        %5497 = vmatprep.subr.mxu0 0.0
        %5498 = vmatpush1.msra.mxu0 0.0
        %5499 = vmatprep.subr.mxu0 0.0
        %5500 = vmatpush1.msra.mxu0 0.0
        %5501 = vmatprep.subr.mxu0 0.0
        %5502 = vmatpush1.msra.mxu0 0.0
        %5503 = vmatprep.subr.mxu0 0.0
        %5504 = vmatpush1.msra.mxu0 0.0
        %5505 = vmatprep.subr.mxu0 0.0
        %5506 = vmatpush1.msra.mxu0 0.0
        %5507 = vmatprep.subr.mxu0 0.0
        %5508 = vmatpush1.msra.mxu0 0.0
        %5509 = vmatprep.subr.mxu0 0.0
        %5510 = vmatpush1.msra.mxu0 0.0
        %5511 = vmatprep.subr.mxu0 0.0
        %5512 = vmatpush1.msra.mxu0 0.0
        %5513 = vmatprep.subr.mxu0 0.0
        %5514 = vmatpush1.msra.mxu0 0.0
        %5515 = vmatprep.subr.mxu0 0.0
        %5516 = vmatpush1.msra.mxu0 0.0
        %5517 = vmatprep.mubr.f32.mxu0 0.0
        %v5518 = vand.u32 %v5078, 4294901760
        %5519 = vmatmul.mubr.f32.gmra.mrb[0].mxu0 %v5518
        %v5520 = vpop.f32.mrb[0].mxu0
        %v5521 = vadd.f32 %v5430, %v5520
        %v5522 = vpop.f32.mrb[0].mxu0
        %5523 = vmatprep.mubr.f32.mxu0 0.0
        %v5524 = vand.u32 %v5081, 4294901760
        %5525 = vmatmul.mubr.f32.gmra.mrb[0].mxu0 %v5524
        %v5526 = vpop.f32.mrb[0].mxu0
        %v5527 = vadd.f32 %v5438, %v5526
        %v5528 = vpop.f32.mrb[0].mxu0
        %5529 = vdwg.mxu0
        %5530 = vmatprep.subr.mxu0 0.0
        %v5531 = vand.u32 %v5073, 4294901760
        %5532 = vmatpush1.msra.mxu0 %v5531
        %5533 = vmatprep.subr.mxu0 0.0
        %v5534 = vand.u32 %v5074, 4294901760
        %5535 = vmatpush1.msra.mxu0 %v5534
        %5536 = vmatprep.subr.mxu0 0.0
        %v5537 = vand.u32 %v5075, 4294901760
        %5538 = vmatpush1.msra.mxu0 %v5537
        %5539 = vmatprep.subr.mxu0 0.0
        %v5540 = vand.u32 %v5076, 4294901760
        %5541 = vmatpush1.msra.mxu0 %v5540
        %5542 = vmatprep.subr.mxu0 0.0
        %5543 = vmatpush1.msra.mxu0 0.0
        %5544 = vmatprep.subr.mxu0 0.0
        %5545 = vmatpush1.msra.mxu0 0.0
        %5546 = vmatprep.subr.mxu0 0.0
        %5547 = vmatpush1.msra.mxu0 0.0
        %5548 = vmatprep.subr.mxu0 0.0
        %5549 = vmatpush1.msra.mxu0 0.0
        %5550 = vmatprep.subr.mxu0 0.0
        %5551 = vmatpush1.msra.mxu0 0.0
        %5552 = vmatprep.subr.mxu0 0.0
        %5553 = vmatpush1.msra.mxu0 0.0
        %5554 = vmatprep.subr.mxu0 0.0
        %5555 = vmatpush1.msra.mxu0 0.0
        %5556 = vmatprep.subr.mxu0 0.0
        %5557 = vmatpush1.msra.mxu0 0.0
        %5558 = vmatprep.subr.mxu0 0.0
        %5559 = vmatpush1.msra.mxu0 0.0
        %5560 = vmatprep.subr.mxu0 0.0
        %5561 = vmatpush1.msra.mxu0 0.0
        %5562 = vmatprep.subr.mxu0 0.0
        %5563 = vmatpush1.msra.mxu0 0.0
        %5564 = vmatprep.subr.mxu0 0.0
        %5565 = vmatpush1.msra.mxu0 0.0
        %5566 = vmatprep.subr.mxu0 0.0
        %5567 = vmatpush1.msra.mxu0 0.0
        %5568 = vmatprep.subr.mxu0 0.0
        %5569 = vmatpush1.msra.mxu0 0.0
        %5570 = vmatprep.subr.mxu0 0.0
        %5571 = vmatpush1.msra.mxu0 0.0
        %5572 = vmatprep.subr.mxu0 0.0
        %5573 = vmatpush1.msra.mxu0 0.0
        %5574 = vmatprep.subr.mxu0 0.0
        %5575 = vmatpush1.msra.mxu0 0.0
        %5576 = vmatprep.subr.mxu0 0.0
        %5577 = vmatpush1.msra.mxu0 0.0
        %5578 = vmatprep.subr.mxu0 0.0
        %5579 = vmatpush1.msra.mxu0 0.0
        %5580 = vmatprep.subr.mxu0 0.0
        %5581 = vmatpush1.msra.mxu0 0.0
        %5582 = vmatprep.subr.mxu0 0.0
        %5583 = vmatpush1.msra.mxu0 0.0
        %5584 = vmatprep.subr.mxu0 0.0
        %5585 = vmatpush1.msra.mxu0 0.0
        %5586 = vmatprep.subr.mxu0 0.0
        %5587 = vmatpush1.msra.mxu0 0.0
        %5588 = vmatprep.subr.mxu0 0.0
        %5589 = vmatpush1.msra.mxu0 0.0
        %5590 = vmatprep.subr.mxu0 0.0
        %5591 = vmatpush1.msra.mxu0 0.0
        %5592 = vmatprep.subr.mxu0 0.0
        %5593 = vmatpush1.msra.mxu0 0.0
        %5594 = vmatprep.subr.mxu0 0.0
        %5595 = vmatpush1.msra.mxu0 0.0
        %5596 = vmatprep.subr.mxu0 0.0
        %5597 = vmatpush1.msra.mxu0 0.0
        %5598 = vmatprep.mubr.f32.mxu0 0.0
        %v5599 = vand.u32 %v5078, 4294901760
        %5600 = vmatmul.mubr.f32.gmra.mrb[0].mxu0 %v5599
        %v5601 = vpop.f32.mrb[0].mxu0
        %v5602 = vadd.f32 %v5521, %v5601
        %v5603 = vpop.f32.mrb[0].mxu0
        %5604 = vmatprep.mubr.f32.mxu0 0.0
        %v5605 = vand.u32 %v5081, 4294901760
        %5606 = vmatmul.mubr.f32.gmra.mrb[0].mxu0 %v5605
        %v5607 = vpop.f32.mrb[0].mxu0
        %v5608 = vadd.f32 %v5527, %v5607
        %v5609 = vpop.f32.mrb[0].mxu0
        %5610 = vdwg.mxu0
        %v5612 = vlaneseq
        %v5613 = vshrl.u32 %v5612, 7
        %v5614 = vsub.s32 0, %v5613
        %v5615 = vrot.slane %v4016, %v5614
        %v5617 = vadd.f32 %v5615, %v5602
        %v5618 = vadd.f32 %v5615, %v5608
        %5619 = vrot.lane.b32.xlu0 %v1392, 96
        %v5620 = vpop.permute.xlu0 %5619
        %5621 = vrot.lane.b32.xlu0 %v1398, 96
        %v5622 = vpop.permute.xlu0 %5621
        %5623 = vrot.lane.b32.xlu0 %v2099, 96
        %v5624 = vpop.permute.xlu0 %5623
        %5625 = vrot.lane.b32.xlu0 %v2105, 96
        %v5626 = vpop.permute.xlu0 %5625
        %v5627 = vsel %vm4017, %v5620, 0
        %v5629 = vsel %vm4017, %v5622, 0
        %v5631 = vsel %vm4017, %v5624, 0
        %v5633 = vsel %vm4017, %v5626, 0
        %5635 = vmatprep.subr.mxu0 0.0
        %v5636 = vand.u32 %v5631, 4294901760
        %5637 = vmatpush1.xpose.msra.mxu0 %v5636
        %5638 = vmatprep.subr.mxu0 0.0
        %v5639 = vand.u32 %v5633, 4294901760
        %5640 = vmatpush1.xpose.msra.mxu0 %v5639
        %5641 = vmatprep.subr.mxu0 0.0
        %5642 = vmatpush1.xpose.msra.mxu0 0.0
        %5643 = vmatprep.subr.mxu0 0.0
        %5644 = vmatpush1.xpose.msra.mxu0 0.0
        %5645 = vmatprep.subr.mxu0 0.0
        %5646 = vmatpush1.xpose.msra.mxu0 0.0
        %5647 = vmatprep.subr.mxu0 0.0
        %5648 = vmatpush1.xpose.msra.mxu0 0.0
        %5649 = vmatprep.subr.mxu0 0.0
        %5650 = vmatpush1.xpose.msra.mxu0 0.0
        %5651 = vmatprep.subr.mxu0 0.0
        %5652 = vmatpush1.xpose.msra.mxu0 0.0
        %5653 = vmatprep.subr.mxu0 0.0
        %5654 = vmatpush1.xpose.msra.mxu0 0.0
        %5655 = vmatprep.subr.mxu0 0.0
        %5656 = vmatpush1.xpose.msra.mxu0 0.0
        %5657 = vmatprep.subr.mxu0 0.0
        %5658 = vmatpush1.xpose.msra.mxu0 0.0
        %5659 = vmatprep.subr.mxu0 0.0
        %5660 = vmatpush1.xpose.msra.mxu0 0.0
        %5661 = vmatprep.subr.mxu0 0.0
        %5662 = vmatpush1.xpose.msra.mxu0 0.0
        %5663 = vmatprep.subr.mxu0 0.0
        %5664 = vmatpush1.xpose.msra.mxu0 0.0
        %5665 = vmatprep.subr.mxu0 0.0
        %5666 = vmatpush1.xpose.msra.mxu0 0.0
        %5667 = vmatprep.subr.mxu0 0.0
        %5668 = vmatpush1.xpose.msra.mxu0 0.0
        %5669 = vmatprep.subr.mxu0 0.0
        %5670 = vmatpush1.xpose.msra.mxu0 0.0
        %5671 = vmatprep.subr.mxu0 0.0
        %5672 = vmatpush1.xpose.msra.mxu0 0.0
        %5673 = vmatprep.subr.mxu0 0.0
        %5674 = vmatpush1.xpose.msra.mxu0 0.0
        %5675 = vmatprep.subr.mxu0 0.0
        %5676 = vmatpush1.xpose.msra.mxu0 0.0
        %5677 = vmatprep.subr.mxu0 0.0
        %5678 = vmatpush1.xpose.msra.mxu0 0.0
        %5679 = vmatprep.subr.mxu0 0.0
        %5680 = vmatpush1.xpose.msra.mxu0 0.0
        %5681 = vmatprep.subr.mxu0 0.0
        %5682 = vmatpush1.xpose.msra.mxu0 0.0
        %5683 = vmatprep.subr.mxu0 0.0
        %5684 = vmatpush1.xpose.msra.mxu0 0.0
        %5685 = vmatprep.subr.mxu0 0.0
        %5686 = vmatpush1.xpose.msra.mxu0 0.0
        %5687 = vmatprep.subr.mxu0 0.0
        %5688 = vmatpush1.xpose.msra.mxu0 0.0
        %5689 = vmatprep.subr.mxu0 0.0
        %5690 = vmatpush1.xpose.msra.mxu0 0.0
        %5691 = vmatprep.subr.mxu0 0.0
        %5692 = vmatpush1.xpose.msra.mxu0 0.0
        %5693 = vmatprep.subr.mxu0 0.0
        %5694 = vmatpush1.xpose.msra.mxu0 0.0
        %5695 = vmatprep.subr.mxu0 0.0
        %5696 = vmatpush1.xpose.msra.mxu0 0.0
        %5697 = vmatprep.subr.mxu0 0.0
        %5698 = vmatpush1.xpose.msra.mxu0 0.0
        %5699 = vmatprep.subr.mxu0 0.0
        %5700 = vmatpush1.xpose.msra.mxu0 0.0
        %5701 = vmatprep.mubr.f32.mxu0 0.0
        %v5702 = vand.u32 %v5627, 4294901760
        %v5703 = vsub.f32 %v5627, %v5702
        %v5704 = vand.u32 %v5703, 4294901760
        %v5705 = vsub.f32 %v5703, %v5704
        %v5706 = vand.u32 %v5705, 4294901760
        %5707 = vmatmul.mubr.f32.gmra.mrb[0].mxu0 %v5706
        %v5708 = vpop.f32.mrb[0].mxu0
        %v5709 = vadd.f32 0.0, %v5708
        %v5710 = vpop.f32.mrb[0].mxu0
        %5711 = vmatprep.mubr.f32.mxu0 0.0
        %v5712 = vand.u32 %v5629, 4294901760
        %v5713 = vsub.f32 %v5629, %v5712
        %v5714 = vand.u32 %v5713, 4294901760
        %v5715 = vsub.f32 %v5713, %v5714
        %v5716 = vand.u32 %v5715, 4294901760
        %5717 = vmatmul.mubr.f32.gmra.mrb[0].mxu0 %v5716
        %v5718 = vpop.f32.mrb[0].mxu0
        %v5719 = vadd.f32 0.0, %v5718
        %v5720 = vpop.f32.mrb[0].mxu0
        %5721 = vdwg.mxu0
        %5722 = vmatprep.subr.mxu0 0.0
        %v5723 = vand.u32 %v5631, 4294901760
        %v5724 = vsub.f32 %v5631, %v5723
        %v5725 = vand.u32 %v5724, 4294901760
        %v5726 = vsub.f32 %v5724, %v5725
        %v5727 = vand.u32 %v5726, 4294901760
        %5728 = vmatpush1.xpose.msra.mxu0 %v5727
        %5729 = vmatprep.subr.mxu0 0.0
        %v5730 = vand.u32 %v5633, 4294901760
        %v5731 = vsub.f32 %v5633, %v5730
        %v5732 = vand.u32 %v5731, 4294901760
        %v5733 = vsub.f32 %v5731, %v5732
        %v5734 = vand.u32 %v5733, 4294901760
        %5735 = vmatpush1.xpose.msra.mxu0 %v5734
        %5736 = vmatprep.subr.mxu0 0.0
        %5737 = vmatpush1.xpose.msra.mxu0 0.0
        %5738 = vmatprep.subr.mxu0 0.0
        %5739 = vmatpush1.xpose.msra.mxu0 0.0
        %5740 = vmatprep.subr.mxu0 0.0
        %5741 = vmatpush1.xpose.msra.mxu0 0.0
        %5742 = vmatprep.subr.mxu0 0.0
        %5743 = vmatpush1.xpose.msra.mxu0 0.0
        %5744 = vmatprep.subr.mxu0 0.0
        %5745 = vmatpush1.xpose.msra.mxu0 0.0
        %5746 = vmatprep.subr.mxu0 0.0
        %5747 = vmatpush1.xpose.msra.mxu0 0.0
        %5748 = vmatprep.subr.mxu0 0.0
        %5749 = vmatpush1.xpose.msra.mxu0 0.0
        %5750 = vmatprep.subr.mxu0 0.0
        %5751 = vmatpush1.xpose.msra.mxu0 0.0
        %5752 = vmatprep.subr.mxu0 0.0
        %5753 = vmatpush1.xpose.msra.mxu0 0.0
        %5754 = vmatprep.subr.mxu0 0.0
        %5755 = vmatpush1.xpose.msra.mxu0 0.0
        %5756 = vmatprep.subr.mxu0 0.0
        %5757 = vmatpush1.xpose.msra.mxu0 0.0
        %5758 = vmatprep.subr.mxu0 0.0
        %5759 = vmatpush1.xpose.msra.mxu0 0.0
        %5760 = vmatprep.subr.mxu0 0.0
        %5761 = vmatpush1.xpose.msra.mxu0 0.0
        %5762 = vmatprep.subr.mxu0 0.0
        %5763 = vmatpush1.xpose.msra.mxu0 0.0
        %5764 = vmatprep.subr.mxu0 0.0
        %5765 = vmatpush1.xpose.msra.mxu0 0.0
        %5766 = vmatprep.subr.mxu0 0.0
        %5767 = vmatpush1.xpose.msra.mxu0 0.0
        %5768 = vmatprep.subr.mxu0 0.0
        %5769 = vmatpush1.xpose.msra.mxu0 0.0
        %5770 = vmatprep.subr.mxu0 0.0
        %5771 = vmatpush1.xpose.msra.mxu0 0.0
        %5772 = vmatprep.subr.mxu0 0.0
        %5773 = vmatpush1.xpose.msra.mxu0 0.0
        %5774 = vmatprep.subr.mxu0 0.0
        %5775 = vmatpush1.xpose.msra.mxu0 0.0
        %5776 = vmatprep.subr.mxu0 0.0
        %5777 = vmatpush1.xpose.msra.mxu0 0.0
        %5778 = vmatprep.subr.mxu0 0.0
        %5779 = vmatpush1.xpose.msra.mxu0 0.0
        %5780 = vmatprep.subr.mxu0 0.0
        %5781 = vmatpush1.xpose.msra.mxu0 0.0
        %5782 = vmatprep.subr.mxu0 0.0
        %5783 = vmatpush1.xpose.msra.mxu0 0.0
        %5784 = vmatprep.subr.mxu0 0.0
        %5785 = vmatpush1.xpose.msra.mxu0 0.0
        %5786 = vmatprep.subr.mxu0 0.0
        %5787 = vmatpush1.xpose.msra.mxu0 0.0
        %5788 = vmatprep.subr.mxu0 0.0
        %5789 = vmatpush1.xpose.msra.mxu0 0.0
        %5790 = vmatprep.subr.mxu0 0.0
        %5791 = vmatpush1.xpose.msra.mxu0 0.0
        %5792 = vmatprep.subr.mxu0 0.0
        %5793 = vmatpush1.xpose.msra.mxu0 0.0
        %5794 = vmatprep.subr.mxu0 0.0
        %5795 = vmatpush1.xpose.msra.mxu0 0.0
        %5796 = vmatprep.mubr.f32.mxu0 0.0
        %v5797 = vand.u32 %v5627, 4294901760
        %5798 = vmatmul.mubr.f32.gmra.mrb[0].mxu0 %v5797
        %v5799 = vpop.f32.mrb[0].mxu0
        %v5800 = vadd.f32 %v5709, %v5799
        %v5801 = vpop.f32.mrb[0].mxu0
        %5802 = vmatprep.mubr.f32.mxu0 0.0
        %v5803 = vand.u32 %v5629, 4294901760
        %5804 = vmatmul.mubr.f32.gmra.mrb[0].mxu0 %v5803
        %v5805 = vpop.f32.mrb[0].mxu0
        %v5806 = vadd.f32 %v5719, %v5805
        %v5807 = vpop.f32.mrb[0].mxu0
        %5808 = vdwg.mxu0
        %5809 = vmatprep.subr.mxu0 0.0
        %v5810 = vand.u32 %v5631, 4294901760
        %v5811 = vsub.f32 %v5631, %v5810
        %5812 = vmatpush1.xpose.msra.mxu0 %v5811
        %5813 = vmatprep.subr.mxu0 0.0
        %v5814 = vand.u32 %v5633, 4294901760
        %v5815 = vsub.f32 %v5633, %v5814
        %5816 = vmatpush1.xpose.msra.mxu0 %v5815
        %5817 = vmatprep.subr.mxu0 0.0
        %5818 = vmatpush1.xpose.msra.mxu0 0.0
        %5819 = vmatprep.subr.mxu0 0.0
        %5820 = vmatpush1.xpose.msra.mxu0 0.0
        %5821 = vmatprep.subr.mxu0 0.0
        %5822 = vmatpush1.xpose.msra.mxu0 0.0
        %5823 = vmatprep.subr.mxu0 0.0
        %5824 = vmatpush1.xpose.msra.mxu0 0.0
        %5825 = vmatprep.subr.mxu0 0.0
        %5826 = vmatpush1.xpose.msra.mxu0 0.0
        %5827 = vmatprep.subr.mxu0 0.0
        %5828 = vmatpush1.xpose.msra.mxu0 0.0
        %5829 = vmatprep.subr.mxu0 0.0
        %5830 = vmatpush1.xpose.msra.mxu0 0.0
        %5831 = vmatprep.subr.mxu0 0.0
        %5832 = vmatpush1.xpose.msra.mxu0 0.0
        %5833 = vmatprep.subr.mxu0 0.0
        %5834 = vmatpush1.xpose.msra.mxu0 0.0
        %5835 = vmatprep.subr.mxu0 0.0
        %5836 = vmatpush1.xpose.msra.mxu0 0.0
        %5837 = vmatprep.subr.mxu0 0.0
        %5838 = vmatpush1.xpose.msra.mxu0 0.0
        %5839 = vmatprep.subr.mxu0 0.0
        %5840 = vmatpush1.xpose.msra.mxu0 0.0
        %5841 = vmatprep.subr.mxu0 0.0
        %5842 = vmatpush1.xpose.msra.mxu0 0.0
        %5843 = vmatprep.subr.mxu0 0.0
        %5844 = vmatpush1.xpose.msra.mxu0 0.0
        %5845 = vmatprep.subr.mxu0 0.0
        %5846 = vmatpush1.xpose.msra.mxu0 0.0
        %5847 = vmatprep.subr.mxu0 0.0
        %5848 = vmatpush1.xpose.msra.mxu0 0.0
        %5849 = vmatprep.subr.mxu0 0.0
        %5850 = vmatpush1.xpose.msra.mxu0 0.0
        %5851 = vmatprep.subr.mxu0 0.0
        %5852 = vmatpush1.xpose.msra.mxu0 0.0
        %5853 = vmatprep.subr.mxu0 0.0
        %5854 = vmatpush1.xpose.msra.mxu0 0.0
        %5855 = vmatprep.subr.mxu0 0.0
        %5856 = vmatpush1.xpose.msra.mxu0 0.0
        %5857 = vmatprep.subr.mxu0 0.0
        %5858 = vmatpush1.xpose.msra.mxu0 0.0
        %5859 = vmatprep.subr.mxu0 0.0
        %5860 = vmatpush1.xpose.msra.mxu0 0.0
        %5861 = vmatprep.subr.mxu0 0.0
        %5862 = vmatpush1.xpose.msra.mxu0 0.0
        %5863 = vmatprep.subr.mxu0 0.0
        %5864 = vmatpush1.xpose.msra.mxu0 0.0
        %5865 = vmatprep.subr.mxu0 0.0
        %5866 = vmatpush1.xpose.msra.mxu0 0.0
        %5867 = vmatprep.subr.mxu0 0.0
        %5868 = vmatpush1.xpose.msra.mxu0 0.0
        %5869 = vmatprep.subr.mxu0 0.0
        %5870 = vmatpush1.xpose.msra.mxu0 0.0
        %5871 = vmatprep.subr.mxu0 0.0
        %5872 = vmatpush1.xpose.msra.mxu0 0.0
        %5873 = vmatprep.subr.mxu0 0.0
        %5874 = vmatpush1.xpose.msra.mxu0 0.0
        %5875 = vmatprep.subr.mxu0 0.0
        %5876 = vmatpush1.xpose.msra.mxu0 0.0
        %5877 = vmatprep.mubr.f32.mxu0 0.0
        %v5878 = vand.u32 %v5627, 4294901760
        %v5879 = vsub.f32 %v5627, %v5878
        %5880 = vmatmul.mubr.f32.gmra.mrb[0].mxu0 %v5879
        %v5881 = vpop.f32.mrb[0].mxu0
        %v5882 = vadd.f32 %v5800, %v5881
        %v5883 = vpop.f32.mrb[0].mxu0
        %5884 = vmatprep.mubr.f32.mxu0 0.0
        %v5885 = vand.u32 %v5629, 4294901760
        %v5886 = vsub.f32 %v5629, %v5885
        %5887 = vmatmul.mubr.f32.gmra.mrb[0].mxu0 %v5886
        %v5888 = vpop.f32.mrb[0].mxu0
        %v5889 = vadd.f32 %v5806, %v5888
        %v5890 = vpop.f32.mrb[0].mxu0
        %5891 = vdwg.mxu0
        %5892 = vmatprep.subr.mxu0 0.0
        %v5893 = vand.u32 %v5631, 4294901760
        %5894 = vmatpush1.xpose.msra.mxu0 %v5893
        %5895 = vmatprep.subr.mxu0 0.0
        %v5896 = vand.u32 %v5633, 4294901760
        %5897 = vmatpush1.xpose.msra.mxu0 %v5896
        %5898 = vmatprep.subr.mxu0 0.0
        %5899 = vmatpush1.xpose.msra.mxu0 0.0
        %5900 = vmatprep.subr.mxu0 0.0
        %5901 = vmatpush1.xpose.msra.mxu0 0.0
        %5902 = vmatprep.subr.mxu0 0.0
        %5903 = vmatpush1.xpose.msra.mxu0 0.0
        %5904 = vmatprep.subr.mxu0 0.0
        %5905 = vmatpush1.xpose.msra.mxu0 0.0
        %5906 = vmatprep.subr.mxu0 0.0
        %5907 = vmatpush1.xpose.msra.mxu0 0.0
        %5908 = vmatprep.subr.mxu0 0.0
        %5909 = vmatpush1.xpose.msra.mxu0 0.0
        %5910 = vmatprep.subr.mxu0 0.0
        %5911 = vmatpush1.xpose.msra.mxu0 0.0
        %5912 = vmatprep.subr.mxu0 0.0
        %5913 = vmatpush1.xpose.msra.mxu0 0.0
        %5914 = vmatprep.subr.mxu0 0.0
        %5915 = vmatpush1.xpose.msra.mxu0 0.0
        %5916 = vmatprep.subr.mxu0 0.0
        %5917 = vmatpush1.xpose.msra.mxu0 0.0
        %5918 = vmatprep.subr.mxu0 0.0
        %5919 = vmatpush1.xpose.msra.mxu0 0.0
        %5920 = vmatprep.subr.mxu0 0.0
        %5921 = vmatpush1.xpose.msra.mxu0 0.0
        %5922 = vmatprep.subr.mxu0 0.0
        %5923 = vmatpush1.xpose.msra.mxu0 0.0
        %5924 = vmatprep.subr.mxu0 0.0
        %5925 = vmatpush1.xpose.msra.mxu0 0.0
        %5926 = vmatprep.subr.mxu0 0.0
        %5927 = vmatpush1.xpose.msra.mxu0 0.0
        %5928 = vmatprep.subr.mxu0 0.0
        %5929 = vmatpush1.xpose.msra.mxu0 0.0
        %5930 = vmatprep.subr.mxu0 0.0
        %5931 = vmatpush1.xpose.msra.mxu0 0.0
        %5932 = vmatprep.subr.mxu0 0.0
        %5933 = vmatpush1.xpose.msra.mxu0 0.0
        %5934 = vmatprep.subr.mxu0 0.0
        %5935 = vmatpush1.xpose.msra.mxu0 0.0
        %5936 = vmatprep.subr.mxu0 0.0
        %5937 = vmatpush1.xpose.msra.mxu0 0.0
        %5938 = vmatprep.subr.mxu0 0.0
        %5939 = vmatpush1.xpose.msra.mxu0 0.0
        %5940 = vmatprep.subr.mxu0 0.0
        %5941 = vmatpush1.xpose.msra.mxu0 0.0
        %5942 = vmatprep.subr.mxu0 0.0
        %5943 = vmatpush1.xpose.msra.mxu0 0.0
        %5944 = vmatprep.subr.mxu0 0.0
        %5945 = vmatpush1.xpose.msra.mxu0 0.0
        %5946 = vmatprep.subr.mxu0 0.0
        %5947 = vmatpush1.xpose.msra.mxu0 0.0
        %5948 = vmatprep.subr.mxu0 0.0
        %5949 = vmatpush1.xpose.msra.mxu0 0.0
        %5950 = vmatprep.subr.mxu0 0.0
        %5951 = vmatpush1.xpose.msra.mxu0 0.0
        %5952 = vmatprep.subr.mxu0 0.0
        %5953 = vmatpush1.xpose.msra.mxu0 0.0
        %5954 = vmatprep.subr.mxu0 0.0
        %5955 = vmatpush1.xpose.msra.mxu0 0.0
        %5956 = vmatprep.subr.mxu0 0.0
        %5957 = vmatpush1.xpose.msra.mxu0 0.0
        %5958 = vmatprep.mubr.f32.mxu0 0.0
        %v5959 = vand.u32 %v5627, 4294901760
        %v5960 = vsub.f32 %v5627, %v5959
        %v5961 = vand.u32 %v5960, 4294901760
        %5962 = vmatmul.mubr.f32.gmra.mrb[0].mxu0 %v5961
        %v5963 = vpop.f32.mrb[0].mxu0
        %v5964 = vadd.f32 %v5882, %v5963
        %v5965 = vpop.f32.mrb[0].mxu0
        %5966 = vmatprep.mubr.f32.mxu0 0.0
        %v5967 = vand.u32 %v5629, 4294901760
        %v5968 = vsub.f32 %v5629, %v5967
        %v5969 = vand.u32 %v5968, 4294901760
        %5970 = vmatmul.mubr.f32.gmra.mrb[0].mxu0 %v5969
        %v5971 = vpop.f32.mrb[0].mxu0
        %v5972 = vadd.f32 %v5889, %v5971
        %v5973 = vpop.f32.mrb[0].mxu0
        %5974 = vdwg.mxu0
        %5975 = vmatprep.subr.mxu0 0.0
        %v5976 = vand.u32 %v5631, 4294901760
        %v5977 = vsub.f32 %v5631, %v5976
        %v5978 = vand.u32 %v5977, 4294901760
        %5979 = vmatpush1.xpose.msra.mxu0 %v5978
        %5980 = vmatprep.subr.mxu0 0.0
        %v5981 = vand.u32 %v5633, 4294901760
        %v5982 = vsub.f32 %v5633, %v5981
        %v5983 = vand.u32 %v5982, 4294901760
        %5984 = vmatpush1.xpose.msra.mxu0 %v5983
        %5985 = vmatprep.subr.mxu0 0.0
        %5986 = vmatpush1.xpose.msra.mxu0 0.0
        %5987 = vmatprep.subr.mxu0 0.0
        %5988 = vmatpush1.xpose.msra.mxu0 0.0
        %5989 = vmatprep.subr.mxu0 0.0
        %5990 = vmatpush1.xpose.msra.mxu0 0.0
        %5991 = vmatprep.subr.mxu0 0.0
        %5992 = vmatpush1.xpose.msra.mxu0 0.0
        %5993 = vmatprep.subr.mxu0 0.0
        %5994 = vmatpush1.xpose.msra.mxu0 0.0
        %5995 = vmatprep.subr.mxu0 0.0
        %5996 = vmatpush1.xpose.msra.mxu0 0.0
        %5997 = vmatprep.subr.mxu0 0.0
        %5998 = vmatpush1.xpose.msra.mxu0 0.0
        %5999 = vmatprep.subr.mxu0 0.0
        %6000 = vmatpush1.xpose.msra.mxu0 0.0
        %6001 = vmatprep.subr.mxu0 0.0
        %6002 = vmatpush1.xpose.msra.mxu0 0.0
        %6003 = vmatprep.subr.mxu0 0.0
        %6004 = vmatpush1.xpose.msra.mxu0 0.0
        %6005 = vmatprep.subr.mxu0 0.0
        %6006 = vmatpush1.xpose.msra.mxu0 0.0
        %6007 = vmatprep.subr.mxu0 0.0
        %6008 = vmatpush1.xpose.msra.mxu0 0.0
        %6009 = vmatprep.subr.mxu0 0.0
        %6010 = vmatpush1.xpose.msra.mxu0 0.0
        %6011 = vmatprep.subr.mxu0 0.0
        %6012 = vmatpush1.xpose.msra.mxu0 0.0
        %6013 = vmatprep.subr.mxu0 0.0
        %6014 = vmatpush1.xpose.msra.mxu0 0.0
        %6015 = vmatprep.subr.mxu0 0.0
        %6016 = vmatpush1.xpose.msra.mxu0 0.0
        %6017 = vmatprep.subr.mxu0 0.0
        %6018 = vmatpush1.xpose.msra.mxu0 0.0
        %6019 = vmatprep.subr.mxu0 0.0
        %6020 = vmatpush1.xpose.msra.mxu0 0.0
        %6021 = vmatprep.subr.mxu0 0.0
        %6022 = vmatpush1.xpose.msra.mxu0 0.0
        %6023 = vmatprep.subr.mxu0 0.0
        %6024 = vmatpush1.xpose.msra.mxu0 0.0
        %6025 = vmatprep.subr.mxu0 0.0
        %6026 = vmatpush1.xpose.msra.mxu0 0.0
        %6027 = vmatprep.subr.mxu0 0.0
        %6028 = vmatpush1.xpose.msra.mxu0 0.0
        %6029 = vmatprep.subr.mxu0 0.0
        %6030 = vmatpush1.xpose.msra.mxu0 0.0
        %6031 = vmatprep.subr.mxu0 0.0
        %6032 = vmatpush1.xpose.msra.mxu0 0.0
        %6033 = vmatprep.subr.mxu0 0.0
        %6034 = vmatpush1.xpose.msra.mxu0 0.0
        %6035 = vmatprep.subr.mxu0 0.0
        %6036 = vmatpush1.xpose.msra.mxu0 0.0
        %6037 = vmatprep.subr.mxu0 0.0
        %6038 = vmatpush1.xpose.msra.mxu0 0.0
        %6039 = vmatprep.subr.mxu0 0.0
        %6040 = vmatpush1.xpose.msra.mxu0 0.0
        %6041 = vmatprep.subr.mxu0 0.0
        %6042 = vmatpush1.xpose.msra.mxu0 0.0
        %6043 = vmatprep.subr.mxu0 0.0
        %6044 = vmatpush1.xpose.msra.mxu0 0.0
        %6045 = vmatprep.mubr.f32.mxu0 0.0
        %v6046 = vand.u32 %v5627, 4294901760
        %6047 = vmatmul.mubr.f32.gmra.mrb[0].mxu0 %v6046
        %v6048 = vpop.f32.mrb[0].mxu0
        %v6049 = vadd.f32 %v5964, %v6048
        %v6050 = vpop.f32.mrb[0].mxu0
        %6051 = vmatprep.mubr.f32.mxu0 0.0
        %v6052 = vand.u32 %v5629, 4294901760
        %6053 = vmatmul.mubr.f32.gmra.mrb[0].mxu0 %v6052
        %v6054 = vpop.f32.mrb[0].mxu0
        %v6055 = vadd.f32 %v5972, %v6054
        %v6056 = vpop.f32.mrb[0].mxu0
        %6057 = vdwg.mxu0
        %6058 = vmatprep.subr.mxu0 0.0
        %v6059 = vand.u32 %v5631, 4294901760
        %6060 = vmatpush1.xpose.msra.mxu0 %v6059
        %6061 = vmatprep.subr.mxu0 0.0
        %v6062 = vand.u32 %v5633, 4294901760
        %6063 = vmatpush1.xpose.msra.mxu0 %v6062
        %6064 = vmatprep.subr.mxu0 0.0
        %6065 = vmatpush1.xpose.msra.mxu0 0.0
        %6066 = vmatprep.subr.mxu0 0.0
        %6067 = vmatpush1.xpose.msra.mxu0 0.0
        %6068 = vmatprep.subr.mxu0 0.0
        %6069 = vmatpush1.xpose.msra.mxu0 0.0
        %6070 = vmatprep.subr.mxu0 0.0
        %6071 = vmatpush1.xpose.msra.mxu0 0.0
        %6072 = vmatprep.subr.mxu0 0.0
        %6073 = vmatpush1.xpose.msra.mxu0 0.0
        %6074 = vmatprep.subr.mxu0 0.0
        %6075 = vmatpush1.xpose.msra.mxu0 0.0
        %6076 = vmatprep.subr.mxu0 0.0
        %6077 = vmatpush1.xpose.msra.mxu0 0.0
        %6078 = vmatprep.subr.mxu0 0.0
        %6079 = vmatpush1.xpose.msra.mxu0 0.0
        %6080 = vmatprep.subr.mxu0 0.0
        %6081 = vmatpush1.xpose.msra.mxu0 0.0
        %6082 = vmatprep.subr.mxu0 0.0
        %6083 = vmatpush1.xpose.msra.mxu0 0.0
        %6084 = vmatprep.subr.mxu0 0.0
        %6085 = vmatpush1.xpose.msra.mxu0 0.0
        %6086 = vmatprep.subr.mxu0 0.0
        %6087 = vmatpush1.xpose.msra.mxu0 0.0
        %6088 = vmatprep.subr.mxu0 0.0
        %6089 = vmatpush1.xpose.msra.mxu0 0.0
        %6090 = vmatprep.subr.mxu0 0.0
        %6091 = vmatpush1.xpose.msra.mxu0 0.0
        %6092 = vmatprep.subr.mxu0 0.0
        %6093 = vmatpush1.xpose.msra.mxu0 0.0
        %6094 = vmatprep.subr.mxu0 0.0
        %6095 = vmatpush1.xpose.msra.mxu0 0.0
        %6096 = vmatprep.subr.mxu0 0.0
        %6097 = vmatpush1.xpose.msra.mxu0 0.0
        %6098 = vmatprep.subr.mxu0 0.0
        %6099 = vmatpush1.xpose.msra.mxu0 0.0
        %6100 = vmatprep.subr.mxu0 0.0
        %6101 = vmatpush1.xpose.msra.mxu0 0.0
        %6102 = vmatprep.subr.mxu0 0.0
        %6103 = vmatpush1.xpose.msra.mxu0 0.0
        %6104 = vmatprep.subr.mxu0 0.0
        %6105 = vmatpush1.xpose.msra.mxu0 0.0
        %6106 = vmatprep.subr.mxu0 0.0
        %6107 = vmatpush1.xpose.msra.mxu0 0.0
        %6108 = vmatprep.subr.mxu0 0.0
        %6109 = vmatpush1.xpose.msra.mxu0 0.0
        %6110 = vmatprep.subr.mxu0 0.0
        %6111 = vmatpush1.xpose.msra.mxu0 0.0
        %6112 = vmatprep.subr.mxu0 0.0
        %6113 = vmatpush1.xpose.msra.mxu0 0.0
        %6114 = vmatprep.subr.mxu0 0.0
        %6115 = vmatpush1.xpose.msra.mxu0 0.0
        %6116 = vmatprep.subr.mxu0 0.0
        %6117 = vmatpush1.xpose.msra.mxu0 0.0
        %6118 = vmatprep.subr.mxu0 0.0
        %6119 = vmatpush1.xpose.msra.mxu0 0.0
        %6120 = vmatprep.subr.mxu0 0.0
        %6121 = vmatpush1.xpose.msra.mxu0 0.0
        %6122 = vmatprep.subr.mxu0 0.0
        %6123 = vmatpush1.xpose.msra.mxu0 0.0
        %6124 = vmatprep.mubr.f32.mxu0 0.0
        %v6125 = vand.u32 %v5627, 4294901760
        %6126 = vmatmul.mubr.f32.gmra.mrb[0].mxu0 %v6125
        %v6127 = vpop.f32.mrb[0].mxu0
        %v6128 = vadd.f32 %v6049, %v6127
        %v6129 = vpop.f32.mrb[0].mxu0
        %6130 = vmatprep.mubr.f32.mxu0 0.0
        %v6131 = vand.u32 %v5629, 4294901760
        %6132 = vmatmul.mubr.f32.gmra.mrb[0].mxu0 %v6131
        %v6133 = vpop.f32.mrb[0].mxu0
        %v6134 = vadd.f32 %v6055, %v6133
        %v6135 = vpop.f32.mrb[0].mxu0
        %6136 = vdwg.mxu0
        %v6137 = vmul.f32 %v6128, 0.17677669
        %v6138 = vmul.f32 %v6134, 0.17677669
        %v6139 = vadd.f32 %v6137, %v4538
        %v6140 = vadd.f32 %v6138, %v4538
        %v6141 = vsel %vm4542, %v6139, -inf
        %6142 = vmax.xlane.f32.xlu0 %v6141
        %v6143 = vpop.xlane.xlu0 %6142
        %v6144 = vsel %vm4542, %v6140, -inf
        %6145 = vmax.xlane.f32.xlu0 %v6144
        %v6146 = vpop.xlane.xlu0 %6145
        %v6147 = vsub.f32 %v6139, %v6143
        %v6148 = vsub.f32 %v6140, %v6146
        %v6149 = vmul.f32 %v6147, 1.442695
        %v6150 = vpow.pop %v6149
        %v6151 = vmul.f32 %v6148, 1.442695
        %v6152 = vpow.pop %v6151
        %v6153 = vsel %vm4542, %v6150, 0.0
        %6154 = vadd.xlane.f32.xlu0 %v6153
        %v6155 = vpop.xlane.xlu0 %6154
        %v6156 = vsel %vm4542, %v6152, 0.0
        %6157 = vadd.xlane.f32.xlu0 %v6156
        %v6158 = vpop.xlane.xlu0 %6157
        %v6159 = vrcp.pop %v6155
        %v6160 = vmul.f32 %v6150, %v6159
        %v6161 = vrcp.pop %v6158
        %v6162 = vmul.f32 %v6152, %v6161
        %6165 = vrot.lane.b32.xlu0 %v4005, 96
        %v6166 = vpop.permute.xlu0 %6165
        %6167 = vrot.lane.b32.xlu0 %v4012, 96
        %v6168 = vpop.permute.xlu0 %6167
        %v6172 = vsel %vm4542, %v6160, 0
        %v6175 = vsel %vm4542, %v6162, 0
        %6177 = vmatprep.subr.mxu0 0.0
        %v6178 = vand.u32 %v6166, 4294901760
        %6179 = vmatpush1.msra.mxu0 %v6178
        %6180 = vmatprep.subr.mxu0 0.0
        %v6181 = vand.u32 %v6168, 4294901760
        %6182 = vmatpush1.msra.mxu0 %v6181
        %6183 = vmatprep.subr.mxu0 0.0
        %6184 = vmatpush1.msra.mxu0 0.0
        %6185 = vmatprep.subr.mxu0 0.0
        %6186 = vmatpush1.msra.mxu0 0.0
        %6187 = vmatprep.subr.mxu0 0.0
        %6188 = vmatpush1.msra.mxu0 0.0
        %6189 = vmatprep.subr.mxu0 0.0
        %6190 = vmatpush1.msra.mxu0 0.0
        %6191 = vmatprep.subr.mxu0 0.0
        %6192 = vmatpush1.msra.mxu0 0.0
        %6193 = vmatprep.subr.mxu0 0.0
        %6194 = vmatpush1.msra.mxu0 0.0
        %6195 = vmatprep.subr.mxu0 0.0
        %6196 = vmatpush1.msra.mxu0 0.0
        %6197 = vmatprep.subr.mxu0 0.0
        %6198 = vmatpush1.msra.mxu0 0.0
        %6199 = vmatprep.subr.mxu0 0.0
        %6200 = vmatpush1.msra.mxu0 0.0
        %6201 = vmatprep.subr.mxu0 0.0
        %6202 = vmatpush1.msra.mxu0 0.0
        %6203 = vmatprep.subr.mxu0 0.0
        %6204 = vmatpush1.msra.mxu0 0.0
        %6205 = vmatprep.subr.mxu0 0.0
        %6206 = vmatpush1.msra.mxu0 0.0
        %6207 = vmatprep.subr.mxu0 0.0
        %6208 = vmatpush1.msra.mxu0 0.0
        %6209 = vmatprep.subr.mxu0 0.0
        %6210 = vmatpush1.msra.mxu0 0.0
        %6211 = vmatprep.subr.mxu0 0.0
        %6212 = vmatpush1.msra.mxu0 0.0
        %6213 = vmatprep.subr.mxu0 0.0
        %6214 = vmatpush1.msra.mxu0 0.0
        %6215 = vmatprep.subr.mxu0 0.0
        %6216 = vmatpush1.msra.mxu0 0.0
        %6217 = vmatprep.subr.mxu0 0.0
        %6218 = vmatpush1.msra.mxu0 0.0
        %6219 = vmatprep.subr.mxu0 0.0
        %6220 = vmatpush1.msra.mxu0 0.0
        %6221 = vmatprep.subr.mxu0 0.0
        %6222 = vmatpush1.msra.mxu0 0.0
        %6223 = vmatprep.subr.mxu0 0.0
        %6224 = vmatpush1.msra.mxu0 0.0
        %6225 = vmatprep.subr.mxu0 0.0
        %6226 = vmatpush1.msra.mxu0 0.0
        %6227 = vmatprep.subr.mxu0 0.0
        %6228 = vmatpush1.msra.mxu0 0.0
        %6229 = vmatprep.subr.mxu0 0.0
        %6230 = vmatpush1.msra.mxu0 0.0
        %6231 = vmatprep.subr.mxu0 0.0
        %6232 = vmatpush1.msra.mxu0 0.0
        %6233 = vmatprep.subr.mxu0 0.0
        %6234 = vmatpush1.msra.mxu0 0.0
        %6235 = vmatprep.subr.mxu0 0.0
        %6236 = vmatpush1.msra.mxu0 0.0
        %6237 = vmatprep.subr.mxu0 0.0
        %6238 = vmatpush1.msra.mxu0 0.0
        %6239 = vmatprep.subr.mxu0 0.0
        %6240 = vmatpush1.msra.mxu0 0.0
        %6241 = vmatprep.subr.mxu0 0.0
        %6242 = vmatpush1.msra.mxu0 0.0
        %6243 = vmatprep.mubr.f32.mxu0 0.0
        %v6244 = vand.u32 %v6172, 4294901760
        %v6245 = vsub.f32 %v6172, %v6244
        %v6246 = vand.u32 %v6245, 4294901760
        %v6247 = vsub.f32 %v6245, %v6246
        %v6248 = vand.u32 %v6247, 4294901760
        %6249 = vmatmul.mubr.f32.gmra.mrb[0].mxu0 %v6248
        %v6250 = vpop.f32.mrb[0].mxu0
        %v6251 = vadd.f32 0.0, %v6250
        %v6252 = vpop.f32.mrb[0].mxu0
        %6253 = vmatprep.mubr.f32.mxu0 0.0
        %v6254 = vand.u32 %v6175, 4294901760
        %v6255 = vsub.f32 %v6175, %v6254
        %v6256 = vand.u32 %v6255, 4294901760
        %v6257 = vsub.f32 %v6255, %v6256
        %v6258 = vand.u32 %v6257, 4294901760
        %6259 = vmatmul.mubr.f32.gmra.mrb[0].mxu0 %v6258
        %v6260 = vpop.f32.mrb[0].mxu0
        %v6261 = vadd.f32 0.0, %v6260
        %v6262 = vpop.f32.mrb[0].mxu0
        %6263 = vdwg.mxu0
        %6264 = vmatprep.subr.mxu0 0.0
        %v6265 = vand.u32 %v6166, 4294901760
        %v6266 = vsub.f32 %v6166, %v6265
        %v6267 = vand.u32 %v6266, 4294901760
        %v6268 = vsub.f32 %v6266, %v6267
        %v6269 = vand.u32 %v6268, 4294901760
        %6270 = vmatpush1.msra.mxu0 %v6269
        %6271 = vmatprep.subr.mxu0 0.0
        %v6272 = vand.u32 %v6168, 4294901760
        %v6273 = vsub.f32 %v6168, %v6272
        %v6274 = vand.u32 %v6273, 4294901760
        %v6275 = vsub.f32 %v6273, %v6274
        %v6276 = vand.u32 %v6275, 4294901760
        %6277 = vmatpush1.msra.mxu0 %v6276
        %6278 = vmatprep.subr.mxu0 0.0
        %6279 = vmatpush1.msra.mxu0 0.0
        %6280 = vmatprep.subr.mxu0 0.0
        %6281 = vmatpush1.msra.mxu0 0.0
        %6282 = vmatprep.subr.mxu0 0.0
        %6283 = vmatpush1.msra.mxu0 0.0
        %6284 = vmatprep.subr.mxu0 0.0
        %6285 = vmatpush1.msra.mxu0 0.0
        %6286 = vmatprep.subr.mxu0 0.0
        %6287 = vmatpush1.msra.mxu0 0.0
        %6288 = vmatprep.subr.mxu0 0.0
        %6289 = vmatpush1.msra.mxu0 0.0
        %6290 = vmatprep.subr.mxu0 0.0
        %6291 = vmatpush1.msra.mxu0 0.0
        %6292 = vmatprep.subr.mxu0 0.0
        %6293 = vmatpush1.msra.mxu0 0.0
        %6294 = vmatprep.subr.mxu0 0.0
        %6295 = vmatpush1.msra.mxu0 0.0
        %6296 = vmatprep.subr.mxu0 0.0
        %6297 = vmatpush1.msra.mxu0 0.0
        %6298 = vmatprep.subr.mxu0 0.0
        %6299 = vmatpush1.msra.mxu0 0.0
        %6300 = vmatprep.subr.mxu0 0.0
        %6301 = vmatpush1.msra.mxu0 0.0
        %6302 = vmatprep.subr.mxu0 0.0
        %6303 = vmatpush1.msra.mxu0 0.0
        %6304 = vmatprep.subr.mxu0 0.0
        %6305 = vmatpush1.msra.mxu0 0.0
        %6306 = vmatprep.subr.mxu0 0.0
        %6307 = vmatpush1.msra.mxu0 0.0
        %6308 = vmatprep.subr.mxu0 0.0
        %6309 = vmatpush1.msra.mxu0 0.0
        %6310 = vmatprep.subr.mxu0 0.0
        %6311 = vmatpush1.msra.mxu0 0.0
        %6312 = vmatprep.subr.mxu0 0.0
        %6313 = vmatpush1.msra.mxu0 0.0
        %6314 = vmatprep.subr.mxu0 0.0
        %6315 = vmatpush1.msra.mxu0 0.0
        %6316 = vmatprep.subr.mxu0 0.0
        %6317 = vmatpush1.msra.mxu0 0.0
        %6318 = vmatprep.subr.mxu0 0.0
        %6319 = vmatpush1.msra.mxu0 0.0
        %6320 = vmatprep.subr.mxu0 0.0
        %6321 = vmatpush1.msra.mxu0 0.0
        %6322 = vmatprep.subr.mxu0 0.0
        %6323 = vmatpush1.msra.mxu0 0.0
        %6324 = vmatprep.subr.mxu0 0.0
        %6325 = vmatpush1.msra.mxu0 0.0
        %6326 = vmatprep.subr.mxu0 0.0
        %6327 = vmatpush1.msra.mxu0 0.0
        %6328 = vmatprep.subr.mxu0 0.0
        %6329 = vmatpush1.msra.mxu0 0.0
        %6330 = vmatprep.subr.mxu0 0.0
        %6331 = vmatpush1.msra.mxu0 0.0
        %6332 = vmatprep.subr.mxu0 0.0
        %6333 = vmatpush1.msra.mxu0 0.0
        %6334 = vmatprep.subr.mxu0 0.0
        %6335 = vmatpush1.msra.mxu0 0.0
        %6336 = vmatprep.subr.mxu0 0.0
        %6337 = vmatpush1.msra.mxu0 0.0
        %6338 = vmatprep.mubr.f32.mxu0 0.0
        %v6339 = vand.u32 %v6172, 4294901760
        %6340 = vmatmul.mubr.f32.gmra.mrb[0].mxu0 %v6339
        %v6341 = vpop.f32.mrb[0].mxu0
        %v6342 = vadd.f32 %v6251, %v6341
        %v6343 = vpop.f32.mrb[0].mxu0
        %6344 = vmatprep.mubr.f32.mxu0 0.0
        %v6345 = vand.u32 %v6175, 4294901760
        %6346 = vmatmul.mubr.f32.gmra.mrb[0].mxu0 %v6345
        %v6347 = vpop.f32.mrb[0].mxu0
        %v6348 = vadd.f32 %v6261, %v6347
        %v6349 = vpop.f32.mrb[0].mxu0
        %6350 = vdwg.mxu0
        %6351 = vmatprep.subr.mxu0 0.0
        %v6352 = vand.u32 %v6166, 4294901760
        %v6353 = vsub.f32 %v6166, %v6352
        %6354 = vmatpush1.msra.mxu0 %v6353
        %6355 = vmatprep.subr.mxu0 0.0
        %v6356 = vand.u32 %v6168, 4294901760
        %v6357 = vsub.f32 %v6168, %v6356
        %6358 = vmatpush1.msra.mxu0 %v6357
        %6359 = vmatprep.subr.mxu0 0.0
        %6360 = vmatpush1.msra.mxu0 0.0
        %6361 = vmatprep.subr.mxu0 0.0
        %6362 = vmatpush1.msra.mxu0 0.0
        %6363 = vmatprep.subr.mxu0 0.0
        %6364 = vmatpush1.msra.mxu0 0.0
        %6365 = vmatprep.subr.mxu0 0.0
        %6366 = vmatpush1.msra.mxu0 0.0
        %6367 = vmatprep.subr.mxu0 0.0
        %6368 = vmatpush1.msra.mxu0 0.0
        %6369 = vmatprep.subr.mxu0 0.0
        %6370 = vmatpush1.msra.mxu0 0.0
        %6371 = vmatprep.subr.mxu0 0.0
        %6372 = vmatpush1.msra.mxu0 0.0
        %6373 = vmatprep.subr.mxu0 0.0
        %6374 = vmatpush1.msra.mxu0 0.0
        %6375 = vmatprep.subr.mxu0 0.0
        %6376 = vmatpush1.msra.mxu0 0.0
        %6377 = vmatprep.subr.mxu0 0.0
        %6378 = vmatpush1.msra.mxu0 0.0
        %6379 = vmatprep.subr.mxu0 0.0
        %6380 = vmatpush1.msra.mxu0 0.0
        %6381 = vmatprep.subr.mxu0 0.0
        %6382 = vmatpush1.msra.mxu0 0.0
        %6383 = vmatprep.subr.mxu0 0.0
        %6384 = vmatpush1.msra.mxu0 0.0
        %6385 = vmatprep.subr.mxu0 0.0
        %6386 = vmatpush1.msra.mxu0 0.0
        %6387 = vmatprep.subr.mxu0 0.0
        %6388 = vmatpush1.msra.mxu0 0.0
        %6389 = vmatprep.subr.mxu0 0.0
        %6390 = vmatpush1.msra.mxu0 0.0
        %6391 = vmatprep.subr.mxu0 0.0
        %6392 = vmatpush1.msra.mxu0 0.0
        %6393 = vmatprep.subr.mxu0 0.0
        %6394 = vmatpush1.msra.mxu0 0.0
        %6395 = vmatprep.subr.mxu0 0.0
        %6396 = vmatpush1.msra.mxu0 0.0
        %6397 = vmatprep.subr.mxu0 0.0
        %6398 = vmatpush1.msra.mxu0 0.0
        %6399 = vmatprep.subr.mxu0 0.0
        %6400 = vmatpush1.msra.mxu0 0.0
        %6401 = vmatprep.subr.mxu0 0.0
        %6402 = vmatpush1.msra.mxu0 0.0
        %6403 = vmatprep.subr.mxu0 0.0
        %6404 = vmatpush1.msra.mxu0 0.0
        %6405 = vmatprep.subr.mxu0 0.0
        %6406 = vmatpush1.msra.mxu0 0.0
        %6407 = vmatprep.subr.mxu0 0.0
        %6408 = vmatpush1.msra.mxu0 0.0
        %6409 = vmatprep.subr.mxu0 0.0
        %6410 = vmatpush1.msra.mxu0 0.0
        %6411 = vmatprep.subr.mxu0 0.0
        %6412 = vmatpush1.msra.mxu0 0.0
        %6413 = vmatprep.subr.mxu0 0.0
        %6414 = vmatpush1.msra.mxu0 0.0
        %6415 = vmatprep.subr.mxu0 0.0
        %6416 = vmatpush1.msra.mxu0 0.0
        %6417 = vmatprep.subr.mxu0 0.0
        %6418 = vmatpush1.msra.mxu0 0.0
        %6419 = vmatprep.mubr.f32.mxu0 0.0
        %v6420 = vand.u32 %v6172, 4294901760
        %v6421 = vsub.f32 %v6172, %v6420
        %6422 = vmatmul.mubr.f32.gmra.mrb[0].mxu0 %v6421
        %v6423 = vpop.f32.mrb[0].mxu0
        %v6424 = vadd.f32 %v6342, %v6423
        %v6425 = vpop.f32.mrb[0].mxu0
        %6426 = vmatprep.mubr.f32.mxu0 0.0
        %v6427 = vand.u32 %v6175, 4294901760
        %v6428 = vsub.f32 %v6175, %v6427
        %6429 = vmatmul.mubr.f32.gmra.mrb[0].mxu0 %v6428
        %v6430 = vpop.f32.mrb[0].mxu0
        %v6431 = vadd.f32 %v6348, %v6430
        %v6432 = vpop.f32.mrb[0].mxu0
        %6433 = vdwg.mxu0
        %6434 = vmatprep.subr.mxu0 0.0
        %v6435 = vand.u32 %v6166, 4294901760
        %6436 = vmatpush1.msra.mxu0 %v6435
        %6437 = vmatprep.subr.mxu0 0.0
        %v6438 = vand.u32 %v6168, 4294901760
        %6439 = vmatpush1.msra.mxu0 %v6438
        %6440 = vmatprep.subr.mxu0 0.0
        %6441 = vmatpush1.msra.mxu0 0.0
        %6442 = vmatprep.subr.mxu0 0.0
        %6443 = vmatpush1.msra.mxu0 0.0
        %6444 = vmatprep.subr.mxu0 0.0
        %6445 = vmatpush1.msra.mxu0 0.0
        %6446 = vmatprep.subr.mxu0 0.0
        %6447 = vmatpush1.msra.mxu0 0.0
        %6448 = vmatprep.subr.mxu0 0.0
        %6449 = vmatpush1.msra.mxu0 0.0
        %6450 = vmatprep.subr.mxu0 0.0
        %6451 = vmatpush1.msra.mxu0 0.0
        %6452 = vmatprep.subr.mxu0 0.0
        %6453 = vmatpush1.msra.mxu0 0.0
        %6454 = vmatprep.subr.mxu0 0.0
        %6455 = vmatpush1.msra.mxu0 0.0
        %6456 = vmatprep.subr.mxu0 0.0
        %6457 = vmatpush1.msra.mxu0 0.0
        %6458 = vmatprep.subr.mxu0 0.0
        %6459 = vmatpush1.msra.mxu0 0.0
        %6460 = vmatprep.subr.mxu0 0.0
        %6461 = vmatpush1.msra.mxu0 0.0
        %6462 = vmatprep.subr.mxu0 0.0
        %6463 = vmatpush1.msra.mxu0 0.0
        %6464 = vmatprep.subr.mxu0 0.0
        %6465 = vmatpush1.msra.mxu0 0.0
        %6466 = vmatprep.subr.mxu0 0.0
        %6467 = vmatpush1.msra.mxu0 0.0
        %6468 = vmatprep.subr.mxu0 0.0
        %6469 = vmatpush1.msra.mxu0 0.0
        %6470 = vmatprep.subr.mxu0 0.0
        %6471 = vmatpush1.msra.mxu0 0.0
        %6472 = vmatprep.subr.mxu0 0.0
        %6473 = vmatpush1.msra.mxu0 0.0
        %6474 = vmatprep.subr.mxu0 0.0
        %6475 = vmatpush1.msra.mxu0 0.0
        %6476 = vmatprep.subr.mxu0 0.0
        %6477 = vmatpush1.msra.mxu0 0.0
        %6478 = vmatprep.subr.mxu0 0.0
        %6479 = vmatpush1.msra.mxu0 0.0
        %6480 = vmatprep.subr.mxu0 0.0
        %6481 = vmatpush1.msra.mxu0 0.0
        %6482 = vmatprep.subr.mxu0 0.0
        %6483 = vmatpush1.msra.mxu0 0.0
        %6484 = vmatprep.subr.mxu0 0.0
        %6485 = vmatpush1.msra.mxu0 0.0
        %6486 = vmatprep.subr.mxu0 0.0
        %6487 = vmatpush1.msra.mxu0 0.0
        %6488 = vmatprep.subr.mxu0 0.0
        %6489 = vmatpush1.msra.mxu0 0.0
        %6490 = vmatprep.subr.mxu0 0.0
        %6491 = vmatpush1.msra.mxu0 0.0
        %6492 = vmatprep.subr.mxu0 0.0
        %6493 = vmatpush1.msra.mxu0 0.0
        %6494 = vmatprep.subr.mxu0 0.0
        %6495 = vmatpush1.msra.mxu0 0.0
        %6496 = vmatprep.subr.mxu0 0.0
        %6497 = vmatpush1.msra.mxu0 0.0
        %6498 = vmatprep.subr.mxu0 0.0
        %6499 = vmatpush1.msra.mxu0 0.0
        %6500 = vmatprep.mubr.f32.mxu0 0.0
        %v6501 = vand.u32 %v6172, 4294901760
        %v6502 = vsub.f32 %v6172, %v6501
        %v6503 = vand.u32 %v6502, 4294901760
        %6504 = vmatmul.mubr.f32.gmra.mrb[0].mxu0 %v6503
        %v6505 = vpop.f32.mrb[0].mxu0
        %v6506 = vadd.f32 %v6424, %v6505
        %v6507 = vpop.f32.mrb[0].mxu0
        %6508 = vmatprep.mubr.f32.mxu0 0.0
        %v6509 = vand.u32 %v6175, 4294901760
        %v6510 = vsub.f32 %v6175, %v6509
        %v6511 = vand.u32 %v6510, 4294901760
        %6512 = vmatmul.mubr.f32.gmra.mrb[0].mxu0 %v6511
        %v6513 = vpop.f32.mrb[0].mxu0
        %v6514 = vadd.f32 %v6431, %v6513
        %v6515 = vpop.f32.mrb[0].mxu0
        %6516 = vdwg.mxu0
        %6517 = vmatprep.subr.mxu0 0.0
        %v6518 = vand.u32 %v6166, 4294901760
        %v6519 = vsub.f32 %v6166, %v6518
        %v6520 = vand.u32 %v6519, 4294901760
        %6521 = vmatpush1.msra.mxu0 %v6520
        %6522 = vmatprep.subr.mxu0 0.0
        %v6523 = vand.u32 %v6168, 4294901760
        %v6524 = vsub.f32 %v6168, %v6523
        %v6525 = vand.u32 %v6524, 4294901760
        %6526 = vmatpush1.msra.mxu0 %v6525
        %6527 = vmatprep.subr.mxu0 0.0
        %6528 = vmatpush1.msra.mxu0 0.0
        %6529 = vmatprep.subr.mxu0 0.0
        %6530 = vmatpush1.msra.mxu0 0.0
        %6531 = vmatprep.subr.mxu0 0.0
        %6532 = vmatpush1.msra.mxu0 0.0
        %6533 = vmatprep.subr.mxu0 0.0
        %6534 = vmatpush1.msra.mxu0 0.0
        %6535 = vmatprep.subr.mxu0 0.0
        %6536 = vmatpush1.msra.mxu0 0.0
        %6537 = vmatprep.subr.mxu0 0.0
        %6538 = vmatpush1.msra.mxu0 0.0
        %6539 = vmatprep.subr.mxu0 0.0
        %6540 = vmatpush1.msra.mxu0 0.0
        %6541 = vmatprep.subr.mxu0 0.0
        %6542 = vmatpush1.msra.mxu0 0.0
        %6543 = vmatprep.subr.mxu0 0.0
        %6544 = vmatpush1.msra.mxu0 0.0
        %6545 = vmatprep.subr.mxu0 0.0
        %6546 = vmatpush1.msra.mxu0 0.0
        %6547 = vmatprep.subr.mxu0 0.0
        %6548 = vmatpush1.msra.mxu0 0.0
        %6549 = vmatprep.subr.mxu0 0.0
        %6550 = vmatpush1.msra.mxu0 0.0
        %6551 = vmatprep.subr.mxu0 0.0
        %6552 = vmatpush1.msra.mxu0 0.0
        %6553 = vmatprep.subr.mxu0 0.0
        %6554 = vmatpush1.msra.mxu0 0.0
        %6555 = vmatprep.subr.mxu0 0.0
        %6556 = vmatpush1.msra.mxu0 0.0
        %6557 = vmatprep.subr.mxu0 0.0
        %6558 = vmatpush1.msra.mxu0 0.0
        %6559 = vmatprep.subr.mxu0 0.0
        %6560 = vmatpush1.msra.mxu0 0.0
        %6561 = vmatprep.subr.mxu0 0.0
        %6562 = vmatpush1.msra.mxu0 0.0
        %6563 = vmatprep.subr.mxu0 0.0
        %6564 = vmatpush1.msra.mxu0 0.0
        %6565 = vmatprep.subr.mxu0 0.0
        %6566 = vmatpush1.msra.mxu0 0.0
        %6567 = vmatprep.subr.mxu0 0.0
        %6568 = vmatpush1.msra.mxu0 0.0
        %6569 = vmatprep.subr.mxu0 0.0
        %6570 = vmatpush1.msra.mxu0 0.0
        %6571 = vmatprep.subr.mxu0 0.0
        %6572 = vmatpush1.msra.mxu0 0.0
        %6573 = vmatprep.subr.mxu0 0.0
        %6574 = vmatpush1.msra.mxu0 0.0
        %6575 = vmatprep.subr.mxu0 0.0
        %6576 = vmatpush1.msra.mxu0 0.0
        %6577 = vmatprep.subr.mxu0 0.0
        %6578 = vmatpush1.msra.mxu0 0.0
        %6579 = vmatprep.subr.mxu0 0.0
        %6580 = vmatpush1.msra.mxu0 0.0
        %6581 = vmatprep.subr.mxu0 0.0
        %6582 = vmatpush1.msra.mxu0 0.0
        %6583 = vmatprep.subr.mxu0 0.0
        %6584 = vmatpush1.msra.mxu0 0.0
        %6585 = vmatprep.subr.mxu0 0.0
        %6586 = vmatpush1.msra.mxu0 0.0
        %6587 = vmatprep.mubr.f32.mxu0 0.0
        %v6588 = vand.u32 %v6172, 4294901760
        %6589 = vmatmul.mubr.f32.gmra.mrb[0].mxu0 %v6588
        %v6590 = vpop.f32.mrb[0].mxu0
        %v6591 = vadd.f32 %v6506, %v6590
        %v6592 = vpop.f32.mrb[0].mxu0
        %6593 = vmatprep.mubr.f32.mxu0 0.0
        %v6594 = vand.u32 %v6175, 4294901760
        %6595 = vmatmul.mubr.f32.gmra.mrb[0].mxu0 %v6594
        %v6596 = vpop.f32.mrb[0].mxu0
        %v6597 = vadd.f32 %v6514, %v6596
        %v6598 = vpop.f32.mrb[0].mxu0
        %6599 = vdwg.mxu0
        %6600 = vmatprep.subr.mxu0 0.0
        %v6601 = vand.u32 %v6166, 4294901760
        %6602 = vmatpush1.msra.mxu0 %v6601
        %6603 = vmatprep.subr.mxu0 0.0
        %v6604 = vand.u32 %v6168, 4294901760
        %6605 = vmatpush1.msra.mxu0 %v6604
        %6606 = vmatprep.subr.mxu0 0.0
        %6607 = vmatpush1.msra.mxu0 0.0
        %6608 = vmatprep.subr.mxu0 0.0
        %6609 = vmatpush1.msra.mxu0 0.0
        %6610 = vmatprep.subr.mxu0 0.0
        %6611 = vmatpush1.msra.mxu0 0.0
        %6612 = vmatprep.subr.mxu0 0.0
        %6613 = vmatpush1.msra.mxu0 0.0
        %6614 = vmatprep.subr.mxu0 0.0
        %6615 = vmatpush1.msra.mxu0 0.0
        %6616 = vmatprep.subr.mxu0 0.0
        %6617 = vmatpush1.msra.mxu0 0.0
        %6618 = vmatprep.subr.mxu0 0.0
        %6619 = vmatpush1.msra.mxu0 0.0
        %6620 = vmatprep.subr.mxu0 0.0
        %6621 = vmatpush1.msra.mxu0 0.0
        %6622 = vmatprep.subr.mxu0 0.0
        %6623 = vmatpush1.msra.mxu0 0.0
        %6624 = vmatprep.subr.mxu0 0.0
        %6625 = vmatpush1.msra.mxu0 0.0
        %6626 = vmatprep.subr.mxu0 0.0
        %6627 = vmatpush1.msra.mxu0 0.0
        %6628 = vmatprep.subr.mxu0 0.0
        %6629 = vmatpush1.msra.mxu0 0.0
        %6630 = vmatprep.subr.mxu0 0.0
        %6631 = vmatpush1.msra.mxu0 0.0
        %6632 = vmatprep.subr.mxu0 0.0
        %6633 = vmatpush1.msra.mxu0 0.0
        %6634 = vmatprep.subr.mxu0 0.0
        %6635 = vmatpush1.msra.mxu0 0.0
        %6636 = vmatprep.subr.mxu0 0.0
        %6637 = vmatpush1.msra.mxu0 0.0
        %6638 = vmatprep.subr.mxu0 0.0
        %6639 = vmatpush1.msra.mxu0 0.0
        %6640 = vmatprep.subr.mxu0 0.0
        %6641 = vmatpush1.msra.mxu0 0.0
        %6642 = vmatprep.subr.mxu0 0.0
        %6643 = vmatpush1.msra.mxu0 0.0
        %6644 = vmatprep.subr.mxu0 0.0
        %6645 = vmatpush1.msra.mxu0 0.0
        %6646 = vmatprep.subr.mxu0 0.0
        %6647 = vmatpush1.msra.mxu0 0.0
        %6648 = vmatprep.subr.mxu0 0.0
        %6649 = vmatpush1.msra.mxu0 0.0
        %6650 = vmatprep.subr.mxu0 0.0
        %6651 = vmatpush1.msra.mxu0 0.0
        %6652 = vmatprep.subr.mxu0 0.0
        %6653 = vmatpush1.msra.mxu0 0.0
        %6654 = vmatprep.subr.mxu0 0.0
        %6655 = vmatpush1.msra.mxu0 0.0
        %6656 = vmatprep.subr.mxu0 0.0
        %6657 = vmatpush1.msra.mxu0 0.0
        %6658 = vmatprep.subr.mxu0 0.0
        %6659 = vmatpush1.msra.mxu0 0.0
        %6660 = vmatprep.subr.mxu0 0.0
        %6661 = vmatpush1.msra.mxu0 0.0
        %6662 = vmatprep.subr.mxu0 0.0
        %6663 = vmatpush1.msra.mxu0 0.0
        %6664 = vmatprep.subr.mxu0 0.0
        %6665 = vmatpush1.msra.mxu0 0.0
        %6666 = vmatprep.mubr.f32.mxu0 0.0
        %v6667 = vand.u32 %v6172, 4294901760
        %6668 = vmatmul.mubr.f32.gmra.mrb[0].mxu0 %v6667
        %v6669 = vpop.f32.mrb[0].mxu0
        %v6670 = vadd.f32 %v6591, %v6669
        %v6671 = vpop.f32.mrb[0].mxu0
        %6672 = vmatprep.mubr.f32.mxu0 0.0
        %v6673 = vand.u32 %v6175, 4294901760
        %6674 = vmatmul.mubr.f32.gmra.mrb[0].mxu0 %v6673
        %v6675 = vpop.f32.mrb[0].mxu0
        %v6676 = vadd.f32 %v6597, %v6675
        %v6677 = vpop.f32.mrb[0].mxu0
        %6678 = vdwg.mxu0
        %s6679 = scalar_lea.vmem [#allocation13], 32
        %v6680 = vld [vmem:[%s6679] sm:$0xff]
        %v6681 = vld [vmem:[%s6679 + $0x8] sm:$0xff]
        %v6682 = vld [vmem:[%s6679 + $0x10] sm:$0xff]
        %v6683 = vld [vmem:[%s6679 + $0x18] sm:$0xff]
        %v6685 = vsel %vm4017, %v6670, 0
        %v6688 = vsel %vm4017, %v6676, 0
        %6690 = vmatprep.subr.mxu0 0.0
        %v6691 = vand.u32 %v6680, 4294901760
        %6692 = vmatpush1.msra.mxu0 %v6691
        %6693 = vmatprep.subr.mxu0 0.0
        %v6694 = vand.u32 %v6681, 4294901760
        %6695 = vmatpush1.msra.mxu0 %v6694
        %6696 = vmatprep.subr.mxu0 0.0
        %v6697 = vand.u32 %v6682, 4294901760
        %6698 = vmatpush1.msra.mxu0 %v6697
        %6699 = vmatprep.subr.mxu0 0.0
        %v6700 = vand.u32 %v6683, 4294901760
        %6701 = vmatpush1.msra.mxu0 %v6700
        %6702 = vmatprep.subr.mxu0 0.0
        %6703 = vmatpush1.msra.mxu0 0.0
        %6704 = vmatprep.subr.mxu0 0.0
        %6705 = vmatpush1.msra.mxu0 0.0
        %6706 = vmatprep.subr.mxu0 0.0
        %6707 = vmatpush1.msra.mxu0 0.0
        %6708 = vmatprep.subr.mxu0 0.0
        %6709 = vmatpush1.msra.mxu0 0.0
        %6710 = vmatprep.subr.mxu0 0.0
        %6711 = vmatpush1.msra.mxu0 0.0
        %6712 = vmatprep.subr.mxu0 0.0
        %6713 = vmatpush1.msra.mxu0 0.0
        %6714 = vmatprep.subr.mxu0 0.0
        %6715 = vmatpush1.msra.mxu0 0.0
        %6716 = vmatprep.subr.mxu0 0.0
        %6717 = vmatpush1.msra.mxu0 0.0
        %6718 = vmatprep.subr.mxu0 0.0
        %6719 = vmatpush1.msra.mxu0 0.0
        %6720 = vmatprep.subr.mxu0 0.0
        %6721 = vmatpush1.msra.mxu0 0.0
        %6722 = vmatprep.subr.mxu0 0.0
        %6723 = vmatpush1.msra.mxu0 0.0
        %6724 = vmatprep.subr.mxu0 0.0
        %6725 = vmatpush1.msra.mxu0 0.0
        %6726 = vmatprep.subr.mxu0 0.0
        %6727 = vmatpush1.msra.mxu0 0.0
        %6728 = vmatprep.subr.mxu0 0.0
        %6729 = vmatpush1.msra.mxu0 0.0
        %6730 = vmatprep.subr.mxu0 0.0
        %6731 = vmatpush1.msra.mxu0 0.0
        %6732 = vmatprep.subr.mxu0 0.0
        %6733 = vmatpush1.msra.mxu0 0.0
        %6734 = vmatprep.subr.mxu0 0.0
        %6735 = vmatpush1.msra.mxu0 0.0
        %6736 = vmatprep.subr.mxu0 0.0
        %6737 = vmatpush1.msra.mxu0 0.0
        %6738 = vmatprep.subr.mxu0 0.0
        %6739 = vmatpush1.msra.mxu0 0.0
        %6740 = vmatprep.subr.mxu0 0.0
        %6741 = vmatpush1.msra.mxu0 0.0
        %6742 = vmatprep.subr.mxu0 0.0
        %6743 = vmatpush1.msra.mxu0 0.0
        %6744 = vmatprep.subr.mxu0 0.0
        %6745 = vmatpush1.msra.mxu0 0.0
        %6746 = vmatprep.subr.mxu0 0.0
        %6747 = vmatpush1.msra.mxu0 0.0
        %6748 = vmatprep.subr.mxu0 0.0
        %6749 = vmatpush1.msra.mxu0 0.0
        %6750 = vmatprep.subr.mxu0 0.0
        %6751 = vmatpush1.msra.mxu0 0.0
        %6752 = vmatprep.subr.mxu0 0.0
        %6753 = vmatpush1.msra.mxu0 0.0
        %6754 = vmatprep.subr.mxu0 0.0
        %6755 = vmatpush1.msra.mxu0 0.0
        %6756 = vmatprep.subr.mxu0 0.0
        %6757 = vmatpush1.msra.mxu0 0.0
        %6758 = vmatprep.mubr.f32.mxu0 0.0
        %v6759 = vand.u32 %v6685, 4294901760
        %v6760 = vsub.f32 %v6685, %v6759
        %v6761 = vand.u32 %v6760, 4294901760
        %v6762 = vsub.f32 %v6760, %v6761
        %v6763 = vand.u32 %v6762, 4294901760
        %6764 = vmatmul.mubr.f32.gmra.mrb[0].mxu0 %v6763
        %v6765 = vpop.f32.mrb[0].mxu0
        %v6766 = vadd.f32 0.0, %v6765
        %v6767 = vpop.f32.mrb[0].mxu0
        %6768 = vmatprep.mubr.f32.mxu0 0.0
        %v6769 = vand.u32 %v6688, 4294901760
        %v6770 = vsub.f32 %v6688, %v6769
        %v6771 = vand.u32 %v6770, 4294901760
        %v6772 = vsub.f32 %v6770, %v6771
        %v6773 = vand.u32 %v6772, 4294901760
        %6774 = vmatmul.mubr.f32.gmra.mrb[0].mxu0 %v6773
        %v6775 = vpop.f32.mrb[0].mxu0
        %v6776 = vadd.f32 0.0, %v6775
        %v6777 = vpop.f32.mrb[0].mxu0
        %6778 = vdwg.mxu0
        %6779 = vmatprep.subr.mxu0 0.0
        %v6780 = vand.u32 %v6680, 4294901760
        %v6781 = vsub.f32 %v6680, %v6780
        %v6782 = vand.u32 %v6781, 4294901760
        %v6783 = vsub.f32 %v6781, %v6782
        %v6784 = vand.u32 %v6783, 4294901760
        %6785 = vmatpush1.msra.mxu0 %v6784
        %6786 = vmatprep.subr.mxu0 0.0
        %v6787 = vand.u32 %v6681, 4294901760
        %v6788 = vsub.f32 %v6681, %v6787
        %v6789 = vand.u32 %v6788, 4294901760
        %v6790 = vsub.f32 %v6788, %v6789
        %v6791 = vand.u32 %v6790, 4294901760
        %6792 = vmatpush1.msra.mxu0 %v6791
        %6793 = vmatprep.subr.mxu0 0.0
        %v6794 = vand.u32 %v6682, 4294901760
        %v6795 = vsub.f32 %v6682, %v6794
        %v6796 = vand.u32 %v6795, 4294901760
        %v6797 = vsub.f32 %v6795, %v6796
        %v6798 = vand.u32 %v6797, 4294901760
        %6799 = vmatpush1.msra.mxu0 %v6798
        %6800 = vmatprep.subr.mxu0 0.0
        %v6801 = vand.u32 %v6683, 4294901760
        %v6802 = vsub.f32 %v6683, %v6801
        %v6803 = vand.u32 %v6802, 4294901760
        %v6804 = vsub.f32 %v6802, %v6803
        %v6805 = vand.u32 %v6804, 4294901760
        %6806 = vmatpush1.msra.mxu0 %v6805
        %6807 = vmatprep.subr.mxu0 0.0
        %6808 = vmatpush1.msra.mxu0 0.0
        %6809 = vmatprep.subr.mxu0 0.0
        %6810 = vmatpush1.msra.mxu0 0.0
        %6811 = vmatprep.subr.mxu0 0.0
        %6812 = vmatpush1.msra.mxu0 0.0
        %6813 = vmatprep.subr.mxu0 0.0
        %6814 = vmatpush1.msra.mxu0 0.0
        %6815 = vmatprep.subr.mxu0 0.0
        %6816 = vmatpush1.msra.mxu0 0.0
        %6817 = vmatprep.subr.mxu0 0.0
        %6818 = vmatpush1.msra.mxu0 0.0
        %6819 = vmatprep.subr.mxu0 0.0
        %6820 = vmatpush1.msra.mxu0 0.0
        %6821 = vmatprep.subr.mxu0 0.0
        %6822 = vmatpush1.msra.mxu0 0.0
        %6823 = vmatprep.subr.mxu0 0.0
        %6824 = vmatpush1.msra.mxu0 0.0
        %6825 = vmatprep.subr.mxu0 0.0
        %6826 = vmatpush1.msra.mxu0 0.0
        %6827 = vmatprep.subr.mxu0 0.0
        %6828 = vmatpush1.msra.mxu0 0.0
        %6829 = vmatprep.subr.mxu0 0.0
        %6830 = vmatpush1.msra.mxu0 0.0
        %6831 = vmatprep.subr.mxu0 0.0
        %6832 = vmatpush1.msra.mxu0 0.0
        %6833 = vmatprep.subr.mxu0 0.0
        %6834 = vmatpush1.msra.mxu0 0.0
        %6835 = vmatprep.subr.mxu0 0.0
        %6836 = vmatpush1.msra.mxu0 0.0
        %6837 = vmatprep.subr.mxu0 0.0
        %6838 = vmatpush1.msra.mxu0 0.0
        %6839 = vmatprep.subr.mxu0 0.0
        %6840 = vmatpush1.msra.mxu0 0.0
        %6841 = vmatprep.subr.mxu0 0.0
        %6842 = vmatpush1.msra.mxu0 0.0
        %6843 = vmatprep.subr.mxu0 0.0
        %6844 = vmatpush1.msra.mxu0 0.0
        %6845 = vmatprep.subr.mxu0 0.0
        %6846 = vmatpush1.msra.mxu0 0.0
        %6847 = vmatprep.subr.mxu0 0.0
        %6848 = vmatpush1.msra.mxu0 0.0
        %6849 = vmatprep.subr.mxu0 0.0
        %6850 = vmatpush1.msra.mxu0 0.0
        %6851 = vmatprep.subr.mxu0 0.0
        %6852 = vmatpush1.msra.mxu0 0.0
        %6853 = vmatprep.subr.mxu0 0.0
        %6854 = vmatpush1.msra.mxu0 0.0
        %6855 = vmatprep.subr.mxu0 0.0
        %6856 = vmatpush1.msra.mxu0 0.0
        %6857 = vmatprep.subr.mxu0 0.0
        %6858 = vmatpush1.msra.mxu0 0.0
        %6859 = vmatprep.subr.mxu0 0.0
        %6860 = vmatpush1.msra.mxu0 0.0
        %6861 = vmatprep.subr.mxu0 0.0
        %6862 = vmatpush1.msra.mxu0 0.0
        %6863 = vmatprep.mubr.f32.mxu0 0.0
        %v6864 = vand.u32 %v6685, 4294901760
        %6865 = vmatmul.mubr.f32.gmra.mrb[0].mxu0 %v6864
        %v6866 = vpop.f32.mrb[0].mxu0
        %v6867 = vadd.f32 %v6766, %v6866
        %v6868 = vpop.f32.mrb[0].mxu0
        %6869 = vmatprep.mubr.f32.mxu0 0.0
        %v6870 = vand.u32 %v6688, 4294901760
        %6871 = vmatmul.mubr.f32.gmra.mrb[0].mxu0 %v6870
        %v6872 = vpop.f32.mrb[0].mxu0
        %v6873 = vadd.f32 %v6776, %v6872
        %v6874 = vpop.f32.mrb[0].mxu0
        %6875 = vdwg.mxu0
        %6876 = vmatprep.subr.mxu0 0.0
        %v6877 = vand.u32 %v6680, 4294901760
        %v6878 = vsub.f32 %v6680, %v6877
        %6879 = vmatpush1.msra.mxu0 %v6878
        %6880 = vmatprep.subr.mxu0 0.0
        %v6881 = vand.u32 %v6681, 4294901760
        %v6882 = vsub.f32 %v6681, %v6881
        %6883 = vmatpush1.msra.mxu0 %v6882
        %6884 = vmatprep.subr.mxu0 0.0
        %v6885 = vand.u32 %v6682, 4294901760
        %v6886 = vsub.f32 %v6682, %v6885
        %6887 = vmatpush1.msra.mxu0 %v6886
        %6888 = vmatprep.subr.mxu0 0.0
        %v6889 = vand.u32 %v6683, 4294901760
        %v6890 = vsub.f32 %v6683, %v6889
        %6891 = vmatpush1.msra.mxu0 %v6890
        %6892 = vmatprep.subr.mxu0 0.0
        %6893 = vmatpush1.msra.mxu0 0.0
        %6894 = vmatprep.subr.mxu0 0.0
        %6895 = vmatpush1.msra.mxu0 0.0
        %6896 = vmatprep.subr.mxu0 0.0
        %6897 = vmatpush1.msra.mxu0 0.0
        %6898 = vmatprep.subr.mxu0 0.0
        %6899 = vmatpush1.msra.mxu0 0.0
        %6900 = vmatprep.subr.mxu0 0.0
        %6901 = vmatpush1.msra.mxu0 0.0
        %6902 = vmatprep.subr.mxu0 0.0
        %6903 = vmatpush1.msra.mxu0 0.0
        %6904 = vmatprep.subr.mxu0 0.0
        %6905 = vmatpush1.msra.mxu0 0.0
        %6906 = vmatprep.subr.mxu0 0.0
        %6907 = vmatpush1.msra.mxu0 0.0
        %6908 = vmatprep.subr.mxu0 0.0
        %6909 = vmatpush1.msra.mxu0 0.0
        %6910 = vmatprep.subr.mxu0 0.0
        %6911 = vmatpush1.msra.mxu0 0.0
        %6912 = vmatprep.subr.mxu0 0.0
        %6913 = vmatpush1.msra.mxu0 0.0
        %6914 = vmatprep.subr.mxu0 0.0
        %6915 = vmatpush1.msra.mxu0 0.0
        %6916 = vmatprep.subr.mxu0 0.0
        %6917 = vmatpush1.msra.mxu0 0.0
        %6918 = vmatprep.subr.mxu0 0.0
        %6919 = vmatpush1.msra.mxu0 0.0
        %6920 = vmatprep.subr.mxu0 0.0
        %6921 = vmatpush1.msra.mxu0 0.0
        %6922 = vmatprep.subr.mxu0 0.0
        %6923 = vmatpush1.msra.mxu0 0.0
        %6924 = vmatprep.subr.mxu0 0.0
        %6925 = vmatpush1.msra.mxu0 0.0
        %6926 = vmatprep.subr.mxu0 0.0
        %6927 = vmatpush1.msra.mxu0 0.0
        %6928 = vmatprep.subr.mxu0 0.0
        %6929 = vmatpush1.msra.mxu0 0.0
        %6930 = vmatprep.subr.mxu0 0.0
        %6931 = vmatpush1.msra.mxu0 0.0
        %6932 = vmatprep.subr.mxu0 0.0
        %6933 = vmatpush1.msra.mxu0 0.0
        %6934 = vmatprep.subr.mxu0 0.0
        %6935 = vmatpush1.msra.mxu0 0.0
        %6936 = vmatprep.subr.mxu0 0.0
        %6937 = vmatpush1.msra.mxu0 0.0
        %6938 = vmatprep.subr.mxu0 0.0
        %6939 = vmatpush1.msra.mxu0 0.0
        %6940 = vmatprep.subr.mxu0 0.0
        %6941 = vmatpush1.msra.mxu0 0.0
        %6942 = vmatprep.subr.mxu0 0.0
        %6943 = vmatpush1.msra.mxu0 0.0
        %6944 = vmatprep.subr.mxu0 0.0
        %6945 = vmatpush1.msra.mxu0 0.0
        %6946 = vmatprep.subr.mxu0 0.0
        %6947 = vmatpush1.msra.mxu0 0.0
        %6948 = vmatprep.mubr.f32.mxu0 0.0
        %v6949 = vand.u32 %v6685, 4294901760
        %v6950 = vsub.f32 %v6685, %v6949
        %6951 = vmatmul.mubr.f32.gmra.mrb[0].mxu0 %v6950
        %v6952 = vpop.f32.mrb[0].mxu0
        %v6953 = vadd.f32 %v6867, %v6952
        %v6954 = vpop.f32.mrb[0].mxu0
        %6955 = vmatprep.mubr.f32.mxu0 0.0
        %v6956 = vand.u32 %v6688, 4294901760
        %v6957 = vsub.f32 %v6688, %v6956
        %6958 = vmatmul.mubr.f32.gmra.mrb[0].mxu0 %v6957
        %v6959 = vpop.f32.mrb[0].mxu0
        %v6960 = vadd.f32 %v6873, %v6959
        %v6961 = vpop.f32.mrb[0].mxu0
        %6962 = vdwg.mxu0
        %6963 = vmatprep.subr.mxu0 0.0
        %v6964 = vand.u32 %v6680, 4294901760
        %6965 = vmatpush1.msra.mxu0 %v6964
        %6966 = vmatprep.subr.mxu0 0.0
        %v6967 = vand.u32 %v6681, 4294901760
        %6968 = vmatpush1.msra.mxu0 %v6967
        %6969 = vmatprep.subr.mxu0 0.0
        %v6970 = vand.u32 %v6682, 4294901760
        %6971 = vmatpush1.msra.mxu0 %v6970
        %6972 = vmatprep.subr.mxu0 0.0
        %v6973 = vand.u32 %v6683, 4294901760
        %6974 = vmatpush1.msra.mxu0 %v6973
        %6975 = vmatprep.subr.mxu0 0.0
        %6976 = vmatpush1.msra.mxu0 0.0
        %6977 = vmatprep.subr.mxu0 0.0
        %6978 = vmatpush1.msra.mxu0 0.0
        %6979 = vmatprep.subr.mxu0 0.0
        %6980 = vmatpush1.msra.mxu0 0.0
        %6981 = vmatprep.subr.mxu0 0.0
        %6982 = vmatpush1.msra.mxu0 0.0
        %6983 = vmatprep.subr.mxu0 0.0
        %6984 = vmatpush1.msra.mxu0 0.0
        %6985 = vmatprep.subr.mxu0 0.0
        %6986 = vmatpush1.msra.mxu0 0.0
        %6987 = vmatprep.subr.mxu0 0.0
        %6988 = vmatpush1.msra.mxu0 0.0
        %6989 = vmatprep.subr.mxu0 0.0
        %6990 = vmatpush1.msra.mxu0 0.0
        %6991 = vmatprep.subr.mxu0 0.0
        %6992 = vmatpush1.msra.mxu0 0.0
        %6993 = vmatprep.subr.mxu0 0.0
        %6994 = vmatpush1.msra.mxu0 0.0
        %6995 = vmatprep.subr.mxu0 0.0
        %6996 = vmatpush1.msra.mxu0 0.0
        %6997 = vmatprep.subr.mxu0 0.0
        %6998 = vmatpush1.msra.mxu0 0.0
        %6999 = vmatprep.subr.mxu0 0.0
        %7000 = vmatpush1.msra.mxu0 0.0
        %7001 = vmatprep.subr.mxu0 0.0
        %7002 = vmatpush1.msra.mxu0 0.0
        %7003 = vmatprep.subr.mxu0 0.0
        %7004 = vmatpush1.msra.mxu0 0.0
        %7005 = vmatprep.subr.mxu0 0.0
        %7006 = vmatpush1.msra.mxu0 0.0
        %7007 = vmatprep.subr.mxu0 0.0
        %7008 = vmatpush1.msra.mxu0 0.0
        %7009 = vmatprep.subr.mxu0 0.0
        %7010 = vmatpush1.msra.mxu0 0.0
        %7011 = vmatprep.subr.mxu0 0.0
        %7012 = vmatpush1.msra.mxu0 0.0
        %7013 = vmatprep.subr.mxu0 0.0
        %7014 = vmatpush1.msra.mxu0 0.0
        %7015 = vmatprep.subr.mxu0 0.0
        %7016 = vmatpush1.msra.mxu0 0.0
        %7017 = vmatprep.subr.mxu0 0.0
        %7018 = vmatpush1.msra.mxu0 0.0
        %7019 = vmatprep.subr.mxu0 0.0
        %7020 = vmatpush1.msra.mxu0 0.0
        %7021 = vmatprep.subr.mxu0 0.0
        %7022 = vmatpush1.msra.mxu0 0.0
        %7023 = vmatprep.subr.mxu0 0.0
        %7024 = vmatpush1.msra.mxu0 0.0
        %7025 = vmatprep.subr.mxu0 0.0
        %7026 = vmatpush1.msra.mxu0 0.0
        %7027 = vmatprep.subr.mxu0 0.0
        %7028 = vmatpush1.msra.mxu0 0.0
        %7029 = vmatprep.subr.mxu0 0.0
        %7030 = vmatpush1.msra.mxu0 0.0
        %7031 = vmatprep.mubr.f32.mxu0 0.0
        %v7032 = vand.u32 %v6685, 4294901760
        %v7033 = vsub.f32 %v6685, %v7032
        %v7034 = vand.u32 %v7033, 4294901760
        %7035 = vmatmul.mubr.f32.gmra.mrb[0].mxu0 %v7034
        %v7036 = vpop.f32.mrb[0].mxu0
        %v7037 = vadd.f32 %v6953, %v7036
        %v7038 = vpop.f32.mrb[0].mxu0
        %7039 = vmatprep.mubr.f32.mxu0 0.0
        %v7040 = vand.u32 %v6688, 4294901760
        %v7041 = vsub.f32 %v6688, %v7040
        %v7042 = vand.u32 %v7041, 4294901760
        %7043 = vmatmul.mubr.f32.gmra.mrb[0].mxu0 %v7042
        %v7044 = vpop.f32.mrb[0].mxu0
        %v7045 = vadd.f32 %v6960, %v7044
        %v7046 = vpop.f32.mrb[0].mxu0
        %7047 = vdwg.mxu0
        %7048 = vmatprep.subr.mxu0 0.0
        %v7049 = vand.u32 %v6680, 4294901760
        %v7050 = vsub.f32 %v6680, %v7049
        %v7051 = vand.u32 %v7050, 4294901760
        %7052 = vmatpush1.msra.mxu0 %v7051
        %7053 = vmatprep.subr.mxu0 0.0
        %v7054 = vand.u32 %v6681, 4294901760
        %v7055 = vsub.f32 %v6681, %v7054
        %v7056 = vand.u32 %v7055, 4294901760
        %7057 = vmatpush1.msra.mxu0 %v7056
        %7058 = vmatprep.subr.mxu0 0.0
        %v7059 = vand.u32 %v6682, 4294901760
        %v7060 = vsub.f32 %v6682, %v7059
        %v7061 = vand.u32 %v7060, 4294901760
        %7062 = vmatpush1.msra.mxu0 %v7061
        %7063 = vmatprep.subr.mxu0 0.0
        %v7064 = vand.u32 %v6683, 4294901760
        %v7065 = vsub.f32 %v6683, %v7064
        %v7066 = vand.u32 %v7065, 4294901760
        %7067 = vmatpush1.msra.mxu0 %v7066
        %7068 = vmatprep.subr.mxu0 0.0
        %7069 = vmatpush1.msra.mxu0 0.0
        %7070 = vmatprep.subr.mxu0 0.0
        %7071 = vmatpush1.msra.mxu0 0.0
        %7072 = vmatprep.subr.mxu0 0.0
        %7073 = vmatpush1.msra.mxu0 0.0
        %7074 = vmatprep.subr.mxu0 0.0
        %7075 = vmatpush1.msra.mxu0 0.0
        %7076 = vmatprep.subr.mxu0 0.0
        %7077 = vmatpush1.msra.mxu0 0.0
        %7078 = vmatprep.subr.mxu0 0.0
        %7079 = vmatpush1.msra.mxu0 0.0
        %7080 = vmatprep.subr.mxu0 0.0
        %7081 = vmatpush1.msra.mxu0 0.0
        %7082 = vmatprep.subr.mxu0 0.0
        %7083 = vmatpush1.msra.mxu0 0.0
        %7084 = vmatprep.subr.mxu0 0.0
        %7085 = vmatpush1.msra.mxu0 0.0
        %7086 = vmatprep.subr.mxu0 0.0
        %7087 = vmatpush1.msra.mxu0 0.0
        %7088 = vmatprep.subr.mxu0 0.0
        %7089 = vmatpush1.msra.mxu0 0.0
        %7090 = vmatprep.subr.mxu0 0.0
        %7091 = vmatpush1.msra.mxu0 0.0
        %7092 = vmatprep.subr.mxu0 0.0
        %7093 = vmatpush1.msra.mxu0 0.0
        %7094 = vmatprep.subr.mxu0 0.0
        %7095 = vmatpush1.msra.mxu0 0.0
        %7096 = vmatprep.subr.mxu0 0.0
        %7097 = vmatpush1.msra.mxu0 0.0
        %7098 = vmatprep.subr.mxu0 0.0
        %7099 = vmatpush1.msra.mxu0 0.0
        %7100 = vmatprep.subr.mxu0 0.0
        %7101 = vmatpush1.msra.mxu0 0.0
        %7102 = vmatprep.subr.mxu0 0.0
        %7103 = vmatpush1.msra.mxu0 0.0
        %7104 = vmatprep.subr.mxu0 0.0
        %7105 = vmatpush1.msra.mxu0 0.0
        %7106 = vmatprep.subr.mxu0 0.0
        %7107 = vmatpush1.msra.mxu0 0.0
        %7108 = vmatprep.subr.mxu0 0.0
        %7109 = vmatpush1.msra.mxu0 0.0
        %7110 = vmatprep.subr.mxu0 0.0
        %7111 = vmatpush1.msra.mxu0 0.0
        %7112 = vmatprep.subr.mxu0 0.0
        %7113 = vmatpush1.msra.mxu0 0.0
        %7114 = vmatprep.subr.mxu0 0.0
        %7115 = vmatpush1.msra.mxu0 0.0
        %7116 = vmatprep.subr.mxu0 0.0
        %7117 = vmatpush1.msra.mxu0 0.0
        %7118 = vmatprep.subr.mxu0 0.0
        %7119 = vmatpush1.msra.mxu0 0.0
        %7120 = vmatprep.subr.mxu0 0.0
        %7121 = vmatpush1.msra.mxu0 0.0
        %7122 = vmatprep.subr.mxu0 0.0
        %7123 = vmatpush1.msra.mxu0 0.0
        %7124 = vmatprep.mubr.f32.mxu0 0.0
        %v7125 = vand.u32 %v6685, 4294901760
        %7126 = vmatmul.mubr.f32.gmra.mrb[0].mxu0 %v7125
        %v7127 = vpop.f32.mrb[0].mxu0
        %v7128 = vadd.f32 %v7037, %v7127
        %v7129 = vpop.f32.mrb[0].mxu0
        %7130 = vmatprep.mubr.f32.mxu0 0.0
        %v7131 = vand.u32 %v6688, 4294901760
        %7132 = vmatmul.mubr.f32.gmra.mrb[0].mxu0 %v7131
        %v7133 = vpop.f32.mrb[0].mxu0
        %v7134 = vadd.f32 %v7045, %v7133
        %v7135 = vpop.f32.mrb[0].mxu0
        %7136 = vdwg.mxu0
        %7137 = vmatprep.subr.mxu0 0.0
        %v7138 = vand.u32 %v6680, 4294901760
        %7139 = vmatpush1.msra.mxu0 %v7138
        %7140 = vmatprep.subr.mxu0 0.0
        %v7141 = vand.u32 %v6681, 4294901760
        %7142 = vmatpush1.msra.mxu0 %v7141
        %7143 = vmatprep.subr.mxu0 0.0
        %v7144 = vand.u32 %v6682, 4294901760
        %7145 = vmatpush1.msra.mxu0 %v7144
        %7146 = vmatprep.subr.mxu0 0.0
        %v7147 = vand.u32 %v6683, 4294901760
        %7148 = vmatpush1.msra.mxu0 %v7147
        %7149 = vmatprep.subr.mxu0 0.0
        %7150 = vmatpush1.msra.mxu0 0.0
        %7151 = vmatprep.subr.mxu0 0.0
        %7152 = vmatpush1.msra.mxu0 0.0
        %7153 = vmatprep.subr.mxu0 0.0
        %7154 = vmatpush1.msra.mxu0 0.0
        %7155 = vmatprep.subr.mxu0 0.0
        %7156 = vmatpush1.msra.mxu0 0.0
        %7157 = vmatprep.subr.mxu0 0.0
        %7158 = vmatpush1.msra.mxu0 0.0
        %7159 = vmatprep.subr.mxu0 0.0
        %7160 = vmatpush1.msra.mxu0 0.0
        %7161 = vmatprep.subr.mxu0 0.0
        %7162 = vmatpush1.msra.mxu0 0.0
        %7163 = vmatprep.subr.mxu0 0.0
        %7164 = vmatpush1.msra.mxu0 0.0
        %7165 = vmatprep.subr.mxu0 0.0
        %7166 = vmatpush1.msra.mxu0 0.0
        %7167 = vmatprep.subr.mxu0 0.0
        %7168 = vmatpush1.msra.mxu0 0.0
        %7169 = vmatprep.subr.mxu0 0.0
        %7170 = vmatpush1.msra.mxu0 0.0
        %7171 = vmatprep.subr.mxu0 0.0
        %7172 = vmatpush1.msra.mxu0 0.0
        %7173 = vmatprep.subr.mxu0 0.0
        %7174 = vmatpush1.msra.mxu0 0.0
        %7175 = vmatprep.subr.mxu0 0.0
        %7176 = vmatpush1.msra.mxu0 0.0
        %7177 = vmatprep.subr.mxu0 0.0
        %7178 = vmatpush1.msra.mxu0 0.0
        %7179 = vmatprep.subr.mxu0 0.0
        %7180 = vmatpush1.msra.mxu0 0.0
        %7181 = vmatprep.subr.mxu0 0.0
        %7182 = vmatpush1.msra.mxu0 0.0
        %7183 = vmatprep.subr.mxu0 0.0
        %7184 = vmatpush1.msra.mxu0 0.0
        %7185 = vmatprep.subr.mxu0 0.0
        %7186 = vmatpush1.msra.mxu0 0.0
        %7187 = vmatprep.subr.mxu0 0.0
        %7188 = vmatpush1.msra.mxu0 0.0
        %7189 = vmatprep.subr.mxu0 0.0
        %7190 = vmatpush1.msra.mxu0 0.0
        %7191 = vmatprep.subr.mxu0 0.0
        %7192 = vmatpush1.msra.mxu0 0.0
        %7193 = vmatprep.subr.mxu0 0.0
        %7194 = vmatpush1.msra.mxu0 0.0
        %7195 = vmatprep.subr.mxu0 0.0
        %7196 = vmatpush1.msra.mxu0 0.0
        %7197 = vmatprep.subr.mxu0 0.0
        %7198 = vmatpush1.msra.mxu0 0.0
        %7199 = vmatprep.subr.mxu0 0.0
        %7200 = vmatpush1.msra.mxu0 0.0
        %7201 = vmatprep.subr.mxu0 0.0
        %7202 = vmatpush1.msra.mxu0 0.0
        %7203 = vmatprep.subr.mxu0 0.0
        %7204 = vmatpush1.msra.mxu0 0.0
        %7205 = vmatprep.mubr.f32.mxu0 0.0
        %v7206 = vand.u32 %v6685, 4294901760
        %7207 = vmatmul.mubr.f32.gmra.mrb[0].mxu0 %v7206
        %v7208 = vpop.f32.mrb[0].mxu0
        %v7209 = vadd.f32 %v7128, %v7208
        %v7210 = vpop.f32.mrb[0].mxu0
        %7211 = vmatprep.mubr.f32.mxu0 0.0
        %v7212 = vand.u32 %v6688, 4294901760
        %7213 = vmatmul.mubr.f32.gmra.mrb[0].mxu0 %v7212
        %v7214 = vpop.f32.mrb[0].mxu0
        %v7215 = vadd.f32 %v7134, %v7214
        %v7216 = vpop.f32.mrb[0].mxu0
        %7217 = vdwg.mxu0
        %v7218 = vadd.f32 %v5617, %v7209
        %v7219 = vadd.f32 %v5618, %v7215
        %7220 = vrot.lane.b32.xlu0 %v1392, 64
        %v7221 = vpop.permute.xlu0 %7220
        %7222 = vrot.lane.b32.xlu0 %v1398, 64
        %v7223 = vpop.permute.xlu0 %7222
        %7224 = vrot.lane.b32.xlu0 %v2099, 64
        %v7225 = vpop.permute.xlu0 %7224
        %7226 = vrot.lane.b32.xlu0 %v2105, 64
        %v7227 = vpop.permute.xlu0 %7226
        %v7228 = vsel %vm4017, %v7221, 0
        %v7230 = vsel %vm4017, %v7223, 0
        %v7232 = vsel %vm4017, %v7225, 0
        %v7234 = vsel %vm4017, %v7227, 0
        %7236 = vmatprep.subr.mxu0 0.0
        %v7237 = vand.u32 %v7232, 4294901760
        %7238 = vmatpush1.xpose.msra.mxu0 %v7237
        %7239 = vmatprep.subr.mxu0 0.0
        %v7240 = vand.u32 %v7234, 4294901760
        %7241 = vmatpush1.xpose.msra.mxu0 %v7240
        %7242 = vmatprep.subr.mxu0 0.0
        %7243 = vmatpush1.xpose.msra.mxu0 0.0
        %7244 = vmatprep.subr.mxu0 0.0
        %7245 = vmatpush1.xpose.msra.mxu0 0.0
        %7246 = vmatprep.subr.mxu0 0.0
        %7247 = vmatpush1.xpose.msra.mxu0 0.0
        %7248 = vmatprep.subr.mxu0 0.0
        %7249 = vmatpush1.xpose.msra.mxu0 0.0
        %7250 = vmatprep.subr.mxu0 0.0
        %7251 = vmatpush1.xpose.msra.mxu0 0.0
        %7252 = vmatprep.subr.mxu0 0.0
        %7253 = vmatpush1.xpose.msra.mxu0 0.0
        %7254 = vmatprep.subr.mxu0 0.0
        %7255 = vmatpush1.xpose.msra.mxu0 0.0
        %7256 = vmatprep.subr.mxu0 0.0
        %7257 = vmatpush1.xpose.msra.mxu0 0.0
        %7258 = vmatprep.subr.mxu0 0.0
        %7259 = vmatpush1.xpose.msra.mxu0 0.0
        %7260 = vmatprep.subr.mxu0 0.0
        %7261 = vmatpush1.xpose.msra.mxu0 0.0
        %7262 = vmatprep.subr.mxu0 0.0
        %7263 = vmatpush1.xpose.msra.mxu0 0.0
        %7264 = vmatprep.subr.mxu0 0.0
        %7265 = vmatpush1.xpose.msra.mxu0 0.0
        %7266 = vmatprep.subr.mxu0 0.0
        %7267 = vmatpush1.xpose.msra.mxu0 0.0
        %7268 = vmatprep.subr.mxu0 0.0
        %7269 = vmatpush1.xpose.msra.mxu0 0.0
        %7270 = vmatprep.subr.mxu0 0.0
        %7271 = vmatpush1.xpose.msra.mxu0 0.0
        %7272 = vmatprep.subr.mxu0 0.0
        %7273 = vmatpush1.xpose.msra.mxu0 0.0
        %7274 = vmatprep.subr.mxu0 0.0
        %7275 = vmatpush1.xpose.msra.mxu0 0.0
        %7276 = vmatprep.subr.mxu0 0.0
        %7277 = vmatpush1.xpose.msra.mxu0 0.0
        %7278 = vmatprep.subr.mxu0 0.0
        %7279 = vmatpush1.xpose.msra.mxu0 0.0
        %7280 = vmatprep.subr.mxu0 0.0
        %7281 = vmatpush1.xpose.msra.mxu0 0.0
        %7282 = vmatprep.subr.mxu0 0.0
        %7283 = vmatpush1.xpose.msra.mxu0 0.0
        %7284 = vmatprep.subr.mxu0 0.0
        %7285 = vmatpush1.xpose.msra.mxu0 0.0
        %7286 = vmatprep.subr.mxu0 0.0
        %7287 = vmatpush1.xpose.msra.mxu0 0.0
        %7288 = vmatprep.subr.mxu0 0.0
        %7289 = vmatpush1.xpose.msra.mxu0 0.0
        %7290 = vmatprep.subr.mxu0 0.0
        %7291 = vmatpush1.xpose.msra.mxu0 0.0
        %7292 = vmatprep.subr.mxu0 0.0
        %7293 = vmatpush1.xpose.msra.mxu0 0.0
        %7294 = vmatprep.subr.mxu0 0.0
        %7295 = vmatpush1.xpose.msra.mxu0 0.0
        %7296 = vmatprep.subr.mxu0 0.0
        %7297 = vmatpush1.xpose.msra.mxu0 0.0
        %7298 = vmatprep.subr.mxu0 0.0
        %7299 = vmatpush1.xpose.msra.mxu0 0.0
        %7300 = vmatprep.subr.mxu0 0.0
        %7301 = vmatpush1.xpose.msra.mxu0 0.0
        %7302 = vmatprep.mubr.f32.mxu0 0.0
        %v7303 = vand.u32 %v7228, 4294901760
        %v7304 = vsub.f32 %v7228, %v7303
        %v7305 = vand.u32 %v7304, 4294901760
        %v7306 = vsub.f32 %v7304, %v7305
        %v7307 = vand.u32 %v7306, 4294901760
        %7308 = vmatmul.mubr.f32.gmra.mrb[0].mxu0 %v7307
        %v7309 = vpop.f32.mrb[0].mxu0
        %v7310 = vadd.f32 0.0, %v7309
        %v7311 = vpop.f32.mrb[0].mxu0
        %7312 = vmatprep.mubr.f32.mxu0 0.0
        %v7313 = vand.u32 %v7230, 4294901760
        %v7314 = vsub.f32 %v7230, %v7313
        %v7315 = vand.u32 %v7314, 4294901760
        %v7316 = vsub.f32 %v7314, %v7315
        %v7317 = vand.u32 %v7316, 4294901760
        %7318 = vmatmul.mubr.f32.gmra.mrb[0].mxu0 %v7317
        %v7319 = vpop.f32.mrb[0].mxu0
        %v7320 = vadd.f32 0.0, %v7319
        %v7321 = vpop.f32.mrb[0].mxu0
        %7322 = vdwg.mxu0
        %7323 = vmatprep.subr.mxu0 0.0
        %v7324 = vand.u32 %v7232, 4294901760
        %v7325 = vsub.f32 %v7232, %v7324
        %v7326 = vand.u32 %v7325, 4294901760
        %v7327 = vsub.f32 %v7325, %v7326
        %v7328 = vand.u32 %v7327, 4294901760
        %7329 = vmatpush1.xpose.msra.mxu0 %v7328
        %7330 = vmatprep.subr.mxu0 0.0
        %v7331 = vand.u32 %v7234, 4294901760
        %v7332 = vsub.f32 %v7234, %v7331
        %v7333 = vand.u32 %v7332, 4294901760
        %v7334 = vsub.f32 %v7332, %v7333
        %v7335 = vand.u32 %v7334, 4294901760
        %7336 = vmatpush1.xpose.msra.mxu0 %v7335
        %7337 = vmatprep.subr.mxu0 0.0
        %7338 = vmatpush1.xpose.msra.mxu0 0.0
        %7339 = vmatprep.subr.mxu0 0.0
        %7340 = vmatpush1.xpose.msra.mxu0 0.0
        %7341 = vmatprep.subr.mxu0 0.0
        %7342 = vmatpush1.xpose.msra.mxu0 0.0
        %7343 = vmatprep.subr.mxu0 0.0
        %7344 = vmatpush1.xpose.msra.mxu0 0.0
        %7345 = vmatprep.subr.mxu0 0.0
        %7346 = vmatpush1.xpose.msra.mxu0 0.0
        %7347 = vmatprep.subr.mxu0 0.0
        %7348 = vmatpush1.xpose.msra.mxu0 0.0
        %7349 = vmatprep.subr.mxu0 0.0
        %7350 = vmatpush1.xpose.msra.mxu0 0.0
        %7351 = vmatprep.subr.mxu0 0.0
        %7352 = vmatpush1.xpose.msra.mxu0 0.0
        %7353 = vmatprep.subr.mxu0 0.0
        %7354 = vmatpush1.xpose.msra.mxu0 0.0
        %7355 = vmatprep.subr.mxu0 0.0
        %7356 = vmatpush1.xpose.msra.mxu0 0.0
        %7357 = vmatprep.subr.mxu0 0.0
        %7358 = vmatpush1.xpose.msra.mxu0 0.0
        %7359 = vmatprep.subr.mxu0 0.0
        %7360 = vmatpush1.xpose.msra.mxu0 0.0
        %7361 = vmatprep.subr.mxu0 0.0
        %7362 = vmatpush1.xpose.msra.mxu0 0.0
        %7363 = vmatprep.subr.mxu0 0.0
        %7364 = vmatpush1.xpose.msra.mxu0 0.0
        %7365 = vmatprep.subr.mxu0 0.0
        %7366 = vmatpush1.xpose.msra.mxu0 0.0
        %7367 = vmatprep.subr.mxu0 0.0
        %7368 = vmatpush1.xpose.msra.mxu0 0.0
        %7369 = vmatprep.subr.mxu0 0.0
        %7370 = vmatpush1.xpose.msra.mxu0 0.0
        %7371 = vmatprep.subr.mxu0 0.0
        %7372 = vmatpush1.xpose.msra.mxu0 0.0
        %7373 = vmatprep.subr.mxu0 0.0
        %7374 = vmatpush1.xpose.msra.mxu0 0.0
        %7375 = vmatprep.subr.mxu0 0.0
        %7376 = vmatpush1.xpose.msra.mxu0 0.0
        %7377 = vmatprep.subr.mxu0 0.0
        %7378 = vmatpush1.xpose.msra.mxu0 0.0
        %7379 = vmatprep.subr.mxu0 0.0
        %7380 = vmatpush1.xpose.msra.mxu0 0.0
        %7381 = vmatprep.subr.mxu0 0.0
        %7382 = vmatpush1.xpose.msra.mxu0 0.0
        %7383 = vmatprep.subr.mxu0 0.0
        %7384 = vmatpush1.xpose.msra.mxu0 0.0
        %7385 = vmatprep.subr.mxu0 0.0
        %7386 = vmatpush1.xpose.msra.mxu0 0.0
        %7387 = vmatprep.subr.mxu0 0.0
        %7388 = vmatpush1.xpose.msra.mxu0 0.0
        %7389 = vmatprep.subr.mxu0 0.0
        %7390 = vmatpush1.xpose.msra.mxu0 0.0
        %7391 = vmatprep.subr.mxu0 0.0
        %7392 = vmatpush1.xpose.msra.mxu0 0.0
        %7393 = vmatprep.subr.mxu0 0.0
        %7394 = vmatpush1.xpose.msra.mxu0 0.0
        %7395 = vmatprep.subr.mxu0 0.0
        %7396 = vmatpush1.xpose.msra.mxu0 0.0
        %7397 = vmatprep.mubr.f32.mxu0 0.0
        %v7398 = vand.u32 %v7228, 4294901760
        %7399 = vmatmul.mubr.f32.gmra.mrb[0].mxu0 %v7398
        %v7400 = vpop.f32.mrb[0].mxu0
        %v7401 = vadd.f32 %v7310, %v7400
        %v7402 = vpop.f32.mrb[0].mxu0
        %7403 = vmatprep.mubr.f32.mxu0 0.0
        %v7404 = vand.u32 %v7230, 4294901760
        %7405 = vmatmul.mubr.f32.gmra.mrb[0].mxu0 %v7404
        %v7406 = vpop.f32.mrb[0].mxu0
        %v7407 = vadd.f32 %v7320, %v7406
        %v7408 = vpop.f32.mrb[0].mxu0
        %7409 = vdwg.mxu0
        %7410 = vmatprep.subr.mxu0 0.0
        %v7411 = vand.u32 %v7232, 4294901760
        %v7412 = vsub.f32 %v7232, %v7411
        %7413 = vmatpush1.xpose.msra.mxu0 %v7412
        %7414 = vmatprep.subr.mxu0 0.0
        %v7415 = vand.u32 %v7234, 4294901760
        %v7416 = vsub.f32 %v7234, %v7415
        %7417 = vmatpush1.xpose.msra.mxu0 %v7416
        %7418 = vmatprep.subr.mxu0 0.0
        %7419 = vmatpush1.xpose.msra.mxu0 0.0
        %7420 = vmatprep.subr.mxu0 0.0
        %7421 = vmatpush1.xpose.msra.mxu0 0.0
        %7422 = vmatprep.subr.mxu0 0.0
        %7423 = vmatpush1.xpose.msra.mxu0 0.0
        %7424 = vmatprep.subr.mxu0 0.0
        %7425 = vmatpush1.xpose.msra.mxu0 0.0
        %7426 = vmatprep.subr.mxu0 0.0
        %7427 = vmatpush1.xpose.msra.mxu0 0.0
        %7428 = vmatprep.subr.mxu0 0.0
        %7429 = vmatpush1.xpose.msra.mxu0 0.0
        %7430 = vmatprep.subr.mxu0 0.0
        %7431 = vmatpush1.xpose.msra.mxu0 0.0
        %7432 = vmatprep.subr.mxu0 0.0
        %7433 = vmatpush1.xpose.msra.mxu0 0.0
        %7434 = vmatprep.subr.mxu0 0.0
        %7435 = vmatpush1.xpose.msra.mxu0 0.0
        %7436 = vmatprep.subr.mxu0 0.0
        %7437 = vmatpush1.xpose.msra.mxu0 0.0
        %7438 = vmatprep.subr.mxu0 0.0
        %7439 = vmatpush1.xpose.msra.mxu0 0.0
        %7440 = vmatprep.subr.mxu0 0.0
        %7441 = vmatpush1.xpose.msra.mxu0 0.0
        %7442 = vmatprep.subr.mxu0 0.0
        %7443 = vmatpush1.xpose.msra.mxu0 0.0
        %7444 = vmatprep.subr.mxu0 0.0
        %7445 = vmatpush1.xpose.msra.mxu0 0.0
        %7446 = vmatprep.subr.mxu0 0.0
        %7447 = vmatpush1.xpose.msra.mxu0 0.0
        %7448 = vmatprep.subr.mxu0 0.0
        %7449 = vmatpush1.xpose.msra.mxu0 0.0
        %7450 = vmatprep.subr.mxu0 0.0
        %7451 = vmatpush1.xpose.msra.mxu0 0.0
        %7452 = vmatprep.subr.mxu0 0.0
        %7453 = vmatpush1.xpose.msra.mxu0 0.0
        %7454 = vmatprep.subr.mxu0 0.0
        %7455 = vmatpush1.xpose.msra.mxu0 0.0
        %7456 = vmatprep.subr.mxu0 0.0
        %7457 = vmatpush1.xpose.msra.mxu0 0.0
        %7458 = vmatprep.subr.mxu0 0.0
        %7459 = vmatpush1.xpose.msra.mxu0 0.0
        %7460 = vmatprep.subr.mxu0 0.0
        %7461 = vmatpush1.xpose.msra.mxu0 0.0
        %7462 = vmatprep.subr.mxu0 0.0
        %7463 = vmatpush1.xpose.msra.mxu0 0.0
        %7464 = vmatprep.subr.mxu0 0.0
        %7465 = vmatpush1.xpose.msra.mxu0 0.0
        %7466 = vmatprep.subr.mxu0 0.0
        %7467 = vmatpush1.xpose.msra.mxu0 0.0
        %7468 = vmatprep.subr.mxu0 0.0
        %7469 = vmatpush1.xpose.msra.mxu0 0.0
        %7470 = vmatprep.subr.mxu0 0.0
        %7471 = vmatpush1.xpose.msra.mxu0 0.0
        %7472 = vmatprep.subr.mxu0 0.0
        %7473 = vmatpush1.xpose.msra.mxu0 0.0
        %7474 = vmatprep.subr.mxu0 0.0
        %7475 = vmatpush1.xpose.msra.mxu0 0.0
        %7476 = vmatprep.subr.mxu0 0.0
        %7477 = vmatpush1.xpose.msra.mxu0 0.0
        %7478 = vmatprep.mubr.f32.mxu0 0.0
        %v7479 = vand.u32 %v7228, 4294901760
        %v7480 = vsub.f32 %v7228, %v7479
        %7481 = vmatmul.mubr.f32.gmra.mrb[0].mxu0 %v7480
        %v7482 = vpop.f32.mrb[0].mxu0
        %v7483 = vadd.f32 %v7401, %v7482
        %v7484 = vpop.f32.mrb[0].mxu0
        %7485 = vmatprep.mubr.f32.mxu0 0.0
        %v7486 = vand.u32 %v7230, 4294901760
        %v7487 = vsub.f32 %v7230, %v7486
        %7488 = vmatmul.mubr.f32.gmra.mrb[0].mxu0 %v7487
        %v7489 = vpop.f32.mrb[0].mxu0
        %v7490 = vadd.f32 %v7407, %v7489
        %v7491 = vpop.f32.mrb[0].mxu0
        %7492 = vdwg.mxu0
        %7493 = vmatprep.subr.mxu0 0.0
        %v7494 = vand.u32 %v7232, 4294901760
        %7495 = vmatpush1.xpose.msra.mxu0 %v7494
        %7496 = vmatprep.subr.mxu0 0.0
        %v7497 = vand.u32 %v7234, 4294901760
        %7498 = vmatpush1.xpose.msra.mxu0 %v7497
        %7499 = vmatprep.subr.mxu0 0.0
        %7500 = vmatpush1.xpose.msra.mxu0 0.0
        %7501 = vmatprep.subr.mxu0 0.0
        %7502 = vmatpush1.xpose.msra.mxu0 0.0
        %7503 = vmatprep.subr.mxu0 0.0
        %7504 = vmatpush1.xpose.msra.mxu0 0.0
        %7505 = vmatprep.subr.mxu0 0.0
        %7506 = vmatpush1.xpose.msra.mxu0 0.0
        %7507 = vmatprep.subr.mxu0 0.0
        %7508 = vmatpush1.xpose.msra.mxu0 0.0
        %7509 = vmatprep.subr.mxu0 0.0
        %7510 = vmatpush1.xpose.msra.mxu0 0.0
        %7511 = vmatprep.subr.mxu0 0.0
        %7512 = vmatpush1.xpose.msra.mxu0 0.0
        %7513 = vmatprep.subr.mxu0 0.0
        %7514 = vmatpush1.xpose.msra.mxu0 0.0
        %7515 = vmatprep.subr.mxu0 0.0
        %7516 = vmatpush1.xpose.msra.mxu0 0.0
        %7517 = vmatprep.subr.mxu0 0.0
        %7518 = vmatpush1.xpose.msra.mxu0 0.0
        %7519 = vmatprep.subr.mxu0 0.0
        %7520 = vmatpush1.xpose.msra.mxu0 0.0
        %7521 = vmatprep.subr.mxu0 0.0
        %7522 = vmatpush1.xpose.msra.mxu0 0.0
        %7523 = vmatprep.subr.mxu0 0.0
        %7524 = vmatpush1.xpose.msra.mxu0 0.0
        %7525 = vmatprep.subr.mxu0 0.0
        %7526 = vmatpush1.xpose.msra.mxu0 0.0
        %7527 = vmatprep.subr.mxu0 0.0
        %7528 = vmatpush1.xpose.msra.mxu0 0.0
        %7529 = vmatprep.subr.mxu0 0.0
        %7530 = vmatpush1.xpose.msra.mxu0 0.0
        %7531 = vmatprep.subr.mxu0 0.0
        %7532 = vmatpush1.xpose.msra.mxu0 0.0
        %7533 = vmatprep.subr.mxu0 0.0
        %7534 = vmatpush1.xpose.msra.mxu0 0.0
        %7535 = vmatprep.subr.mxu0 0.0
        %7536 = vmatpush1.xpose.msra.mxu0 0.0
        %7537 = vmatprep.subr.mxu0 0.0
        %7538 = vmatpush1.xpose.msra.mxu0 0.0
        %7539 = vmatprep.subr.mxu0 0.0
        %7540 = vmatpush1.xpose.msra.mxu0 0.0
        %7541 = vmatprep.subr.mxu0 0.0
        %7542 = vmatpush1.xpose.msra.mxu0 0.0
        %7543 = vmatprep.subr.mxu0 0.0
        %7544 = vmatpush1.xpose.msra.mxu0 0.0
        %7545 = vmatprep.subr.mxu0 0.0
        %7546 = vmatpush1.xpose.msra.mxu0 0.0
        %7547 = vmatprep.subr.mxu0 0.0
        %7548 = vmatpush1.xpose.msra.mxu0 0.0
        %7549 = vmatprep.subr.mxu0 0.0
        %7550 = vmatpush1.xpose.msra.mxu0 0.0
        %7551 = vmatprep.subr.mxu0 0.0
        %7552 = vmatpush1.xpose.msra.mxu0 0.0
        %7553 = vmatprep.subr.mxu0 0.0
        %7554 = vmatpush1.xpose.msra.mxu0 0.0
        %7555 = vmatprep.subr.mxu0 0.0
        %7556 = vmatpush1.xpose.msra.mxu0 0.0
        %7557 = vmatprep.subr.mxu0 0.0
        %7558 = vmatpush1.xpose.msra.mxu0 0.0
        %7559 = vmatprep.mubr.f32.mxu0 0.0
        %v7560 = vand.u32 %v7228, 4294901760
        %v7561 = vsub.f32 %v7228, %v7560
        %v7562 = vand.u32 %v7561, 4294901760
        %7563 = vmatmul.mubr.f32.gmra.mrb[0].mxu0 %v7562
        %v7564 = vpop.f32.mrb[0].mxu0
        %v7565 = vadd.f32 %v7483, %v7564
        %v7566 = vpop.f32.mrb[0].mxu0
        %7567 = vmatprep.mubr.f32.mxu0 0.0
        %v7568 = vand.u32 %v7230, 4294901760
        %v7569 = vsub.f32 %v7230, %v7568
        %v7570 = vand.u32 %v7569, 4294901760
        %7571 = vmatmul.mubr.f32.gmra.mrb[0].mxu0 %v7570
        %v7572 = vpop.f32.mrb[0].mxu0
        %v7573 = vadd.f32 %v7490, %v7572
        %v7574 = vpop.f32.mrb[0].mxu0
        %7575 = vdwg.mxu0
        %7576 = vmatprep.subr.mxu0 0.0
        %v7577 = vand.u32 %v7232, 4294901760
        %v7578 = vsub.f32 %v7232, %v7577
        %v7579 = vand.u32 %v7578, 4294901760
        %7580 = vmatpush1.xpose.msra.mxu0 %v7579
        %7581 = vmatprep.subr.mxu0 0.0
        %v7582 = vand.u32 %v7234, 4294901760
        %v7583 = vsub.f32 %v7234, %v7582
        %v7584 = vand.u32 %v7583, 4294901760
        %7585 = vmatpush1.xpose.msra.mxu0 %v7584
        %7586 = vmatprep.subr.mxu0 0.0
        %7587 = vmatpush1.xpose.msra.mxu0 0.0
        %7588 = vmatprep.subr.mxu0 0.0
        %7589 = vmatpush1.xpose.msra.mxu0 0.0
        %7590 = vmatprep.subr.mxu0 0.0
        %7591 = vmatpush1.xpose.msra.mxu0 0.0
        %7592 = vmatprep.subr.mxu0 0.0
        %7593 = vmatpush1.xpose.msra.mxu0 0.0
        %7594 = vmatprep.subr.mxu0 0.0
        %7595 = vmatpush1.xpose.msra.mxu0 0.0
        %7596 = vmatprep.subr.mxu0 0.0
        %7597 = vmatpush1.xpose.msra.mxu0 0.0
        %7598 = vmatprep.subr.mxu0 0.0
        %7599 = vmatpush1.xpose.msra.mxu0 0.0
        %7600 = vmatprep.subr.mxu0 0.0
        %7601 = vmatpush1.xpose.msra.mxu0 0.0
        %7602 = vmatprep.subr.mxu0 0.0
        %7603 = vmatpush1.xpose.msra.mxu0 0.0
        %7604 = vmatprep.subr.mxu0 0.0
        %7605 = vmatpush1.xpose.msra.mxu0 0.0
        %7606 = vmatprep.subr.mxu0 0.0
        %7607 = vmatpush1.xpose.msra.mxu0 0.0
        %7608 = vmatprep.subr.mxu0 0.0
        %7609 = vmatpush1.xpose.msra.mxu0 0.0
        %7610 = vmatprep.subr.mxu0 0.0
        %7611 = vmatpush1.xpose.msra.mxu0 0.0
        %7612 = vmatprep.subr.mxu0 0.0
        %7613 = vmatpush1.xpose.msra.mxu0 0.0
        %7614 = vmatprep.subr.mxu0 0.0
        %7615 = vmatpush1.xpose.msra.mxu0 0.0
        %7616 = vmatprep.subr.mxu0 0.0
        %7617 = vmatpush1.xpose.msra.mxu0 0.0
        %7618 = vmatprep.subr.mxu0 0.0
        %7619 = vmatpush1.xpose.msra.mxu0 0.0
        %7620 = vmatprep.subr.mxu0 0.0
        %7621 = vmatpush1.xpose.msra.mxu0 0.0
        %7622 = vmatprep.subr.mxu0 0.0
        %7623 = vmatpush1.xpose.msra.mxu0 0.0
        %7624 = vmatprep.subr.mxu0 0.0
        %7625 = vmatpush1.xpose.msra.mxu0 0.0
        %7626 = vmatprep.subr.mxu0 0.0
        %7627 = vmatpush1.xpose.msra.mxu0 0.0
        %7628 = vmatprep.subr.mxu0 0.0
        %7629 = vmatpush1.xpose.msra.mxu0 0.0
        %7630 = vmatprep.subr.mxu0 0.0
        %7631 = vmatpush1.xpose.msra.mxu0 0.0
        %7632 = vmatprep.subr.mxu0 0.0
        %7633 = vmatpush1.xpose.msra.mxu0 0.0
        %7634 = vmatprep.subr.mxu0 0.0
        %7635 = vmatpush1.xpose.msra.mxu0 0.0
        %7636 = vmatprep.subr.mxu0 0.0
        %7637 = vmatpush1.xpose.msra.mxu0 0.0
        %7638 = vmatprep.subr.mxu0 0.0
        %7639 = vmatpush1.xpose.msra.mxu0 0.0
        %7640 = vmatprep.subr.mxu0 0.0
        %7641 = vmatpush1.xpose.msra.mxu0 0.0
        %7642 = vmatprep.subr.mxu0 0.0
        %7643 = vmatpush1.xpose.msra.mxu0 0.0
        %7644 = vmatprep.subr.mxu0 0.0
        %7645 = vmatpush1.xpose.msra.mxu0 0.0
        %7646 = vmatprep.mubr.f32.mxu0 0.0
        %v7647 = vand.u32 %v7228, 4294901760
        %7648 = vmatmul.mubr.f32.gmra.mrb[0].mxu0 %v7647
        %v7649 = vpop.f32.mrb[0].mxu0
        %v7650 = vadd.f32 %v7565, %v7649
        %v7651 = vpop.f32.mrb[0].mxu0
        %7652 = vmatprep.mubr.f32.mxu0 0.0
        %v7653 = vand.u32 %v7230, 4294901760
        %7654 = vmatmul.mubr.f32.gmra.mrb[0].mxu0 %v7653
        %v7655 = vpop.f32.mrb[0].mxu0
        %v7656 = vadd.f32 %v7573, %v7655
        %v7657 = vpop.f32.mrb[0].mxu0
        %7658 = vdwg.mxu0
        %7659 = vmatprep.subr.mxu0 0.0
        %v7660 = vand.u32 %v7232, 4294901760
        %7661 = vmatpush1.xpose.msra.mxu0 %v7660
        %7662 = vmatprep.subr.mxu0 0.0
        %v7663 = vand.u32 %v7234, 4294901760
        %7664 = vmatpush1.xpose.msra.mxu0 %v7663
        %7665 = vmatprep.subr.mxu0 0.0
        %7666 = vmatpush1.xpose.msra.mxu0 0.0
        %7667 = vmatprep.subr.mxu0 0.0
        %7668 = vmatpush1.xpose.msra.mxu0 0.0
        %7669 = vmatprep.subr.mxu0 0.0
        %7670 = vmatpush1.xpose.msra.mxu0 0.0
        %7671 = vmatprep.subr.mxu0 0.0
        %7672 = vmatpush1.xpose.msra.mxu0 0.0
        %7673 = vmatprep.subr.mxu0 0.0
        %7674 = vmatpush1.xpose.msra.mxu0 0.0
        %7675 = vmatprep.subr.mxu0 0.0
        %7676 = vmatpush1.xpose.msra.mxu0 0.0
        %7677 = vmatprep.subr.mxu0 0.0
        %7678 = vmatpush1.xpose.msra.mxu0 0.0
        %7679 = vmatprep.subr.mxu0 0.0
        %7680 = vmatpush1.xpose.msra.mxu0 0.0
        %7681 = vmatprep.subr.mxu0 0.0
        %7682 = vmatpush1.xpose.msra.mxu0 0.0
        %7683 = vmatprep.subr.mxu0 0.0
        %7684 = vmatpush1.xpose.msra.mxu0 0.0
        %7685 = vmatprep.subr.mxu0 0.0
        %7686 = vmatpush1.xpose.msra.mxu0 0.0
        %7687 = vmatprep.subr.mxu0 0.0
        %7688 = vmatpush1.xpose.msra.mxu0 0.0
        %7689 = vmatprep.subr.mxu0 0.0
        %7690 = vmatpush1.xpose.msra.mxu0 0.0
        %7691 = vmatprep.subr.mxu0 0.0
        %7692 = vmatpush1.xpose.msra.mxu0 0.0
        %7693 = vmatprep.subr.mxu0 0.0
        %7694 = vmatpush1.xpose.msra.mxu0 0.0
        %7695 = vmatprep.subr.mxu0 0.0
        %7696 = vmatpush1.xpose.msra.mxu0 0.0
        %7697 = vmatprep.subr.mxu0 0.0
        %7698 = vmatpush1.xpose.msra.mxu0 0.0
        %7699 = vmatprep.subr.mxu0 0.0
        %7700 = vmatpush1.xpose.msra.mxu0 0.0
        %7701 = vmatprep.subr.mxu0 0.0
        %7702 = vmatpush1.xpose.msra.mxu0 0.0
        %7703 = vmatprep.subr.mxu0 0.0
        %7704 = vmatpush1.xpose.msra.mxu0 0.0
        %7705 = vmatprep.subr.mxu0 0.0
        %7706 = vmatpush1.xpose.msra.mxu0 0.0
        %7707 = vmatprep.subr.mxu0 0.0
        %7708 = vmatpush1.xpose.msra.mxu0 0.0
        %7709 = vmatprep.subr.mxu0 0.0
        %7710 = vmatpush1.xpose.msra.mxu0 0.0
        %7711 = vmatprep.subr.mxu0 0.0
        %7712 = vmatpush1.xpose.msra.mxu0 0.0
        %7713 = vmatprep.subr.mxu0 0.0
        %7714 = vmatpush1.xpose.msra.mxu0 0.0
        %7715 = vmatprep.subr.mxu0 0.0
        %7716 = vmatpush1.xpose.msra.mxu0 0.0
        %7717 = vmatprep.subr.mxu0 0.0
        %7718 = vmatpush1.xpose.msra.mxu0 0.0
        %7719 = vmatprep.subr.mxu0 0.0
        %7720 = vmatpush1.xpose.msra.mxu0 0.0
        %7721 = vmatprep.subr.mxu0 0.0
        %7722 = vmatpush1.xpose.msra.mxu0 0.0
        %7723 = vmatprep.subr.mxu0 0.0
        %7724 = vmatpush1.xpose.msra.mxu0 0.0
        %7725 = vmatprep.mubr.f32.mxu0 0.0
        %v7726 = vand.u32 %v7228, 4294901760
        %7727 = vmatmul.mubr.f32.gmra.mrb[0].mxu0 %v7726
        %v7728 = vpop.f32.mrb[0].mxu0
        %v7729 = vadd.f32 %v7650, %v7728
        %v7730 = vpop.f32.mrb[0].mxu0
        %7731 = vmatprep.mubr.f32.mxu0 0.0
        %v7732 = vand.u32 %v7230, 4294901760
        %7733 = vmatmul.mubr.f32.gmra.mrb[0].mxu0 %v7732
        %v7734 = vpop.f32.mrb[0].mxu0
        %v7735 = vadd.f32 %v7656, %v7734
        %v7736 = vpop.f32.mrb[0].mxu0
        %7737 = vdwg.mxu0
        %v7738 = vmul.f32 %v7729, 0.17677669
        %v7739 = vmul.f32 %v7735, 0.17677669
        %v7740 = vadd.f32 %v7738, %v4538
        %v7741 = vadd.f32 %v7739, %v4538
        %v7742 = vsel %vm4542, %v7740, -inf
        %7743 = vmax.xlane.f32.xlu0 %v7742
        %v7744 = vpop.xlane.xlu0 %7743
        %v7745 = vsel %vm4542, %v7741, -inf
        %7746 = vmax.xlane.f32.xlu0 %v7745
        %v7747 = vpop.xlane.xlu0 %7746
        %v7748 = vsub.f32 %v7740, %v7744
        %v7749 = vsub.f32 %v7741, %v7747
        %v7750 = vmul.f32 %v7748, 1.442695
        %v7751 = vpow.pop %v7750
        %v7752 = vmul.f32 %v7749, 1.442695
        %v7753 = vpow.pop %v7752
        %v7754 = vsel %vm4542, %v7751, 0.0
        %7755 = vadd.xlane.f32.xlu0 %v7754
        %v7756 = vpop.xlane.xlu0 %7755
        %v7757 = vsel %vm4542, %v7753, 0.0
        %7758 = vadd.xlane.f32.xlu0 %v7757
        %v7759 = vpop.xlane.xlu0 %7758
        %v7760 = vrcp.pop %v7756
        %v7761 = vmul.f32 %v7751, %v7760
        %v7762 = vrcp.pop %v7759
        %v7763 = vmul.f32 %v7753, %v7762
        %7764 = vrot.lane.b32.xlu0 %v4005, 64
        %v7765 = vpop.permute.xlu0 %7764
        %7766 = vrot.lane.b32.xlu0 %v4012, 64
        %v7767 = vpop.permute.xlu0 %7766
        %v7771 = vsel %vm4542, %v7761, 0
        %v7774 = vsel %vm4542, %v7763, 0
        %7776 = vmatprep.subr.mxu0 0.0
        %v7777 = vand.u32 %v7765, 4294901760
        %7778 = vmatpush1.msra.mxu0 %v7777
        %7779 = vmatprep.subr.mxu0 0.0
        %v7780 = vand.u32 %v7767, 4294901760
        %7781 = vmatpush1.msra.mxu0 %v7780
        %7782 = vmatprep.subr.mxu0 0.0
        %7783 = vmatpush1.msra.mxu0 0.0
        %7784 = vmatprep.subr.mxu0 0.0
        %7785 = vmatpush1.msra.mxu0 0.0
        %7786 = vmatprep.subr.mxu0 0.0
        %7787 = vmatpush1.msra.mxu0 0.0
        %7788 = vmatprep.subr.mxu0 0.0
        %7789 = vmatpush1.msra.mxu0 0.0
        %7790 = vmatprep.subr.mxu0 0.0
        %7791 = vmatpush1.msra.mxu0 0.0
        %7792 = vmatprep.subr.mxu0 0.0
        %7793 = vmatpush1.msra.mxu0 0.0
        %7794 = vmatprep.subr.mxu0 0.0
        %7795 = vmatpush1.msra.mxu0 0.0
        %7796 = vmatprep.subr.mxu0 0.0
        %7797 = vmatpush1.msra.mxu0 0.0
        %7798 = vmatprep.subr.mxu0 0.0
        %7799 = vmatpush1.msra.mxu0 0.0
        %7800 = vmatprep.subr.mxu0 0.0
        %7801 = vmatpush1.msra.mxu0 0.0
        %7802 = vmatprep.subr.mxu0 0.0
        %7803 = vmatpush1.msra.mxu0 0.0
        %7804 = vmatprep.subr.mxu0 0.0
        %7805 = vmatpush1.msra.mxu0 0.0
        %7806 = vmatprep.subr.mxu0 0.0
        %7807 = vmatpush1.msra.mxu0 0.0
        %7808 = vmatprep.subr.mxu0 0.0
        %7809 = vmatpush1.msra.mxu0 0.0
        %7810 = vmatprep.subr.mxu0 0.0
        %7811 = vmatpush1.msra.mxu0 0.0
        %7812 = vmatprep.subr.mxu0 0.0
        %7813 = vmatpush1.msra.mxu0 0.0
        %7814 = vmatprep.subr.mxu0 0.0
        %7815 = vmatpush1.msra.mxu0 0.0
        %7816 = vmatprep.subr.mxu0 0.0
        %7817 = vmatpush1.msra.mxu0 0.0
        %7818 = vmatprep.subr.mxu0 0.0
        %7819 = vmatpush1.msra.mxu0 0.0
        %7820 = vmatprep.subr.mxu0 0.0
        %7821 = vmatpush1.msra.mxu0 0.0
        %7822 = vmatprep.subr.mxu0 0.0
        %7823 = vmatpush1.msra.mxu0 0.0
        %7824 = vmatprep.subr.mxu0 0.0
        %7825 = vmatpush1.msra.mxu0 0.0
        %7826 = vmatprep.subr.mxu0 0.0
        %7827 = vmatpush1.msra.mxu0 0.0
        %7828 = vmatprep.subr.mxu0 0.0
        %7829 = vmatpush1.msra.mxu0 0.0
        %7830 = vmatprep.subr.mxu0 0.0
        %7831 = vmatpush1.msra.mxu0 0.0
        %7832 = vmatprep.subr.mxu0 0.0
        %7833 = vmatpush1.msra.mxu0 0.0
        %7834 = vmatprep.subr.mxu0 0.0
        %7835 = vmatpush1.msra.mxu0 0.0
        %7836 = vmatprep.subr.mxu0 0.0
        %7837 = vmatpush1.msra.mxu0 0.0
        %7838 = vmatprep.subr.mxu0 0.0
        %7839 = vmatpush1.msra.mxu0 0.0
        %7840 = vmatprep.subr.mxu0 0.0
        %7841 = vmatpush1.msra.mxu0 0.0
        %7842 = vmatprep.mubr.f32.mxu0 0.0
        %v7843 = vand.u32 %v7771, 4294901760
        %v7844 = vsub.f32 %v7771, %v7843
        %v7845 = vand.u32 %v7844, 4294901760
        %v7846 = vsub.f32 %v7844, %v7845
        %v7847 = vand.u32 %v7846, 4294901760
        %7848 = vmatmul.mubr.f32.gmra.mrb[0].mxu0 %v7847
        %v7849 = vpop.f32.mrb[0].mxu0
        %v7850 = vadd.f32 0.0, %v7849
        %v7851 = vpop.f32.mrb[0].mxu0
        %7852 = vmatprep.mubr.f32.mxu0 0.0
        %v7853 = vand.u32 %v7774, 4294901760
        %v7854 = vsub.f32 %v7774, %v7853
        %v7855 = vand.u32 %v7854, 4294901760
        %v7856 = vsub.f32 %v7854, %v7855
        %v7857 = vand.u32 %v7856, 4294901760
        %7858 = vmatmul.mubr.f32.gmra.mrb[0].mxu0 %v7857
        %v7859 = vpop.f32.mrb[0].mxu0
        %v7860 = vadd.f32 0.0, %v7859
        %v7861 = vpop.f32.mrb[0].mxu0
        %7862 = vdwg.mxu0
        %7863 = vmatprep.subr.mxu0 0.0
        %v7864 = vand.u32 %v7765, 4294901760
        %v7865 = vsub.f32 %v7765, %v7864
        %v7866 = vand.u32 %v7865, 4294901760
        %v7867 = vsub.f32 %v7865, %v7866
        %v7868 = vand.u32 %v7867, 4294901760
        %7869 = vmatpush1.msra.mxu0 %v7868
        %7870 = vmatprep.subr.mxu0 0.0
        %v7871 = vand.u32 %v7767, 4294901760
        %v7872 = vsub.f32 %v7767, %v7871
        %v7873 = vand.u32 %v7872, 4294901760
        %v7874 = vsub.f32 %v7872, %v7873
        %v7875 = vand.u32 %v7874, 4294901760
        %7876 = vmatpush1.msra.mxu0 %v7875
        %7877 = vmatprep.subr.mxu0 0.0
        %7878 = vmatpush1.msra.mxu0 0.0
        %7879 = vmatprep.subr.mxu0 0.0
        %7880 = vmatpush1.msra.mxu0 0.0
        %7881 = vmatprep.subr.mxu0 0.0
        %7882 = vmatpush1.msra.mxu0 0.0
        %7883 = vmatprep.subr.mxu0 0.0
        %7884 = vmatpush1.msra.mxu0 0.0
        %7885 = vmatprep.subr.mxu0 0.0
        %7886 = vmatpush1.msra.mxu0 0.0
        %7887 = vmatprep.subr.mxu0 0.0
        %7888 = vmatpush1.msra.mxu0 0.0
        %7889 = vmatprep.subr.mxu0 0.0
        %7890 = vmatpush1.msra.mxu0 0.0
        %7891 = vmatprep.subr.mxu0 0.0
        %7892 = vmatpush1.msra.mxu0 0.0
        %7893 = vmatprep.subr.mxu0 0.0
        %7894 = vmatpush1.msra.mxu0 0.0
        %7895 = vmatprep.subr.mxu0 0.0
        %7896 = vmatpush1.msra.mxu0 0.0
        %7897 = vmatprep.subr.mxu0 0.0
        %7898 = vmatpush1.msra.mxu0 0.0
        %7899 = vmatprep.subr.mxu0 0.0
        %7900 = vmatpush1.msra.mxu0 0.0
        %7901 = vmatprep.subr.mxu0 0.0
        %7902 = vmatpush1.msra.mxu0 0.0
        %7903 = vmatprep.subr.mxu0 0.0
        %7904 = vmatpush1.msra.mxu0 0.0
        %7905 = vmatprep.subr.mxu0 0.0
        %7906 = vmatpush1.msra.mxu0 0.0
        %7907 = vmatprep.subr.mxu0 0.0
        %7908 = vmatpush1.msra.mxu0 0.0
        %7909 = vmatprep.subr.mxu0 0.0
        %7910 = vmatpush1.msra.mxu0 0.0
        %7911 = vmatprep.subr.mxu0 0.0
        %7912 = vmatpush1.msra.mxu0 0.0
        %7913 = vmatprep.subr.mxu0 0.0
        %7914 = vmatpush1.msra.mxu0 0.0
        %7915 = vmatprep.subr.mxu0 0.0
        %7916 = vmatpush1.msra.mxu0 0.0
        %7917 = vmatprep.subr.mxu0 0.0
        %7918 = vmatpush1.msra.mxu0 0.0
        %7919 = vmatprep.subr.mxu0 0.0
        %7920 = vmatpush1.msra.mxu0 0.0
        %7921 = vmatprep.subr.mxu0 0.0
        %7922 = vmatpush1.msra.mxu0 0.0
        %7923 = vmatprep.subr.mxu0 0.0
        %7924 = vmatpush1.msra.mxu0 0.0
        %7925 = vmatprep.subr.mxu0 0.0
        %7926 = vmatpush1.msra.mxu0 0.0
        %7927 = vmatprep.subr.mxu0 0.0
        %7928 = vmatpush1.msra.mxu0 0.0
        %7929 = vmatprep.subr.mxu0 0.0
        %7930 = vmatpush1.msra.mxu0 0.0
        %7931 = vmatprep.subr.mxu0 0.0
        %7932 = vmatpush1.msra.mxu0 0.0
        %7933 = vmatprep.subr.mxu0 0.0
        %7934 = vmatpush1.msra.mxu0 0.0
        %7935 = vmatprep.subr.mxu0 0.0
        %7936 = vmatpush1.msra.mxu0 0.0
        %7937 = vmatprep.mubr.f32.mxu0 0.0
        %v7938 = vand.u32 %v7771, 4294901760
        %7939 = vmatmul.mubr.f32.gmra.mrb[0].mxu0 %v7938
        %v7940 = vpop.f32.mrb[0].mxu0
        %v7941 = vadd.f32 %v7850, %v7940
        %v7942 = vpop.f32.mrb[0].mxu0
        %7943 = vmatprep.mubr.f32.mxu0 0.0
        %v7944 = vand.u32 %v7774, 4294901760
        %7945 = vmatmul.mubr.f32.gmra.mrb[0].mxu0 %v7944
        %v7946 = vpop.f32.mrb[0].mxu0
        %v7947 = vadd.f32 %v7860, %v7946
        %v7948 = vpop.f32.mrb[0].mxu0
        %7949 = vdwg.mxu0
        %7950 = vmatprep.subr.mxu0 0.0
        %v7951 = vand.u32 %v7765, 4294901760
        %v7952 = vsub.f32 %v7765, %v7951
        %7953 = vmatpush1.msra.mxu0 %v7952
        %7954 = vmatprep.subr.mxu0 0.0
        %v7955 = vand.u32 %v7767, 4294901760
        %v7956 = vsub.f32 %v7767, %v7955
        %7957 = vmatpush1.msra.mxu0 %v7956
        %7958 = vmatprep.subr.mxu0 0.0
        %7959 = vmatpush1.msra.mxu0 0.0
        %7960 = vmatprep.subr.mxu0 0.0
        %7961 = vmatpush1.msra.mxu0 0.0
        %7962 = vmatprep.subr.mxu0 0.0
        %7963 = vmatpush1.msra.mxu0 0.0
        %7964 = vmatprep.subr.mxu0 0.0
        %7965 = vmatpush1.msra.mxu0 0.0
        %7966 = vmatprep.subr.mxu0 0.0
        %7967 = vmatpush1.msra.mxu0 0.0
        %7968 = vmatprep.subr.mxu0 0.0
        %7969 = vmatpush1.msra.mxu0 0.0
        %7970 = vmatprep.subr.mxu0 0.0
        %7971 = vmatpush1.msra.mxu0 0.0
        %7972 = vmatprep.subr.mxu0 0.0
        %7973 = vmatpush1.msra.mxu0 0.0
        %7974 = vmatprep.subr.mxu0 0.0
        %7975 = vmatpush1.msra.mxu0 0.0
        %7976 = vmatprep.subr.mxu0 0.0
        %7977 = vmatpush1.msra.mxu0 0.0
        %7978 = vmatprep.subr.mxu0 0.0
        %7979 = vmatpush1.msra.mxu0 0.0
        %7980 = vmatprep.subr.mxu0 0.0
        %7981 = vmatpush1.msra.mxu0 0.0
        %7982 = vmatprep.subr.mxu0 0.0
        %7983 = vmatpush1.msra.mxu0 0.0
        %7984 = vmatprep.subr.mxu0 0.0
        %7985 = vmatpush1.msra.mxu0 0.0
        %7986 = vmatprep.subr.mxu0 0.0
        %7987 = vmatpush1.msra.mxu0 0.0
        %7988 = vmatprep.subr.mxu0 0.0
        %7989 = vmatpush1.msra.mxu0 0.0
        %7990 = vmatprep.subr.mxu0 0.0
        %7991 = vmatpush1.msra.mxu0 0.0
        %7992 = vmatprep.subr.mxu0 0.0
        %7993 = vmatpush1.msra.mxu0 0.0
        %7994 = vmatprep.subr.mxu0 0.0
        %7995 = vmatpush1.msra.mxu0 0.0
        %7996 = vmatprep.subr.mxu0 0.0
        %7997 = vmatpush1.msra.mxu0 0.0
        %7998 = vmatprep.subr.mxu0 0.0
        %7999 = vmatpush1.msra.mxu0 0.0
        %8000 = vmatprep.subr.mxu0 0.0
        %8001 = vmatpush1.msra.mxu0 0.0
        %8002 = vmatprep.subr.mxu0 0.0
        %8003 = vmatpush1.msra.mxu0 0.0
        %8004 = vmatprep.subr.mxu0 0.0
        %8005 = vmatpush1.msra.mxu0 0.0
        %8006 = vmatprep.subr.mxu0 0.0
        %8007 = vmatpush1.msra.mxu0 0.0
        %8008 = vmatprep.subr.mxu0 0.0
        %8009 = vmatpush1.msra.mxu0 0.0
        %8010 = vmatprep.subr.mxu0 0.0
        %8011 = vmatpush1.msra.mxu0 0.0
        %8012 = vmatprep.subr.mxu0 0.0
        %8013 = vmatpush1.msra.mxu0 0.0
        %8014 = vmatprep.subr.mxu0 0.0
        %8015 = vmatpush1.msra.mxu0 0.0
        %8016 = vmatprep.subr.mxu0 0.0
        %8017 = vmatpush1.msra.mxu0 0.0
        %8018 = vmatprep.mubr.f32.mxu0 0.0
        %v8019 = vand.u32 %v7771, 4294901760
        %v8020 = vsub.f32 %v7771, %v8019
        %8021 = vmatmul.mubr.f32.gmra.mrb[0].mxu0 %v8020
        %v8022 = vpop.f32.mrb[0].mxu0
        %v8023 = vadd.f32 %v7941, %v8022
        %v8024 = vpop.f32.mrb[0].mxu0
        %8025 = vmatprep.mubr.f32.mxu0 0.0
        %v8026 = vand.u32 %v7774, 4294901760
        %v8027 = vsub.f32 %v7774, %v8026
        %8028 = vmatmul.mubr.f32.gmra.mrb[0].mxu0 %v8027
        %v8029 = vpop.f32.mrb[0].mxu0
        %v8030 = vadd.f32 %v7947, %v8029
        %v8031 = vpop.f32.mrb[0].mxu0
        %8032 = vdwg.mxu0
        %8033 = vmatprep.subr.mxu0 0.0
        %v8034 = vand.u32 %v7765, 4294901760
        %8035 = vmatpush1.msra.mxu0 %v8034
        %8036 = vmatprep.subr.mxu0 0.0
        %v8037 = vand.u32 %v7767, 4294901760
        %8038 = vmatpush1.msra.mxu0 %v8037
        %8039 = vmatprep.subr.mxu0 0.0
        %8040 = vmatpush1.msra.mxu0 0.0
        %8041 = vmatprep.subr.mxu0 0.0
        %8042 = vmatpush1.msra.mxu0 0.0
        %8043 = vmatprep.subr.mxu0 0.0
        %8044 = vmatpush1.msra.mxu0 0.0
        %8045 = vmatprep.subr.mxu0 0.0
        %8046 = vmatpush1.msra.mxu0 0.0
        %8047 = vmatprep.subr.mxu0 0.0
        %8048 = vmatpush1.msra.mxu0 0.0
        %8049 = vmatprep.subr.mxu0 0.0
        %8050 = vmatpush1.msra.mxu0 0.0
        %8051 = vmatprep.subr.mxu0 0.0
        %8052 = vmatpush1.msra.mxu0 0.0
        %8053 = vmatprep.subr.mxu0 0.0
        %8054 = vmatpush1.msra.mxu0 0.0
        %8055 = vmatprep.subr.mxu0 0.0
        %8056 = vmatpush1.msra.mxu0 0.0
        %8057 = vmatprep.subr.mxu0 0.0
        %8058 = vmatpush1.msra.mxu0 0.0
        %8059 = vmatprep.subr.mxu0 0.0
        %8060 = vmatpush1.msra.mxu0 0.0
        %8061 = vmatprep.subr.mxu0 0.0
        %8062 = vmatpush1.msra.mxu0 0.0
        %8063 = vmatprep.subr.mxu0 0.0
        %8064 = vmatpush1.msra.mxu0 0.0
        %8065 = vmatprep.subr.mxu0 0.0
        %8066 = vmatpush1.msra.mxu0 0.0
        %8067 = vmatprep.subr.mxu0 0.0
        %8068 = vmatpush1.msra.mxu0 0.0
        %8069 = vmatprep.subr.mxu0 0.0
        %8070 = vmatpush1.msra.mxu0 0.0
        %8071 = vmatprep.subr.mxu0 0.0
        %8072 = vmatpush1.msra.mxu0 0.0
        %8073 = vmatprep.subr.mxu0 0.0
        %8074 = vmatpush1.msra.mxu0 0.0
        %8075 = vmatprep.subr.mxu0 0.0
        %8076 = vmatpush1.msra.mxu0 0.0
        %8077 = vmatprep.subr.mxu0 0.0
        %8078 = vmatpush1.msra.mxu0 0.0
        %8079 = vmatprep.subr.mxu0 0.0
        %8080 = vmatpush1.msra.mxu0 0.0
        %8081 = vmatprep.subr.mxu0 0.0
        %8082 = vmatpush1.msra.mxu0 0.0
        %8083 = vmatprep.subr.mxu0 0.0
        %8084 = vmatpush1.msra.mxu0 0.0
        %8085 = vmatprep.subr.mxu0 0.0
        %8086 = vmatpush1.msra.mxu0 0.0
        %8087 = vmatprep.subr.mxu0 0.0
        %8088 = vmatpush1.msra.mxu0 0.0
        %8089 = vmatprep.subr.mxu0 0.0
        %8090 = vmatpush1.msra.mxu0 0.0
        %8091 = vmatprep.subr.mxu0 0.0
        %8092 = vmatpush1.msra.mxu0 0.0
        %8093 = vmatprep.subr.mxu0 0.0
        %8094 = vmatpush1.msra.mxu0 0.0
        %8095 = vmatprep.subr.mxu0 0.0
        %8096 = vmatpush1.msra.mxu0 0.0
        %8097 = vmatprep.subr.mxu0 0.0
        %8098 = vmatpush1.msra.mxu0 0.0
        %8099 = vmatprep.mubr.f32.mxu0 0.0
        %v8100 = vand.u32 %v7771, 4294901760
        %v8101 = vsub.f32 %v7771, %v8100
        %v8102 = vand.u32 %v8101, 4294901760
        %8103 = vmatmul.mubr.f32.gmra.mrb[0].mxu0 %v8102
        %v8104 = vpop.f32.mrb[0].mxu0
        %v8105 = vadd.f32 %v8023, %v8104
        %v8106 = vpop.f32.mrb[0].mxu0
        %8107 = vmatprep.mubr.f32.mxu0 0.0
        %v8108 = vand.u32 %v7774, 4294901760
        %v8109 = vsub.f32 %v7774, %v8108
        %v8110 = vand.u32 %v8109, 4294901760
        %8111 = vmatmul.mubr.f32.gmra.mrb[0].mxu0 %v8110
        %v8112 = vpop.f32.mrb[0].mxu0
        %v8113 = vadd.f32 %v8030, %v8112
        %v8114 = vpop.f32.mrb[0].mxu0
        %8115 = vdwg.mxu0
        %8116 = vmatprep.subr.mxu0 0.0
        %v8117 = vand.u32 %v7765, 4294901760
        %v8118 = vsub.f32 %v7765, %v8117
        %v8119 = vand.u32 %v8118, 4294901760
        %8120 = vmatpush1.msra.mxu0 %v8119
        %8121 = vmatprep.subr.mxu0 0.0
        %v8122 = vand.u32 %v7767, 4294901760
        %v8123 = vsub.f32 %v7767, %v8122
        %v8124 = vand.u32 %v8123, 4294901760
        %8125 = vmatpush1.msra.mxu0 %v8124
        %8126 = vmatprep.subr.mxu0 0.0
        %8127 = vmatpush1.msra.mxu0 0.0
        %8128 = vmatprep.subr.mxu0 0.0
        %8129 = vmatpush1.msra.mxu0 0.0
        %8130 = vmatprep.subr.mxu0 0.0
        %8131 = vmatpush1.msra.mxu0 0.0
        %8132 = vmatprep.subr.mxu0 0.0
        %8133 = vmatpush1.msra.mxu0 0.0
        %8134 = vmatprep.subr.mxu0 0.0
        %8135 = vmatpush1.msra.mxu0 0.0
        %8136 = vmatprep.subr.mxu0 0.0
        %8137 = vmatpush1.msra.mxu0 0.0
        %8138 = vmatprep.subr.mxu0 0.0
        %8139 = vmatpush1.msra.mxu0 0.0
        %8140 = vmatprep.subr.mxu0 0.0
        %8141 = vmatpush1.msra.mxu0 0.0
        %8142 = vmatprep.subr.mxu0 0.0
        %8143 = vmatpush1.msra.mxu0 0.0
        %8144 = vmatprep.subr.mxu0 0.0
        %8145 = vmatpush1.msra.mxu0 0.0
        %8146 = vmatprep.subr.mxu0 0.0
        %8147 = vmatpush1.msra.mxu0 0.0
        %8148 = vmatprep.subr.mxu0 0.0
        %8149 = vmatpush1.msra.mxu0 0.0
        %8150 = vmatprep.subr.mxu0 0.0
        %8151 = vmatpush1.msra.mxu0 0.0
        %8152 = vmatprep.subr.mxu0 0.0
        %8153 = vmatpush1.msra.mxu0 0.0
        %8154 = vmatprep.subr.mxu0 0.0
        %8155 = vmatpush1.msra.mxu0 0.0
        %8156 = vmatprep.subr.mxu0 0.0
        %8157 = vmatpush1.msra.mxu0 0.0
        %8158 = vmatprep.subr.mxu0 0.0
        %8159 = vmatpush1.msra.mxu0 0.0
        %8160 = vmatprep.subr.mxu0 0.0
        %8161 = vmatpush1.msra.mxu0 0.0
        %8162 = vmatprep.subr.mxu0 0.0
        %8163 = vmatpush1.msra.mxu0 0.0
        %8164 = vmatprep.subr.mxu0 0.0
        %8165 = vmatpush1.msra.mxu0 0.0
        %8166 = vmatprep.subr.mxu0 0.0
        %8167 = vmatpush1.msra.mxu0 0.0
        %8168 = vmatprep.subr.mxu0 0.0
        %8169 = vmatpush1.msra.mxu0 0.0
        %8170 = vmatprep.subr.mxu0 0.0
        %8171 = vmatpush1.msra.mxu0 0.0
        %8172 = vmatprep.subr.mxu0 0.0
        %8173 = vmatpush1.msra.mxu0 0.0
        %8174 = vmatprep.subr.mxu0 0.0
        %8175 = vmatpush1.msra.mxu0 0.0
        %8176 = vmatprep.subr.mxu0 0.0
        %8177 = vmatpush1.msra.mxu0 0.0
        %8178 = vmatprep.subr.mxu0 0.0
        %8179 = vmatpush1.msra.mxu0 0.0
        %8180 = vmatprep.subr.mxu0 0.0
        %8181 = vmatpush1.msra.mxu0 0.0
        %8182 = vmatprep.subr.mxu0 0.0
        %8183 = vmatpush1.msra.mxu0 0.0
        %8184 = vmatprep.subr.mxu0 0.0
        %8185 = vmatpush1.msra.mxu0 0.0
        %8186 = vmatprep.mubr.f32.mxu0 0.0
        %v8187 = vand.u32 %v7771, 4294901760
        %8188 = vmatmul.mubr.f32.gmra.mrb[0].mxu0 %v8187
        %v8189 = vpop.f32.mrb[0].mxu0
        %v8190 = vadd.f32 %v8105, %v8189
        %v8191 = vpop.f32.mrb[0].mxu0
        %8192 = vmatprep.mubr.f32.mxu0 0.0
        %v8193 = vand.u32 %v7774, 4294901760
        %8194 = vmatmul.mubr.f32.gmra.mrb[0].mxu0 %v8193
        %v8195 = vpop.f32.mrb[0].mxu0
        %v8196 = vadd.f32 %v8113, %v8195
        %v8197 = vpop.f32.mrb[0].mxu0
        %8198 = vdwg.mxu0
        %8199 = vmatprep.subr.mxu0 0.0
        %v8200 = vand.u32 %v7765, 4294901760
        %8201 = vmatpush1.msra.mxu0 %v8200
        %8202 = vmatprep.subr.mxu0 0.0
        %v8203 = vand.u32 %v7767, 4294901760
        %8204 = vmatpush1.msra.mxu0 %v8203
        %8205 = vmatprep.subr.mxu0 0.0
        %8206 = vmatpush1.msra.mxu0 0.0
        %8207 = vmatprep.subr.mxu0 0.0
        %8208 = vmatpush1.msra.mxu0 0.0
        %8209 = vmatprep.subr.mxu0 0.0
        %8210 = vmatpush1.msra.mxu0 0.0
        %8211 = vmatprep.subr.mxu0 0.0
        %8212 = vmatpush1.msra.mxu0 0.0
        %8213 = vmatprep.subr.mxu0 0.0
        %8214 = vmatpush1.msra.mxu0 0.0
        %8215 = vmatprep.subr.mxu0 0.0
        %8216 = vmatpush1.msra.mxu0 0.0
        %8217 = vmatprep.subr.mxu0 0.0
        %8218 = vmatpush1.msra.mxu0 0.0
        %8219 = vmatprep.subr.mxu0 0.0
        %8220 = vmatpush1.msra.mxu0 0.0
        %8221 = vmatprep.subr.mxu0 0.0
        %8222 = vmatpush1.msra.mxu0 0.0
        %8223 = vmatprep.subr.mxu0 0.0
        %8224 = vmatpush1.msra.mxu0 0.0
        %8225 = vmatprep.subr.mxu0 0.0
        %8226 = vmatpush1.msra.mxu0 0.0
        %8227 = vmatprep.subr.mxu0 0.0
        %8228 = vmatpush1.msra.mxu0 0.0
        %8229 = vmatprep.subr.mxu0 0.0
        %8230 = vmatpush1.msra.mxu0 0.0
        %8231 = vmatprep.subr.mxu0 0.0
        %8232 = vmatpush1.msra.mxu0 0.0
        %8233 = vmatprep.subr.mxu0 0.0
        %8234 = vmatpush1.msra.mxu0 0.0
        %8235 = vmatprep.subr.mxu0 0.0
        %8236 = vmatpush1.msra.mxu0 0.0
        %8237 = vmatprep.subr.mxu0 0.0
        %8238 = vmatpush1.msra.mxu0 0.0
        %8239 = vmatprep.subr.mxu0 0.0
        %8240 = vmatpush1.msra.mxu0 0.0
        %8241 = vmatprep.subr.mxu0 0.0
        %8242 = vmatpush1.msra.mxu0 0.0
        %8243 = vmatprep.subr.mxu0 0.0
        %8244 = vmatpush1.msra.mxu0 0.0
        %8245 = vmatprep.subr.mxu0 0.0
        %8246 = vmatpush1.msra.mxu0 0.0
        %8247 = vmatprep.subr.mxu0 0.0
        %8248 = vmatpush1.msra.mxu0 0.0
        %8249 = vmatprep.subr.mxu0 0.0
        %8250 = vmatpush1.msra.mxu0 0.0
        %8251 = vmatprep.subr.mxu0 0.0
        %8252 = vmatpush1.msra.mxu0 0.0
        %8253 = vmatprep.subr.mxu0 0.0
        %8254 = vmatpush1.msra.mxu0 0.0
        %8255 = vmatprep.subr.mxu0 0.0
        %8256 = vmatpush1.msra.mxu0 0.0
        %8257 = vmatprep.subr.mxu0 0.0
        %8258 = vmatpush1.msra.mxu0 0.0
        %8259 = vmatprep.subr.mxu0 0.0
        %8260 = vmatpush1.msra.mxu0 0.0
        %8261 = vmatprep.subr.mxu0 0.0
        %8262 = vmatpush1.msra.mxu0 0.0
        %8263 = vmatprep.subr.mxu0 0.0
        %8264 = vmatpush1.msra.mxu0 0.0
        %8265 = vmatprep.mubr.f32.mxu0 0.0
        %v8266 = vand.u32 %v7771, 4294901760
        %8267 = vmatmul.mubr.f32.gmra.mrb[0].mxu0 %v8266
        %v8268 = vpop.f32.mrb[0].mxu0
        %v8269 = vadd.f32 %v8190, %v8268
        %v8270 = vpop.f32.mrb[0].mxu0
        %8271 = vmatprep.mubr.f32.mxu0 0.0
        %v8272 = vand.u32 %v7774, 4294901760
        %8273 = vmatmul.mubr.f32.gmra.mrb[0].mxu0 %v8272
        %v8274 = vpop.f32.mrb[0].mxu0
        %v8275 = vadd.f32 %v8196, %v8274
        %v8276 = vpop.f32.mrb[0].mxu0
        %8277 = vdwg.mxu0
        %s8278 = scalar_lea.vmem [#allocation13], 64
        %v8279 = vld [vmem:[%s8278] sm:$0xff]
        %v8280 = vld [vmem:[%s8278 + $0x8] sm:$0xff]
        %v8281 = vld [vmem:[%s8278 + $0x10] sm:$0xff]
        %v8282 = vld [vmem:[%s8278 + $0x18] sm:$0xff]
        %v8284 = vsel %vm4017, %v8269, 0
        %v8287 = vsel %vm4017, %v8275, 0
        %8289 = vmatprep.subr.mxu0 0.0
        %v8290 = vand.u32 %v8279, 4294901760
        %8291 = vmatpush1.msra.mxu0 %v8290
        %8292 = vmatprep.subr.mxu0 0.0
        %v8293 = vand.u32 %v8280, 4294901760
        %8294 = vmatpush1.msra.mxu0 %v8293
        %8295 = vmatprep.subr.mxu0 0.0
        %v8296 = vand.u32 %v8281, 4294901760
        %8297 = vmatpush1.msra.mxu0 %v8296
        %8298 = vmatprep.subr.mxu0 0.0
        %v8299 = vand.u32 %v8282, 4294901760
        %8300 = vmatpush1.msra.mxu0 %v8299
        %8301 = vmatprep.subr.mxu0 0.0
        %8302 = vmatpush1.msra.mxu0 0.0
        %8303 = vmatprep.subr.mxu0 0.0
        %8304 = vmatpush1.msra.mxu0 0.0
        %8305 = vmatprep.subr.mxu0 0.0
        %8306 = vmatpush1.msra.mxu0 0.0
        %8307 = vmatprep.subr.mxu0 0.0
        %8308 = vmatpush1.msra.mxu0 0.0
        %8309 = vmatprep.subr.mxu0 0.0
        %8310 = vmatpush1.msra.mxu0 0.0
        %8311 = vmatprep.subr.mxu0 0.0
        %8312 = vmatpush1.msra.mxu0 0.0
        %8313 = vmatprep.subr.mxu0 0.0
        %8314 = vmatpush1.msra.mxu0 0.0
        %8315 = vmatprep.subr.mxu0 0.0
        %8316 = vmatpush1.msra.mxu0 0.0
        %8317 = vmatprep.subr.mxu0 0.0
        %8318 = vmatpush1.msra.mxu0 0.0
        %8319 = vmatprep.subr.mxu0 0.0
        %8320 = vmatpush1.msra.mxu0 0.0
        %8321 = vmatprep.subr.mxu0 0.0
        %8322 = vmatpush1.msra.mxu0 0.0
        %8323 = vmatprep.subr.mxu0 0.0
        %8324 = vmatpush1.msra.mxu0 0.0
        %8325 = vmatprep.subr.mxu0 0.0
        %8326 = vmatpush1.msra.mxu0 0.0
        %8327 = vmatprep.subr.mxu0 0.0
        %8328 = vmatpush1.msra.mxu0 0.0
        %8329 = vmatprep.subr.mxu0 0.0
        %8330 = vmatpush1.msra.mxu0 0.0
        %8331 = vmatprep.subr.mxu0 0.0
        %8332 = vmatpush1.msra.mxu0 0.0
        %8333 = vmatprep.subr.mxu0 0.0
        %8334 = vmatpush1.msra.mxu0 0.0
        %8335 = vmatprep.subr.mxu0 0.0
        %8336 = vmatpush1.msra.mxu0 0.0
        %8337 = vmatprep.subr.mxu0 0.0
        %8338 = vmatpush1.msra.mxu0 0.0
        %8339 = vmatprep.subr.mxu0 0.0
        %8340 = vmatpush1.msra.mxu0 0.0
        %8341 = vmatprep.subr.mxu0 0.0
        %8342 = vmatpush1.msra.mxu0 0.0
        %8343 = vmatprep.subr.mxu0 0.0
        %8344 = vmatpush1.msra.mxu0 0.0
        %8345 = vmatprep.subr.mxu0 0.0
        %8346 = vmatpush1.msra.mxu0 0.0
        %8347 = vmatprep.subr.mxu0 0.0
        %8348 = vmatpush1.msra.mxu0 0.0
        %8349 = vmatprep.subr.mxu0 0.0
        %8350 = vmatpush1.msra.mxu0 0.0
        %8351 = vmatprep.subr.mxu0 0.0
        %8352 = vmatpush1.msra.mxu0 0.0
        %8353 = vmatprep.subr.mxu0 0.0
        %8354 = vmatpush1.msra.mxu0 0.0
        %8355 = vmatprep.subr.mxu0 0.0
        %8356 = vmatpush1.msra.mxu0 0.0
        %8357 = vmatprep.mubr.f32.mxu0 0.0
        %v8358 = vand.u32 %v8284, 4294901760
        %v8359 = vsub.f32 %v8284, %v8358
        %v8360 = vand.u32 %v8359, 4294901760
        %v8361 = vsub.f32 %v8359, %v8360
        %v8362 = vand.u32 %v8361, 4294901760
        %8363 = vmatmul.mubr.f32.gmra.mrb[0].mxu0 %v8362
        %v8364 = vpop.f32.mrb[0].mxu0
        %v8365 = vadd.f32 0.0, %v8364
        %v8366 = vpop.f32.mrb[0].mxu0
        %8367 = vmatprep.mubr.f32.mxu0 0.0
        %v8368 = vand.u32 %v8287, 4294901760
        %v8369 = vsub.f32 %v8287, %v8368
        %v8370 = vand.u32 %v8369, 4294901760
        %v8371 = vsub.f32 %v8369, %v8370
        %v8372 = vand.u32 %v8371, 4294901760
        %8373 = vmatmul.mubr.f32.gmra.mrb[0].mxu0 %v8372
        %v8374 = vpop.f32.mrb[0].mxu0
        %v8375 = vadd.f32 0.0, %v8374
        %v8376 = vpop.f32.mrb[0].mxu0
        %8377 = vdwg.mxu0
        %8378 = vmatprep.subr.mxu0 0.0
        %v8379 = vand.u32 %v8279, 4294901760
        %v8380 = vsub.f32 %v8279, %v8379
        %v8381 = vand.u32 %v8380, 4294901760
        %v8382 = vsub.f32 %v8380, %v8381
        %v8383 = vand.u32 %v8382, 4294901760
        %8384 = vmatpush1.msra.mxu0 %v8383
        %8385 = vmatprep.subr.mxu0 0.0
        %v8386 = vand.u32 %v8280, 4294901760
        %v8387 = vsub.f32 %v8280, %v8386
        %v8388 = vand.u32 %v8387, 4294901760
        %v8389 = vsub.f32 %v8387, %v8388
        %v8390 = vand.u32 %v8389, 4294901760
        %8391 = vmatpush1.msra.mxu0 %v8390
        %8392 = vmatprep.subr.mxu0 0.0
        %v8393 = vand.u32 %v8281, 4294901760
        %v8394 = vsub.f32 %v8281, %v8393
        %v8395 = vand.u32 %v8394, 4294901760
        %v8396 = vsub.f32 %v8394, %v8395
        %v8397 = vand.u32 %v8396, 4294901760
        %8398 = vmatpush1.msra.mxu0 %v8397
        %8399 = vmatprep.subr.mxu0 0.0
        %v8400 = vand.u32 %v8282, 4294901760
        %v8401 = vsub.f32 %v8282, %v8400
        %v8402 = vand.u32 %v8401, 4294901760
        %v8403 = vsub.f32 %v8401, %v8402
        %v8404 = vand.u32 %v8403, 4294901760
        %8405 = vmatpush1.msra.mxu0 %v8404
        %8406 = vmatprep.subr.mxu0 0.0
        %8407 = vmatpush1.msra.mxu0 0.0
        %8408 = vmatprep.subr.mxu0 0.0
        %8409 = vmatpush1.msra.mxu0 0.0
        %8410 = vmatprep.subr.mxu0 0.0
        %8411 = vmatpush1.msra.mxu0 0.0
        %8412 = vmatprep.subr.mxu0 0.0
        %8413 = vmatpush1.msra.mxu0 0.0
        %8414 = vmatprep.subr.mxu0 0.0
        %8415 = vmatpush1.msra.mxu0 0.0
        %8416 = vmatprep.subr.mxu0 0.0
        %8417 = vmatpush1.msra.mxu0 0.0
        %8418 = vmatprep.subr.mxu0 0.0
        %8419 = vmatpush1.msra.mxu0 0.0
        %8420 = vmatprep.subr.mxu0 0.0
        %8421 = vmatpush1.msra.mxu0 0.0
        %8422 = vmatprep.subr.mxu0 0.0
        %8423 = vmatpush1.msra.mxu0 0.0
        %8424 = vmatprep.subr.mxu0 0.0
        %8425 = vmatpush1.msra.mxu0 0.0
        %8426 = vmatprep.subr.mxu0 0.0
        %8427 = vmatpush1.msra.mxu0 0.0
        %8428 = vmatprep.subr.mxu0 0.0
        %8429 = vmatpush1.msra.mxu0 0.0
        %8430 = vmatprep.subr.mxu0 0.0
        %8431 = vmatpush1.msra.mxu0 0.0
        %8432 = vmatprep.subr.mxu0 0.0
        %8433 = vmatpush1.msra.mxu0 0.0
        %8434 = vmatprep.subr.mxu0 0.0
        %8435 = vmatpush1.msra.mxu0 0.0
        %8436 = vmatprep.subr.mxu0 0.0
        %8437 = vmatpush1.msra.mxu0 0.0
        %8438 = vmatprep.subr.mxu0 0.0
        %8439 = vmatpush1.msra.mxu0 0.0
        %8440 = vmatprep.subr.mxu0 0.0
        %8441 = vmatpush1.msra.mxu0 0.0
        %8442 = vmatprep.subr.mxu0 0.0
        %8443 = vmatpush1.msra.mxu0 0.0
        %8444 = vmatprep.subr.mxu0 0.0
        %8445 = vmatpush1.msra.mxu0 0.0
        %8446 = vmatprep.subr.mxu0 0.0
        %8447 = vmatpush1.msra.mxu0 0.0
        %8448 = vmatprep.subr.mxu0 0.0
        %8449 = vmatpush1.msra.mxu0 0.0
        %8450 = vmatprep.subr.mxu0 0.0
        %8451 = vmatpush1.msra.mxu0 0.0
        %8452 = vmatprep.subr.mxu0 0.0
        %8453 = vmatpush1.msra.mxu0 0.0
        %8454 = vmatprep.subr.mxu0 0.0
        %8455 = vmatpush1.msra.mxu0 0.0
        %8456 = vmatprep.subr.mxu0 0.0
        %8457 = vmatpush1.msra.mxu0 0.0
        %8458 = vmatprep.subr.mxu0 0.0
        %8459 = vmatpush1.msra.mxu0 0.0
        %8460 = vmatprep.subr.mxu0 0.0
        %8461 = vmatpush1.msra.mxu0 0.0
        %8462 = vmatprep.mubr.f32.mxu0 0.0
        %v8463 = vand.u32 %v8284, 4294901760
        %8464 = vmatmul.mubr.f32.gmra.mrb[0].mxu0 %v8463
        %v8465 = vpop.f32.mrb[0].mxu0
        %v8466 = vadd.f32 %v8365, %v8465
        %v8467 = vpop.f32.mrb[0].mxu0
        %8468 = vmatprep.mubr.f32.mxu0 0.0
        %v8469 = vand.u32 %v8287, 4294901760
        %8470 = vmatmul.mubr.f32.gmra.mrb[0].mxu0 %v8469
        %v8471 = vpop.f32.mrb[0].mxu0
        %v8472 = vadd.f32 %v8375, %v8471
        %v8473 = vpop.f32.mrb[0].mxu0
        %8474 = vdwg.mxu0
        %8475 = vmatprep.subr.mxu0 0.0
        %v8476 = vand.u32 %v8279, 4294901760
        %v8477 = vsub.f32 %v8279, %v8476
        %8478 = vmatpush1.msra.mxu0 %v8477
        %8479 = vmatprep.subr.mxu0 0.0
        %v8480 = vand.u32 %v8280, 4294901760
        %v8481 = vsub.f32 %v8280, %v8480
        %8482 = vmatpush1.msra.mxu0 %v8481
        %8483 = vmatprep.subr.mxu0 0.0
        %v8484 = vand.u32 %v8281, 4294901760
        %v8485 = vsub.f32 %v8281, %v8484
        %8486 = vmatpush1.msra.mxu0 %v8485
        %8487 = vmatprep.subr.mxu0 0.0
        %v8488 = vand.u32 %v8282, 4294901760
        %v8489 = vsub.f32 %v8282, %v8488
        %8490 = vmatpush1.msra.mxu0 %v8489
        %8491 = vmatprep.subr.mxu0 0.0
        %8492 = vmatpush1.msra.mxu0 0.0
        %8493 = vmatprep.subr.mxu0 0.0
        %8494 = vmatpush1.msra.mxu0 0.0
        %8495 = vmatprep.subr.mxu0 0.0
        %8496 = vmatpush1.msra.mxu0 0.0
        %8497 = vmatprep.subr.mxu0 0.0
        %8498 = vmatpush1.msra.mxu0 0.0
        %8499 = vmatprep.subr.mxu0 0.0
        %8500 = vmatpush1.msra.mxu0 0.0
        %8501 = vmatprep.subr.mxu0 0.0
        %8502 = vmatpush1.msra.mxu0 0.0
        %8503 = vmatprep.subr.mxu0 0.0
        %8504 = vmatpush1.msra.mxu0 0.0
        %8505 = vmatprep.subr.mxu0 0.0
        %8506 = vmatpush1.msra.mxu0 0.0
        %8507 = vmatprep.subr.mxu0 0.0
        %8508 = vmatpush1.msra.mxu0 0.0
        %8509 = vmatprep.subr.mxu0 0.0
        %8510 = vmatpush1.msra.mxu0 0.0
        %8511 = vmatprep.subr.mxu0 0.0
        %8512 = vmatpush1.msra.mxu0 0.0
        %8513 = vmatprep.subr.mxu0 0.0
        %8514 = vmatpush1.msra.mxu0 0.0
        %8515 = vmatprep.subr.mxu0 0.0
        %8516 = vmatpush1.msra.mxu0 0.0
        %8517 = vmatprep.subr.mxu0 0.0
        %8518 = vmatpush1.msra.mxu0 0.0
        %8519 = vmatprep.subr.mxu0 0.0
        %8520 = vmatpush1.msra.mxu0 0.0
        %8521 = vmatprep.subr.mxu0 0.0
        %8522 = vmatpush1.msra.mxu0 0.0
        %8523 = vmatprep.subr.mxu0 0.0
        %8524 = vmatpush1.msra.mxu0 0.0
        %8525 = vmatprep.subr.mxu0 0.0
        %8526 = vmatpush1.msra.mxu0 0.0
        %8527 = vmatprep.subr.mxu0 0.0
        %8528 = vmatpush1.msra.mxu0 0.0
        %8529 = vmatprep.subr.mxu0 0.0
        %8530 = vmatpush1.msra.mxu0 0.0
        %8531 = vmatprep.subr.mxu0 0.0
        %8532 = vmatpush1.msra.mxu0 0.0
        %8533 = vmatprep.subr.mxu0 0.0
        %8534 = vmatpush1.msra.mxu0 0.0
        %8535 = vmatprep.subr.mxu0 0.0
        %8536 = vmatpush1.msra.mxu0 0.0
        %8537 = vmatprep.subr.mxu0 0.0
        %8538 = vmatpush1.msra.mxu0 0.0
        %8539 = vmatprep.subr.mxu0 0.0
        %8540 = vmatpush1.msra.mxu0 0.0
        %8541 = vmatprep.subr.mxu0 0.0
        %8542 = vmatpush1.msra.mxu0 0.0
        %8543 = vmatprep.subr.mxu0 0.0
        %8544 = vmatpush1.msra.mxu0 0.0
        %8545 = vmatprep.subr.mxu0 0.0
        %8546 = vmatpush1.msra.mxu0 0.0
        %8547 = vmatprep.mubr.f32.mxu0 0.0
        %v8548 = vand.u32 %v8284, 4294901760
        %v8549 = vsub.f32 %v8284, %v8548
        %8550 = vmatmul.mubr.f32.gmra.mrb[0].mxu0 %v8549
        %v8551 = vpop.f32.mrb[0].mxu0
        %v8552 = vadd.f32 %v8466, %v8551
        %v8553 = vpop.f32.mrb[0].mxu0
        %8554 = vmatprep.mubr.f32.mxu0 0.0
        %v8555 = vand.u32 %v8287, 4294901760
        %v8556 = vsub.f32 %v8287, %v8555
        %8557 = vmatmul.mubr.f32.gmra.mrb[0].mxu0 %v8556
        %v8558 = vpop.f32.mrb[0].mxu0
        %v8559 = vadd.f32 %v8472, %v8558
        %v8560 = vpop.f32.mrb[0].mxu0
        %8561 = vdwg.mxu0
        %8562 = vmatprep.subr.mxu0 0.0
        %v8563 = vand.u32 %v8279, 4294901760
        %8564 = vmatpush1.msra.mxu0 %v8563
        %8565 = vmatprep.subr.mxu0 0.0
        %v8566 = vand.u32 %v8280, 4294901760
        %8567 = vmatpush1.msra.mxu0 %v8566
        %8568 = vmatprep.subr.mxu0 0.0
        %v8569 = vand.u32 %v8281, 4294901760
        %8570 = vmatpush1.msra.mxu0 %v8569
        %8571 = vmatprep.subr.mxu0 0.0
        %v8572 = vand.u32 %v8282, 4294901760
        %8573 = vmatpush1.msra.mxu0 %v8572
        %8574 = vmatprep.subr.mxu0 0.0
        %8575 = vmatpush1.msra.mxu0 0.0
        %8576 = vmatprep.subr.mxu0 0.0
        %8577 = vmatpush1.msra.mxu0 0.0
        %8578 = vmatprep.subr.mxu0 0.0
        %8579 = vmatpush1.msra.mxu0 0.0
        %8580 = vmatprep.subr.mxu0 0.0
        %8581 = vmatpush1.msra.mxu0 0.0
        %8582 = vmatprep.subr.mxu0 0.0
        %8583 = vmatpush1.msra.mxu0 0.0
        %8584 = vmatprep.subr.mxu0 0.0
        %8585 = vmatpush1.msra.mxu0 0.0
        %8586 = vmatprep.subr.mxu0 0.0
        %8587 = vmatpush1.msra.mxu0 0.0
        %8588 = vmatprep.subr.mxu0 0.0
        %8589 = vmatpush1.msra.mxu0 0.0
        %8590 = vmatprep.subr.mxu0 0.0
        %8591 = vmatpush1.msra.mxu0 0.0
        %8592 = vmatprep.subr.mxu0 0.0
        %8593 = vmatpush1.msra.mxu0 0.0
        %8594 = vmatprep.subr.mxu0 0.0
        %8595 = vmatpush1.msra.mxu0 0.0
        %8596 = vmatprep.subr.mxu0 0.0
        %8597 = vmatpush1.msra.mxu0 0.0
        %8598 = vmatprep.subr.mxu0 0.0
        %8599 = vmatpush1.msra.mxu0 0.0
        %8600 = vmatprep.subr.mxu0 0.0
        %8601 = vmatpush1.msra.mxu0 0.0
        %8602 = vmatprep.subr.mxu0 0.0
        %8603 = vmatpush1.msra.mxu0 0.0
        %8604 = vmatprep.subr.mxu0 0.0
        %8605 = vmatpush1.msra.mxu0 0.0
        %8606 = vmatprep.subr.mxu0 0.0
        %8607 = vmatpush1.msra.mxu0 0.0
        %8608 = vmatprep.subr.mxu0 0.0
        %8609 = vmatpush1.msra.mxu0 0.0
        %8610 = vmatprep.subr.mxu0 0.0
        %8611 = vmatpush1.msra.mxu0 0.0
        %8612 = vmatprep.subr.mxu0 0.0
        %8613 = vmatpush1.msra.mxu0 0.0
        %8614 = vmatprep.subr.mxu0 0.0
        %8615 = vmatpush1.msra.mxu0 0.0
        %8616 = vmatprep.subr.mxu0 0.0
        %8617 = vmatpush1.msra.mxu0 0.0
        %8618 = vmatprep.subr.mxu0 0.0
        %8619 = vmatpush1.msra.mxu0 0.0
        %8620 = vmatprep.subr.mxu0 0.0
        %8621 = vmatpush1.msra.mxu0 0.0
        %8622 = vmatprep.subr.mxu0 0.0
        %8623 = vmatpush1.msra.mxu0 0.0
        %8624 = vmatprep.subr.mxu0 0.0
        %8625 = vmatpush1.msra.mxu0 0.0
        %8626 = vmatprep.subr.mxu0 0.0
        %8627 = vmatpush1.msra.mxu0 0.0
        %8628 = vmatprep.subr.mxu0 0.0
        %8629 = vmatpush1.msra.mxu0 0.0
        %8630 = vmatprep.mubr.f32.mxu0 0.0
        %v8631 = vand.u32 %v8284, 4294901760
        %v8632 = vsub.f32 %v8284, %v8631
        %v8633 = vand.u32 %v8632, 4294901760
        %8634 = vmatmul.mubr.f32.gmra.mrb[0].mxu0 %v8633
        %v8635 = vpop.f32.mrb[0].mxu0
        %v8636 = vadd.f32 %v8552, %v8635
        %v8637 = vpop.f32.mrb[0].mxu0
        %8638 = vmatprep.mubr.f32.mxu0 0.0
        %v8639 = vand.u32 %v8287, 4294901760
        %v8640 = vsub.f32 %v8287, %v8639
        %v8641 = vand.u32 %v8640, 4294901760
        %8642 = vmatmul.mubr.f32.gmra.mrb[0].mxu0 %v8641
        %v8643 = vpop.f32.mrb[0].mxu0
        %v8644 = vadd.f32 %v8559, %v8643
        %v8645 = vpop.f32.mrb[0].mxu0
        %8646 = vdwg.mxu0
        %8647 = vmatprep.subr.mxu0 0.0
        %v8648 = vand.u32 %v8279, 4294901760
        %v8649 = vsub.f32 %v8279, %v8648
        %v8650 = vand.u32 %v8649, 4294901760
        %8651 = vmatpush1.msra.mxu0 %v8650
        %8652 = vmatprep.subr.mxu0 0.0
        %v8653 = vand.u32 %v8280, 4294901760
        %v8654 = vsub.f32 %v8280, %v8653
        %v8655 = vand.u32 %v8654, 4294901760
        %8656 = vmatpush1.msra.mxu0 %v8655
        %8657 = vmatprep.subr.mxu0 0.0
        %v8658 = vand.u32 %v8281, 4294901760
        %v8659 = vsub.f32 %v8281, %v8658
        %v8660 = vand.u32 %v8659, 4294901760
        %8661 = vmatpush1.msra.mxu0 %v8660
        %8662 = vmatprep.subr.mxu0 0.0
        %v8663 = vand.u32 %v8282, 4294901760
        %v8664 = vsub.f32 %v8282, %v8663
        %v8665 = vand.u32 %v8664, 4294901760
        %8666 = vmatpush1.msra.mxu0 %v8665
        %8667 = vmatprep.subr.mxu0 0.0
        %8668 = vmatpush1.msra.mxu0 0.0
        %8669 = vmatprep.subr.mxu0 0.0
        %8670 = vmatpush1.msra.mxu0 0.0
        %8671 = vmatprep.subr.mxu0 0.0
        %8672 = vmatpush1.msra.mxu0 0.0
        %8673 = vmatprep.subr.mxu0 0.0
        %8674 = vmatpush1.msra.mxu0 0.0
        %8675 = vmatprep.subr.mxu0 0.0
        %8676 = vmatpush1.msra.mxu0 0.0
        %8677 = vmatprep.subr.mxu0 0.0
        %8678 = vmatpush1.msra.mxu0 0.0
        %8679 = vmatprep.subr.mxu0 0.0
        %8680 = vmatpush1.msra.mxu0 0.0
        %8681 = vmatprep.subr.mxu0 0.0
        %8682 = vmatpush1.msra.mxu0 0.0
        %8683 = vmatprep.subr.mxu0 0.0
        %8684 = vmatpush1.msra.mxu0 0.0
        %8685 = vmatprep.subr.mxu0 0.0
        %8686 = vmatpush1.msra.mxu0 0.0
        %8687 = vmatprep.subr.mxu0 0.0
        %8688 = vmatpush1.msra.mxu0 0.0
        %8689 = vmatprep.subr.mxu0 0.0
        %8690 = vmatpush1.msra.mxu0 0.0
        %8691 = vmatprep.subr.mxu0 0.0
        %8692 = vmatpush1.msra.mxu0 0.0
        %8693 = vmatprep.subr.mxu0 0.0
        %8694 = vmatpush1.msra.mxu0 0.0
        %8695 = vmatprep.subr.mxu0 0.0
        %8696 = vmatpush1.msra.mxu0 0.0
        %8697 = vmatprep.subr.mxu0 0.0
        %8698 = vmatpush1.msra.mxu0 0.0
        %8699 = vmatprep.subr.mxu0 0.0
        %8700 = vmatpush1.msra.mxu0 0.0
        %8701 = vmatprep.subr.mxu0 0.0
        %8702 = vmatpush1.msra.mxu0 0.0
        %8703 = vmatprep.subr.mxu0 0.0
        %8704 = vmatpush1.msra.mxu0 0.0
        %8705 = vmatprep.subr.mxu0 0.0
        %8706 = vmatpush1.msra.mxu0 0.0
        %8707 = vmatprep.subr.mxu0 0.0
        %8708 = vmatpush1.msra.mxu0 0.0
        %8709 = vmatprep.subr.mxu0 0.0
        %8710 = vmatpush1.msra.mxu0 0.0
        %8711 = vmatprep.subr.mxu0 0.0
        %8712 = vmatpush1.msra.mxu0 0.0
        %8713 = vmatprep.subr.mxu0 0.0
        %8714 = vmatpush1.msra.mxu0 0.0
        %8715 = vmatprep.subr.mxu0 0.0
        %8716 = vmatpush1.msra.mxu0 0.0
        %8717 = vmatprep.subr.mxu0 0.0
        %8718 = vmatpush1.msra.mxu0 0.0
        %8719 = vmatprep.subr.mxu0 0.0
        %8720 = vmatpush1.msra.mxu0 0.0
        %8721 = vmatprep.subr.mxu0 0.0
        %8722 = vmatpush1.msra.mxu0 0.0
        %8723 = vmatprep.mubr.f32.mxu0 0.0
        %v8724 = vand.u32 %v8284, 4294901760
        %8725 = vmatmul.mubr.f32.gmra.mrb[0].mxu0 %v8724
        %v8726 = vpop.f32.mrb[0].mxu0
        %v8727 = vadd.f32 %v8636, %v8726
        %v8728 = vpop.f32.mrb[0].mxu0
        %8729 = vmatprep.mubr.f32.mxu0 0.0
        %v8730 = vand.u32 %v8287, 4294901760
        %8731 = vmatmul.mubr.f32.gmra.mrb[0].mxu0 %v8730
        %v8732 = vpop.f32.mrb[0].mxu0
        %v8733 = vadd.f32 %v8644, %v8732
        %v8734 = vpop.f32.mrb[0].mxu0
        %8735 = vdwg.mxu0
        %8736 = vmatprep.subr.mxu0 0.0
        %v8737 = vand.u32 %v8279, 4294901760
        %8738 = vmatpush1.msra.mxu0 %v8737
        %8739 = vmatprep.subr.mxu0 0.0
        %v8740 = vand.u32 %v8280, 4294901760
        %8741 = vmatpush1.msra.mxu0 %v8740
        %8742 = vmatprep.subr.mxu0 0.0
        %v8743 = vand.u32 %v8281, 4294901760
        %8744 = vmatpush1.msra.mxu0 %v8743
        %8745 = vmatprep.subr.mxu0 0.0
        %v8746 = vand.u32 %v8282, 4294901760
        %8747 = vmatpush1.msra.mxu0 %v8746
        %8748 = vmatprep.subr.mxu0 0.0
        %8749 = vmatpush1.msra.mxu0 0.0
        %8750 = vmatprep.subr.mxu0 0.0
        %8751 = vmatpush1.msra.mxu0 0.0
        %8752 = vmatprep.subr.mxu0 0.0
        %8753 = vmatpush1.msra.mxu0 0.0
        %8754 = vmatprep.subr.mxu0 0.0
        %8755 = vmatpush1.msra.mxu0 0.0
        %8756 = vmatprep.subr.mxu0 0.0
        %8757 = vmatpush1.msra.mxu0 0.0
        %8758 = vmatprep.subr.mxu0 0.0
        %8759 = vmatpush1.msra.mxu0 0.0
        %8760 = vmatprep.subr.mxu0 0.0
        %8761 = vmatpush1.msra.mxu0 0.0
        %8762 = vmatprep.subr.mxu0 0.0
        %8763 = vmatpush1.msra.mxu0 0.0
        %8764 = vmatprep.subr.mxu0 0.0
        %8765 = vmatpush1.msra.mxu0 0.0
        %8766 = vmatprep.subr.mxu0 0.0
        %8767 = vmatpush1.msra.mxu0 0.0
        %8768 = vmatprep.subr.mxu0 0.0
        %8769 = vmatpush1.msra.mxu0 0.0
        %8770 = vmatprep.subr.mxu0 0.0
        %8771 = vmatpush1.msra.mxu0 0.0
        %8772 = vmatprep.subr.mxu0 0.0
        %8773 = vmatpush1.msra.mxu0 0.0
        %8774 = vmatprep.subr.mxu0 0.0
        %8775 = vmatpush1.msra.mxu0 0.0
        %8776 = vmatprep.subr.mxu0 0.0
        %8777 = vmatpush1.msra.mxu0 0.0
        %8778 = vmatprep.subr.mxu0 0.0
        %8779 = vmatpush1.msra.mxu0 0.0
        %8780 = vmatprep.subr.mxu0 0.0
        %8781 = vmatpush1.msra.mxu0 0.0
        %8782 = vmatprep.subr.mxu0 0.0
        %8783 = vmatpush1.msra.mxu0 0.0
        %8784 = vmatprep.subr.mxu0 0.0
        %8785 = vmatpush1.msra.mxu0 0.0
        %8786 = vmatprep.subr.mxu0 0.0
        %8787 = vmatpush1.msra.mxu0 0.0
        %8788 = vmatprep.subr.mxu0 0.0
        %8789 = vmatpush1.msra.mxu0 0.0
        %8790 = vmatprep.subr.mxu0 0.0
        %8791 = vmatpush1.msra.mxu0 0.0
        %8792 = vmatprep.subr.mxu0 0.0
        %8793 = vmatpush1.msra.mxu0 0.0
        %8794 = vmatprep.subr.mxu0 0.0
        %8795 = vmatpush1.msra.mxu0 0.0
        %8796 = vmatprep.subr.mxu0 0.0
        %8797 = vmatpush1.msra.mxu0 0.0
        %8798 = vmatprep.subr.mxu0 0.0
        %8799 = vmatpush1.msra.mxu0 0.0
        %8800 = vmatprep.subr.mxu0 0.0
        %8801 = vmatpush1.msra.mxu0 0.0
        %8802 = vmatprep.subr.mxu0 0.0
        %8803 = vmatpush1.msra.mxu0 0.0
        %8804 = vmatprep.mubr.f32.mxu0 0.0
        %v8805 = vand.u32 %v8284, 4294901760
        %8806 = vmatmul.mubr.f32.gmra.mrb[0].mxu0 %v8805
        %v8807 = vpop.f32.mrb[0].mxu0
        %v8808 = vadd.f32 %v8727, %v8807
        %v8809 = vpop.f32.mrb[0].mxu0
        %8810 = vmatprep.mubr.f32.mxu0 0.0
        %v8811 = vand.u32 %v8287, 4294901760
        %8812 = vmatmul.mubr.f32.gmra.mrb[0].mxu0 %v8811
        %v8813 = vpop.f32.mrb[0].mxu0
        %v8814 = vadd.f32 %v8733, %v8813
        %v8815 = vpop.f32.mrb[0].mxu0
        %8816 = vdwg.mxu0
        %v8817 = vadd.f32 %v7218, %v8808
        %v8818 = vadd.f32 %v7219, %v8814
        %8819 = vrot.lane.b32.xlu0 %v1392, 32
        %v8820 = vpop.permute.xlu0 %8819
        %8821 = vrot.lane.b32.xlu0 %v1398, 32
        %v8822 = vpop.permute.xlu0 %8821
        %8823 = vrot.lane.b32.xlu0 %v2099, 32
        %v8824 = vpop.permute.xlu0 %8823
        %8825 = vrot.lane.b32.xlu0 %v2105, 32
        %v8826 = vpop.permute.xlu0 %8825
        %v8827 = vsel %vm4017, %v8820, 0
        %v8829 = vsel %vm4017, %v8822, 0
        %v8831 = vsel %vm4017, %v8824, 0
        %v8833 = vsel %vm4017, %v8826, 0
        %8835 = vmatprep.subr.mxu0 0.0
        %v8836 = vand.u32 %v8831, 4294901760
        %8837 = vmatpush1.xpose.msra.mxu0 %v8836
        %8838 = vmatprep.subr.mxu0 0.0
        %v8839 = vand.u32 %v8833, 4294901760
        %8840 = vmatpush1.xpose.msra.mxu0 %v8839
        %8841 = vmatprep.subr.mxu0 0.0
        %8842 = vmatpush1.xpose.msra.mxu0 0.0
        %8843 = vmatprep.subr.mxu0 0.0
        %8844 = vmatpush1.xpose.msra.mxu0 0.0
        %8845 = vmatprep.subr.mxu0 0.0
        %8846 = vmatpush1.xpose.msra.mxu0 0.0
        %8847 = vmatprep.subr.mxu0 0.0
        %8848 = vmatpush1.xpose.msra.mxu0 0.0
        %8849 = vmatprep.subr.mxu0 0.0
        %8850 = vmatpush1.xpose.msra.mxu0 0.0
        %8851 = vmatprep.subr.mxu0 0.0
        %8852 = vmatpush1.xpose.msra.mxu0 0.0
        %8853 = vmatprep.subr.mxu0 0.0
        %8854 = vmatpush1.xpose.msra.mxu0 0.0
        %8855 = vmatprep.subr.mxu0 0.0
        %8856 = vmatpush1.xpose.msra.mxu0 0.0
        %8857 = vmatprep.subr.mxu0 0.0
        %8858 = vmatpush1.xpose.msra.mxu0 0.0
        %8859 = vmatprep.subr.mxu0 0.0
        %8860 = vmatpush1.xpose.msra.mxu0 0.0
        %8861 = vmatprep.subr.mxu0 0.0
        %8862 = vmatpush1.xpose.msra.mxu0 0.0
        %8863 = vmatprep.subr.mxu0 0.0
        %8864 = vmatpush1.xpose.msra.mxu0 0.0
        %8865 = vmatprep.subr.mxu0 0.0
        %8866 = vmatpush1.xpose.msra.mxu0 0.0
        %8867 = vmatprep.subr.mxu0 0.0
        %8868 = vmatpush1.xpose.msra.mxu0 0.0
        %8869 = vmatprep.subr.mxu0 0.0
        %8870 = vmatpush1.xpose.msra.mxu0 0.0
        %8871 = vmatprep.subr.mxu0 0.0
        %8872 = vmatpush1.xpose.msra.mxu0 0.0
        %8873 = vmatprep.subr.mxu0 0.0
        %8874 = vmatpush1.xpose.msra.mxu0 0.0
        %8875 = vmatprep.subr.mxu0 0.0
        %8876 = vmatpush1.xpose.msra.mxu0 0.0
        %8877 = vmatprep.subr.mxu0 0.0
        %8878 = vmatpush1.xpose.msra.mxu0 0.0
        %8879 = vmatprep.subr.mxu0 0.0
        %8880 = vmatpush1.xpose.msra.mxu0 0.0
        %8881 = vmatprep.subr.mxu0 0.0
        %8882 = vmatpush1.xpose.msra.mxu0 0.0
        %8883 = vmatprep.subr.mxu0 0.0
        %8884 = vmatpush1.xpose.msra.mxu0 0.0
        %8885 = vmatprep.subr.mxu0 0.0
        %8886 = vmatpush1.xpose.msra.mxu0 0.0
        %8887 = vmatprep.subr.mxu0 0.0
        %8888 = vmatpush1.xpose.msra.mxu0 0.0
        %8889 = vmatprep.subr.mxu0 0.0
        %8890 = vmatpush1.xpose.msra.mxu0 0.0
        %8891 = vmatprep.subr.mxu0 0.0
        %8892 = vmatpush1.xpose.msra.mxu0 0.0
        %8893 = vmatprep.subr.mxu0 0.0
        %8894 = vmatpush1.xpose.msra.mxu0 0.0
        %8895 = vmatprep.subr.mxu0 0.0
        %8896 = vmatpush1.xpose.msra.mxu0 0.0
        %8897 = vmatprep.subr.mxu0 0.0
        %8898 = vmatpush1.xpose.msra.mxu0 0.0
        %8899 = vmatprep.subr.mxu0 0.0
        %8900 = vmatpush1.xpose.msra.mxu0 0.0
        %8901 = vmatprep.mubr.f32.mxu0 0.0
        %v8902 = vand.u32 %v8827, 4294901760
        %v8903 = vsub.f32 %v8827, %v8902
        %v8904 = vand.u32 %v8903, 4294901760
        %v8905 = vsub.f32 %v8903, %v8904
        %v8906 = vand.u32 %v8905, 4294901760
        %8907 = vmatmul.mubr.f32.gmra.mrb[0].mxu0 %v8906
        %v8908 = vpop.f32.mrb[0].mxu0
        %v8909 = vadd.f32 0.0, %v8908
        %v8910 = vpop.f32.mrb[0].mxu0
        %8911 = vmatprep.mubr.f32.mxu0 0.0
        %v8912 = vand.u32 %v8829, 4294901760
        %v8913 = vsub.f32 %v8829, %v8912
        %v8914 = vand.u32 %v8913, 4294901760
        %v8915 = vsub.f32 %v8913, %v8914
        %v8916 = vand.u32 %v8915, 4294901760
        %8917 = vmatmul.mubr.f32.gmra.mrb[0].mxu0 %v8916
        %v8918 = vpop.f32.mrb[0].mxu0
        %v8919 = vadd.f32 0.0, %v8918
        %v8920 = vpop.f32.mrb[0].mxu0
        %8921 = vdwg.mxu0
        %8922 = vmatprep.subr.mxu0 0.0
        %v8923 = vand.u32 %v8831, 4294901760
        %v8924 = vsub.f32 %v8831, %v8923
        %v8925 = vand.u32 %v8924, 4294901760
        %v8926 = vsub.f32 %v8924, %v8925
        %v8927 = vand.u32 %v8926, 4294901760
        %8928 = vmatpush1.xpose.msra.mxu0 %v8927
        %8929 = vmatprep.subr.mxu0 0.0
        %v8930 = vand.u32 %v8833, 4294901760
        %v8931 = vsub.f32 %v8833, %v8930
        %v8932 = vand.u32 %v8931, 4294901760
        %v8933 = vsub.f32 %v8931, %v8932
        %v8934 = vand.u32 %v8933, 4294901760
        %8935 = vmatpush1.xpose.msra.mxu0 %v8934
        %8936 = vmatprep.subr.mxu0 0.0
        %8937 = vmatpush1.xpose.msra.mxu0 0.0
        %8938 = vmatprep.subr.mxu0 0.0
        %8939 = vmatpush1.xpose.msra.mxu0 0.0
        %8940 = vmatprep.subr.mxu0 0.0
        %8941 = vmatpush1.xpose.msra.mxu0 0.0
        %8942 = vmatprep.subr.mxu0 0.0
        %8943 = vmatpush1.xpose.msra.mxu0 0.0
        %8944 = vmatprep.subr.mxu0 0.0
        %8945 = vmatpush1.xpose.msra.mxu0 0.0
        %8946 = vmatprep.subr.mxu0 0.0
        %8947 = vmatpush1.xpose.msra.mxu0 0.0
        %8948 = vmatprep.subr.mxu0 0.0
        %8949 = vmatpush1.xpose.msra.mxu0 0.0
        %8950 = vmatprep.subr.mxu0 0.0
        %8951 = vmatpush1.xpose.msra.mxu0 0.0
        %8952 = vmatprep.subr.mxu0 0.0
        %8953 = vmatpush1.xpose.msra.mxu0 0.0
        %8954 = vmatprep.subr.mxu0 0.0
        %8955 = vmatpush1.xpose.msra.mxu0 0.0
        %8956 = vmatprep.subr.mxu0 0.0
        %8957 = vmatpush1.xpose.msra.mxu0 0.0
        %8958 = vmatprep.subr.mxu0 0.0
        %8959 = vmatpush1.xpose.msra.mxu0 0.0
        %8960 = vmatprep.subr.mxu0 0.0
        %8961 = vmatpush1.xpose.msra.mxu0 0.0
        %8962 = vmatprep.subr.mxu0 0.0
        %8963 = vmatpush1.xpose.msra.mxu0 0.0
        %8964 = vmatprep.subr.mxu0 0.0
        %8965 = vmatpush1.xpose.msra.mxu0 0.0
        %8966 = vmatprep.subr.mxu0 0.0
        %8967 = vmatpush1.xpose.msra.mxu0 0.0
        %8968 = vmatprep.subr.mxu0 0.0
        %8969 = vmatpush1.xpose.msra.mxu0 0.0
        %8970 = vmatprep.subr.mxu0 0.0
        %8971 = vmatpush1.xpose.msra.mxu0 0.0
        %8972 = vmatprep.subr.mxu0 0.0
        %8973 = vmatpush1.xpose.msra.mxu0 0.0
        %8974 = vmatprep.subr.mxu0 0.0
        %8975 = vmatpush1.xpose.msra.mxu0 0.0
        %8976 = vmatprep.subr.mxu0 0.0
        %8977 = vmatpush1.xpose.msra.mxu0 0.0
        %8978 = vmatprep.subr.mxu0 0.0
        %8979 = vmatpush1.xpose.msra.mxu0 0.0
        %8980 = vmatprep.subr.mxu0 0.0
        %8981 = vmatpush1.xpose.msra.mxu0 0.0
        %8982 = vmatprep.subr.mxu0 0.0
        %8983 = vmatpush1.xpose.msra.mxu0 0.0
        %8984 = vmatprep.subr.mxu0 0.0
        %8985 = vmatpush1.xpose.msra.mxu0 0.0
        %8986 = vmatprep.subr.mxu0 0.0
        %8987 = vmatpush1.xpose.msra.mxu0 0.0
        %8988 = vmatprep.subr.mxu0 0.0
        %8989 = vmatpush1.xpose.msra.mxu0 0.0
        %8990 = vmatprep.subr.mxu0 0.0
        %8991 = vmatpush1.xpose.msra.mxu0 0.0
        %8992 = vmatprep.subr.mxu0 0.0
        %8993 = vmatpush1.xpose.msra.mxu0 0.0
        %8994 = vmatprep.subr.mxu0 0.0
        %8995 = vmatpush1.xpose.msra.mxu0 0.0
        %8996 = vmatprep.mubr.f32.mxu0 0.0
        %v8997 = vand.u32 %v8827, 4294901760
        %8998 = vmatmul.mubr.f32.gmra.mrb[0].mxu0 %v8997
        %v8999 = vpop.f32.mrb[0].mxu0
        %v9000 = vadd.f32 %v8909, %v8999
        %v9001 = vpop.f32.mrb[0].mxu0
        %9002 = vmatprep.mubr.f32.mxu0 0.0
        %v9003 = vand.u32 %v8829, 4294901760
        %9004 = vmatmul.mubr.f32.gmra.mrb[0].mxu0 %v9003
        %v9005 = vpop.f32.mrb[0].mxu0
        %v9006 = vadd.f32 %v8919, %v9005
        %v9007 = vpop.f32.mrb[0].mxu0
        %9008 = vdwg.mxu0
        %9009 = vmatprep.subr.mxu0 0.0
        %v9010 = vand.u32 %v8831, 4294901760
        %v9011 = vsub.f32 %v8831, %v9010
        %9012 = vmatpush1.xpose.msra.mxu0 %v9011
        %9013 = vmatprep.subr.mxu0 0.0
        %v9014 = vand.u32 %v8833, 4294901760
        %v9015 = vsub.f32 %v8833, %v9014
        %9016 = vmatpush1.xpose.msra.mxu0 %v9015
        %9017 = vmatprep.subr.mxu0 0.0
        %9018 = vmatpush1.xpose.msra.mxu0 0.0
        %9019 = vmatprep.subr.mxu0 0.0
        %9020 = vmatpush1.xpose.msra.mxu0 0.0
        %9021 = vmatprep.subr.mxu0 0.0
        %9022 = vmatpush1.xpose.msra.mxu0 0.0
        %9023 = vmatprep.subr.mxu0 0.0
        %9024 = vmatpush1.xpose.msra.mxu0 0.0
        %9025 = vmatprep.subr.mxu0 0.0
        %9026 = vmatpush1.xpose.msra.mxu0 0.0
        %9027 = vmatprep.subr.mxu0 0.0
        %9028 = vmatpush1.xpose.msra.mxu0 0.0
        %9029 = vmatprep.subr.mxu0 0.0
        %9030 = vmatpush1.xpose.msra.mxu0 0.0
        %9031 = vmatprep.subr.mxu0 0.0
        %9032 = vmatpush1.xpose.msra.mxu0 0.0
        %9033 = vmatprep.subr.mxu0 0.0
        %9034 = vmatpush1.xpose.msra.mxu0 0.0
        %9035 = vmatprep.subr.mxu0 0.0
        %9036 = vmatpush1.xpose.msra.mxu0 0.0
        %9037 = vmatprep.subr.mxu0 0.0
        %9038 = vmatpush1.xpose.msra.mxu0 0.0
        %9039 = vmatprep.subr.mxu0 0.0
        %9040 = vmatpush1.xpose.msra.mxu0 0.0
        %9041 = vmatprep.subr.mxu0 0.0
        %9042 = vmatpush1.xpose.msra.mxu0 0.0
        %9043 = vmatprep.subr.mxu0 0.0
        %9044 = vmatpush1.xpose.msra.mxu0 0.0
        %9045 = vmatprep.subr.mxu0 0.0
        %9046 = vmatpush1.xpose.msra.mxu0 0.0
        %9047 = vmatprep.subr.mxu0 0.0
        %9048 = vmatpush1.xpose.msra.mxu0 0.0
        %9049 = vmatprep.subr.mxu0 0.0
        %9050 = vmatpush1.xpose.msra.mxu0 0.0
        %9051 = vmatprep.subr.mxu0 0.0
        %9052 = vmatpush1.xpose.msra.mxu0 0.0
        %9053 = vmatprep.subr.mxu0 0.0
        %9054 = vmatpush1.xpose.msra.mxu0 0.0
        %9055 = vmatprep.subr.mxu0 0.0
        %9056 = vmatpush1.xpose.msra.mxu0 0.0
        %9057 = vmatprep.subr.mxu0 0.0
        %9058 = vmatpush1.xpose.msra.mxu0 0.0
        %9059 = vmatprep.subr.mxu0 0.0
        %9060 = vmatpush1.xpose.msra.mxu0 0.0
        %9061 = vmatprep.subr.mxu0 0.0
        %9062 = vmatpush1.xpose.msra.mxu0 0.0
        %9063 = vmatprep.subr.mxu0 0.0
        %9064 = vmatpush1.xpose.msra.mxu0 0.0
        %9065 = vmatprep.subr.mxu0 0.0
        %9066 = vmatpush1.xpose.msra.mxu0 0.0
        %9067 = vmatprep.subr.mxu0 0.0
        %9068 = vmatpush1.xpose.msra.mxu0 0.0
        %9069 = vmatprep.subr.mxu0 0.0
        %9070 = vmatpush1.xpose.msra.mxu0 0.0
        %9071 = vmatprep.subr.mxu0 0.0
        %9072 = vmatpush1.xpose.msra.mxu0 0.0
        %9073 = vmatprep.subr.mxu0 0.0
        %9074 = vmatpush1.xpose.msra.mxu0 0.0
        %9075 = vmatprep.subr.mxu0 0.0
        %9076 = vmatpush1.xpose.msra.mxu0 0.0
        %9077 = vmatprep.mubr.f32.mxu0 0.0
        %v9078 = vand.u32 %v8827, 4294901760
        %v9079 = vsub.f32 %v8827, %v9078
        %9080 = vmatmul.mubr.f32.gmra.mrb[0].mxu0 %v9079
        %v9081 = vpop.f32.mrb[0].mxu0
        %v9082 = vadd.f32 %v9000, %v9081
        %v9083 = vpop.f32.mrb[0].mxu0
        %9084 = vmatprep.mubr.f32.mxu0 0.0
        %v9085 = vand.u32 %v8829, 4294901760
        %v9086 = vsub.f32 %v8829, %v9085
        %9087 = vmatmul.mubr.f32.gmra.mrb[0].mxu0 %v9086
        %v9088 = vpop.f32.mrb[0].mxu0
        %v9089 = vadd.f32 %v9006, %v9088
        %v9090 = vpop.f32.mrb[0].mxu0
        %9091 = vdwg.mxu0
        %9092 = vmatprep.subr.mxu0 0.0
        %v9093 = vand.u32 %v8831, 4294901760
        %9094 = vmatpush1.xpose.msra.mxu0 %v9093
        %9095 = vmatprep.subr.mxu0 0.0
        %v9096 = vand.u32 %v8833, 4294901760
        %9097 = vmatpush1.xpose.msra.mxu0 %v9096
        %9098 = vmatprep.subr.mxu0 0.0
        %9099 = vmatpush1.xpose.msra.mxu0 0.0
        %9100 = vmatprep.subr.mxu0 0.0
        %9101 = vmatpush1.xpose.msra.mxu0 0.0
        %9102 = vmatprep.subr.mxu0 0.0
        %9103 = vmatpush1.xpose.msra.mxu0 0.0
        %9104 = vmatprep.subr.mxu0 0.0
        %9105 = vmatpush1.xpose.msra.mxu0 0.0
        %9106 = vmatprep.subr.mxu0 0.0
        %9107 = vmatpush1.xpose.msra.mxu0 0.0
        %9108 = vmatprep.subr.mxu0 0.0
        %9109 = vmatpush1.xpose.msra.mxu0 0.0
        %9110 = vmatprep.subr.mxu0 0.0
        %9111 = vmatpush1.xpose.msra.mxu0 0.0
        %9112 = vmatprep.subr.mxu0 0.0
        %9113 = vmatpush1.xpose.msra.mxu0 0.0
        %9114 = vmatprep.subr.mxu0 0.0
        %9115 = vmatpush1.xpose.msra.mxu0 0.0
        %9116 = vmatprep.subr.mxu0 0.0
        %9117 = vmatpush1.xpose.msra.mxu0 0.0
        %9118 = vmatprep.subr.mxu0 0.0
        %9119 = vmatpush1.xpose.msra.mxu0 0.0
        %9120 = vmatprep.subr.mxu0 0.0
        %9121 = vmatpush1.xpose.msra.mxu0 0.0
        %9122 = vmatprep.subr.mxu0 0.0
        %9123 = vmatpush1.xpose.msra.mxu0 0.0
        %9124 = vmatprep.subr.mxu0 0.0
        %9125 = vmatpush1.xpose.msra.mxu0 0.0
        %9126 = vmatprep.subr.mxu0 0.0
        %9127 = vmatpush1.xpose.msra.mxu0 0.0
        %9128 = vmatprep.subr.mxu0 0.0
        %9129 = vmatpush1.xpose.msra.mxu0 0.0
        %9130 = vmatprep.subr.mxu0 0.0
        %9131 = vmatpush1.xpose.msra.mxu0 0.0
        %9132 = vmatprep.subr.mxu0 0.0
        %9133 = vmatpush1.xpose.msra.mxu0 0.0
        %9134 = vmatprep.subr.mxu0 0.0
        %9135 = vmatpush1.xpose.msra.mxu0 0.0
        %9136 = vmatprep.subr.mxu0 0.0
        %9137 = vmatpush1.xpose.msra.mxu0 0.0
        %9138 = vmatprep.subr.mxu0 0.0
        %9139 = vmatpush1.xpose.msra.mxu0 0.0
        %9140 = vmatprep.subr.mxu0 0.0
        %9141 = vmatpush1.xpose.msra.mxu0 0.0
        %9142 = vmatprep.subr.mxu0 0.0
        %9143 = vmatpush1.xpose.msra.mxu0 0.0
        %9144 = vmatprep.subr.mxu0 0.0
        %9145 = vmatpush1.xpose.msra.mxu0 0.0
        %9146 = vmatprep.subr.mxu0 0.0
        %9147 = vmatpush1.xpose.msra.mxu0 0.0
        %9148 = vmatprep.subr.mxu0 0.0
        %9149 = vmatpush1.xpose.msra.mxu0 0.0
        %9150 = vmatprep.subr.mxu0 0.0
        %9151 = vmatpush1.xpose.msra.mxu0 0.0
        %9152 = vmatprep.subr.mxu0 0.0
        %9153 = vmatpush1.xpose.msra.mxu0 0.0
        %9154 = vmatprep.subr.mxu0 0.0
        %9155 = vmatpush1.xpose.msra.mxu0 0.0
        %9156 = vmatprep.subr.mxu0 0.0
        %9157 = vmatpush1.xpose.msra.mxu0 0.0
        %9158 = vmatprep.mubr.f32.mxu0 0.0
        %v9159 = vand.u32 %v8827, 4294901760
        %v9160 = vsub.f32 %v8827, %v9159
        %v9161 = vand.u32 %v9160, 4294901760
        %9162 = vmatmul.mubr.f32.gmra.mrb[0].mxu0 %v9161
        %v9163 = vpop.f32.mrb[0].mxu0
        %v9164 = vadd.f32 %v9082, %v9163
        %v9165 = vpop.f32.mrb[0].mxu0
        %9166 = vmatprep.mubr.f32.mxu0 0.0
        %v9167 = vand.u32 %v8829, 4294901760
        %v9168 = vsub.f32 %v8829, %v9167
        %v9169 = vand.u32 %v9168, 4294901760
        %9170 = vmatmul.mubr.f32.gmra.mrb[0].mxu0 %v9169
        %v9171 = vpop.f32.mrb[0].mxu0
        %v9172 = vadd.f32 %v9089, %v9171
        %v9173 = vpop.f32.mrb[0].mxu0
        %9174 = vdwg.mxu0
        %9175 = vmatprep.subr.mxu0 0.0
        %v9176 = vand.u32 %v8831, 4294901760
        %v9177 = vsub.f32 %v8831, %v9176
        %v9178 = vand.u32 %v9177, 4294901760
        %9179 = vmatpush1.xpose.msra.mxu0 %v9178
        %9180 = vmatprep.subr.mxu0 0.0
        %v9181 = vand.u32 %v8833, 4294901760
        %v9182 = vsub.f32 %v8833, %v9181
        %v9183 = vand.u32 %v9182, 4294901760
        %9184 = vmatpush1.xpose.msra.mxu0 %v9183
        %9185 = vmatprep.subr.mxu0 0.0
        %9186 = vmatpush1.xpose.msra.mxu0 0.0
        %9187 = vmatprep.subr.mxu0 0.0
        %9188 = vmatpush1.xpose.msra.mxu0 0.0
        %9189 = vmatprep.subr.mxu0 0.0
        %9190 = vmatpush1.xpose.msra.mxu0 0.0
        %9191 = vmatprep.subr.mxu0 0.0
        %9192 = vmatpush1.xpose.msra.mxu0 0.0
        %9193 = vmatprep.subr.mxu0 0.0
        %9194 = vmatpush1.xpose.msra.mxu0 0.0
        %9195 = vmatprep.subr.mxu0 0.0
        %9196 = vmatpush1.xpose.msra.mxu0 0.0
        %9197 = vmatprep.subr.mxu0 0.0
        %9198 = vmatpush1.xpose.msra.mxu0 0.0
        %9199 = vmatprep.subr.mxu0 0.0
        %9200 = vmatpush1.xpose.msra.mxu0 0.0
        %9201 = vmatprep.subr.mxu0 0.0
        %9202 = vmatpush1.xpose.msra.mxu0 0.0
        %9203 = vmatprep.subr.mxu0 0.0
        %9204 = vmatpush1.xpose.msra.mxu0 0.0
        %9205 = vmatprep.subr.mxu0 0.0
        %9206 = vmatpush1.xpose.msra.mxu0 0.0
        %9207 = vmatprep.subr.mxu0 0.0
        %9208 = vmatpush1.xpose.msra.mxu0 0.0
        %9209 = vmatprep.subr.mxu0 0.0
        %9210 = vmatpush1.xpose.msra.mxu0 0.0
        %9211 = vmatprep.subr.mxu0 0.0
        %9212 = vmatpush1.xpose.msra.mxu0 0.0
        %9213 = vmatprep.subr.mxu0 0.0
        %9214 = vmatpush1.xpose.msra.mxu0 0.0
        %9215 = vmatprep.subr.mxu0 0.0
        %9216 = vmatpush1.xpose.msra.mxu0 0.0
        %9217 = vmatprep.subr.mxu0 0.0
        %9218 = vmatpush1.xpose.msra.mxu0 0.0
        %9219 = vmatprep.subr.mxu0 0.0
        %9220 = vmatpush1.xpose.msra.mxu0 0.0
        %9221 = vmatprep.subr.mxu0 0.0
        %9222 = vmatpush1.xpose.msra.mxu0 0.0
        %9223 = vmatprep.subr.mxu0 0.0
        %9224 = vmatpush1.xpose.msra.mxu0 0.0
        %9225 = vmatprep.subr.mxu0 0.0
        %9226 = vmatpush1.xpose.msra.mxu0 0.0
        %9227 = vmatprep.subr.mxu0 0.0
        %9228 = vmatpush1.xpose.msra.mxu0 0.0
        %9229 = vmatprep.subr.mxu0 0.0
        %9230 = vmatpush1.xpose.msra.mxu0 0.0
        %9231 = vmatprep.subr.mxu0 0.0
        %9232 = vmatpush1.xpose.msra.mxu0 0.0
        %9233 = vmatprep.subr.mxu0 0.0
        %9234 = vmatpush1.xpose.msra.mxu0 0.0
        %9235 = vmatprep.subr.mxu0 0.0
        %9236 = vmatpush1.xpose.msra.mxu0 0.0
        %9237 = vmatprep.subr.mxu0 0.0
        %9238 = vmatpush1.xpose.msra.mxu0 0.0
        %9239 = vmatprep.subr.mxu0 0.0
        %9240 = vmatpush1.xpose.msra.mxu0 0.0
        %9241 = vmatprep.subr.mxu0 0.0
        %9242 = vmatpush1.xpose.msra.mxu0 0.0
        %9243 = vmatprep.subr.mxu0 0.0
        %9244 = vmatpush1.xpose.msra.mxu0 0.0
        %9245 = vmatprep.mubr.f32.mxu0 0.0
        %v9246 = vand.u32 %v8827, 4294901760
        %9247 = vmatmul.mubr.f32.gmra.mrb[0].mxu0 %v9246
        %v9248 = vpop.f32.mrb[0].mxu0
        %v9249 = vadd.f32 %v9164, %v9248
        %v9250 = vpop.f32.mrb[0].mxu0
        %9251 = vmatprep.mubr.f32.mxu0 0.0
        %v9252 = vand.u32 %v8829, 4294901760
        %9253 = vmatmul.mubr.f32.gmra.mrb[0].mxu0 %v9252
        %v9254 = vpop.f32.mrb[0].mxu0
        %v9255 = vadd.f32 %v9172, %v9254
        %v9256 = vpop.f32.mrb[0].mxu0
        %9257 = vdwg.mxu0
        %9258 = vmatprep.subr.mxu0 0.0
        %v9259 = vand.u32 %v8831, 4294901760
        %9260 = vmatpush1.xpose.msra.mxu0 %v9259
        %9261 = vmatprep.subr.mxu0 0.0
        %v9262 = vand.u32 %v8833, 4294901760
        %9263 = vmatpush1.xpose.msra.mxu0 %v9262
        %9264 = vmatprep.subr.mxu0 0.0
        %9265 = vmatpush1.xpose.msra.mxu0 0.0
        %9266 = vmatprep.subr.mxu0 0.0
        %9267 = vmatpush1.xpose.msra.mxu0 0.0
        %9268 = vmatprep.subr.mxu0 0.0
        %9269 = vmatpush1.xpose.msra.mxu0 0.0
        %9270 = vmatprep.subr.mxu0 0.0
        %9271 = vmatpush1.xpose.msra.mxu0 0.0
        %9272 = vmatprep.subr.mxu0 0.0
        %9273 = vmatpush1.xpose.msra.mxu0 0.0
        %9274 = vmatprep.subr.mxu0 0.0
        %9275 = vmatpush1.xpose.msra.mxu0 0.0
        %9276 = vmatprep.subr.mxu0 0.0
        %9277 = vmatpush1.xpose.msra.mxu0 0.0
        %9278 = vmatprep.subr.mxu0 0.0
        %9279 = vmatpush1.xpose.msra.mxu0 0.0
        %9280 = vmatprep.subr.mxu0 0.0
        %9281 = vmatpush1.xpose.msra.mxu0 0.0
        %9282 = vmatprep.subr.mxu0 0.0
        %9283 = vmatpush1.xpose.msra.mxu0 0.0
        %9284 = vmatprep.subr.mxu0 0.0
        %9285 = vmatpush1.xpose.msra.mxu0 0.0
        %9286 = vmatprep.subr.mxu0 0.0
        %9287 = vmatpush1.xpose.msra.mxu0 0.0
        %9288 = vmatprep.subr.mxu0 0.0
        %9289 = vmatpush1.xpose.msra.mxu0 0.0
        %9290 = vmatprep.subr.mxu0 0.0
        %9291 = vmatpush1.xpose.msra.mxu0 0.0
        %9292 = vmatprep.subr.mxu0 0.0
        %9293 = vmatpush1.xpose.msra.mxu0 0.0
        %9294 = vmatprep.subr.mxu0 0.0
        %9295 = vmatpush1.xpose.msra.mxu0 0.0
        %9296 = vmatprep.subr.mxu0 0.0
        %9297 = vmatpush1.xpose.msra.mxu0 0.0
        %9298 = vmatprep.subr.mxu0 0.0
        %9299 = vmatpush1.xpose.msra.mxu0 0.0
        %9300 = vmatprep.subr.mxu0 0.0
        %9301 = vmatpush1.xpose.msra.mxu0 0.0
        %9302 = vmatprep.subr.mxu0 0.0
        %9303 = vmatpush1.xpose.msra.mxu0 0.0
        %9304 = vmatprep.subr.mxu0 0.0
        %9305 = vmatpush1.xpose.msra.mxu0 0.0
        %9306 = vmatprep.subr.mxu0 0.0
        %9307 = vmatpush1.xpose.msra.mxu0 0.0
        %9308 = vmatprep.subr.mxu0 0.0
        %9309 = vmatpush1.xpose.msra.mxu0 0.0
        %9310 = vmatprep.subr.mxu0 0.0
        %9311 = vmatpush1.xpose.msra.mxu0 0.0
        %9312 = vmatprep.subr.mxu0 0.0
        %9313 = vmatpush1.xpose.msra.mxu0 0.0
        %9314 = vmatprep.subr.mxu0 0.0
        %9315 = vmatpush1.xpose.msra.mxu0 0.0
        %9316 = vmatprep.subr.mxu0 0.0
        %9317 = vmatpush1.xpose.msra.mxu0 0.0
        %9318 = vmatprep.subr.mxu0 0.0
        %9319 = vmatpush1.xpose.msra.mxu0 0.0
        %9320 = vmatprep.subr.mxu0 0.0
        %9321 = vmatpush1.xpose.msra.mxu0 0.0
        %9322 = vmatprep.subr.mxu0 0.0
        %9323 = vmatpush1.xpose.msra.mxu0 0.0
        %9324 = vmatprep.mubr.f32.mxu0 0.0
        %v9325 = vand.u32 %v8827, 4294901760
        %9326 = vmatmul.mubr.f32.gmra.mrb[0].mxu0 %v9325
        %v9327 = vpop.f32.mrb[0].mxu0
        %v9328 = vadd.f32 %v9249, %v9327
        %v9329 = vpop.f32.mrb[0].mxu0
        %9330 = vmatprep.mubr.f32.mxu0 0.0
        %v9331 = vand.u32 %v8829, 4294901760
        %9332 = vmatmul.mubr.f32.gmra.mrb[0].mxu0 %v9331
        %v9333 = vpop.f32.mrb[0].mxu0
        %v9334 = vadd.f32 %v9255, %v9333
        %v9335 = vpop.f32.mrb[0].mxu0
        %9336 = vdwg.mxu0
        %v9337 = vmul.f32 %v9328, 0.17677669
        %v9338 = vmul.f32 %v9334, 0.17677669
        %v9339 = vadd.f32 %v9337, %v4538
        %v9340 = vadd.f32 %v9338, %v4538
        %v9341 = vsel %vm4542, %v9339, -inf
        %9342 = vmax.xlane.f32.xlu0 %v9341
        %v9343 = vpop.xlane.xlu0 %9342
        %v9344 = vsel %vm4542, %v9340, -inf
        %9345 = vmax.xlane.f32.xlu0 %v9344
        %v9346 = vpop.xlane.xlu0 %9345
        %v9347 = vsub.f32 %v9339, %v9343
        %v9348 = vsub.f32 %v9340, %v9346
        %v9349 = vmul.f32 %v9347, 1.442695
        %v9350 = vpow.pop %v9349
        %v9351 = vmul.f32 %v9348, 1.442695
        %v9352 = vpow.pop %v9351
        %v9353 = vsel %vm4542, %v9350, 0.0
        %9354 = vadd.xlane.f32.xlu0 %v9353
        %v9355 = vpop.xlane.xlu0 %9354
        %v9356 = vsel %vm4542, %v9352, 0.0
        %9357 = vadd.xlane.f32.xlu0 %v9356
        %v9358 = vpop.xlane.xlu0 %9357
        %v9359 = vrcp.pop %v9355
        %v9360 = vmul.f32 %v9350, %v9359
        %v9361 = vrcp.pop %v9358
        %v9362 = vmul.f32 %v9352, %v9361
        %9363 = vrot.lane.b32.xlu0 %v4005, 32
        %v9364 = vpop.permute.xlu0 %9363
        %9365 = vrot.lane.b32.xlu0 %v4012, 32
        %v9366 = vpop.permute.xlu0 %9365
        %v9370 = vsel %vm4542, %v9360, 0
        %v9373 = vsel %vm4542, %v9362, 0
        %9375 = vmatprep.subr.mxu0 0.0
        %v9376 = vand.u32 %v9364, 4294901760
        %9377 = vmatpush1.msra.mxu0 %v9376
        %9378 = vmatprep.subr.mxu0 0.0
        %v9379 = vand.u32 %v9366, 4294901760
        %9380 = vmatpush1.msra.mxu0 %v9379
        %9381 = vmatprep.subr.mxu0 0.0
        %9382 = vmatpush1.msra.mxu0 0.0
        %9383 = vmatprep.subr.mxu0 0.0
        %9384 = vmatpush1.msra.mxu0 0.0
        %9385 = vmatprep.subr.mxu0 0.0
        %9386 = vmatpush1.msra.mxu0 0.0
        %9387 = vmatprep.subr.mxu0 0.0
        %9388 = vmatpush1.msra.mxu0 0.0
        %9389 = vmatprep.subr.mxu0 0.0
        %9390 = vmatpush1.msra.mxu0 0.0
        %9391 = vmatprep.subr.mxu0 0.0
        %9392 = vmatpush1.msra.mxu0 0.0
        %9393 = vmatprep.subr.mxu0 0.0
        %9394 = vmatpush1.msra.mxu0 0.0
        %9395 = vmatprep.subr.mxu0 0.0
        %9396 = vmatpush1.msra.mxu0 0.0
        %9397 = vmatprep.subr.mxu0 0.0
        %9398 = vmatpush1.msra.mxu0 0.0
        %9399 = vmatprep.subr.mxu0 0.0
        %9400 = vmatpush1.msra.mxu0 0.0
        %9401 = vmatprep.subr.mxu0 0.0
        %9402 = vmatpush1.msra.mxu0 0.0
        %9403 = vmatprep.subr.mxu0 0.0
        %9404 = vmatpush1.msra.mxu0 0.0
        %9405 = vmatprep.subr.mxu0 0.0
        %9406 = vmatpush1.msra.mxu0 0.0
        %9407 = vmatprep.subr.mxu0 0.0
        %9408 = vmatpush1.msra.mxu0 0.0
        %9409 = vmatprep.subr.mxu0 0.0
        %9410 = vmatpush1.msra.mxu0 0.0
        %9411 = vmatprep.subr.mxu0 0.0
        %9412 = vmatpush1.msra.mxu0 0.0
        %9413 = vmatprep.subr.mxu0 0.0
        %9414 = vmatpush1.msra.mxu0 0.0
        %9415 = vmatprep.subr.mxu0 0.0
        %9416 = vmatpush1.msra.mxu0 0.0
        %9417 = vmatprep.subr.mxu0 0.0
        %9418 = vmatpush1.msra.mxu0 0.0
        %9419 = vmatprep.subr.mxu0 0.0
        %9420 = vmatpush1.msra.mxu0 0.0
        %9421 = vmatprep.subr.mxu0 0.0
        %9422 = vmatpush1.msra.mxu0 0.0
        %9423 = vmatprep.subr.mxu0 0.0
        %9424 = vmatpush1.msra.mxu0 0.0
        %9425 = vmatprep.subr.mxu0 0.0
        %9426 = vmatpush1.msra.mxu0 0.0
        %9427 = vmatprep.subr.mxu0 0.0
        %9428 = vmatpush1.msra.mxu0 0.0
        %9429 = vmatprep.subr.mxu0 0.0
        %9430 = vmatpush1.msra.mxu0 0.0
        %9431 = vmatprep.subr.mxu0 0.0
        %9432 = vmatpush1.msra.mxu0 0.0
        %9433 = vmatprep.subr.mxu0 0.0
        %9434 = vmatpush1.msra.mxu0 0.0
        %9435 = vmatprep.subr.mxu0 0.0
        %9436 = vmatpush1.msra.mxu0 0.0
        %9437 = vmatprep.subr.mxu0 0.0
        %9438 = vmatpush1.msra.mxu0 0.0
        %9439 = vmatprep.subr.mxu0 0.0
        %9440 = vmatpush1.msra.mxu0 0.0
        %9441 = vmatprep.mubr.f32.mxu0 0.0
        %v9442 = vand.u32 %v9370, 4294901760
        %v9443 = vsub.f32 %v9370, %v9442
        %v9444 = vand.u32 %v9443, 4294901760
        %v9445 = vsub.f32 %v9443, %v9444
        %v9446 = vand.u32 %v9445, 4294901760
        %9447 = vmatmul.mubr.f32.gmra.mrb[0].mxu0 %v9446
        %v9448 = vpop.f32.mrb[0].mxu0
        %v9449 = vadd.f32 0.0, %v9448
        %v9450 = vpop.f32.mrb[0].mxu0
        %9451 = vmatprep.mubr.f32.mxu0 0.0
        %v9452 = vand.u32 %v9373, 4294901760
        %v9453 = vsub.f32 %v9373, %v9452
        %v9454 = vand.u32 %v9453, 4294901760
        %v9455 = vsub.f32 %v9453, %v9454
        %v9456 = vand.u32 %v9455, 4294901760
        %9457 = vmatmul.mubr.f32.gmra.mrb[0].mxu0 %v9456
        %v9458 = vpop.f32.mrb[0].mxu0
        %v9459 = vadd.f32 0.0, %v9458
        %v9460 = vpop.f32.mrb[0].mxu0
        %9461 = vdwg.mxu0
        %9462 = vmatprep.subr.mxu0 0.0
        %v9463 = vand.u32 %v9364, 4294901760
        %v9464 = vsub.f32 %v9364, %v9463
        %v9465 = vand.u32 %v9464, 4294901760
        %v9466 = vsub.f32 %v9464, %v9465
        %v9467 = vand.u32 %v9466, 4294901760
        %9468 = vmatpush1.msra.mxu0 %v9467
        %9469 = vmatprep.subr.mxu0 0.0
        %v9470 = vand.u32 %v9366, 4294901760
        %v9471 = vsub.f32 %v9366, %v9470
        %v9472 = vand.u32 %v9471, 4294901760
        %v9473 = vsub.f32 %v9471, %v9472
        %v9474 = vand.u32 %v9473, 4294901760
        %9475 = vmatpush1.msra.mxu0 %v9474
        %9476 = vmatprep.subr.mxu0 0.0
        %9477 = vmatpush1.msra.mxu0 0.0
        %9478 = vmatprep.subr.mxu0 0.0
        %9479 = vmatpush1.msra.mxu0 0.0
        %9480 = vmatprep.subr.mxu0 0.0
        %9481 = vmatpush1.msra.mxu0 0.0
        %9482 = vmatprep.subr.mxu0 0.0
        %9483 = vmatpush1.msra.mxu0 0.0
        %9484 = vmatprep.subr.mxu0 0.0
        %9485 = vmatpush1.msra.mxu0 0.0
        %9486 = vmatprep.subr.mxu0 0.0
        %9487 = vmatpush1.msra.mxu0 0.0
        %9488 = vmatprep.subr.mxu0 0.0
        %9489 = vmatpush1.msra.mxu0 0.0
        %9490 = vmatprep.subr.mxu0 0.0
        %9491 = vmatpush1.msra.mxu0 0.0
        %9492 = vmatprep.subr.mxu0 0.0
        %9493 = vmatpush1.msra.mxu0 0.0
        %9494 = vmatprep.subr.mxu0 0.0
        %9495 = vmatpush1.msra.mxu0 0.0
        %9496 = vmatprep.subr.mxu0 0.0
        %9497 = vmatpush1.msra.mxu0 0.0
        %9498 = vmatprep.subr.mxu0 0.0
        %9499 = vmatpush1.msra.mxu0 0.0
        %9500 = vmatprep.subr.mxu0 0.0
        %9501 = vmatpush1.msra.mxu0 0.0
        %9502 = vmatprep.subr.mxu0 0.0
        %9503 = vmatpush1.msra.mxu0 0.0
        %9504 = vmatprep.subr.mxu0 0.0
        %9505 = vmatpush1.msra.mxu0 0.0
        %9506 = vmatprep.subr.mxu0 0.0
        %9507 = vmatpush1.msra.mxu0 0.0
        %9508 = vmatprep.subr.mxu0 0.0
        %9509 = vmatpush1.msra.mxu0 0.0
        %9510 = vmatprep.subr.mxu0 0.0
        %9511 = vmatpush1.msra.mxu0 0.0
        %9512 = vmatprep.subr.mxu0 0.0
        %9513 = vmatpush1.msra.mxu0 0.0
        %9514 = vmatprep.subr.mxu0 0.0
        %9515 = vmatpush1.msra.mxu0 0.0
        %9516 = vmatprep.subr.mxu0 0.0
        %9517 = vmatpush1.msra.mxu0 0.0
        %9518 = vmatprep.subr.mxu0 0.0
        %9519 = vmatpush1.msra.mxu0 0.0
        %9520 = vmatprep.subr.mxu0 0.0
        %9521 = vmatpush1.msra.mxu0 0.0
        %9522 = vmatprep.subr.mxu0 0.0
        %9523 = vmatpush1.msra.mxu0 0.0
        %9524 = vmatprep.subr.mxu0 0.0
        %9525 = vmatpush1.msra.mxu0 0.0
        %9526 = vmatprep.subr.mxu0 0.0
        %9527 = vmatpush1.msra.mxu0 0.0
        %9528 = vmatprep.subr.mxu0 0.0
        %9529 = vmatpush1.msra.mxu0 0.0
        %9530 = vmatprep.subr.mxu0 0.0
        %9531 = vmatpush1.msra.mxu0 0.0
        %9532 = vmatprep.subr.mxu0 0.0
        %9533 = vmatpush1.msra.mxu0 0.0
        %9534 = vmatprep.subr.mxu0 0.0
        %9535 = vmatpush1.msra.mxu0 0.0
        %9536 = vmatprep.mubr.f32.mxu0 0.0
        %v9537 = vand.u32 %v9370, 4294901760
        %9538 = vmatmul.mubr.f32.gmra.mrb[0].mxu0 %v9537
        %v9539 = vpop.f32.mrb[0].mxu0
        %v9540 = vadd.f32 %v9449, %v9539
        %v9541 = vpop.f32.mrb[0].mxu0
        %9542 = vmatprep.mubr.f32.mxu0 0.0
        %v9543 = vand.u32 %v9373, 4294901760
        %9544 = vmatmul.mubr.f32.gmra.mrb[0].mxu0 %v9543
        %v9545 = vpop.f32.mrb[0].mxu0
        %v9546 = vadd.f32 %v9459, %v9545
        %v9547 = vpop.f32.mrb[0].mxu0
        %9548 = vdwg.mxu0
        %9549 = vmatprep.subr.mxu0 0.0
        %v9550 = vand.u32 %v9364, 4294901760
        %v9551 = vsub.f32 %v9364, %v9550
        %9552 = vmatpush1.msra.mxu0 %v9551
        %9553 = vmatprep.subr.mxu0 0.0
        %v9554 = vand.u32 %v9366, 4294901760
        %v9555 = vsub.f32 %v9366, %v9554
        %9556 = vmatpush1.msra.mxu0 %v9555
        %9557 = vmatprep.subr.mxu0 0.0
        %9558 = vmatpush1.msra.mxu0 0.0
        %9559 = vmatprep.subr.mxu0 0.0
        %9560 = vmatpush1.msra.mxu0 0.0
        %9561 = vmatprep.subr.mxu0 0.0
        %9562 = vmatpush1.msra.mxu0 0.0
        %9563 = vmatprep.subr.mxu0 0.0
        %9564 = vmatpush1.msra.mxu0 0.0
        %9565 = vmatprep.subr.mxu0 0.0
        %9566 = vmatpush1.msra.mxu0 0.0
        %9567 = vmatprep.subr.mxu0 0.0
        %9568 = vmatpush1.msra.mxu0 0.0
        %9569 = vmatprep.subr.mxu0 0.0
        %9570 = vmatpush1.msra.mxu0 0.0
        %9571 = vmatprep.subr.mxu0 0.0
        %9572 = vmatpush1.msra.mxu0 0.0
        %9573 = vmatprep.subr.mxu0 0.0
        %9574 = vmatpush1.msra.mxu0 0.0
        %9575 = vmatprep.subr.mxu0 0.0
        %9576 = vmatpush1.msra.mxu0 0.0
        %9577 = vmatprep.subr.mxu0 0.0
        %9578 = vmatpush1.msra.mxu0 0.0
        %9579 = vmatprep.subr.mxu0 0.0
        %9580 = vmatpush1.msra.mxu0 0.0
        %9581 = vmatprep.subr.mxu0 0.0
        %9582 = vmatpush1.msra.mxu0 0.0
        %9583 = vmatprep.subr.mxu0 0.0
        %9584 = vmatpush1.msra.mxu0 0.0
        %9585 = vmatprep.subr.mxu0 0.0
        %9586 = vmatpush1.msra.mxu0 0.0
        %9587 = vmatprep.subr.mxu0 0.0
        %9588 = vmatpush1.msra.mxu0 0.0
        %9589 = vmatprep.subr.mxu0 0.0
        %9590 = vmatpush1.msra.mxu0 0.0
        %9591 = vmatprep.subr.mxu0 0.0
        %9592 = vmatpush1.msra.mxu0 0.0
        %9593 = vmatprep.subr.mxu0 0.0
        %9594 = vmatpush1.msra.mxu0 0.0
        %9595 = vmatprep.subr.mxu0 0.0
        %9596 = vmatpush1.msra.mxu0 0.0
        %9597 = vmatprep.subr.mxu0 0.0
        %9598 = vmatpush1.msra.mxu0 0.0
        %9599 = vmatprep.subr.mxu0 0.0
        %9600 = vmatpush1.msra.mxu0 0.0
        %9601 = vmatprep.subr.mxu0 0.0
        %9602 = vmatpush1.msra.mxu0 0.0
        %9603 = vmatprep.subr.mxu0 0.0
        %9604 = vmatpush1.msra.mxu0 0.0
        %9605 = vmatprep.subr.mxu0 0.0
        %9606 = vmatpush1.msra.mxu0 0.0
        %9607 = vmatprep.subr.mxu0 0.0
        %9608 = vmatpush1.msra.mxu0 0.0
        %9609 = vmatprep.subr.mxu0 0.0
        %9610 = vmatpush1.msra.mxu0 0.0
        %9611 = vmatprep.subr.mxu0 0.0
        %9612 = vmatpush1.msra.mxu0 0.0
        %9613 = vmatprep.subr.mxu0 0.0
        %9614 = vmatpush1.msra.mxu0 0.0
        %9615 = vmatprep.subr.mxu0 0.0
        %9616 = vmatpush1.msra.mxu0 0.0
        %9617 = vmatprep.mubr.f32.mxu0 0.0
        %v9618 = vand.u32 %v9370, 4294901760
        %v9619 = vsub.f32 %v9370, %v9618
        %9620 = vmatmul.mubr.f32.gmra.mrb[0].mxu0 %v9619
        %v9621 = vpop.f32.mrb[0].mxu0
        %v9622 = vadd.f32 %v9540, %v9621
        %v9623 = vpop.f32.mrb[0].mxu0
        %9624 = vmatprep.mubr.f32.mxu0 0.0
        %v9625 = vand.u32 %v9373, 4294901760
        %v9626 = vsub.f32 %v9373, %v9625
        %9627 = vmatmul.mubr.f32.gmra.mrb[0].mxu0 %v9626
        %v9628 = vpop.f32.mrb[0].mxu0
        %v9629 = vadd.f32 %v9546, %v9628
        %v9630 = vpop.f32.mrb[0].mxu0
        %9631 = vdwg.mxu0
        %9632 = vmatprep.subr.mxu0 0.0
        %v9633 = vand.u32 %v9364, 4294901760
        %9634 = vmatpush1.msra.mxu0 %v9633
        %9635 = vmatprep.subr.mxu0 0.0
        %v9636 = vand.u32 %v9366, 4294901760
        %9637 = vmatpush1.msra.mxu0 %v9636
        %9638 = vmatprep.subr.mxu0 0.0
        %9639 = vmatpush1.msra.mxu0 0.0
        %9640 = vmatprep.subr.mxu0 0.0
        %9641 = vmatpush1.msra.mxu0 0.0
        %9642 = vmatprep.subr.mxu0 0.0
        %9643 = vmatpush1.msra.mxu0 0.0
        %9644 = vmatprep.subr.mxu0 0.0
        %9645 = vmatpush1.msra.mxu0 0.0
        %9646 = vmatprep.subr.mxu0 0.0
        %9647 = vmatpush1.msra.mxu0 0.0
        %9648 = vmatprep.subr.mxu0 0.0
        %9649 = vmatpush1.msra.mxu0 0.0
        %9650 = vmatprep.subr.mxu0 0.0
        %9651 = vmatpush1.msra.mxu0 0.0
        %9652 = vmatprep.subr.mxu0 0.0
        %9653 = vmatpush1.msra.mxu0 0.0
        %9654 = vmatprep.subr.mxu0 0.0
        %9655 = vmatpush1.msra.mxu0 0.0
        %9656 = vmatprep.subr.mxu0 0.0
        %9657 = vmatpush1.msra.mxu0 0.0
        %9658 = vmatprep.subr.mxu0 0.0
        %9659 = vmatpush1.msra.mxu0 0.0
        %9660 = vmatprep.subr.mxu0 0.0
        %9661 = vmatpush1.msra.mxu0 0.0
        %9662 = vmatprep.subr.mxu0 0.0
        %9663 = vmatpush1.msra.mxu0 0.0
        %9664 = vmatprep.subr.mxu0 0.0
        %9665 = vmatpush1.msra.mxu0 0.0
        %9666 = vmatprep.subr.mxu0 0.0
        %9667 = vmatpush1.msra.mxu0 0.0
        %9668 = vmatprep.subr.mxu0 0.0
        %9669 = vmatpush1.msra.mxu0 0.0
        %9670 = vmatprep.subr.mxu0 0.0
        %9671 = vmatpush1.msra.mxu0 0.0
        %9672 = vmatprep.subr.mxu0 0.0
        %9673 = vmatpush1.msra.mxu0 0.0
        %9674 = vmatprep.subr.mxu0 0.0
        %9675 = vmatpush1.msra.mxu0 0.0
        %9676 = vmatprep.subr.mxu0 0.0
        %9677 = vmatpush1.msra.mxu0 0.0
        %9678 = vmatprep.subr.mxu0 0.0
        %9679 = vmatpush1.msra.mxu0 0.0
        %9680 = vmatprep.subr.mxu0 0.0
        %9681 = vmatpush1.msra.mxu0 0.0
        %9682 = vmatprep.subr.mxu0 0.0
        %9683 = vmatpush1.msra.mxu0 0.0
        %9684 = vmatprep.subr.mxu0 0.0
        %9685 = vmatpush1.msra.mxu0 0.0
        %9686 = vmatprep.subr.mxu0 0.0
        %9687 = vmatpush1.msra.mxu0 0.0
        %9688 = vmatprep.subr.mxu0 0.0
        %9689 = vmatpush1.msra.mxu0 0.0
        %9690 = vmatprep.subr.mxu0 0.0
        %9691 = vmatpush1.msra.mxu0 0.0
        %9692 = vmatprep.subr.mxu0 0.0
        %9693 = vmatpush1.msra.mxu0 0.0
        %9694 = vmatprep.subr.mxu0 0.0
        %9695 = vmatpush1.msra.mxu0 0.0
        %9696 = vmatprep.subr.mxu0 0.0
        %9697 = vmatpush1.msra.mxu0 0.0
        %9698 = vmatprep.mubr.f32.mxu0 0.0
        %v9699 = vand.u32 %v9370, 4294901760
        %v9700 = vsub.f32 %v9370, %v9699
        %v9701 = vand.u32 %v9700, 4294901760
        %9702 = vmatmul.mubr.f32.gmra.mrb[0].mxu0 %v9701
        %v9703 = vpop.f32.mrb[0].mxu0
        %v9704 = vadd.f32 %v9622, %v9703
        %v9705 = vpop.f32.mrb[0].mxu0
        %9706 = vmatprep.mubr.f32.mxu0 0.0
        %v9707 = vand.u32 %v9373, 4294901760
        %v9708 = vsub.f32 %v9373, %v9707
        %v9709 = vand.u32 %v9708, 4294901760
        %9710 = vmatmul.mubr.f32.gmra.mrb[0].mxu0 %v9709
        %v9711 = vpop.f32.mrb[0].mxu0
        %v9712 = vadd.f32 %v9629, %v9711
        %v9713 = vpop.f32.mrb[0].mxu0
        %9714 = vdwg.mxu0
        %9715 = vmatprep.subr.mxu0 0.0
        %v9716 = vand.u32 %v9364, 4294901760
        %v9717 = vsub.f32 %v9364, %v9716
        %v9718 = vand.u32 %v9717, 4294901760
        %9719 = vmatpush1.msra.mxu0 %v9718
        %9720 = vmatprep.subr.mxu0 0.0
        %v9721 = vand.u32 %v9366, 4294901760
        %v9722 = vsub.f32 %v9366, %v9721
        %v9723 = vand.u32 %v9722, 4294901760
        %9724 = vmatpush1.msra.mxu0 %v9723
        %9725 = vmatprep.subr.mxu0 0.0
        %9726 = vmatpush1.msra.mxu0 0.0
        %9727 = vmatprep.subr.mxu0 0.0
        %9728 = vmatpush1.msra.mxu0 0.0
        %9729 = vmatprep.subr.mxu0 0.0
        %9730 = vmatpush1.msra.mxu0 0.0
        %9731 = vmatprep.subr.mxu0 0.0
        %9732 = vmatpush1.msra.mxu0 0.0
        %9733 = vmatprep.subr.mxu0 0.0
        %9734 = vmatpush1.msra.mxu0 0.0
        %9735 = vmatprep.subr.mxu0 0.0
        %9736 = vmatpush1.msra.mxu0 0.0
        %9737 = vmatprep.subr.mxu0 0.0
        %9738 = vmatpush1.msra.mxu0 0.0
        %9739 = vmatprep.subr.mxu0 0.0
        %9740 = vmatpush1.msra.mxu0 0.0
        %9741 = vmatprep.subr.mxu0 0.0
        %9742 = vmatpush1.msra.mxu0 0.0
        %9743 = vmatprep.subr.mxu0 0.0
        %9744 = vmatpush1.msra.mxu0 0.0
        %9745 = vmatprep.subr.mxu0 0.0
        %9746 = vmatpush1.msra.mxu0 0.0
        %9747 = vmatprep.subr.mxu0 0.0
        %9748 = vmatpush1.msra.mxu0 0.0
        %9749 = vmatprep.subr.mxu0 0.0
        %9750 = vmatpush1.msra.mxu0 0.0
        %9751 = vmatprep.subr.mxu0 0.0
        %9752 = vmatpush1.msra.mxu0 0.0
        %9753 = vmatprep.subr.mxu0 0.0
        %9754 = vmatpush1.msra.mxu0 0.0
        %9755 = vmatprep.subr.mxu0 0.0
        %9756 = vmatpush1.msra.mxu0 0.0
        %9757 = vmatprep.subr.mxu0 0.0
        %9758 = vmatpush1.msra.mxu0 0.0
        %9759 = vmatprep.subr.mxu0 0.0
        %9760 = vmatpush1.msra.mxu0 0.0
        %9761 = vmatprep.subr.mxu0 0.0
        %9762 = vmatpush1.msra.mxu0 0.0
        %9763 = vmatprep.subr.mxu0 0.0
        %9764 = vmatpush1.msra.mxu0 0.0
        %9765 = vmatprep.subr.mxu0 0.0
        %9766 = vmatpush1.msra.mxu0 0.0
        %9767 = vmatprep.subr.mxu0 0.0
        %9768 = vmatpush1.msra.mxu0 0.0
        %9769 = vmatprep.subr.mxu0 0.0
        %9770 = vmatpush1.msra.mxu0 0.0
        %9771 = vmatprep.subr.mxu0 0.0
        %9772 = vmatpush1.msra.mxu0 0.0
        %9773 = vmatprep.subr.mxu0 0.0
        %9774 = vmatpush1.msra.mxu0 0.0
        %9775 = vmatprep.subr.mxu0 0.0
        %9776 = vmatpush1.msra.mxu0 0.0
        %9777 = vmatprep.subr.mxu0 0.0
        %9778 = vmatpush1.msra.mxu0 0.0
        %9779 = vmatprep.subr.mxu0 0.0
        %9780 = vmatpush1.msra.mxu0 0.0
        %9781 = vmatprep.subr.mxu0 0.0
        %9782 = vmatpush1.msra.mxu0 0.0
        %9783 = vmatprep.subr.mxu0 0.0
        %9784 = vmatpush1.msra.mxu0 0.0
        %9785 = vmatprep.mubr.f32.mxu0 0.0
        %v9786 = vand.u32 %v9370, 4294901760
        %9787 = vmatmul.mubr.f32.gmra.mrb[0].mxu0 %v9786
        %v9788 = vpop.f32.mrb[0].mxu0
        %v9789 = vadd.f32 %v9704, %v9788
        %v9790 = vpop.f32.mrb[0].mxu0
        %9791 = vmatprep.mubr.f32.mxu0 0.0
        %v9792 = vand.u32 %v9373, 4294901760
        %9793 = vmatmul.mubr.f32.gmra.mrb[0].mxu0 %v9792
        %v9794 = vpop.f32.mrb[0].mxu0
        %v9795 = vadd.f32 %v9712, %v9794
        %v9796 = vpop.f32.mrb[0].mxu0
        %9797 = vdwg.mxu0
        %9798 = vmatprep.subr.mxu0 0.0
        %v9799 = vand.u32 %v9364, 4294901760
        %9800 = vmatpush1.msra.mxu0 %v9799
        %9801 = vmatprep.subr.mxu0 0.0
        %v9802 = vand.u32 %v9366, 4294901760
        %9803 = vmatpush1.msra.mxu0 %v9802
        %9804 = vmatprep.subr.mxu0 0.0
        %9805 = vmatpush1.msra.mxu0 0.0
        %9806 = vmatprep.subr.mxu0 0.0
        %9807 = vmatpush1.msra.mxu0 0.0
        %9808 = vmatprep.subr.mxu0 0.0
        %9809 = vmatpush1.msra.mxu0 0.0
        %9810 = vmatprep.subr.mxu0 0.0
        %9811 = vmatpush1.msra.mxu0 0.0
        %9812 = vmatprep.subr.mxu0 0.0
        %9813 = vmatpush1.msra.mxu0 0.0
        %9814 = vmatprep.subr.mxu0 0.0
        %9815 = vmatpush1.msra.mxu0 0.0
        %9816 = vmatprep.subr.mxu0 0.0
        %9817 = vmatpush1.msra.mxu0 0.0
        %9818 = vmatprep.subr.mxu0 0.0
        %9819 = vmatpush1.msra.mxu0 0.0
        %9820 = vmatprep.subr.mxu0 0.0
        %9821 = vmatpush1.msra.mxu0 0.0
        %9822 = vmatprep.subr.mxu0 0.0
        %9823 = vmatpush1.msra.mxu0 0.0
        %9824 = vmatprep.subr.mxu0 0.0
        %9825 = vmatpush1.msra.mxu0 0.0
        %9826 = vmatprep.subr.mxu0 0.0
        %9827 = vmatpush1.msra.mxu0 0.0
        %9828 = vmatprep.subr.mxu0 0.0
        %9829 = vmatpush1.msra.mxu0 0.0
        %9830 = vmatprep.subr.mxu0 0.0
        %9831 = vmatpush1.msra.mxu0 0.0
        %9832 = vmatprep.subr.mxu0 0.0
        %9833 = vmatpush1.msra.mxu0 0.0
        %9834 = vmatprep.subr.mxu0 0.0
        %9835 = vmatpush1.msra.mxu0 0.0
        %9836 = vmatprep.subr.mxu0 0.0
        %9837 = vmatpush1.msra.mxu0 0.0
        %9838 = vmatprep.subr.mxu0 0.0
        %9839 = vmatpush1.msra.mxu0 0.0
        %9840 = vmatprep.subr.mxu0 0.0
        %9841 = vmatpush1.msra.mxu0 0.0
        %9842 = vmatprep.subr.mxu0 0.0
        %9843 = vmatpush1.msra.mxu0 0.0
        %9844 = vmatprep.subr.mxu0 0.0
        %9845 = vmatpush1.msra.mxu0 0.0
        %9846 = vmatprep.subr.mxu0 0.0
        %9847 = vmatpush1.msra.mxu0 0.0
        %9848 = vmatprep.subr.mxu0 0.0
        %9849 = vmatpush1.msra.mxu0 0.0
        %9850 = vmatprep.subr.mxu0 0.0
        %9851 = vmatpush1.msra.mxu0 0.0
        %9852 = vmatprep.subr.mxu0 0.0
        %9853 = vmatpush1.msra.mxu0 0.0
        %9854 = vmatprep.subr.mxu0 0.0
        %9855 = vmatpush1.msra.mxu0 0.0
        %9856 = vmatprep.subr.mxu0 0.0
        %9857 = vmatpush1.msra.mxu0 0.0
        %9858 = vmatprep.subr.mxu0 0.0
        %9859 = vmatpush1.msra.mxu0 0.0
        %9860 = vmatprep.subr.mxu0 0.0
        %9861 = vmatpush1.msra.mxu0 0.0
        %9862 = vmatprep.subr.mxu0 0.0
        %9863 = vmatpush1.msra.mxu0 0.0
        %9864 = vmatprep.mubr.f32.mxu0 0.0
        %v9865 = vand.u32 %v9370, 4294901760
        %9866 = vmatmul.mubr.f32.gmra.mrb[0].mxu0 %v9865
        %v9867 = vpop.f32.mrb[0].mxu0
        %v9868 = vadd.f32 %v9789, %v9867
        %v9869 = vpop.f32.mrb[0].mxu0
        %9870 = vmatprep.mubr.f32.mxu0 0.0
        %v9871 = vand.u32 %v9373, 4294901760
        %9872 = vmatmul.mubr.f32.gmra.mrb[0].mxu0 %v9871
        %v9873 = vpop.f32.mrb[0].mxu0
        %v9874 = vadd.f32 %v9795, %v9873
        %v9875 = vpop.f32.mrb[0].mxu0
        %9876 = vdwg.mxu0
        %s9877 = scalar_lea.vmem [#allocation13], 96
        %v9878 = vld [vmem:[%s9877] sm:$0xff]
        %v9879 = vld [vmem:[%s9877 + $0x8] sm:$0xff]
        %v9880 = vld [vmem:[%s9877 + $0x10] sm:$0xff]
        %v9881 = vld [vmem:[%s9877 + $0x18] sm:$0xff]
        %v9883 = vsel %vm4017, %v9868, 0
        %v9886 = vsel %vm4017, %v9874, 0
        %9888 = vmatprep.subr.mxu0 0.0
        %v9889 = vand.u32 %v9878, 4294901760
        %9890 = vmatpush1.msra.mxu0 %v9889
        %9891 = vmatprep.subr.mxu0 0.0
        %v9892 = vand.u32 %v9879, 4294901760
        %9893 = vmatpush1.msra.mxu0 %v9892
        %9894 = vmatprep.subr.mxu0 0.0
        %v9895 = vand.u32 %v9880, 4294901760
        %9896 = vmatpush1.msra.mxu0 %v9895
        %9897 = vmatprep.subr.mxu0 0.0
        %v9898 = vand.u32 %v9881, 4294901760
        %9899 = vmatpush1.msra.mxu0 %v9898
        %9900 = vmatprep.subr.mxu0 0.0
        %9901 = vmatpush1.msra.mxu0 0.0
        %9902 = vmatprep.subr.mxu0 0.0
        %9903 = vmatpush1.msra.mxu0 0.0
        %9904 = vmatprep.subr.mxu0 0.0
        %9905 = vmatpush1.msra.mxu0 0.0
        %9906 = vmatprep.subr.mxu0 0.0
        %9907 = vmatpush1.msra.mxu0 0.0
        %9908 = vmatprep.subr.mxu0 0.0
        %9909 = vmatpush1.msra.mxu0 0.0
        %9910 = vmatprep.subr.mxu0 0.0
        %9911 = vmatpush1.msra.mxu0 0.0
        %9912 = vmatprep.subr.mxu0 0.0
        %9913 = vmatpush1.msra.mxu0 0.0
        %9914 = vmatprep.subr.mxu0 0.0
        %9915 = vmatpush1.msra.mxu0 0.0
        %9916 = vmatprep.subr.mxu0 0.0
        %9917 = vmatpush1.msra.mxu0 0.0
        %9918 = vmatprep.subr.mxu0 0.0
        %9919 = vmatpush1.msra.mxu0 0.0
        %9920 = vmatprep.subr.mxu0 0.0
        %9921 = vmatpush1.msra.mxu0 0.0
        %9922 = vmatprep.subr.mxu0 0.0
        %9923 = vmatpush1.msra.mxu0 0.0
        %9924 = vmatprep.subr.mxu0 0.0
        %9925 = vmatpush1.msra.mxu0 0.0
        %9926 = vmatprep.subr.mxu0 0.0
        %9927 = vmatpush1.msra.mxu0 0.0
        %9928 = vmatprep.subr.mxu0 0.0
        %9929 = vmatpush1.msra.mxu0 0.0
        %9930 = vmatprep.subr.mxu0 0.0
        %9931 = vmatpush1.msra.mxu0 0.0
        %9932 = vmatprep.subr.mxu0 0.0
        %9933 = vmatpush1.msra.mxu0 0.0
        %9934 = vmatprep.subr.mxu0 0.0
        %9935 = vmatpush1.msra.mxu0 0.0
        %9936 = vmatprep.subr.mxu0 0.0
        %9937 = vmatpush1.msra.mxu0 0.0
        %9938 = vmatprep.subr.mxu0 0.0
        %9939 = vmatpush1.msra.mxu0 0.0
        %9940 = vmatprep.subr.mxu0 0.0
        %9941 = vmatpush1.msra.mxu0 0.0
        %9942 = vmatprep.subr.mxu0 0.0
        %9943 = vmatpush1.msra.mxu0 0.0
        %9944 = vmatprep.subr.mxu0 0.0
        %9945 = vmatpush1.msra.mxu0 0.0
        %9946 = vmatprep.subr.mxu0 0.0
        %9947 = vmatpush1.msra.mxu0 0.0
        %9948 = vmatprep.subr.mxu0 0.0
        %9949 = vmatpush1.msra.mxu0 0.0
        %9950 = vmatprep.subr.mxu0 0.0
        %9951 = vmatpush1.msra.mxu0 0.0
        %9952 = vmatprep.subr.mxu0 0.0
        %9953 = vmatpush1.msra.mxu0 0.0
        %9954 = vmatprep.subr.mxu0 0.0
        %9955 = vmatpush1.msra.mxu0 0.0
        %9956 = vmatprep.mubr.f32.mxu0 0.0
        %v9957 = vand.u32 %v9883, 4294901760
        %v9958 = vsub.f32 %v9883, %v9957
        %v9959 = vand.u32 %v9958, 4294901760
        %v9960 = vsub.f32 %v9958, %v9959
        %v9961 = vand.u32 %v9960, 4294901760
        %9962 = vmatmul.mubr.f32.gmra.mrb[0].mxu0 %v9961
        %v9963 = vpop.f32.mrb[0].mxu0
        %v9964 = vadd.f32 0.0, %v9963
        %v9965 = vpop.f32.mrb[0].mxu0
        %9966 = vmatprep.mubr.f32.mxu0 0.0
        %v9967 = vand.u32 %v9886, 4294901760
        %v9968 = vsub.f32 %v9886, %v9967
        %v9969 = vand.u32 %v9968, 4294901760
        %v9970 = vsub.f32 %v9968, %v9969
        %v9971 = vand.u32 %v9970, 4294901760
        %9972 = vmatmul.mubr.f32.gmra.mrb[0].mxu0 %v9971
        %v9973 = vpop.f32.mrb[0].mxu0
        %v9974 = vadd.f32 0.0, %v9973
        %v9975 = vpop.f32.mrb[0].mxu0
        %9976 = vdwg.mxu0
        %9977 = vmatprep.subr.mxu0 0.0
        %v9978 = vand.u32 %v9878, 4294901760
        %v9979 = vsub.f32 %v9878, %v9978
        %v9980 = vand.u32 %v9979, 4294901760
        %v9981 = vsub.f32 %v9979, %v9980
        %v9982 = vand.u32 %v9981, 4294901760
        %9983 = vmatpush1.msra.mxu0 %v9982
        %9984 = vmatprep.subr.mxu0 0.0
        %v9985 = vand.u32 %v9879, 4294901760
        %v9986 = vsub.f32 %v9879, %v9985
        %v9987 = vand.u32 %v9986, 4294901760
        %v9988 = vsub.f32 %v9986, %v9987
        %v9989 = vand.u32 %v9988, 4294901760
        %9990 = vmatpush1.msra.mxu0 %v9989
        %9991 = vmatprep.subr.mxu0 0.0
        %v9992 = vand.u32 %v9880, 4294901760
        %v9993 = vsub.f32 %v9880, %v9992
        %v9994 = vand.u32 %v9993, 4294901760
        %v9995 = vsub.f32 %v9993, %v9994
        %v9996 = vand.u32 %v9995, 4294901760
        %9997 = vmatpush1.msra.mxu0 %v9996
        %9998 = vmatprep.subr.mxu0 0.0
        %v9999 = vand.u32 %v9881, 4294901760
        %v10000 = vsub.f32 %v9881, %v9999
        %v10001 = vand.u32 %v10000, 4294901760
        %v10002 = vsub.f32 %v10000, %v10001
        %v10003 = vand.u32 %v10002, 4294901760
        %10004 = vmatpush1.msra.mxu0 %v10003
        %10005 = vmatprep.subr.mxu0 0.0
        %10006 = vmatpush1.msra.mxu0 0.0
        %10007 = vmatprep.subr.mxu0 0.0
        %10008 = vmatpush1.msra.mxu0 0.0
        %10009 = vmatprep.subr.mxu0 0.0
        %10010 = vmatpush1.msra.mxu0 0.0
        %10011 = vmatprep.subr.mxu0 0.0
        %10012 = vmatpush1.msra.mxu0 0.0
        %10013 = vmatprep.subr.mxu0 0.0
        %10014 = vmatpush1.msra.mxu0 0.0
        %10015 = vmatprep.subr.mxu0 0.0
        %10016 = vmatpush1.msra.mxu0 0.0
        %10017 = vmatprep.subr.mxu0 0.0
        %10018 = vmatpush1.msra.mxu0 0.0
        %10019 = vmatprep.subr.mxu0 0.0
        %10020 = vmatpush1.msra.mxu0 0.0
        %10021 = vmatprep.subr.mxu0 0.0
        %10022 = vmatpush1.msra.mxu0 0.0
        %10023 = vmatprep.subr.mxu0 0.0
        %10024 = vmatpush1.msra.mxu0 0.0
        %10025 = vmatprep.subr.mxu0 0.0
        %10026 = vmatpush1.msra.mxu0 0.0
        %10027 = vmatprep.subr.mxu0 0.0
        %10028 = vmatpush1.msra.mxu0 0.0
        %10029 = vmatprep.subr.mxu0 0.0
        %10030 = vmatpush1.msra.mxu0 0.0
        %10031 = vmatprep.subr.mxu0 0.0
        %10032 = vmatpush1.msra.mxu0 0.0
        %10033 = vmatprep.subr.mxu0 0.0
        %10034 = vmatpush1.msra.mxu0 0.0
        %10035 = vmatprep.subr.mxu0 0.0
        %10036 = vmatpush1.msra.mxu0 0.0
        %10037 = vmatprep.subr.mxu0 0.0
        %10038 = vmatpush1.msra.mxu0 0.0
        %10039 = vmatprep.subr.mxu0 0.0
        %10040 = vmatpush1.msra.mxu0 0.0
        %10041 = vmatprep.subr.mxu0 0.0
        %10042 = vmatpush1.msra.mxu0 0.0
        %10043 = vmatprep.subr.mxu0 0.0
        %10044 = vmatpush1.msra.mxu0 0.0
        %10045 = vmatprep.subr.mxu0 0.0
        %10046 = vmatpush1.msra.mxu0 0.0
        %10047 = vmatprep.subr.mxu0 0.0
        %10048 = vmatpush1.msra.mxu0 0.0
        %10049 = vmatprep.subr.mxu0 0.0
        %10050 = vmatpush1.msra.mxu0 0.0
        %10051 = vmatprep.subr.mxu0 0.0
        %10052 = vmatpush1.msra.mxu0 0.0
        %10053 = vmatprep.subr.mxu0 0.0
        %10054 = vmatpush1.msra.mxu0 0.0
        %10055 = vmatprep.subr.mxu0 0.0
        %10056 = vmatpush1.msra.mxu0 0.0
        %10057 = vmatprep.subr.mxu0 0.0
        %10058 = vmatpush1.msra.mxu0 0.0
        %10059 = vmatprep.subr.mxu0 0.0
        %10060 = vmatpush1.msra.mxu0 0.0
        %10061 = vmatprep.mubr.f32.mxu0 0.0
        %v10062 = vand.u32 %v9883, 4294901760
        %10063 = vmatmul.mubr.f32.gmra.mrb[0].mxu0 %v10062
        %v10064 = vpop.f32.mrb[0].mxu0
        %v10065 = vadd.f32 %v9964, %v10064
        %v10066 = vpop.f32.mrb[0].mxu0
        %10067 = vmatprep.mubr.f32.mxu0 0.0
        %v10068 = vand.u32 %v9886, 4294901760
        %10069 = vmatmul.mubr.f32.gmra.mrb[0].mxu0 %v10068
        %v10070 = vpop.f32.mrb[0].mxu0
        %v10071 = vadd.f32 %v9974, %v10070
        %v10072 = vpop.f32.mrb[0].mxu0
        %10073 = vdwg.mxu0
        %10074 = vmatprep.subr.mxu0 0.0
        %v10075 = vand.u32 %v9878, 4294901760
        %v10076 = vsub.f32 %v9878, %v10075
        %10077 = vmatpush1.msra.mxu0 %v10076
        %10078 = vmatprep.subr.mxu0 0.0
        %v10079 = vand.u32 %v9879, 4294901760
        %v10080 = vsub.f32 %v9879, %v10079
        %10081 = vmatpush1.msra.mxu0 %v10080
        %10082 = vmatprep.subr.mxu0 0.0
        %v10083 = vand.u32 %v9880, 4294901760
        %v10084 = vsub.f32 %v9880, %v10083
        %10085 = vmatpush1.msra.mxu0 %v10084
        %10086 = vmatprep.subr.mxu0 0.0
        %v10087 = vand.u32 %v9881, 4294901760
        %v10088 = vsub.f32 %v9881, %v10087
        %10089 = vmatpush1.msra.mxu0 %v10088
        %10090 = vmatprep.subr.mxu0 0.0
        %10091 = vmatpush1.msra.mxu0 0.0
        %10092 = vmatprep.subr.mxu0 0.0
        %10093 = vmatpush1.msra.mxu0 0.0
        %10094 = vmatprep.subr.mxu0 0.0
        %10095 = vmatpush1.msra.mxu0 0.0
        %10096 = vmatprep.subr.mxu0 0.0
        %10097 = vmatpush1.msra.mxu0 0.0
        %10098 = vmatprep.subr.mxu0 0.0
        %10099 = vmatpush1.msra.mxu0 0.0
        %10100 = vmatprep.subr.mxu0 0.0
        %10101 = vmatpush1.msra.mxu0 0.0
        %10102 = vmatprep.subr.mxu0 0.0
        %10103 = vmatpush1.msra.mxu0 0.0
        %10104 = vmatprep.subr.mxu0 0.0
        %10105 = vmatpush1.msra.mxu0 0.0
        %10106 = vmatprep.subr.mxu0 0.0
        %10107 = vmatpush1.msra.mxu0 0.0
        %10108 = vmatprep.subr.mxu0 0.0
        %10109 = vmatpush1.msra.mxu0 0.0
        %10110 = vmatprep.subr.mxu0 0.0
        %10111 = vmatpush1.msra.mxu0 0.0
        %10112 = vmatprep.subr.mxu0 0.0
        %10113 = vmatpush1.msra.mxu0 0.0
        %10114 = vmatprep.subr.mxu0 0.0
        %10115 = vmatpush1.msra.mxu0 0.0
        %10116 = vmatprep.subr.mxu0 0.0
        %10117 = vmatpush1.msra.mxu0 0.0
        %10118 = vmatprep.subr.mxu0 0.0
        %10119 = vmatpush1.msra.mxu0 0.0
        %10120 = vmatprep.subr.mxu0 0.0
        %10121 = vmatpush1.msra.mxu0 0.0
        %10122 = vmatprep.subr.mxu0 0.0
        %10123 = vmatpush1.msra.mxu0 0.0
        %10124 = vmatprep.subr.mxu0 0.0
        %10125 = vmatpush1.msra.mxu0 0.0
        %10126 = vmatprep.subr.mxu0 0.0
        %10127 = vmatpush1.msra.mxu0 0.0
        %10128 = vmatprep.subr.mxu0 0.0
        %10129 = vmatpush1.msra.mxu0 0.0
        %10130 = vmatprep.subr.mxu0 0.0
        %10131 = vmatpush1.msra.mxu0 0.0
        %10132 = vmatprep.subr.mxu0 0.0
        %10133 = vmatpush1.msra.mxu0 0.0
        %10134 = vmatprep.subr.mxu0 0.0
        %10135 = vmatpush1.msra.mxu0 0.0
        %10136 = vmatprep.subr.mxu0 0.0
        %10137 = vmatpush1.msra.mxu0 0.0
        %10138 = vmatprep.subr.mxu0 0.0
        %10139 = vmatpush1.msra.mxu0 0.0
        %10140 = vmatprep.subr.mxu0 0.0
        %10141 = vmatpush1.msra.mxu0 0.0
        %10142 = vmatprep.subr.mxu0 0.0
        %10143 = vmatpush1.msra.mxu0 0.0
        %10144 = vmatprep.subr.mxu0 0.0
        %10145 = vmatpush1.msra.mxu0 0.0
        %10146 = vmatprep.mubr.f32.mxu0 0.0
        %v10147 = vand.u32 %v9883, 4294901760
        %v10148 = vsub.f32 %v9883, %v10147
        %10149 = vmatmul.mubr.f32.gmra.mrb[0].mxu0 %v10148
        %v10150 = vpop.f32.mrb[0].mxu0
        %v10151 = vadd.f32 %v10065, %v10150
        %v10152 = vpop.f32.mrb[0].mxu0
        %10153 = vmatprep.mubr.f32.mxu0 0.0
        %v10154 = vand.u32 %v9886, 4294901760
        %v10155 = vsub.f32 %v9886, %v10154
        %10156 = vmatmul.mubr.f32.gmra.mrb[0].mxu0 %v10155
        %v10157 = vpop.f32.mrb[0].mxu0
        %v10158 = vadd.f32 %v10071, %v10157
        %v10159 = vpop.f32.mrb[0].mxu0
        %10160 = vdwg.mxu0
        %10161 = vmatprep.subr.mxu0 0.0
        %v10162 = vand.u32 %v9878, 4294901760
        %10163 = vmatpush1.msra.mxu0 %v10162
        %10164 = vmatprep.subr.mxu0 0.0
        %v10165 = vand.u32 %v9879, 4294901760
        %10166 = vmatpush1.msra.mxu0 %v10165
        %10167 = vmatprep.subr.mxu0 0.0
        %v10168 = vand.u32 %v9880, 4294901760
        %10169 = vmatpush1.msra.mxu0 %v10168
        %10170 = vmatprep.subr.mxu0 0.0
        %v10171 = vand.u32 %v9881, 4294901760
        %10172 = vmatpush1.msra.mxu0 %v10171
        %10173 = vmatprep.subr.mxu0 0.0
        %10174 = vmatpush1.msra.mxu0 0.0
        %10175 = vmatprep.subr.mxu0 0.0
        %10176 = vmatpush1.msra.mxu0 0.0
        %10177 = vmatprep.subr.mxu0 0.0
        %10178 = vmatpush1.msra.mxu0 0.0
        %10179 = vmatprep.subr.mxu0 0.0
        %10180 = vmatpush1.msra.mxu0 0.0
        %10181 = vmatprep.subr.mxu0 0.0
        %10182 = vmatpush1.msra.mxu0 0.0
        %10183 = vmatprep.subr.mxu0 0.0
        %10184 = vmatpush1.msra.mxu0 0.0
        %10185 = vmatprep.subr.mxu0 0.0
        %10186 = vmatpush1.msra.mxu0 0.0
        %10187 = vmatprep.subr.mxu0 0.0
        %10188 = vmatpush1.msra.mxu0 0.0
        %10189 = vmatprep.subr.mxu0 0.0
        %10190 = vmatpush1.msra.mxu0 0.0
        %10191 = vmatprep.subr.mxu0 0.0
        %10192 = vmatpush1.msra.mxu0 0.0
        %10193 = vmatprep.subr.mxu0 0.0
        %10194 = vmatpush1.msra.mxu0 0.0
        %10195 = vmatprep.subr.mxu0 0.0
        %10196 = vmatpush1.msra.mxu0 0.0
        %10197 = vmatprep.subr.mxu0 0.0
        %10198 = vmatpush1.msra.mxu0 0.0
        %10199 = vmatprep.subr.mxu0 0.0
        %10200 = vmatpush1.msra.mxu0 0.0
        %10201 = vmatprep.subr.mxu0 0.0
        %10202 = vmatpush1.msra.mxu0 0.0
        %10203 = vmatprep.subr.mxu0 0.0
        %10204 = vmatpush1.msra.mxu0 0.0
        %10205 = vmatprep.subr.mxu0 0.0
        %10206 = vmatpush1.msra.mxu0 0.0
        %10207 = vmatprep.subr.mxu0 0.0
        %10208 = vmatpush1.msra.mxu0 0.0
        %10209 = vmatprep.subr.mxu0 0.0
        %10210 = vmatpush1.msra.mxu0 0.0
        %10211 = vmatprep.subr.mxu0 0.0
        %10212 = vmatpush1.msra.mxu0 0.0
        %10213 = vmatprep.subr.mxu0 0.0
        %10214 = vmatpush1.msra.mxu0 0.0
        %10215 = vmatprep.subr.mxu0 0.0
        %10216 = vmatpush1.msra.mxu0 0.0
        %10217 = vmatprep.subr.mxu0 0.0
        %10218 = vmatpush1.msra.mxu0 0.0
        %10219 = vmatprep.subr.mxu0 0.0
        %10220 = vmatpush1.msra.mxu0 0.0
        %10221 = vmatprep.subr.mxu0 0.0
        %10222 = vmatpush1.msra.mxu0 0.0
        %10223 = vmatprep.subr.mxu0 0.0
        %10224 = vmatpush1.msra.mxu0 0.0
        %10225 = vmatprep.subr.mxu0 0.0
        %10226 = vmatpush1.msra.mxu0 0.0
        %10227 = vmatprep.subr.mxu0 0.0
        %10228 = vmatpush1.msra.mxu0 0.0
        %10229 = vmatprep.mubr.f32.mxu0 0.0
        %v10230 = vand.u32 %v9883, 4294901760
        %v10231 = vsub.f32 %v9883, %v10230
        %v10232 = vand.u32 %v10231, 4294901760
        %10233 = vmatmul.mubr.f32.gmra.mrb[0].mxu0 %v10232
        %v10234 = vpop.f32.mrb[0].mxu0
        %v10235 = vadd.f32 %v10151, %v10234
        %v10236 = vpop.f32.mrb[0].mxu0
        %10237 = vmatprep.mubr.f32.mxu0 0.0
        %v10238 = vand.u32 %v9886, 4294901760
        %v10239 = vsub.f32 %v9886, %v10238
        %v10240 = vand.u32 %v10239, 4294901760
        %10241 = vmatmul.mubr.f32.gmra.mrb[0].mxu0 %v10240
        %v10242 = vpop.f32.mrb[0].mxu0
        %v10243 = vadd.f32 %v10158, %v10242
        %v10244 = vpop.f32.mrb[0].mxu0
        %10245 = vdwg.mxu0
        %10246 = vmatprep.subr.mxu0 0.0
        %v10247 = vand.u32 %v9878, 4294901760
        %v10248 = vsub.f32 %v9878, %v10247
        %v10249 = vand.u32 %v10248, 4294901760
        %10250 = vmatpush1.msra.mxu0 %v10249
        %10251 = vmatprep.subr.mxu0 0.0
        %v10252 = vand.u32 %v9879, 4294901760
        %v10253 = vsub.f32 %v9879, %v10252
        %v10254 = vand.u32 %v10253, 4294901760
        %10255 = vmatpush1.msra.mxu0 %v10254
        %10256 = vmatprep.subr.mxu0 0.0
        %v10257 = vand.u32 %v9880, 4294901760
        %v10258 = vsub.f32 %v9880, %v10257
        %v10259 = vand.u32 %v10258, 4294901760
        %10260 = vmatpush1.msra.mxu0 %v10259
        %10261 = vmatprep.subr.mxu0 0.0
        %v10262 = vand.u32 %v9881, 4294901760
        %v10263 = vsub.f32 %v9881, %v10262
        %v10264 = vand.u32 %v10263, 4294901760
        %10265 = vmatpush1.msra.mxu0 %v10264
        %10266 = vmatprep.subr.mxu0 0.0
        %10267 = vmatpush1.msra.mxu0 0.0
        %10268 = vmatprep.subr.mxu0 0.0
        %10269 = vmatpush1.msra.mxu0 0.0
        %10270 = vmatprep.subr.mxu0 0.0
        %10271 = vmatpush1.msra.mxu0 0.0
        %10272 = vmatprep.subr.mxu0 0.0
        %10273 = vmatpush1.msra.mxu0 0.0
        %10274 = vmatprep.subr.mxu0 0.0
        %10275 = vmatpush1.msra.mxu0 0.0
        %10276 = vmatprep.subr.mxu0 0.0
        %10277 = vmatpush1.msra.mxu0 0.0
        %10278 = vmatprep.subr.mxu0 0.0
        %10279 = vmatpush1.msra.mxu0 0.0
        %10280 = vmatprep.subr.mxu0 0.0
        %10281 = vmatpush1.msra.mxu0 0.0
        %10282 = vmatprep.subr.mxu0 0.0
        %10283 = vmatpush1.msra.mxu0 0.0
        %10284 = vmatprep.subr.mxu0 0.0
        %10285 = vmatpush1.msra.mxu0 0.0
        %10286 = vmatprep.subr.mxu0 0.0
        %10287 = vmatpush1.msra.mxu0 0.0
        %10288 = vmatprep.subr.mxu0 0.0
        %10289 = vmatpush1.msra.mxu0 0.0
        %10290 = vmatprep.subr.mxu0 0.0
        %10291 = vmatpush1.msra.mxu0 0.0
        %10292 = vmatprep.subr.mxu0 0.0
        %10293 = vmatpush1.msra.mxu0 0.0
        %10294 = vmatprep.subr.mxu0 0.0
        %10295 = vmatpush1.msra.mxu0 0.0
        %10296 = vmatprep.subr.mxu0 0.0
        %10297 = vmatpush1.msra.mxu0 0.0
        %10298 = vmatprep.subr.mxu0 0.0
        %10299 = vmatpush1.msra.mxu0 0.0
        %10300 = vmatprep.subr.mxu0 0.0
        %10301 = vmatpush1.msra.mxu0 0.0
        %10302 = vmatprep.subr.mxu0 0.0
        %10303 = vmatpush1.msra.mxu0 0.0
        %10304 = vmatprep.subr.mxu0 0.0
        %10305 = vmatpush1.msra.mxu0 0.0
        %10306 = vmatprep.subr.mxu0 0.0
        %10307 = vmatpush1.msra.mxu0 0.0
        %10308 = vmatprep.subr.mxu0 0.0
        %10309 = vmatpush1.msra.mxu0 0.0
        %10310 = vmatprep.subr.mxu0 0.0
        %10311 = vmatpush1.msra.mxu0 0.0
        %10312 = vmatprep.subr.mxu0 0.0
        %10313 = vmatpush1.msra.mxu0 0.0
        %10314 = vmatprep.subr.mxu0 0.0
        %10315 = vmatpush1.msra.mxu0 0.0
        %10316 = vmatprep.subr.mxu0 0.0
        %10317 = vmatpush1.msra.mxu0 0.0
        %10318 = vmatprep.subr.mxu0 0.0
        %10319 = vmatpush1.msra.mxu0 0.0
        %10320 = vmatprep.subr.mxu0 0.0
        %10321 = vmatpush1.msra.mxu0 0.0
        %10322 = vmatprep.mubr.f32.mxu0 0.0
        %v10323 = vand.u32 %v9883, 4294901760
        %10324 = vmatmul.mubr.f32.gmra.mrb[0].mxu0 %v10323
        %v10325 = vpop.f32.mrb[0].mxu0
        %v10326 = vadd.f32 %v10235, %v10325
        %v10327 = vpop.f32.mrb[0].mxu0
        %10328 = vmatprep.mubr.f32.mxu0 0.0
        %v10329 = vand.u32 %v9886, 4294901760
        %10330 = vmatmul.mubr.f32.gmra.mrb[0].mxu0 %v10329
        %v10331 = vpop.f32.mrb[0].mxu0
        %v10332 = vadd.f32 %v10243, %v10331
        %v10333 = vpop.f32.mrb[0].mxu0
        %10334 = vdwg.mxu0
        %10335 = vmatprep.subr.mxu0 0.0
        %v10336 = vand.u32 %v9878, 4294901760
        %10337 = vmatpush1.msra.mxu0 %v10336
        %10338 = vmatprep.subr.mxu0 0.0
        %v10339 = vand.u32 %v9879, 4294901760
        %10340 = vmatpush1.msra.mxu0 %v10339
        %10341 = vmatprep.subr.mxu0 0.0
        %v10342 = vand.u32 %v9880, 4294901760
        %10343 = vmatpush1.msra.mxu0 %v10342
        %10344 = vmatprep.subr.mxu0 0.0
        %v10345 = vand.u32 %v9881, 4294901760
        %10346 = vmatpush1.msra.mxu0 %v10345
        %10347 = vmatprep.subr.mxu0 0.0
        %10348 = vmatpush1.msra.mxu0 0.0
        %10349 = vmatprep.subr.mxu0 0.0
        %10350 = vmatpush1.msra.mxu0 0.0
        %10351 = vmatprep.subr.mxu0 0.0
        %10352 = vmatpush1.msra.mxu0 0.0
        %10353 = vmatprep.subr.mxu0 0.0
        %10354 = vmatpush1.msra.mxu0 0.0
        %10355 = vmatprep.subr.mxu0 0.0
        %10356 = vmatpush1.msra.mxu0 0.0
        %10357 = vmatprep.subr.mxu0 0.0
        %10358 = vmatpush1.msra.mxu0 0.0
        %10359 = vmatprep.subr.mxu0 0.0
        %10360 = vmatpush1.msra.mxu0 0.0
        %10361 = vmatprep.subr.mxu0 0.0
        %10362 = vmatpush1.msra.mxu0 0.0
        %10363 = vmatprep.subr.mxu0 0.0
        %10364 = vmatpush1.msra.mxu0 0.0
        %10365 = vmatprep.subr.mxu0 0.0
        %10366 = vmatpush1.msra.mxu0 0.0
        %10367 = vmatprep.subr.mxu0 0.0
        %10368 = vmatpush1.msra.mxu0 0.0
        %10369 = vmatprep.subr.mxu0 0.0
        %10370 = vmatpush1.msra.mxu0 0.0
        %10371 = vmatprep.subr.mxu0 0.0
        %10372 = vmatpush1.msra.mxu0 0.0
        %10373 = vmatprep.subr.mxu0 0.0
        %10374 = vmatpush1.msra.mxu0 0.0
        %10375 = vmatprep.subr.mxu0 0.0
        %10376 = vmatpush1.msra.mxu0 0.0
        %10377 = vmatprep.subr.mxu0 0.0
        %10378 = vmatpush1.msra.mxu0 0.0
        %10379 = vmatprep.subr.mxu0 0.0
        %10380 = vmatpush1.msra.mxu0 0.0
        %10381 = vmatprep.subr.mxu0 0.0
        %10382 = vmatpush1.msra.mxu0 0.0
        %10383 = vmatprep.subr.mxu0 0.0
        %10384 = vmatpush1.msra.mxu0 0.0
        %10385 = vmatprep.subr.mxu0 0.0
        %10386 = vmatpush1.msra.mxu0 0.0
        %10387 = vmatprep.subr.mxu0 0.0
        %10388 = vmatpush1.msra.mxu0 0.0
        %10389 = vmatprep.subr.mxu0 0.0
        %10390 = vmatpush1.msra.mxu0 0.0
        %10391 = vmatprep.subr.mxu0 0.0
        %10392 = vmatpush1.msra.mxu0 0.0
        %10393 = vmatprep.subr.mxu0 0.0
        %10394 = vmatpush1.msra.mxu0 0.0
        %10395 = vmatprep.subr.mxu0 0.0
        %10396 = vmatpush1.msra.mxu0 0.0
        %10397 = vmatprep.subr.mxu0 0.0
        %10398 = vmatpush1.msra.mxu0 0.0
        %10399 = vmatprep.subr.mxu0 0.0
        %10400 = vmatpush1.msra.mxu0 0.0
        %10401 = vmatprep.subr.mxu0 0.0
        %10402 = vmatpush1.msra.mxu0 0.0
        %10403 = vmatprep.mubr.f32.mxu0 0.0
        %v10404 = vand.u32 %v9883, 4294901760
        %10405 = vmatmul.mubr.f32.gmra.mrb[0].mxu0 %v10404
        %v10406 = vpop.f32.mrb[0].mxu0
        %v10407 = vadd.f32 %v10326, %v10406
        %v10408 = vpop.f32.mrb[0].mxu0
        %10409 = vmatprep.mubr.f32.mxu0 0.0
        %v10410 = vand.u32 %v9886, 4294901760
        %10411 = vmatmul.mubr.f32.gmra.mrb[0].mxu0 %v10410
        %v10412 = vpop.f32.mrb[0].mxu0
        %v10413 = vadd.f32 %v10332, %v10412
        %v10414 = vpop.f32.mrb[0].mxu0
        %10415 = vdwg.mxu0
        %v10416 = vadd.f32 %v8817, %v10407
        %v10417 = vadd.f32 %v8818, %v10413
        %v10418 = vld [vmem:[%s575] sm:$0xff]
        %v10419 = vld [vmem:[%s575 + $0x8] sm:$0xff]
        %v10420 = vadd.f32 %v10416, %v10418
        %v10421 = vadd.f32 %v10417, %v10419
        %v10422 = vld [vmem:[%s13] sm:$0x1]
        %v10424 = vlaneseq
        %v10425 = vshrl.u32 %v10424, 7
        %v10426 = vsub.s32 0, %v10425
        %v10427 = vrot.slane %v10422, %v10426
        %v10429 = vmul.f32 %v10427, %v10420
        %v10430 = vmul.f32 %v10427, %v10421
        %v10431 = vld [vmem:[%s14] sm:$0x1]
        %v10433 = vlaneseq
        %v10434 = vshrl.u32 %v10433, 7
        %v10435 = vsub.s32 0, %v10434
        %v10436 = vrot.slane %v10431, %v10435
        %v10438 = vadd.f32 %v10429, %v10436
        %v10439 = vadd.f32 %v10430, %v10436
        %10440 = vst [vmem:[%s673] sm:$0xff] %v10438
        %10441 = vst [vmem:[%s673 + $0x8] sm:$0xff] %v10439
        %s10442 = sand.u32 %s385, 1
        %s10443 = scalar_lea.sflag [#allocation4], %s10442
        %s10444 = sand.u32 %s385, 1
        %s10445 = smul.addr %s10444, 16
        %s10446 = scalar_lea.vmem [#allocation14], %s10445
        // Predicated region
        $region109: #{bert_attention.1} parent=79 // pred_check
          %p10447 = pneg %p395
        $region110: #{bert_attention.1} parent=79 // pred_check_branch
          %10449 = sbr.rel (%p10447) target = $region112
        $region111: #{bert_attention.1} parent=79 // pred_region
          %s10451 = ssub.s32 256, 256
          %10452 = vsyncadd %s10443, %s10451
          %s10453 = smul.addr %s37, 2
          %s10454 = smul.addr %s10453, 128
          %s10455 = scalar_lea.hbm %s15, %s10454
          %s10456 = sshll.u32 %s10446, 4
          %s10457 = int_to_ptr.vmem [resolvable:$true] %s10456
          %10462 = dma.vmem_to_hbm [thread:$0]  %s10457, 256, %s10455, %s10443, 128, 128, 8
        $region112: #{bert_attention.1} parent=79 // pred_fallthru
          _
      $region80: #{bert_attention.1} parent=5 // pred_fallthru
        _
      %p10463 = scmp.le.s32.totalorder 2, %s32
      // Predicated region
      $region113: #{bert_attention.1} parent=5 // pred_check
        %p10464 = pneg %p10463
      $region114: #{bert_attention.1} parent=5 // pred_check_branch
        %10466 = sbr.rel (%p10464) target = $region116
      $region115: #{bert_attention.1} parent=5 // pred_region
        %s10467 = ssub.s32 %s32, 2
        // Predicated region
        $region117: #{bert_attention.1} parent=115 // pred_check
          %p10468 = pneg %p401
        $region118: #{bert_attention.1} parent=115 // pred_check_branch
          %10470 = sbr.rel (%p10468) target = $region120
        $region119: #{bert_attention.1} parent=115 // pred_region
          %s10471 = sand.u32 %s386, 1
          %s10472 = scalar_lea.sflag [#allocation4], %s10471
          %s10473 = sand.u32 %s386, 1
          %s10474 = smul.addr %s10473, 16
          %s10475 = scalar_lea.vmem [#allocation14], %s10474
          %10476 = dma.done %s10472, 256
        $region120: #{bert_attention.1} parent=115 // pred_fallthru
          _
      $region116: #{bert_attention.1} parent=5 // pred_fallthru
        _
    $region6: #{bert_attention.1} parent=1 // loop_footer
      %s36 = sadd.s32 1, %s32
    $region7: #{bert_attention.1} parent=1 // loop_footer_branch
      %31 = sbr.rel target = $region3
    $region8: #{bert_attention.1} parent=1 // loop_exit
      _
    %10477 = vsyncpa [#allocation3], 1
    %s10478 = scalar_lea.sflag [#allocation3], 1
    %10479 = vsyncpa %s10478, 1
    %10480 = vsyncpa [#allocation6], 1
    %s10481 = scalar_lea.sflag [#allocation6], 1
    %10482 = vsyncpa %s10481, 1
    %10483 = vsyncpa [#allocation9], 1
    %10484 = vsyncpa [#allocation12], 1
    %10485 = vsyncpa [#allocation4], 1
    %s10486 = scalar_lea.sflag [#allocation4], 1
    %10487 = vsyncpa %s10486, 1

</llo_original>
